<compile_context>
chip_gen: v7x
topology: tpu7x:2x2x1
jax: 0.10.0
libtpu: 0.0.40
codegen_flags: <defaults>
</compile_context>

<pallas_src>
import functools
import math

import jax
import jax.numpy as jnp
import numpy as np
from jax.experimental import pallas as pl
from jax.experimental.pallas import tpu as pltpu


# ----------------------------------------------------------------------------
# Configuration (small, consistent with the module's __init__)
# ----------------------------------------------------------------------------
CFG = dict(
    batch=2,
    target_dim=16,
    context_length=8,
    prediction_length=4,
    lags_seq=[1, 2, 4],
    num_time_features=4,      # input_size - target_dim
    num_cells=32,             # transformer hidden size
    num_layers=2,
    num_heads=4,
    conditioning_length=32,
    diff_steps=10,
    beta_end=0.1,
    residual_layers=3,
    residual_channels=8,
    dilation_cycle_length=2,
    embed_dim=1,
    time_emb_dim=16,          # EpsilonTheta DiffusionEmbedding dim
    residual_hidden=64,       # EpsilonTheta hidden size of diffusion embedding
)
CFG["history_length"] = CFG["context_length"] + max(CFG["lags_seq"])
CFG["input_size"] = CFG["target_dim"] + CFG["num_time_features"]


def _full_spec(shape):
    """Whole-array block, identical for every grid step."""
    nd = len(shape)
    return pl.BlockSpec(shape, lambda *_: (0,) * nd)


# ----------------------------------------------------------------------------
# Fused encoder kernel: value proj + pos-enc + N layers + distr-args proj,
# batch folded into the row axis (B*T rows).
# ----------------------------------------------------------------------------
def _encoder_kernel(x_ref, mask_ref, pe_ref, valw_ref, valb_ref,
                    wqkv_ref, bqkv_ref, wo_ref, bo_ref,
                    ln1g_ref, ln1b_ref, w1_ref, b1_ref, w2_ref, b2_ref,
                    ln2g_ref, ln2b_ref, projw_ref, projb_ref, o_ref,
                    *, num_layers, num_heads, eps):
    f32 = jnp.float32
    bf16 = jnp.bfloat16

    def mm(a, w):
        return jnp.dot(a.astype(bf16), w, preferred_element_type=f32)

    def layernorm(v, g, b):
        mu = jnp.mean(v, axis=-1, keepdims=True)
        vc = v - mu
        var = jnp.mean(vc * vc, axis=-1, keepdims=True)
        return vc * jax.lax.rsqrt(var + eps) * g + b

    # value projection + (tiled) positional encoding
    x = mm(x_ref[...], valw_ref[...]) + valb_ref[...] + pe_ref[...]   # (N, H)
    N, H = x.shape
    dh = H // num_heads
    scale = 1.0 / math.sqrt(dh)
    neg_mask = mask_ref[...]                                          # (N, N)

    for li in range(num_layers):
        # fused QKV projection (weights stacked along N)
        qkv = mm(x, wqkv_ref[li]) + bqkv_ref[li]                      # (N, 3H)
        qh = jnp.transpose(qkv[:, :H].reshape(N, num_heads, dh), (1, 0, 2))
        kh = jnp.transpose(qkv[:, H:2 * H].reshape(N, num_heads, dh), (1, 0, 2))
        vh = jnp.transpose(qkv[:, 2 * H:].reshape(N, num_heads, dh), (1, 0, 2))

        # batched-head attention; block-diagonal mask keeps batches separate
        s = jnp.einsum('hqd,hkd->hqk', qh.astype(bf16), kh.astype(bf16),
                       preferred_element_type=f32) * scale
        s = s + neg_mask                                              # (nh, N, N)
        s = s - jnp.max(s, axis=-1, keepdims=True)
        p = jnp.exp(s)
        p = p / jnp.sum(p, axis=-1, keepdims=True)                    # exact div
        attn = jnp.einsum('hqk,hkd->hqd', p.astype(bf16), vh.astype(bf16),
                          preferred_element_type=f32)
        attn = jnp.transpose(attn, (1, 0, 2)).reshape(N, H)

        attn = mm(attn, wo_ref[li]) + bo_ref[li]
        x = layernorm(x + attn, ln1g_ref[li], ln1b_ref[li])

        hmid = jax.nn.gelu(mm(x, w1_ref[li]) + b1_ref[li])
        ff = mm(hmid, w2_ref[li]) + b2_ref[li]
        x = layernorm(x + ff, ln2g_ref[li], ln2b_ref[li])

    # distr-args projection fused into the same kernel
    o_ref[...] = mm(x, projw_ref[...]) + projb_ref[...]


def encoder_pallas(prep, inputs_flat):
    """inputs_flat: (B*T, in_dim) -> distr_args_flat (B*T, cond_len)."""
    N, in_dim = inputs_flat.shape
    cond_len = CFG["conditioning_length"]
    H = CFG["num_cells"]
    nh = CFG["num_heads"]
    nl = CFG["num_layers"]
    w = prep["enc"]

    args = [inputs_flat.astype(jnp.float32), w["attn_mask"], w["pe"],
            w["val_w"], w["val_b"],
            w["wqkv"], w["bqkv"], w["wo"], w["bo"],
            w["ln1g"], w["ln1b"], w["w1"], w["b1"], w["w2"], w["b2"],
            w["ln2g"], w["ln2b"], w["proj_w"], w["proj_b"]]

    kernel = functools.partial(_encoder_kernel,
                               num_layers=nl, num_heads=nh, eps=1e-5)

    flops = 2 * N * in_dim * H
    flops += nl * (2 * N * H * 3 * H          # QKV
                   + 2 * (2 * nh * N * N * (H // nh))   # scores + p@v
                   + 2 * N * H * H            # out proj
                   + 2 * (2 * N * H * 2 * H))  # FFN
    flops += 2 * N * H * cond_len
    trans = nl * (nh * N * N + 2 * N * 2 * H)
    bytes_acc = sum(int(a.size) * a.dtype.itemsize for a in args) + N * cond_len * 4

    return pl.pallas_call(
        kernel,
        grid=(1,),
        in_specs=[_full_spec(a.shape) for a in args],
        out_specs=_full_spec((N, cond_len)),
        out_shape=jax.ShapeDtypeStruct((N, cond_len), jnp.float32),
        cost_estimate=pl.CostEstimate(flops=int(flops),
                                      transcendentals=int(trans),
                                      bytes_accessed=int(bytes_acc)),
    )(*args)


# ----------------------------------------------------------------------------
# Fused EpsilonTheta + diffusion L2 loss kernel.
# Layout: rows = diffusion batch N = B*T, lanes = channel*position.
# All convolutions pre-folded into dense (transposed) matrices.
# ----------------------------------------------------------------------------
def _eps_theta_kernel(xs_ref, nz_ref, sa_ref, sb_ref, emb0_ref, cond_ref,
                      pin_ref, bin_ref, dew1_ref, deb1_ref, dew2_ref, deb2_ref,
                      cuw1_ref, cub1_ref, cuw2_ref, cub2_ref,
                      wgf_ref, bgf_ref, cgf_ref, b1gf_ref,
                      wrs_ref, b2rs_ref,
                      wskip_ref, bskip_ref, woutc_ref, boutc_ref,
                      o_ref, *, num_res):
    f32 = jnp.float32
    bf16 = jnp.bfloat16

    def mm(a, w):
        return jnp.dot(a.astype(bf16), w, preferred_element_type=f32)

    def leaky(v):                                  # F.leaky_relu(x, 0.4)
        return jnp.where(v >= 0.0, v, 0.4 * v)

    noise = nz_ref[...]                            # (N, D)
    # q_sample: x_noisy = sqrt(ac)*x0 + sqrt(1-ac)*noise
    xn = sa_ref[...] * xs_ref[...] + sb_ref[...] * noise              # (N, D)

    # diffusion-step embedding MLP (SiLU)                               (N, RH)
    emb = mm(emb0_ref[...], dew1_ref[...]) + deb1_ref[...]
    emb = emb * jax.nn.sigmoid(emb)
    emb = mm(emb, dew2_ref[...]) + deb2_ref[...]
    emb = emb * jax.nn.sigmoid(emb)

    # conditioning upsampler                                            (N, D)
    cu = leaky(mm(cond_ref[...], cuw1_ref[...]) + cub1_ref[...])
    cu = leaky(mm(cu, cuw2_ref[...]) + cub2_ref[...])

    # input projection (circular pad + 1x1 conv folded into pin)        (N, C*L)
    x = leaky(mm(xn, pin_ref[...]) + bin_ref[...])

    emb_b = emb.astype(bf16)
    cu_b = cu.astype(bf16)

    inv_sqrt2 = 1.0 / math.sqrt(2.0)
    skip_acc = jnp.zeros_like(x)
    for i in range(num_res):
        xb = x.astype(bf16)
        # dilated circular conv + diffusion-step + conditioner + biases,
        # pre-split into gate / filter halves (no mid-vreg lane slicing).
        yg = (jnp.dot(xb, wgf_ref[i, 0], preferred_element_type=f32)
              + jnp.dot(emb_b, bgf_ref[i, 0], preferred_element_type=f32)
              + jnp.dot(cu_b, cgf_ref[i, 0], preferred_element_type=f32)
              + b1gf_ref[i, 0])
        yf = (jnp.dot(xb, wgf_ref[i, 1], preferred_element_type=f32)
              + jnp.dot(emb_b, bgf_ref[i, 1], preferred_element_type=f32)
              + jnp.dot(cu_b, cgf_ref[i, 1], preferred_element_type=f32)
              + b1gf_ref[i, 1])
        gated = jax.nn.sigmoid(yg) * jnp.tanh(yf)                     # (N, C*L)
        gb = gated.astype(bf16)
        res = leaky(jnp.dot(gb, wrs_ref[i, 0], preferred_element_type=f32)
                    + b2rs_ref[i, 0])
        skp = leaky(jnp.dot(gb, wrs_ref[i, 1], preferred_element_type=f32)
                    + b2rs_ref[i, 1])
        x = (x + res) * inv_sqrt2
        skip_acc = skip_acc + skp

    x = skip_acc * (1.0 / math.sqrt(num_res))
    y = leaky(mm(x, wskip_ref[...]) + bskip_ref[...])                 # (N, C*(L-2))
    eps = mm(y, woutc_ref[...]) + boutc_ref[...]                      # (N, D)

    d = eps - noise
    o_ref[...] = jnp.sum(d * d, axis=(0, 1), keepdims=True)


def eps_theta_loss_pallas(prep, x_start, noise, sa, sb, emb0, cond):
    """Diffusion L2 loss (F.mse_loss) for one random timestep per sample."""
    m = prep["eps"]
    args = [x_start, noise, sa[:, None], sb[:, None], emb0, cond,
            m["pin"], m["b_in"],
            m["de_w1"], m["de_b1"], m["de_w2"], m["de_b2"],
            m["cu_w1"], m["cu_b1"], m["cu_w2"], m["cu_b2"],
            m["W_gf"], m["B_gf"], m["C_gf"], m["b1_gf"],
            m["W_rs"], m["b2_rs"],
            m["W_skipT"], m["b_skip"], m["W_outcT"], m["b_outc"]]

    N, D = x_start.shape
    C = CFG["residual_channels"]
    L = D + 4
    CL = C * L
    RH = CFG["residual_hidden"]
    TE = CFG["time_emb_dim"]
    cond_len = CFG["conditioning_length"]
    nres = CFG["residual_layers"]

    flops = 2 * N * D * CL                                   # input proj
    flops += nres * (2 * (2 * N * CL * CL)                   # gate/filter @ x
                     + 2 * (2 * N * RH * CL)                 # @ emb
                     + 2 * (2 * N * D * CL)                  # @ cond
                     + 2 * (2 * N * CL * CL))                # res/skip out proj
    flops += 2 * N * CL * (C * (L - 2)) + 2 * N * (C * (L - 2)) * D
    flops += 2 * N * (2 * TE) * RH + 2 * N * RH * RH
    flops += 2 * N * cond_len * (D // 2) + 2 * N * (D // 2) * D
    trans = nres * 2 * N * CL + 4 * N * RH
    bytes_acc = sum(int(a.size) * a.dtype.itemsize for a in args) + 4

    kernel = functools.partial(_eps_theta_kernel, num_res=nres)
    sse = pl.pallas_call(
        kernel,
        grid=(1,),
        in_specs=[_full_spec(a.shape) for a in args],
        out_specs=_full_spec((1, 1)),
        out_shape=jax.ShapeDtypeStruct((1, 1), jnp.float32),
        cost_estimate=pl.CostEstimate(flops=int(flops),
                                      transcendentals=int(trans),
                                      bytes_accessed=int(bytes_acc)),
    )(*args)
    return sse[0, 0] / x_start.size


# ----------------------------------------------------------------------------
# Glue helpers (plain JAX, outside the hot path)
# ----------------------------------------------------------------------------
def get_lagged_subsequences(sequence, sequence_length, indices, subsequences_length):
    lagged = []
    for lag in indices:
        begin = sequence_length - lag - subsequences_length
        end = sequence_length - lag
        lagged.append(sequence[:, begin:end, ...][:, None])
    out = jnp.concatenate(lagged, axis=1)            # (B, n_lags, sub, D)
    return jnp.transpose(out, (0, 2, 3, 1))          # (B, sub, D, n_lags)


def mean_scaler(data, observed, keepdim=True):
    """pts MeanScaler semantics."""
    num_observed = observed.sum(axis=1)                          # (B, D)
    sum_observed = (jnp.abs(data) * observed).sum(axis=1)        # (B, D)
    total_observed = num_observed.sum(axis=0)                    # (D,)
    default_scale = sum_observed.sum(axis=0) / jnp.maximum(total_observed, 1.0)
    scale = sum_observed / jnp.maximum(num_observed, 1.0)
    scale = jnp.where(sum_observed > 0, scale, default_scale[None, :])
    scale = jnp.maximum(scale, 1.0)
    if keepdim:
        scale = scale[:, None, :]                                # (B, 1, D)
    return data / scale, scale


# ----------------------------------------------------------------------------
# Parameter init (deterministic, synthetic)
# ----------------------------------------------------------------------------
def init_params(key):
    p = {}
    keys = iter(jax.random.split(key, 256))

    def nrm(shape, scale=0.05):
        return scale * jax.random.normal(next(keys), shape, dtype=jnp.float32)

    H = CFG["num_cells"]
    D = CFG["target_dim"]
    F = CFG["num_time_features"]
    n_lags = len(CFG["lags_seq"])
    in_dim = n_lags * D + D * CFG["embed_dim"] + F
    cond_len = CFG["conditioning_length"]
    C = CFG["residual_channels"]
    RH = CFG["residual_hidden"]
    TE = CFG["time_emb_dim"]

    # target-dimension index embedding (nn.Embedding(target_dim, 1))
    p["embed"] = nrm((D, CFG["embed_dim"]), 1.0)

    # transformer-encoder proxy for tst_encoder
    p["val_w"] = nrm((in_dim, H)); p["val_b"] = jnp.zeros((H,), jnp.float32)
    p["layers"] = []
    for _ in range(CFG["num_layers"]):
        p["layers"].append(dict(
            wq=nrm((H, H)), bq=jnp.zeros((H,), jnp.float32),
            wk=nrm((H, H)), bk=jnp.zeros((H,), jnp.float32),
            wv=nrm((H, H)), bv=jnp.zeros((H,), jnp.float32),
            wo=nrm((H, H)), bo=jnp.zeros((H,), jnp.float32),
            ln1_g=jnp.ones((H,), jnp.float32), ln1_b=jnp.zeros((H,), jnp.float32),
            ln2_g=jnp.ones((H,), jnp.float32), ln2_b=jnp.zeros((H,), jnp.float32),
            w1=nrm((H, 2 * H)), b1=jnp.zeros((2 * H,), jnp.float32),
            w2=nrm((2 * H, H)), b2=jnp.zeros((H,), jnp.float32),
        ))

    # proj_dist_args : Linear(num_cells -> conditioning_length)
    p["proj_w"] = nrm((H, cond_len)); p["proj_b"] = jnp.zeros((cond_len,), jnp.float32)

    # EpsilonTheta (denoise_fn)
    p["inp_w"] = nrm((1, C)); p["inp_b"] = jnp.zeros((C,), jnp.float32)
    p["de_w1"] = nrm((2 * TE, RH)); p["de_b1"] = jnp.zeros((RH,), jnp.float32)
    p["de_w2"] = nrm((RH, RH)); p["de_b2"] = jnp.zeros((RH,), jnp.float32)
    p["cu_w1"] = nrm((cond_len, D // 2)); p["cu_b1"] = jnp.zeros((D // 2,), jnp.float32)
    p["cu_w2"] = nrm((D // 2, D)); p["cu_b2"] = jnp.zeros((D,), jnp.float32)
    p["res"] = []
    for _ in range(CFG["residual_layers"]):
        p["res"].append(dict(
            dil_w=nrm((3 * C, 2 * C)), dil_b=jnp.zeros((2 * C,), jnp.float32),
            dif_w=nrm((RH, C)), dif_b=jnp.zeros((C,), jnp.float32),
            con_w=nrm((1, 2 * C)), con_b=jnp.zeros((2 * C,), jnp.float32),
            out_w=nrm((C, 2 * C)), out_b=jnp.zeros((2 * C,), jnp.float32),
        ))
    p["skip_w"] = nrm((3 * C, C)); p["skip_b"] = jnp.zeros((C,), jnp.float32)
    p["out_w"] = nrm((3 * C, 1)); p["out_b"] = jnp.zeros((1,), jnp.float32)

    # GaussianDiffusion linear beta schedule
    betas = np.linspace(1e-4, CFG["beta_end"], CFG["diff_steps"], dtype=np.float64)
    ac = np.cumprod(1.0 - betas)
    p["sqrt_ac"] = jnp.asarray(np.sqrt(ac), jnp.float32)
    p["sqrt_1mac"] = jnp.asarray(np.sqrt(1.0 - ac), jnp.float32)

    # DiffusionEmbedding sin/cos table
    steps = np.arange(CFG["diff_steps"])[:, None]
    dims = np.arange(TE)[None, :]
    table = steps * 10.0 ** (dims * 4.0 / TE)
    p["de_table"] = jnp.asarray(
        np.concatenate([np.sin(table), np.cos(table)], axis=1), jnp.float32)
    return p


# ----------------------------------------------------------------------------
# One-time weight preparation: stacking / transposing / folding the WaveNet
# convolutions into dense matrices in the (rows = batch, lanes = features)
# layout, with matmul operands cast to bf16.
# ----------------------------------------------------------------------------
def prepare(p):
    bf16 = jnp.bfloat16
    B = CFG["batch"]
    D = CFG["target_dim"]
    C = CFG["residual_channels"]
    L = D + 4                                    # length after input projection
    CL = C * L
    H = CFG["num_cells"]
    T = CFG["context_length"] + CFG["prediction_length"]
    N = B * T

    prep = {}

    # ---------------- encoder weights ----------------
    enc = {}
    pos = np.arange(T)[:, None]
    i = np.arange(H)[None, :]
    angle = pos / np.power(10000.0, (2 * (i // 2)) / H)
    pe = np.where(i % 2 == 0, np.sin(angle), np.cos(angle)).astype(np.float32)
    enc["pe"] = jnp.asarray(np.tile(pe, (B, 1)))                   # (B*T, H)

    # block-diagonal additive attention mask (keeps batches independent)
    bid = np.arange(N) // T
    mask = np.where(bid[:, None] == bid[None, :], 0.0, -1e9).astype(np.float32)
    enc["attn_mask"] = jnp.asarray(mask)                           # (N, N)

    enc["val_w"] = p["val_w"].astype(bf16)
    enc["val_b"] = p["val_b"][None, :]
    enc["wqkv"] = jnp.stack([jnp.concatenate([lp["wq"], lp["wk"], lp["wv"]], axis=1)
                             for lp in p["layers"]]).astype(bf16)
    enc["bqkv"] = jnp.stack([jnp.concatenate([lp["bq"], lp["bk"], lp["bv"]])[None, :]
                             for lp in p["layers"]])
    enc["wo"] = jnp.stack([lp["wo"] for lp in p["layers"]]).astype(bf16)
    enc["bo"] = jnp.stack([lp["bo"][None, :] for lp in p["layers"]])
    enc["ln1g"] = jnp.stack([lp["ln1_g"][None, :] for lp in p["layers"]])
    enc["ln1b"] = jnp.stack([lp["ln1_b"][None, :] for lp in p["layers"]])
    enc["w1"] = jnp.stack([lp["w1"] for lp in p["layers"]]).astype(bf16)
    enc["b1"] = jnp.stack([lp["b1"][None, :] for lp in p["layers"]])
    enc["w2"] = jnp.stack([lp["w2"] for lp in p["layers"]]).astype(bf16)
    enc["b2"] = jnp.stack([lp["b2"][None, :] for lp in p["layers"]])
    enc["ln2g"] = jnp.stack([lp["ln2_g"][None, :] for lp in p["layers"]])
    enc["ln2b"] = jnp.stack([lp["ln2_b"][None, :] for lp in p["layers"]])
    enc["proj_w"] = p["proj_w"].astype(bf16)
    enc["proj_b"] = p["proj_b"][None, :]
    prep["enc"] = enc

    # ---------------- EpsilonTheta folded matrices (transposed layout) -------
    eps = {}
    # circular-pad-by-2 selector: length-D signal -> length-L signal
    Ppad = np.zeros((L, D), np.float32)
    Ppad[np.arange(L), (np.arange(L) - 2) % D] = 1.0
    Ppad = jnp.asarray(Ppad)
    eye_L = jnp.asarray(np.eye(L, dtype=np.float32))
    # broadcast-over-position selector: per-channel scalar -> rows c*L+l
    T_mat = jnp.asarray(np.repeat(np.eye(C, dtype=np.float32), L, axis=0))  # (C*L, C)

    # input projection: rows (c, l) un-transposed, then transpose to (D, C*L)
    P_in = jnp.einsum("c,ld->cld", p["inp_w"][0], Ppad).reshape(CL, D)
    eps["pin"] = P_in.T.astype(bf16)
    eps["b_in"] = jnp.repeat(p["inp_b"], L)[None, :]                        # (1, CL)

    # diffusion-step embedding MLP and cond upsampler (row-major activations)
    eps["de_w1"] = p["de_w1"].astype(bf16); eps["de_b1"] = p["de_b1"][None, :]
    eps["de_w2"] = p["de_w2"].astype(bf16); eps["de_b2"] = p["de_b2"][None, :]
    eps["cu_w1"] = p["cu_w1"].astype(bf16); eps["cu_b1"] = p["cu_b1"][None, :]
    eps["cu_w2"] = p["cu_w2"].astype(bf16); eps["cu_b2"] = p["cu_b2"][None, :]

    Wgf, Bgf, Cgf, b1gf, Wrs, b2rs = [], [], [], [], [], []
    for li, rp in enumerate(p["res"]):
        d = 2 ** (li % CFG["dilation_cycle_length"])
        # circular dilated-conv selector: S[k, l, l'] = 1 iff l' = (l+(k-1)d) mod L
        S = np.zeros((3, L, L), np.float32)
        for k in range(3):
            S[k, np.arange(L), (np.arange(L) + (k - 1) * d) % L] = 1.0
        S = jnp.asarray(S)
        dil_w3 = rp["dil_w"].reshape(3, C, 2 * C)                  # (k, cin, cout)
        Wbig = jnp.einsum("kco,klm->olcm", dil_w3, S).reshape(2 * CL, CL)
        # diffusion-step contribution folded through the dilated conv
        Bemb = Wbig @ T_mat @ rp["dif_w"].T                        # (2CL, RH)
        # conditioner (1x1 circular conv on the upsampled cond)
        Cbig = jnp.einsum("o,ld->old", rp["con_w"][0], Ppad).reshape(2 * CL, D)
        bias1 = (jnp.repeat(rp["dil_b"] + rp["con_b"], L)[:, None]
                 + Wbig @ T_mat @ rp["dif_b"][:, None])            # (2CL, 1)
        # residual-block output projection (1x1 conv)
        Wout = jnp.einsum("co,lm->olcm", rp["out_w"], eye_L).reshape(2 * CL, CL)
        bias2 = jnp.repeat(rp["out_b"], L)[:, None]                # (2CL, 1)

        # transpose + split into gate/filter and residual/skip halves
        Wgf.append(jnp.stack([Wbig[:CL].T, Wbig[CL:].T]))          # (2, CL, CL)
        Bgf.append(jnp.stack([Bemb[:CL].T, Bemb[CL:].T]))          # (2, RH, CL)
        Cgf.append(jnp.stack([Cbig[:CL].T, Cbig[CL:].T]))          # (2, D, CL)
        b1gf.append(jnp.stack([bias1[:CL].T, bias1[CL:].T]))       # (2, 1, CL)
        Wrs.append(jnp.stack([Wout[:CL].T, Wout[CL:].T]))          # (2, CL, CL)
        b2rs.append(jnp.stack([bias2[:CL].T, bias2[CL:].T]))       # (2, 1, CL)

    eps["W_gf"] = jnp.stack(Wgf).astype(bf16)
    eps["B_gf"] = jnp.stack(Bgf).astype(bf16)
    eps["C_gf"] = jnp.stack(Cgf).astype(bf16)
    eps["b1_gf"] = jnp.stack(b1gf)
    eps["W_rs"] = jnp.stack(Wrs).astype(bf16)
    eps["b2_rs"] = jnp.stack(b2rs)

    # skip conv (kernel 3, valid) and final out conv (kernel 3, valid)
    Sv = np.zeros((3, L - 2, L), np.float32)
    for k in range(3):
        Sv[k, np.arange(L - 2), np.arange(L - 2) + k] = 1.0
    Sv2 = np.zeros((3, L - 4, L - 2), np.float32)
    for k in range(3):
        Sv2[k, np.arange(L - 4), np.arange(L - 4) + k] = 1.0
    skip_w3 = p["skip_w"].reshape(3, C, C)
    out_w3 = p["out_w"].reshape(3, C, 1)
    W_skip = jnp.einsum("kco,klm->olcm", skip_w3,
                        jnp.asarray(Sv)).reshape(C * (L - 2), CL)
    W_outc = jnp.einsum("kco,klm->olcm", out_w3,
                        jnp.asarray(Sv2)).reshape(L - 4, C * (L - 2))
    eps["W_skipT"] = W_skip.T.astype(bf16)                         # (CL, C*(L-2))
    eps["b_skip"] = jnp.repeat(p["skip_b"], L - 2)[None, :]        # (1, C*(L-2))
    eps["W_outcT"] = W_outc.T.astype(bf16)                         # (C*(L-2), D)
    eps["b_outc"] = p["out_b"].reshape(1, 1)
    prep["eps"] = eps
    return prep


# ----------------------------------------------------------------------------
# Full forward (TimeGradTrainingNetwork.forward)
# ----------------------------------------------------------------------------
def forward(params, prep, batch, key):
    B = CFG["batch"]
    D = CFG["target_dim"]
    ctx = CFG["context_length"]
    pred = CFG["prediction_length"]
    hist = CFG["history_length"]
    T = ctx + pred
    cond_len = CFG["conditioning_length"]

    past_time_feat = batch["past_time_feat"]
    past_target_cdf = batch["past_target_cdf"]
    past_is_pad = batch["past_is_pad"]
    future_time_feat = batch["future_time_feat"]
    future_target_cdf = batch["future_target_cdf"]
    future_observed_values = batch["future_observed_values"]
    tdi = batch["target_dimension_indicator"]

    past_observed = jnp.minimum(batch["past_observed_values"],
                                1.0 - past_is_pad[..., None])

    time_feat = jnp.concatenate([past_time_feat[:, -ctx:], future_time_feat], axis=1)
    sequence = jnp.concatenate([past_target_cdf, future_target_cdf], axis=1)
    sequence_length = hist + pred
    subseq = ctx + pred

    lags = get_lagged_subsequences(sequence, sequence_length, CFG["lags_seq"], subseq)
    _, scale = mean_scaler(past_target_cdf[:, -ctx:], past_observed[:, -ctx:])

    # unroll: build encoder inputs
    lags_scaled = lags / scale[..., None]
    input_lags = lags_scaled.reshape(B, subseq, len(CFG["lags_seq"]) * D)
    index_emb = params["embed"][tdi]                                        # (B, D, E)
    rep_emb = jnp.broadcast_to(index_emb[:, None],
                               (B, subseq, D, CFG["embed_dim"])
                               ).reshape(B, subseq, D * CFG["embed_dim"])
    inputs = jnp.concatenate([input_lags, rep_emb, time_feat], axis=-1)
    inputs_flat = inputs.reshape(B * T, -1)

    # fused encoder + distr-args projection (one pallas_call), output already
    # in the (B*T, cond_len) layout the diffusion kernel consumes.
    distr_args_flat = encoder_pallas(prep, inputs_flat)                     # (B*T, cond)

    target = jnp.concatenate([past_target_cdf[:, -ctx:], future_target_cdf], axis=1)

    # GaussianDiffusion.log_prob (training p_losses, loss_type='l2')
    x = target / scale                                                      # diffusion.scale
    k_t, k_n = jax.random.split(key)
    t = jax.random.randint(k_t, (B * T,), 0, CFG["diff_steps"])
    x_start = x.reshape(B * T, D)
    noise = jax.random.normal(k_n, x_start.shape, dtype=jnp.float32)
    sa = params["sqrt_ac"][t]
    sb = params["sqrt_1mac"][t]
    emb0 = params["de_table"][t]

    # fused EpsilonTheta WaveNet + L2 loss (one pallas_call)
    likelihood = eps_theta_loss_pallas(prep, x_start, noise, sa, sb, emb0,
                                       distr_args_flat)
    likelihoods = likelihood[None]                      # .unsqueeze(-1) on a scalar

    observed_values = jnp.concatenate(
        [past_observed[:, -ctx:], future_observed_values], axis=1)          # (B, T, D)
    loss_weights = jnp.min(observed_values, axis=-1, keepdims=True)         # (B, T, 1)

    # weighted_average(likelihoods, weights=loss_weights, dim=1)
    weighted = jnp.where(loss_weights != 0, likelihoods * loss_weights, 0.0)
    loss = jnp.sum(weighted, axis=1) / jnp.maximum(jnp.sum(loss_weights, axis=1), 1.0)

    distr_args = distr_args_flat.reshape(B, T, cond_len)
    return loss.mean(), likelihoods, distr_args


# ----------------------------------------------------------------------------
# Main
# ----------------------------------------------------------------------------
if __name__ == "__main__":
    root = jax.random.PRNGKey(0)
    kp, kd = jax.random.split(root)
    params = init_params(kp)
    prep = prepare(params)

    keys = jax.random.split(kd, 8)
    B = CFG["batch"]
    hist = CFG["history_length"]
    pred = CFG["prediction_length"]
    D = CFG["target_dim"]
    F = CFG["num_time_features"]

    batch = dict(
        past_time_feat=jax.random.normal(keys[0], (B, hist, F), jnp.float32),
        past_target_cdf=jnp.abs(jax.random.normal(keys[1], (B, hist, D), jnp.float32)),
        past_observed_values=jnp.ones((B, hist, D), jnp.float32),
        past_is_pad=jnp.zeros((B, hist), jnp.float32),
        future_time_feat=jax.random.normal(keys[2], (B, pred, F), jnp.float32),
        future_target_cdf=jnp.abs(jax.random.normal(keys[3], (B, pred, D), jnp.float32)),
        future_observed_values=jnp.ones((B, pred, D), jnp.float32),
        target_dimension_indicator=jnp.broadcast_to(
            jnp.arange(D, dtype=jnp.int32)[None], (B, D)),
    )

    loss, likelihoods, distr_args = jax.jit(forward)(params, prep, batch, keys[4])
    jax.block_until_ready((loss, likelihoods, distr_args))

    assert loss.shape == ()
    assert likelihoods.shape == (1,)
    assert distr_args.shape == (B, CFG["context_length"] + pred, CFG["conditioning_length"])
    assert bool(jnp.isfinite(loss))
    print("KERNEL_OK")
</pallas_src>

<mosaic_0001>
module attributes {stable_mosaic.version = 11 : i64} {
  func.func @_encoder_kernel(%arg0: i32, %arg1: memref<24x68xf32, #tpu.memory_space<vmem>>, %arg2: memref<24x24xf32, #tpu.memory_space<vmem>>, %arg3: memref<24x32xf32, #tpu.memory_space<vmem>>, %arg4: memref<68x32xbf16, #tpu.memory_space<vmem>>, %arg5: memref<1x32xf32, #tpu.memory_space<vmem>>, %arg6: memref<2x32x96xbf16, #tpu.memory_space<vmem>>, %arg7: memref<2x1x96xf32, #tpu.memory_space<vmem>>, %arg8: memref<2x32x32xbf16, #tpu.memory_space<vmem>>, %arg9: memref<2x1x32xf32, #tpu.memory_space<vmem>>, %arg10: memref<2x1x32xf32, #tpu.memory_space<vmem>>, %arg11: memref<2x1x32xf32, #tpu.memory_space<vmem>>, %arg12: memref<2x32x64xbf16, #tpu.memory_space<vmem>>, %arg13: memref<2x1x64xf32, #tpu.memory_space<vmem>>, %arg14: memref<2x64x32xbf16, #tpu.memory_space<vmem>>, %arg15: memref<2x1x32xf32, #tpu.memory_space<vmem>>, %arg16: memref<2x1x32xf32, #tpu.memory_space<vmem>>, %arg17: memref<2x1x32xf32, #tpu.memory_space<vmem>>, %arg18: memref<32x32xbf16, #tpu.memory_space<vmem>>, %arg19: memref<1x32xf32, #tpu.memory_space<vmem>>, %arg20: memref<24x32xf32, #tpu.memory_space<vmem>>) attributes {dimension_semantics = [#tpu.dimension_semantics<arbitrary>], iteration_bounds = array<i64: 1>, scalar_prefetch = 0 : i64, scratch_operands = 0 : i64, tpu.core_type = #tpu.core_type<tc>, window_params = [{pipeline_mode = #tpu.pipeline_mode<synchronous>, transform_indices = @transform_0, window_bounds = array<i64: 24, 68>}, {pipeline_mode = #tpu.pipeline_mode<synchronous>, transform_indices = @transform_1, window_bounds = array<i64: 24, 24>}, {pipeline_mode = #tpu.pipeline_mode<synchronous>, transform_indices = @transform_2, window_bounds = array<i64: 24, 32>}, {pipeline_mode = #tpu.pipeline_mode<synchronous>, transform_indices = @transform_3, window_bounds = array<i64: 68, 32>}, {pipeline_mode = #tpu.pipeline_mode<synchronous>, transform_indices = @transform_4, window_bounds = array<i64: 1, 32>}, {pipeline_mode = #tpu.pipeline_mode<synchronous>, transform_indices = @transform_5, window_bounds = array<i64: 2, 32, 96>}, {pipeline_mode = #tpu.pipeline_mode<synchronous>, transform_indices = @transform_6, window_bounds = array<i64: 2, 1, 96>}, {pipeline_mode = #tpu.pipeline_mode<synchronous>, transform_indices = @transform_7, window_bounds = array<i64: 2, 32, 32>}, {pipeline_mode = #tpu.pipeline_mode<synchronous>, transform_indices = @transform_8, window_bounds = array<i64: 2, 1, 32>}, {pipeline_mode = #tpu.pipeline_mode<synchronous>, transform_indices = @transform_9, window_bounds = array<i64: 2, 1, 32>}, {pipeline_mode = #tpu.pipeline_mode<synchronous>, transform_indices = @transform_10, window_bounds = array<i64: 2, 1, 32>}, {pipeline_mode = #tpu.pipeline_mode<synchronous>, transform_indices = @transform_11, window_bounds = array<i64: 2, 32, 64>}, {pipeline_mode = #tpu.pipeline_mode<synchronous>, transform_indices = @transform_12, window_bounds = array<i64: 2, 1, 64>}, {pipeline_mode = #tpu.pipeline_mode<synchronous>, transform_indices = @transform_13, window_bounds = array<i64: 2, 64, 32>}, {pipeline_mode = #tpu.pipeline_mode<synchronous>, transform_indices = @transform_14, window_bounds = array<i64: 2, 1, 32>}, {pipeline_mode = #tpu.pipeline_mode<synchronous>, transform_indices = @transform_15, window_bounds = array<i64: 2, 1, 32>}, {pipeline_mode = #tpu.pipeline_mode<synchronous>, transform_indices = @transform_16, window_bounds = array<i64: 2, 1, 32>}, {pipeline_mode = #tpu.pipeline_mode<synchronous>, transform_indices = @transform_17, window_bounds = array<i64: 32, 32>}, {pipeline_mode = #tpu.pipeline_mode<synchronous>, transform_indices = @transform_18, window_bounds = array<i64: 1, 32>}, {pipeline_mode = #tpu.pipeline_mode<synchronous>, transform_indices = @transform_19, window_bounds = array<i64: 24, 32>}]} {
    %c0 = arith.constant 0 : index
    %c0_0 = arith.constant 0 : index
    %0 = vector.load %arg1[%c0, %c0_0] : memref<24x68xf32, #tpu.memory_space<vmem>>, vector<24x68xf32>
    %c0_1 = arith.constant 0 : index
    %c0_2 = arith.constant 0 : index
    %1 = vector.load %arg4[%c0_1, %c0_2] : memref<68x32xbf16, #tpu.memory_space<vmem>>, vector<68x32xbf16>
    %2 = arith.truncf %0 : vector<24x68xf32> to vector<24x68xbf16>
    %cst = arith.constant dense<0.000000e+00> : vector<24x32xf32>
    %3 = tpu.matmul %2, %1, %cst {dimension_numbers = #tpu.dot_dimension_numbers<[1], [0], [0], [1], [0, 0, 1, 1], [], []>} : vector<24x68xbf16>, vector<68x32xbf16>, vector<24x32xf32> -> vector<24x32xf32>
    %c0_3 = arith.constant 0 : index
    %c0_4 = arith.constant 0 : index
    %4 = vector.load %arg5[%c0_3, %c0_4] : memref<1x32xf32, #tpu.memory_space<vmem>>, vector<1x32xf32>
    %5 = vector.broadcast %4 : vector<1x32xf32> to vector<24x32xf32>
    %6 = arith.addf %3, %5 : vector<24x32xf32>
    %c0_5 = arith.constant 0 : index
    %c0_6 = arith.constant 0 : index
    %7 = vector.load %arg3[%c0_5, %c0_6] : memref<24x32xf32, #tpu.memory_space<vmem>>, vector<24x32xf32>
    %8 = arith.addf %6, %7 : vector<24x32xf32>
    %c0_7 = arith.constant 0 : index
    %c0_8 = arith.constant 0 : index
    %9 = vector.load %arg2[%c0_7, %c0_8] : memref<24x24xf32, #tpu.memory_space<vmem>>, vector<24x24xf32>
    %c0_9 = arith.constant 0 : index
    %c0_10 = arith.constant 0 : index
    %c0_11 = arith.constant 0 : index
    %10 = vector.load %arg6[%c0_9, %c0_10, %c0_11] : memref<2x32x96xbf16, #tpu.memory_space<vmem>>, vector<1x32x96xbf16>
    %11 = vector.shape_cast %10 : vector<1x32x96xbf16> to vector<32x96xbf16>
    %12 = arith.truncf %8 : vector<24x32xf32> to vector<24x32xbf16>
    %cst_12 = arith.constant dense<0.000000e+00> : vector<24x96xf32>
    %13 = tpu.matmul %12, %11, %cst_12 {dimension_numbers = #tpu.dot_dimension_numbers<[1], [0], [0], [1], [0, 0, 1, 1], [], []>} : vector<24x32xbf16>, vector<32x96xbf16>, vector<24x96xf32> -> vector<24x96xf32>
    %c0_13 = arith.constant 0 : index
    %c0_14 = arith.constant 0 : index
    %c0_15 = arith.constant 0 : index
    %14 = vector.load %arg7[%c0_13, %c0_14, %c0_15] : memref<2x1x96xf32, #tpu.memory_space<vmem>>, vector<1x1x96xf32>
    %15 = vector.shape_cast %14 : vector<1x1x96xf32> to vector<1x96xf32>
    %16 = vector.broadcast %15 : vector<1x96xf32> to vector<24x96xf32>
    %17 = arith.addf %13, %16 : vector<24x96xf32>
    %18 = vector.extract_strided_slice %17 {offsets = [0, 0], sizes = [24, 32], strides = [1, 1]} : vector<24x96xf32> to vector<24x32xf32>
    %19 = vector.shape_cast %18 : vector<24x32xf32> to vector<24x4x8xf32>
    %20 = tpu.transpose %19, [1, 0, 2] : vector<24x4x8xf32> -> vector<4x24x8xf32>
    %21 = vector.extract_strided_slice %17 {offsets = [0, 32], sizes = [24, 32], strides = [1, 1]} : vector<24x96xf32> to vector<24x32xf32>
    %22 = vector.shape_cast %21 : vector<24x32xf32> to vector<24x4x8xf32>
    %23 = tpu.transpose %22, [1, 0, 2] : vector<24x4x8xf32> -> vector<4x24x8xf32>
    %24 = vector.extract_strided_slice %17 {offsets = [0, 64], sizes = [24, 32], strides = [1, 1]} : vector<24x96xf32> to vector<24x32xf32>
    %25 = vector.shape_cast %24 : vector<24x32xf32> to vector<24x4x8xf32>
    %26 = tpu.transpose %25, [1, 0, 2] : vector<24x4x8xf32> -> vector<4x24x8xf32>
    %27 = arith.truncf %20 : vector<4x24x8xf32> to vector<4x24x8xbf16>
    %28 = arith.truncf %23 : vector<4x24x8xf32> to vector<4x24x8xbf16>
    "tpu.trace_start"() <{level = 10 : i32, message = "hqd,hkd->hqk"}> : () -> ()
    %cst_16 = arith.constant dense<0.000000e+00> : vector<4x24x24xf32>
    %29 = tpu.matmul %27, %28, %cst_16 {dimension_numbers = #tpu.dot_dimension_numbers<[2], [2], [1], [1], [0, 0, 0, 1, 1, 1], [0], [0]>} : vector<4x24x8xbf16>, vector<4x24x8xbf16>, vector<4x24x24xf32> -> vector<4x24x24xf32>
    "tpu.trace_stop"() : () -> ()
    %cst_17 = arith.constant 0.353553385 : f32
    %30 = vector.broadcast %cst_17 : f32 to vector<4x24x24xf32>
    %31 = arith.mulf %29, %30 : vector<4x24x24xf32>
    %32 = vector.shape_cast %9 : vector<24x24xf32> to vector<1x24x24xf32>
    %33 = vector.broadcast %32 : vector<1x24x24xf32> to vector<4x24x24xf32>
    %34 = arith.addf %31, %33 : vector<4x24x24xf32>
    %cst_18 = arith.constant dense<0xFF800000> : vector<4x24xf32>
    %35 = vector.multi_reduction <maximumf>, %34, %cst_18 [2] : vector<4x24x24xf32> to vector<4x24xf32>
    %36 = vector.shape_cast %35 : vector<4x24xf32> to vector<4x24x1xf32>
    %37 = vector.broadcast %36 : vector<4x24x1xf32> to vector<4x24x24xf32>
    %38 = arith.subf %34, %37 : vector<4x24x24xf32>
    %39 = math.exp %38 : vector<4x24x24xf32>
    %cst_19 = arith.constant dense<0.000000e+00> : vector<4x24xf32>
    %40 = vector.multi_reduction <add>, %39, %cst_19 [2] : vector<4x24x24xf32> to vector<4x24xf32>
    %41 = vector.shape_cast %40 : vector<4x24xf32> to vector<4x24x1xf32>
    %42 = vector.broadcast %41 : vector<4x24x1xf32> to vector<4x24x24xf32>
    %43 = arith.divf %39, %42 : vector<4x24x24xf32>
    %44 = arith.truncf %43 : vector<4x24x24xf32> to vector<4x24x24xbf16>
    %45 = arith.truncf %26 : vector<4x24x8xf32> to vector<4x24x8xbf16>
    "tpu.trace_start"() <{level = 10 : i32, message = "hqk,hkd->hqd"}> : () -> ()
    %cst_20 = arith.constant dense<0.000000e+00> : vector<4x24x8xf32>
    %46 = tpu.matmul %44, %45, %cst_20 {dimension_numbers = #tpu.dot_dimension_numbers<[2], [1], [1], [2], [0, 0, 0, 1, 1, 2], [0], [0]>} : vector<4x24x24xbf16>, vector<4x24x8xbf16>, vector<4x24x8xf32> -> vector<4x24x8xf32>
    "tpu.trace_stop"() : () -> ()
    %47 = tpu.transpose %46, [1, 0, 2] : vector<4x24x8xf32> -> vector<24x4x8xf32>
    %48 = vector.shape_cast %47 : vector<24x4x8xf32> to vector<24x32xf32>
    %c0_21 = arith.constant 0 : index
    %c0_22 = arith.constant 0 : index
    %c0_23 = arith.constant 0 : index
    %49 = vector.load %arg8[%c0_21, %c0_22, %c0_23] : memref<2x32x32xbf16, #tpu.memory_space<vmem>>, vector<1x32x32xbf16>
    %50 = vector.shape_cast %49 : vector<1x32x32xbf16> to vector<32x32xbf16>
    %51 = arith.truncf %48 : vector<24x32xf32> to vector<24x32xbf16>
    %cst_24 = arith.constant dense<0.000000e+00> : vector<24x32xf32>
    %52 = tpu.matmul %51, %50, %cst_24 {dimension_numbers = #tpu.dot_dimension_numbers<[1], [0], [0], [1], [0, 0, 1, 1], [], []>} : vector<24x32xbf16>, vector<32x32xbf16>, vector<24x32xf32> -> vector<24x32xf32>
    %c0_25 = arith.constant 0 : index
    %c0_26 = arith.constant 0 : index
    %c0_27 = arith.constant 0 : index
    %53 = vector.load %arg9[%c0_25, %c0_26, %c0_27] : memref<2x1x32xf32, #tpu.memory_space<vmem>>, vector<1x1x32xf32>
    %54 = vector.shape_cast %53 : vector<1x1x32xf32> to vector<1x32xf32>
    %55 = vector.broadcast %54 : vector<1x32xf32> to vector<24x32xf32>
    %56 = arith.addf %52, %55 : vector<24x32xf32>
    %57 = arith.addf %8, %56 : vector<24x32xf32>
    %c0_28 = arith.constant 0 : index
    %c0_29 = arith.constant 0 : index
    %c0_30 = arith.constant 0 : index
    %58 = vector.load %arg10[%c0_28, %c0_29, %c0_30] : memref<2x1x32xf32, #tpu.memory_space<vmem>>, vector<1x1x32xf32>
    %59 = vector.shape_cast %58 : vector<1x1x32xf32> to vector<1x32xf32>
    %c0_31 = arith.constant 0 : index
    %c0_32 = arith.constant 0 : index
    %c0_33 = arith.constant 0 : index
    %60 = vector.load %arg11[%c0_31, %c0_32, %c0_33] : memref<2x1x32xf32, #tpu.memory_space<vmem>>, vector<1x1x32xf32>
    %61 = vector.shape_cast %60 : vector<1x1x32xf32> to vector<1x32xf32>
    %cst_34 = arith.constant dense<0.000000e+00> : vector<24xf32>
    %62 = vector.multi_reduction <add>, %57, %cst_34 [1] : vector<24x32xf32> to vector<24xf32>
    %63 = vector.shape_cast %62 : vector<24xf32> to vector<24x1xf32>
    %cst_35 = arith.constant 3.200000e+01 : f32
    %64 = vector.broadcast %cst_35 : f32 to vector<24x1xf32>
    %65 = arith.divf %63, %64 : vector<24x1xf32>
    %66 = vector.broadcast %65 : vector<24x1xf32> to vector<24x32xf32>
    %67 = arith.subf %57, %66 : vector<24x32xf32>
    %68 = arith.mulf %67, %67 : vector<24x32xf32>
    %cst_36 = arith.constant dense<0.000000e+00> : vector<24xf32>
    %69 = vector.multi_reduction <add>, %68, %cst_36 [1] : vector<24x32xf32> to vector<24xf32>
    %70 = vector.shape_cast %69 : vector<24xf32> to vector<24x1xf32>
    %cst_37 = arith.constant 3.200000e+01 : f32
    %71 = vector.broadcast %cst_37 : f32 to vector<24x1xf32>
    %72 = arith.divf %70, %71 : vector<24x1xf32>
    %cst_38 = arith.constant 9.99999974E-6 : f32
    %73 = vector.broadcast %cst_38 : f32 to vector<24x1xf32>
    %74 = arith.addf %72, %73 : vector<24x1xf32>
    %75 = math.rsqrt %74 : vector<24x1xf32>
    %76 = vector.broadcast %75 : vector<24x1xf32> to vector<24x32xf32>
    %77 = arith.mulf %67, %76 : vector<24x32xf32>
    %78 = vector.broadcast %59 : vector<1x32xf32> to vector<24x32xf32>
    %79 = arith.mulf %77, %78 : vector<24x32xf32>
    %80 = vector.broadcast %61 : vector<1x32xf32> to vector<24x32xf32>
    %81 = arith.addf %79, %80 : vector<24x32xf32>
    %c0_39 = arith.constant 0 : index
    %c0_40 = arith.constant 0 : index
    %c0_41 = arith.constant 0 : index
    %82 = vector.load %arg12[%c0_39, %c0_40, %c0_41] : memref<2x32x64xbf16, #tpu.memory_space<vmem>>, vector<1x32x64xbf16>
    %83 = vector.shape_cast %82 : vector<1x32x64xbf16> to vector<32x64xbf16>
    %84 = arith.truncf %81 : vector<24x32xf32> to vector<24x32xbf16>
    %cst_42 = arith.constant dense<0.000000e+00> : vector<24x64xf32>
    %85 = tpu.matmul %84, %83, %cst_42 {dimension_numbers = #tpu.dot_dimension_numbers<[1], [0], [0], [1], [0, 0, 1, 1], [], []>} : vector<24x32xbf16>, vector<32x64xbf16>, vector<24x64xf32> -> vector<24x64xf32>
    %c0_43 = arith.constant 0 : index
    %c0_44 = arith.constant 0 : index
    %c0_45 = arith.constant 0 : index
    %86 = vector.load %arg13[%c0_43, %c0_44, %c0_45] : memref<2x1x64xf32, #tpu.memory_space<vmem>>, vector<1x1x64xf32>
    %87 = vector.shape_cast %86 : vector<1x1x64xf32> to vector<1x64xf32>
    %88 = vector.broadcast %87 : vector<1x64xf32> to vector<24x64xf32>
    %89 = arith.addf %85, %88 : vector<24x64xf32>
    %90 = arith.mulf %89, %89 : vector<24x64xf32>
    %91 = arith.mulf %89, %90 : vector<24x64xf32>
    %cst_46 = arith.constant 4.471500e-02 : f32
    %92 = vector.broadcast %cst_46 : f32 to vector<24x64xf32>
    %93 = arith.mulf %92, %91 : vector<24x64xf32>
    %94 = arith.addf %89, %93 : vector<24x64xf32>
    %cst_47 = arith.constant 0.797884583 : f32
    %95 = vector.broadcast %cst_47 : f32 to vector<24x64xf32>
    %96 = arith.mulf %95, %94 : vector<24x64xf32>
    %97 = math.tanh %96 : vector<24x64xf32>
    %cst_48 = arith.constant 1.000000e+00 : f32
    %98 = vector.broadcast %cst_48 : f32 to vector<24x64xf32>
    %99 = arith.addf %98, %97 : vector<24x64xf32>
    %cst_49 = arith.constant 5.000000e-01 : f32
    %100 = vector.broadcast %cst_49 : f32 to vector<24x64xf32>
    %101 = arith.mulf %100, %99 : vector<24x64xf32>
    %102 = arith.mulf %89, %101 : vector<24x64xf32>
    %c0_50 = arith.constant 0 : index
    %c0_51 = arith.constant 0 : index
    %c0_52 = arith.constant 0 : index
    %103 = vector.load %arg14[%c0_50, %c0_51, %c0_52] : memref<2x64x32xbf16, #tpu.memory_space<vmem>>, vector<1x64x32xbf16>
    %104 = vector.shape_cast %103 : vector<1x64x32xbf16> to vector<64x32xbf16>
    %105 = arith.truncf %102 : vector<24x64xf32> to vector<24x64xbf16>
    %cst_53 = arith.constant dense<0.000000e+00> : vector<24x32xf32>
    %106 = tpu.matmul %105, %104, %cst_53 {dimension_numbers = #tpu.dot_dimension_numbers<[1], [0], [0], [1], [0, 0, 1, 1], [], []>} : vector<24x64xbf16>, vector<64x32xbf16>, vector<24x32xf32> -> vector<24x32xf32>
    %c0_54 = arith.constant 0 : index
    %c0_55 = arith.constant 0 : index
    %c0_56 = arith.constant 0 : index
    %107 = vector.load %arg15[%c0_54, %c0_55, %c0_56] : memref<2x1x32xf32, #tpu.memory_space<vmem>>, vector<1x1x32xf32>
    %108 = vector.shape_cast %107 : vector<1x1x32xf32> to vector<1x32xf32>
    %109 = vector.broadcast %108 : vector<1x32xf32> to vector<24x32xf32>
    %110 = arith.addf %106, %109 : vector<24x32xf32>
    %111 = arith.addf %81, %110 : vector<24x32xf32>
    %c0_57 = arith.constant 0 : index
    %c0_58 = arith.constant 0 : index
    %c0_59 = arith.constant 0 : index
    %112 = vector.load %arg16[%c0_57, %c0_58, %c0_59] : memref<2x1x32xf32, #tpu.memory_space<vmem>>, vector<1x1x32xf32>
    %113 = vector.shape_cast %112 : vector<1x1x32xf32> to vector<1x32xf32>
    %c0_60 = arith.constant 0 : index
    %c0_61 = arith.constant 0 : index
    %c0_62 = arith.constant 0 : index
    %114 = vector.load %arg17[%c0_60, %c0_61, %c0_62] : memref<2x1x32xf32, #tpu.memory_space<vmem>>, vector<1x1x32xf32>
    %115 = vector.shape_cast %114 : vector<1x1x32xf32> to vector<1x32xf32>
    %cst_63 = arith.constant dense<0.000000e+00> : vector<24xf32>
    %116 = vector.multi_reduction <add>, %111, %cst_63 [1] : vector<24x32xf32> to vector<24xf32>
    %117 = vector.shape_cast %116 : vector<24xf32> to vector<24x1xf32>
    %cst_64 = arith.constant 3.200000e+01 : f32
    %118 = vector.broadcast %cst_64 : f32 to vector<24x1xf32>
    %119 = arith.divf %117, %118 : vector<24x1xf32>
    %120 = vector.broadcast %119 : vector<24x1xf32> to vector<24x32xf32>
    %121 = arith.subf %111, %120 : vector<24x32xf32>
    %122 = arith.mulf %121, %121 : vector<24x32xf32>
    %cst_65 = arith.constant dense<0.000000e+00> : vector<24xf32>
    %123 = vector.multi_reduction <add>, %122, %cst_65 [1] : vector<24x32xf32> to vector<24xf32>
    %124 = vector.shape_cast %123 : vector<24xf32> to vector<24x1xf32>
    %cst_66 = arith.constant 3.200000e+01 : f32
    %125 = vector.broadcast %cst_66 : f32 to vector<24x1xf32>
    %126 = arith.divf %124, %125 : vector<24x1xf32>
    %cst_67 = arith.constant 9.99999974E-6 : f32
    %127 = vector.broadcast %cst_67 : f32 to vector<24x1xf32>
    %128 = arith.addf %126, %127 : vector<24x1xf32>
    %129 = math.rsqrt %128 : vector<24x1xf32>
    %130 = vector.broadcast %129 : vector<24x1xf32> to vector<24x32xf32>
    %131 = arith.mulf %121, %130 : vector<24x32xf32>
    %132 = vector.broadcast %113 : vector<1x32xf32> to vector<24x32xf32>
    %133 = arith.mulf %131, %132 : vector<24x32xf32>
    %134 = vector.broadcast %115 : vector<1x32xf32> to vector<24x32xf32>
    %135 = arith.addf %133, %134 : vector<24x32xf32>
    %c1 = arith.constant 1 : index
    %c0_68 = arith.constant 0 : index
    %c0_69 = arith.constant 0 : index
    %136 = vector.load %arg6[%c1, %c0_68, %c0_69] : memref<2x32x96xbf16, #tpu.memory_space<vmem>>, vector<1x32x96xbf16>
    %137 = vector.shape_cast %136 : vector<1x32x96xbf16> to vector<32x96xbf16>
    %138 = arith.truncf %135 : vector<24x32xf32> to vector<24x32xbf16>
    %cst_70 = arith.constant dense<0.000000e+00> : vector<24x96xf32>
    %139 = tpu.matmul %138, %137, %cst_70 {dimension_numbers = #tpu.dot_dimension_numbers<[1], [0], [0], [1], [0, 0, 1, 1], [], []>} : vector<24x32xbf16>, vector<32x96xbf16>, vector<24x96xf32> -> vector<24x96xf32>
    %c1_71 = arith.constant 1 : index
    %c0_72 = arith.constant 0 : index
    %c0_73 = arith.constant 0 : index
    %140 = vector.load %arg7[%c1_71, %c0_72, %c0_73] : memref<2x1x96xf32, #tpu.memory_space<vmem>>, vector<1x1x96xf32>
    %141 = vector.shape_cast %140 : vector<1x1x96xf32> to vector<1x96xf32>
    %142 = vector.broadcast %141 : vector<1x96xf32> to vector<24x96xf32>
    %143 = arith.addf %139, %142 : vector<24x96xf32>
    %144 = vector.extract_strided_slice %143 {offsets = [0, 0], sizes = [24, 32], strides = [1, 1]} : vector<24x96xf32> to vector<24x32xf32>
    %145 = vector.shape_cast %144 : vector<24x32xf32> to vector<24x4x8xf32>
    %146 = tpu.transpose %145, [1, 0, 2] : vector<24x4x8xf32> -> vector<4x24x8xf32>
    %147 = vector.extract_strided_slice %143 {offsets = [0, 32], sizes = [24, 32], strides = [1, 1]} : vector<24x96xf32> to vector<24x32xf32>
    %148 = vector.shape_cast %147 : vector<24x32xf32> to vector<24x4x8xf32>
    %149 = tpu.transpose %148, [1, 0, 2] : vector<24x4x8xf32> -> vector<4x24x8xf32>
    %150 = vector.extract_strided_slice %143 {offsets = [0, 64], sizes = [24, 32], strides = [1, 1]} : vector<24x96xf32> to vector<24x32xf32>
    %151 = vector.shape_cast %150 : vector<24x32xf32> to vector<24x4x8xf32>
    %152 = tpu.transpose %151, [1, 0, 2] : vector<24x4x8xf32> -> vector<4x24x8xf32>
    %153 = arith.truncf %146 : vector<4x24x8xf32> to vector<4x24x8xbf16>
    %154 = arith.truncf %149 : vector<4x24x8xf32> to vector<4x24x8xbf16>
    "tpu.trace_start"() <{level = 10 : i32, message = "hqd,hkd->hqk"}> : () -> ()
    %cst_74 = arith.constant dense<0.000000e+00> : vector<4x24x24xf32>
    %155 = tpu.matmul %153, %154, %cst_74 {dimension_numbers = #tpu.dot_dimension_numbers<[2], [2], [1], [1], [0, 0, 0, 1, 1, 1], [0], [0]>} : vector<4x24x8xbf16>, vector<4x24x8xbf16>, vector<4x24x24xf32> -> vector<4x24x24xf32>
    "tpu.trace_stop"() : () -> ()
    %cst_75 = arith.constant 0.353553385 : f32
    %156 = vector.broadcast %cst_75 : f32 to vector<4x24x24xf32>
    %157 = arith.mulf %155, %156 : vector<4x24x24xf32>
    %158 = vector.shape_cast %9 : vector<24x24xf32> to vector<1x24x24xf32>
    %159 = vector.broadcast %158 : vector<1x24x24xf32> to vector<4x24x24xf32>
    %160 = arith.addf %157, %159 : vector<4x24x24xf32>
    %cst_76 = arith.constant dense<0xFF800000> : vector<4x24xf32>
    %161 = vector.multi_reduction <maximumf>, %160, %cst_76 [2] : vector<4x24x24xf32> to vector<4x24xf32>
    %162 = vector.shape_cast %161 : vector<4x24xf32> to vector<4x24x1xf32>
    %163 = vector.broadcast %162 : vector<4x24x1xf32> to vector<4x24x24xf32>
    %164 = arith.subf %160, %163 : vector<4x24x24xf32>
    %165 = math.exp %164 : vector<4x24x24xf32>
    %cst_77 = arith.constant dense<0.000000e+00> : vector<4x24xf32>
    %166 = vector.multi_reduction <add>, %165, %cst_77 [2] : vector<4x24x24xf32> to vector<4x24xf32>
    %167 = vector.shape_cast %166 : vector<4x24xf32> to vector<4x24x1xf32>
    %168 = vector.broadcast %167 : vector<4x24x1xf32> to vector<4x24x24xf32>
    %169 = arith.divf %165, %168 : vector<4x24x24xf32>
    %170 = arith.truncf %169 : vector<4x24x24xf32> to vector<4x24x24xbf16>
    %171 = arith.truncf %152 : vector<4x24x8xf32> to vector<4x24x8xbf16>
    "tpu.trace_start"() <{level = 10 : i32, message = "hqk,hkd->hqd"}> : () -> ()
    %cst_78 = arith.constant dense<0.000000e+00> : vector<4x24x8xf32>
    %172 = tpu.matmul %170, %171, %cst_78 {dimension_numbers = #tpu.dot_dimension_numbers<[2], [1], [1], [2], [0, 0, 0, 1, 1, 2], [0], [0]>} : vector<4x24x24xbf16>, vector<4x24x8xbf16>, vector<4x24x8xf32> -> vector<4x24x8xf32>
    "tpu.trace_stop"() : () -> ()
    %173 = tpu.transpose %172, [1, 0, 2] : vector<4x24x8xf32> -> vector<24x4x8xf32>
    %174 = vector.shape_cast %173 : vector<24x4x8xf32> to vector<24x32xf32>
    %c1_79 = arith.constant 1 : index
    %c0_80 = arith.constant 0 : index
    %c0_81 = arith.constant 0 : index
    %175 = vector.load %arg8[%c1_79, %c0_80, %c0_81] : memref<2x32x32xbf16, #tpu.memory_space<vmem>>, vector<1x32x32xbf16>
    %176 = vector.shape_cast %175 : vector<1x32x32xbf16> to vector<32x32xbf16>
    %177 = arith.truncf %174 : vector<24x32xf32> to vector<24x32xbf16>
    %cst_82 = arith.constant dense<0.000000e+00> : vector<24x32xf32>
    %178 = tpu.matmul %177, %176, %cst_82 {dimension_numbers = #tpu.dot_dimension_numbers<[1], [0], [0], [1], [0, 0, 1, 1], [], []>} : vector<24x32xbf16>, vector<32x32xbf16>, vector<24x32xf32> -> vector<24x32xf32>
    %c1_83 = arith.constant 1 : index
    %c0_84 = arith.constant 0 : index
    %c0_85 = arith.constant 0 : index
    %179 = vector.load %arg9[%c1_83, %c0_84, %c0_85] : memref<2x1x32xf32, #tpu.memory_space<vmem>>, vector<1x1x32xf32>
    %180 = vector.shape_cast %179 : vector<1x1x32xf32> to vector<1x32xf32>
    %181 = vector.broadcast %180 : vector<1x32xf32> to vector<24x32xf32>
    %182 = arith.addf %178, %181 : vector<24x32xf32>
    %183 = arith.addf %135, %182 : vector<24x32xf32>
    %c1_86 = arith.constant 1 : index
    %c0_87 = arith.constant 0 : index
    %c0_88 = arith.constant 0 : index
    %184 = vector.load %arg10[%c1_86, %c0_87, %c0_88] : memref<2x1x32xf32, #tpu.memory_space<vmem>>, vector<1x1x32xf32>
    %185 = vector.shape_cast %184 : vector<1x1x32xf32> to vector<1x32xf32>
    %c1_89 = arith.constant 1 : index
    %c0_90 = arith.constant 0 : index
    %c0_91 = arith.constant 0 : index
    %186 = vector.load %arg11[%c1_89, %c0_90, %c0_91] : memref<2x1x32xf32, #tpu.memory_space<vmem>>, vector<1x1x32xf32>
    %187 = vector.shape_cast %186 : vector<1x1x32xf32> to vector<1x32xf32>
    %cst_92 = arith.constant dense<0.000000e+00> : vector<24xf32>
    %188 = vector.multi_reduction <add>, %183, %cst_92 [1] : vector<24x32xf32> to vector<24xf32>
    %189 = vector.shape_cast %188 : vector<24xf32> to vector<24x1xf32>
    %cst_93 = arith.constant 3.200000e+01 : f32
    %190 = vector.broadcast %cst_93 : f32 to vector<24x1xf32>
    %191 = arith.divf %189, %190 : vector<24x1xf32>
    %192 = vector.broadcast %191 : vector<24x1xf32> to vector<24x32xf32>
    %193 = arith.subf %183, %192 : vector<24x32xf32>
    %194 = arith.mulf %193, %193 : vector<24x32xf32>
    %cst_94 = arith.constant dense<0.000000e+00> : vector<24xf32>
    %195 = vector.multi_reduction <add>, %194, %cst_94 [1] : vector<24x32xf32> to vector<24xf32>
    %196 = vector.shape_cast %195 : vector<24xf32> to vector<24x1xf32>
    %cst_95 = arith.constant 3.200000e+01 : f32
    %197 = vector.broadcast %cst_95 : f32 to vector<24x1xf32>
    %198 = arith.divf %196, %197 : vector<24x1xf32>
    %cst_96 = arith.constant 9.99999974E-6 : f32
    %199 = vector.broadcast %cst_96 : f32 to vector<24x1xf32>
    %200 = arith.addf %198, %199 : vector<24x1xf32>
    %201 = math.rsqrt %200 : vector<24x1xf32>
    %202 = vector.broadcast %201 : vector<24x1xf32> to vector<24x32xf32>
    %203 = arith.mulf %193, %202 : vector<24x32xf32>
    %204 = vector.broadcast %185 : vector<1x32xf32> to vector<24x32xf32>
    %205 = arith.mulf %203, %204 : vector<24x32xf32>
    %206 = vector.broadcast %187 : vector<1x32xf32> to vector<24x32xf32>
    %207 = arith.addf %205, %206 : vector<24x32xf32>
    %c1_97 = arith.constant 1 : index
    %c0_98 = arith.constant 0 : index
    %c0_99 = arith.constant 0 : index
    %208 = vector.load %arg12[%c1_97, %c0_98, %c0_99] : memref<2x32x64xbf16, #tpu.memory_space<vmem>>, vector<1x32x64xbf16>
    %209 = vector.shape_cast %208 : vector<1x32x64xbf16> to vector<32x64xbf16>
    %210 = arith.truncf %207 : vector<24x32xf32> to vector<24x32xbf16>
    %cst_100 = arith.constant dense<0.000000e+00> : vector<24x64xf32>
    %211 = tpu.matmul %210, %209, %cst_100 {dimension_numbers = #tpu.dot_dimension_numbers<[1], [0], [0], [1], [0, 0, 1, 1], [], []>} : vector<24x32xbf16>, vector<32x64xbf16>, vector<24x64xf32> -> vector<24x64xf32>
    %c1_101 = arith.constant 1 : index
    %c0_102 = arith.constant 0 : index
    %c0_103 = arith.constant 0 : index
    %212 = vector.load %arg13[%c1_101, %c0_102, %c0_103] : memref<2x1x64xf32, #tpu.memory_space<vmem>>, vector<1x1x64xf32>
    %213 = vector.shape_cast %212 : vector<1x1x64xf32> to vector<1x64xf32>
    %214 = vector.broadcast %213 : vector<1x64xf32> to vector<24x64xf32>
    %215 = arith.addf %211, %214 : vector<24x64xf32>
    %216 = arith.mulf %215, %215 : vector<24x64xf32>
    %217 = arith.mulf %215, %216 : vector<24x64xf32>
    %cst_104 = arith.constant 4.471500e-02 : f32
    %218 = vector.broadcast %cst_104 : f32 to vector<24x64xf32>
    %219 = arith.mulf %218, %217 : vector<24x64xf32>
    %220 = arith.addf %215, %219 : vector<24x64xf32>
    %cst_105 = arith.constant 0.797884583 : f32
    %221 = vector.broadcast %cst_105 : f32 to vector<24x64xf32>
    %222 = arith.mulf %221, %220 : vector<24x64xf32>
    %223 = math.tanh %222 : vector<24x64xf32>
    %cst_106 = arith.constant 1.000000e+00 : f32
    %224 = vector.broadcast %cst_106 : f32 to vector<24x64xf32>
    %225 = arith.addf %224, %223 : vector<24x64xf32>
    %cst_107 = arith.constant 5.000000e-01 : f32
    %226 = vector.broadcast %cst_107 : f32 to vector<24x64xf32>
    %227 = arith.mulf %226, %225 : vector<24x64xf32>
    %228 = arith.mulf %215, %227 : vector<24x64xf32>
    %c1_108 = arith.constant 1 : index
    %c0_109 = arith.constant 0 : index
    %c0_110 = arith.constant 0 : index
    %229 = vector.load %arg14[%c1_108, %c0_109, %c0_110] : memref<2x64x32xbf16, #tpu.memory_space<vmem>>, vector<1x64x32xbf16>
    %230 = vector.shape_cast %229 : vector<1x64x32xbf16> to vector<64x32xbf16>
    %231 = arith.truncf %228 : vector<24x64xf32> to vector<24x64xbf16>
    %cst_111 = arith.constant dense<0.000000e+00> : vector<24x32xf32>
    %232 = tpu.matmul %231, %230, %cst_111 {dimension_numbers = #tpu.dot_dimension_numbers<[1], [0], [0], [1], [0, 0, 1, 1], [], []>} : vector<24x64xbf16>, vector<64x32xbf16>, vector<24x32xf32> -> vector<24x32xf32>
    %c1_112 = arith.constant 1 : index
    %c0_113 = arith.constant 0 : index
    %c0_114 = arith.constant 0 : index
    %233 = vector.load %arg15[%c1_112, %c0_113, %c0_114] : memref<2x1x32xf32, #tpu.memory_space<vmem>>, vector<1x1x32xf32>
    %234 = vector.shape_cast %233 : vector<1x1x32xf32> to vector<1x32xf32>
    %235 = vector.broadcast %234 : vector<1x32xf32> to vector<24x32xf32>
    %236 = arith.addf %232, %235 : vector<24x32xf32>
    %237 = arith.addf %207, %236 : vector<24x32xf32>
    %c1_115 = arith.constant 1 : index
    %c0_116 = arith.constant 0 : index
    %c0_117 = arith.constant 0 : index
    %238 = vector.load %arg16[%c1_115, %c0_116, %c0_117] : memref<2x1x32xf32, #tpu.memory_space<vmem>>, vector<1x1x32xf32>
    %239 = vector.shape_cast %238 : vector<1x1x32xf32> to vector<1x32xf32>
    %c1_118 = arith.constant 1 : index
    %c0_119 = arith.constant 0 : index
    %c0_120 = arith.constant 0 : index
    %240 = vector.load %arg17[%c1_118, %c0_119, %c0_120] : memref<2x1x32xf32, #tpu.memory_space<vmem>>, vector<1x1x32xf32>
    %241 = vector.shape_cast %240 : vector<1x1x32xf32> to vector<1x32xf32>
    %cst_121 = arith.constant dense<0.000000e+00> : vector<24xf32>
    %242 = vector.multi_reduction <add>, %237, %cst_121 [1] : vector<24x32xf32> to vector<24xf32>
    %243 = vector.shape_cast %242 : vector<24xf32> to vector<24x1xf32>
    %cst_122 = arith.constant 3.200000e+01 : f32
    %244 = vector.broadcast %cst_122 : f32 to vector<24x1xf32>
    %245 = arith.divf %243, %244 : vector<24x1xf32>
    %246 = vector.broadcast %245 : vector<24x1xf32> to vector<24x32xf32>
    %247 = arith.subf %237, %246 : vector<24x32xf32>
    %248 = arith.mulf %247, %247 : vector<24x32xf32>
    %cst_123 = arith.constant dense<0.000000e+00> : vector<24xf32>
    %249 = vector.multi_reduction <add>, %248, %cst_123 [1] : vector<24x32xf32> to vector<24xf32>
    %250 = vector.shape_cast %249 : vector<24xf32> to vector<24x1xf32>
    %cst_124 = arith.constant 3.200000e+01 : f32
    %251 = vector.broadcast %cst_124 : f32 to vector<24x1xf32>
    %252 = arith.divf %250, %251 : vector<24x1xf32>
    %cst_125 = arith.constant 9.99999974E-6 : f32
    %253 = vector.broadcast %cst_125 : f32 to vector<24x1xf32>
    %254 = arith.addf %252, %253 : vector<24x1xf32>
    %255 = math.rsqrt %254 : vector<24x1xf32>
    %256 = vector.broadcast %255 : vector<24x1xf32> to vector<24x32xf32>
    %257 = arith.mulf %247, %256 : vector<24x32xf32>
    %258 = vector.broadcast %239 : vector<1x32xf32> to vector<24x32xf32>
    %259 = arith.mulf %257, %258 : vector<24x32xf32>
    %260 = vector.broadcast %241 : vector<1x32xf32> to vector<24x32xf32>
    %261 = arith.addf %259, %260 : vector<24x32xf32>
    %c0_126 = arith.constant 0 : index
    %c0_127 = arith.constant 0 : index
    %262 = vector.load %arg18[%c0_126, %c0_127] : memref<32x32xbf16, #tpu.memory_space<vmem>>, vector<32x32xbf16>
    %263 = arith.truncf %261 : vector<24x32xf32> to vector<24x32xbf16>
    %cst_128 = arith.constant dense<0.000000e+00> : vector<24x32xf32>
    %264 = tpu.matmul %263, %262, %cst_128 {dimension_numbers = #tpu.dot_dimension_numbers<[1], [0], [0], [1], [0, 0, 1, 1], [], []>} : vector<24x32xbf16>, vector<32x32xbf16>, vector<24x32xf32> -> vector<24x32xf32>
    %c0_129 = arith.constant 0 : index
    %c0_130 = arith.constant 0 : index
    %265 = vector.load %arg19[%c0_129, %c0_130] : memref<1x32xf32, #tpu.memory_space<vmem>>, vector<1x32xf32>
    %266 = vector.broadcast %265 : vector<1x32xf32> to vector<24x32xf32>
    %267 = arith.addf %264, %266 : vector<24x32xf32>
    %c0_131 = arith.constant 0 : index
    %c0_132 = arith.constant 0 : index
    %268 = vector.load %arg20[%c0_131, %c0_132] : memref<24x32xf32, #tpu.memory_space<vmem>>, vector<24x32xf32>
    tpu.vector_store %arg20[%c0_131, %c0_132], %267 {strides = array<i32>} : memref<24x32xf32, #tpu.memory_space<vmem>>, vector<24x32xf32>,
    return
  }
  func.func @transform_0(%arg0: i32) -> (i32, i32) {
    %c0_i32 = arith.constant 0 : i32
    %c0_i32_0 = arith.constant 0 : i32
    %c0_i32_1 = arith.constant 0 : i32
    return %c0_i32, %c0_i32_0 : i32, i32
  }
  func.func @transform_1(%arg0: i32) -> (i32, i32) {
    %c0_i32 = arith.constant 0 : i32
    %c0_i32_0 = arith.constant 0 : i32
    %c0_i32_1 = arith.constant 0 : i32
    return %c0_i32, %c0_i32_0 : i32, i32
  }
  func.func @transform_2(%arg0: i32) -> (i32, i32) {
    %c0_i32 = arith.constant 0 : i32
    %c0_i32_0 = arith.constant 0 : i32
    %c0_i32_1 = arith.constant 0 : i32
    return %c0_i32, %c0_i32_0 : i32, i32
  }
  func.func @transform_3(%arg0: i32) -> (i32, i32) {
    %c0_i32 = arith.constant 0 : i32
    %c0_i32_0 = arith.constant 0 : i32
    %c0_i32_1 = arith.constant 0 : i32
    return %c0_i32, %c0_i32_0 : i32, i32
  }
  func.func @transform_4(%arg0: i32) -> (i32, i32) {
    %c0_i32 = arith.constant 0 : i32
    %c0_i32_0 = arith.constant 0 : i32
    %c0_i32_1 = arith.constant 0 : i32
    return %c0_i32, %c0_i32_0 : i32, i32
  }
  func.func @transform_5(%arg0: i32) -> (i32, i32, i32) {
    %c0_i32 = arith.constant 0 : i32
    %c0_i32_0 = arith.constant 0 : i32
    %c0_i32_1 = arith.constant 0 : i32
    %c0_i32_2 = arith.constant 0 : i32
    return %c0_i32, %c0_i32_0, %c0_i32_1 : i32, i32, i32
  }
  func.func @transform_6(%arg0: i32) -> (i32, i32, i32) {
    %c0_i32 = arith.constant 0 : i32
    %c0_i32_0 = arith.constant 0 : i32
    %c0_i32_1 = arith.constant 0 : i32
    %c0_i32_2 = arith.constant 0 : i32
    return %c0_i32, %c0_i32_0, %c0_i32_1 : i32, i32, i32
  }
  func.func @transform_7(%arg0: i32) -> (i32, i32, i32) {
    %c0_i32 = arith.constant 0 : i32
    %c0_i32_0 = arith.constant 0 : i32
    %c0_i32_1 = arith.constant 0 : i32
    %c0_i32_2 = arith.constant 0 : i32
    return %c0_i32, %c0_i32_0, %c0_i32_1 : i32, i32, i32
  }
  func.func @transform_8(%arg0: i32) -> (i32, i32, i32) {
    %c0_i32 = arith.constant 0 : i32
    %c0_i32_0 = arith.constant 0 : i32
    %c0_i32_1 = arith.constant 0 : i32
    %c0_i32_2 = arith.constant 0 : i32
    return %c0_i32, %c0_i32_0, %c0_i32_1 : i32, i32, i32
  }
  func.func @transform_9(%arg0: i32) -> (i32, i32, i32) {
    %c0_i32 = arith.constant 0 : i32
    %c0_i32_0 = arith.constant 0 : i32
    %c0_i32_1 = arith.constant 0 : i32
    %c0_i32_2 = arith.constant 0 : i32
    return %c0_i32, %c0_i32_0, %c0_i32_1 : i32, i32, i32
  }
  func.func @transform_10(%arg0: i32) -> (i32, i32, i32) {
    %c0_i32 = arith.constant 0 : i32
    %c0_i32_0 = arith.constant 0 : i32
    %c0_i32_1 = arith.constant 0 : i32
    %c0_i32_2 = arith.constant 0 : i32
    return %c0_i32, %c0_i32_0, %c0_i32_1 : i32, i32, i32
  }
  func.func @transform_11(%arg0: i32) -> (i32, i32, i32) {
    %c0_i32 = arith.constant 0 : i32
    %c0_i32_0 = arith.constant 0 : i32
    %c0_i32_1 = arith.constant 0 : i32
    %c0_i32_2 = arith.constant 0 : i32
    return %c0_i32, %c0_i32_0, %c0_i32_1 : i32, i32, i32
  }
  func.func @transform_12(%arg0: i32) -> (i32, i32, i32) {
    %c0_i32 = arith.constant 0 : i32
    %c0_i32_0 = arith.constant 0 : i32
    %c0_i32_1 = arith.constant 0 : i32
    %c0_i32_2 = arith.constant 0 : i32
    return %c0_i32, %c0_i32_0, %c0_i32_1 : i32, i32, i32
  }
  func.func @transform_13(%arg0: i32) -> (i32, i32, i32) {
    %c0_i32 = arith.constant 0 : i32
    %c0_i32_0 = arith.constant 0 : i32
    %c0_i32_1 = arith.constant 0 : i32
    %c0_i32_2 = arith.constant 0 : i32
    return %c0_i32, %c0_i32_0, %c0_i32_1 : i32, i32, i32
  }
  func.func @transform_14(%arg0: i32) -> (i32, i32, i32) {
    %c0_i32 = arith.constant 0 : i32
    %c0_i32_0 = arith.constant 0 : i32
    %c0_i32_1 = arith.constant 0 : i32
    %c0_i32_2 = arith.constant 0 : i32
    return %c0_i32, %c0_i32_0, %c0_i32_1 : i32, i32, i32
  }
  func.func @transform_15(%arg0: i32) -> (i32, i32, i32) {
    %c0_i32 = arith.constant 0 : i32
    %c0_i32_0 = arith.constant 0 : i32
    %c0_i32_1 = arith.constant 0 : i32
    %c0_i32_2 = arith.constant 0 : i32
    return %c0_i32, %c0_i32_0, %c0_i32_1 : i32, i32, i32
  }
  func.func @transform_16(%arg0: i32) -> (i32, i32, i32) {
    %c0_i32 = arith.constant 0 : i32
    %c0_i32_0 = arith.constant 0 : i32
    %c0_i32_1 = arith.constant 0 : i32
    %c0_i32_2 = arith.constant 0 : i32
    return %c0_i32, %c0_i32_0, %c0_i32_1 : i32, i32, i32
  }
  func.func @transform_17(%arg0: i32) -> (i32, i32) {
    %c0_i32 = arith.constant 0 : i32
    %c0_i32_0 = arith.constant 0 : i32
    %c0_i32_1 = arith.constant 0 : i32
    return %c0_i32, %c0_i32_0 : i32, i32
  }
  func.func @transform_18(%arg0: i32) -> (i32, i32) {
    %c0_i32 = arith.constant 0 : i32
    %c0_i32_0 = arith.constant 0 : i32
    %c0_i32_1 = arith.constant 0 : i32
    return %c0_i32, %c0_i32_0 : i32, i32
  }
  func.func @transform_19(%arg0: i32) -> (i32, i32) {
    %c0_i32 = arith.constant 0 : i32
    %c0_i32_0 = arith.constant 0 : i32
    %c0_i32_1 = arith.constant 0 : i32
    return %c0_i32, %c0_i32_0 : i32, i32
  }
}

module attributes {stable_mosaic.version = 11 : i64} {
  func.func @_eps_theta_kernel(%arg0: i32, %arg1: memref<24x16xf32, #tpu.memory_space<vmem>>, %arg2: memref<24x16xf32, #tpu.memory_space<vmem>>, %arg3: memref<24x1xf32, #tpu.memory_space<vmem>>, %arg4: memref<24x1xf32, #tpu.memory_space<vmem>>, %arg5: memref<24x32xf32, #tpu.memory_space<vmem>>, %arg6: memref<24x32xf32, #tpu.memory_space<vmem>>, %arg7: memref<16x160xbf16, #tpu.memory_space<vmem>>, %arg8: memref<1x160xf32, #tpu.memory_space<vmem>>, %arg9: memref<32x64xbf16, #tpu.memory_space<vmem>>, %arg10: memref<1x64xf32, #tpu.memory_space<vmem>>, %arg11: memref<64x64xbf16, #tpu.memory_space<vmem>>, %arg12: memref<1x64xf32, #tpu.memory_space<vmem>>, %arg13: memref<32x8xbf16, #tpu.memory_space<vmem>>, %arg14: memref<1x8xf32, #tpu.memory_space<vmem>>, %arg15: memref<8x16xbf16, #tpu.memory_space<vmem>>, %arg16: memref<1x16xf32, #tpu.memory_space<vmem>>, %arg17: memref<3x2x160x160xbf16, #tpu.memory_space<vmem>>, %arg18: memref<3x2x64x160xbf16, #tpu.memory_space<vmem>>, %arg19: memref<3x2x16x160xbf16, #tpu.memory_space<vmem>>, %arg20: memref<3x2x1x160xf32, #tpu.memory_space<vmem>>, %arg21: memref<3x2x160x160xbf16, #tpu.memory_space<vmem>>, %arg22: memref<3x2x1x160xf32, #tpu.memory_space<vmem>>, %arg23: memref<160x144xbf16, #tpu.memory_space<vmem>>, %arg24: memref<1x144xf32, #tpu.memory_space<vmem>>, %arg25: memref<144x16xbf16, #tpu.memory_space<vmem>>, %arg26: memref<1x1xf32, #tpu.memory_space<vmem>>, %arg27: memref<1x1xf32, #tpu.memory_space<vmem>>) attributes {dimension_semantics = [#tpu.dimension_semantics<arbitrary>], iteration_bounds = array<i64: 1>, scalar_prefetch = 0 : i64, scratch_operands = 0 : i64, tpu.core_type = #tpu.core_type<tc>, window_params = [{pipeline_mode = #tpu.pipeline_mode<synchronous>, transform_indices = @transform_0, window_bounds = array<i64: 24, 16>}, {pipeline_mode = #tpu.pipeline_mode<synchronous>, transform_indices = @transform_1, window_bounds = array<i64: 24, 16>}, {pipeline_mode = #tpu.pipeline_mode<synchronous>, transform_indices = @transform_2, window_bounds = array<i64: 24, 1>}, {pipeline_mode = #tpu.pipeline_mode<synchronous>, transform_indices = @transform_3, window_bounds = array<i64: 24, 1>}, {pipeline_mode = #tpu.pipeline_mode<synchronous>, transform_indices = @transform_4, window_bounds = array<i64: 24, 32>}, {pipeline_mode = #tpu.pipeline_mode<synchronous>, transform_indices = @transform_5, window_bounds = array<i64: 24, 32>}, {pipeline_mode = #tpu.pipeline_mode<synchronous>, transform_indices = @transform_6, window_bounds = array<i64: 16, 160>}, {pipeline_mode = #tpu.pipeline_mode<synchronous>, transform_indices = @transform_7, window_bounds = array<i64: 1, 160>}, {pipeline_mode = #tpu.pipeline_mode<synchronous>, transform_indices = @transform_8, window_bounds = array<i64: 32, 64>}, {pipeline_mode = #tpu.pipeline_mode<synchronous>, transform_indices = @transform_9, window_bounds = array<i64: 1, 64>}, {pipeline_mode = #tpu.pipeline_mode<synchronous>, transform_indices = @transform_10, window_bounds = array<i64: 64, 64>}, {pipeline_mode = #tpu.pipeline_mode<synchronous>, transform_indices = @transform_11, window_bounds = array<i64: 1, 64>}, {pipeline_mode = #tpu.pipeline_mode<synchronous>, transform_indices = @transform_12, window_bounds = array<i64: 32, 8>}, {pipeline_mode = #tpu.pipeline_mode<synchronous>, transform_indices = @transform_13, window_bounds = array<i64: 1, 8>}, {pipeline_mode = #tpu.pipeline_mode<synchronous>, transform_indices = @transform_14, window_bounds = array<i64: 8, 16>}, {pipeline_mode = #tpu.pipeline_mode<synchronous>, transform_indices = @transform_15, window_bounds = array<i64: 1, 16>}, {pipeline_mode = #tpu.pipeline_mode<synchronous>, transform_indices = @transform_16, window_bounds = array<i64: 3, 2, 160, 160>}, {pipeline_mode = #tpu.pipeline_mode<synchronous>, transform_indices = @transform_17, window_bounds = array<i64: 3, 2, 64, 160>}, {pipeline_mode = #tpu.pipeline_mode<synchronous>, transform_indices = @transform_18, window_bounds = array<i64: 3, 2, 16, 160>}, {pipeline_mode = #tpu.pipeline_mode<synchronous>, transform_indices = @transform_19, window_bounds = array<i64: 3, 2, 1, 160>}, {pipeline_mode = #tpu.pipeline_mode<synchronous>, transform_indices = @transform_20, window_bounds = array<i64: 3, 2, 160, 160>}, {pipeline_mode = #tpu.pipeline_mode<synchronous>, transform_indices = @transform_21, window_bounds = array<i64: 3, 2, 1, 160>}, {pipeline_mode = #tpu.pipeline_mode<synchronous>, transform_indices = @transform_22, window_bounds = array<i64: 160, 144>}, {pipeline_mode = #tpu.pipeline_mode<synchronous>, transform_indices = @transform_23, window_bounds = array<i64: 1, 144>}, {pipeline_mode = #tpu.pipeline_mode<synchronous>, transform_indices = @transform_24, window_bounds = array<i64: 144, 16>}, {pipeline_mode = #tpu.pipeline_mode<synchronous>, transform_indices = @transform_25, window_bounds = array<i64: 1, 1>}, {pipeline_mode = #tpu.pipeline_mode<synchronous>, transform_indices = @transform_26, window_bounds = array<i64: 1, 1>}]} {
    %c0 = arith.constant 0 : index
    %c0_0 = arith.constant 0 : index
    %0 = vector.load %arg2[%c0, %c0_0] : memref<24x16xf32, #tpu.memory_space<vmem>>, vector<24x16xf32>
    %c0_1 = arith.constant 0 : index
    %c0_2 = arith.constant 0 : index
    %1 = vector.load %arg3[%c0_1, %c0_2] : memref<24x1xf32, #tpu.memory_space<vmem>>, vector<24x1xf32>
    %c0_3 = arith.constant 0 : index
    %c0_4 = arith.constant 0 : index
    %2 = vector.load %arg1[%c0_3, %c0_4] : memref<24x16xf32, #tpu.memory_space<vmem>>, vector<24x16xf32>
    %3 = vector.broadcast %1 : vector<24x1xf32> to vector<24x16xf32>
    %4 = arith.mulf %3, %2 : vector<24x16xf32>
    %c0_5 = arith.constant 0 : index
    %c0_6 = arith.constant 0 : index
    %5 = vector.load %arg4[%c0_5, %c0_6] : memref<24x1xf32, #tpu.memory_space<vmem>>, vector<24x1xf32>
    %6 = vector.broadcast %5 : vector<24x1xf32> to vector<24x16xf32>
    %7 = arith.mulf %6, %0 : vector<24x16xf32>
    %8 = arith.addf %4, %7 : vector<24x16xf32>
    %c0_7 = arith.constant 0 : index
    %c0_8 = arith.constant 0 : index
    %9 = vector.load %arg5[%c0_7, %c0_8] : memref<24x32xf32, #tpu.memory_space<vmem>>, vector<24x32xf32>
    %c0_9 = arith.constant 0 : index
    %c0_10 = arith.constant 0 : index
    %10 = vector.load %arg9[%c0_9, %c0_10] : memref<32x64xbf16, #tpu.memory_space<vmem>>, vector<32x64xbf16>
    %11 = arith.truncf %9 : vector<24x32xf32> to vector<24x32xbf16>
    %cst = arith.constant dense<0.000000e+00> : vector<24x64xf32>
    %12 = tpu.matmul %11, %10, %cst {dimension_numbers = #tpu.dot_dimension_numbers<[1], [0], [0], [1], [0, 0, 1, 1], [], []>} : vector<24x32xbf16>, vector<32x64xbf16>, vector<24x64xf32> -> vector<24x64xf32>
    %c0_11 = arith.constant 0 : index
    %c0_12 = arith.constant 0 : index
    %13 = vector.load %arg10[%c0_11, %c0_12] : memref<1x64xf32, #tpu.memory_space<vmem>>, vector<1x64xf32>
    %14 = vector.broadcast %13 : vector<1x64xf32> to vector<24x64xf32>
    %15 = arith.addf %12, %14 : vector<24x64xf32>
    %16 = arith.negf %15 : vector<24x64xf32>
    %17 = math.exp %16 : vector<24x64xf32>
    %cst_13 = arith.constant 1.000000e+00 : f32
    %18 = vector.broadcast %cst_13 : f32 to vector<24x64xf32>
    %19 = arith.addf %18, %17 : vector<24x64xf32>
    %20 = arith.divf %18, %19 : vector<24x64xf32>
    %21 = arith.mulf %15, %20 : vector<24x64xf32>
    %c0_14 = arith.constant 0 : index
    %c0_15 = arith.constant 0 : index
    %22 = vector.load %arg11[%c0_14, %c0_15] : memref<64x64xbf16, #tpu.memory_space<vmem>>, vector<64x64xbf16>
    %23 = arith.truncf %21 : vector<24x64xf32> to vector<24x64xbf16>
    %cst_16 = arith.constant dense<0.000000e+00> : vector<24x64xf32>
    %24 = tpu.matmul %23, %22, %cst_16 {dimension_numbers = #tpu.dot_dimension_numbers<[1], [0], [0], [1], [0, 0, 1, 1], [], []>} : vector<24x64xbf16>, vector<64x64xbf16>, vector<24x64xf32> -> vector<24x64xf32>
    %c0_17 = arith.constant 0 : index
    %c0_18 = arith.constant 0 : index
    %25 = vector.load %arg12[%c0_17, %c0_18] : memref<1x64xf32, #tpu.memory_space<vmem>>, vector<1x64xf32>
    %26 = vector.broadcast %25 : vector<1x64xf32> to vector<24x64xf32>
    %27 = arith.addf %24, %26 : vector<24x64xf32>
    %28 = arith.negf %27 : vector<24x64xf32>
    %29 = math.exp %28 : vector<24x64xf32>
    %cst_19 = arith.constant 1.000000e+00 : f32
    %30 = vector.broadcast %cst_19 : f32 to vector<24x64xf32>
    %31 = arith.addf %30, %29 : vector<24x64xf32>
    %32 = arith.divf %30, %31 : vector<24x64xf32>
    %33 = arith.mulf %27, %32 : vector<24x64xf32>
    %c0_20 = arith.constant 0 : index
    %c0_21 = arith.constant 0 : index
    %34 = vector.load %arg6[%c0_20, %c0_21] : memref<24x32xf32, #tpu.memory_space<vmem>>, vector<24x32xf32>
    %c0_22 = arith.constant 0 : index
    %c0_23 = arith.constant 0 : index
    %35 = vector.load %arg13[%c0_22, %c0_23] : memref<32x8xbf16, #tpu.memory_space<vmem>>, vector<32x8xbf16>
    %36 = arith.truncf %34 : vector<24x32xf32> to vector<24x32xbf16>
    %cst_24 = arith.constant dense<0.000000e+00> : vector<24x8xf32>
    %37 = tpu.matmul %36, %35, %cst_24 {dimension_numbers = #tpu.dot_dimension_numbers<[1], [0], [0], [1], [0, 0, 1, 1], [], []>} : vector<24x32xbf16>, vector<32x8xbf16>, vector<24x8xf32> -> vector<24x8xf32>
    %c0_25 = arith.constant 0 : index
    %c0_26 = arith.constant 0 : index
    %38 = vector.load %arg14[%c0_25, %c0_26] : memref<1x8xf32, #tpu.memory_space<vmem>>, vector<1x8xf32>
    %39 = vector.broadcast %38 : vector<1x8xf32> to vector<24x8xf32>
    %40 = arith.addf %37, %39 : vector<24x8xf32>
    %cst_27 = arith.constant 0.000000e+00 : f32
    %41 = vector.broadcast %cst_27 : f32 to vector<24x8xf32>
    %42 = arith.cmpf oge, %40, %41 : vector<24x8xf32>
    %cst_28 = arith.constant 4.000000e-01 : f32
    %43 = vector.broadcast %cst_28 : f32 to vector<24x8xf32>
    %44 = arith.mulf %43, %40 : vector<24x8xf32>
    %45 = arith.select %42, %40, %44 : vector<24x8xi1>, vector<24x8xf32>
    %c0_29 = arith.constant 0 : index
    %c0_30 = arith.constant 0 : index
    %46 = vector.load %arg15[%c0_29, %c0_30] : memref<8x16xbf16, #tpu.memory_space<vmem>>, vector<8x16xbf16>
    %47 = arith.truncf %45 : vector<24x8xf32> to vector<24x8xbf16>
    %cst_31 = arith.constant dense<0.000000e+00> : vector<24x16xf32>
    %48 = tpu.matmul %47, %46, %cst_31 {dimension_numbers = #tpu.dot_dimension_numbers<[1], [0], [0], [1], [0, 0, 1, 1], [], []>} : vector<24x8xbf16>, vector<8x16xbf16>, vector<24x16xf32> -> vector<24x16xf32>
    %c0_32 = arith.constant 0 : index
    %c0_33 = arith.constant 0 : index
    %49 = vector.load %arg16[%c0_32, %c0_33] : memref<1x16xf32, #tpu.memory_space<vmem>>, vector<1x16xf32>
    %50 = vector.broadcast %49 : vector<1x16xf32> to vector<24x16xf32>
    %51 = arith.addf %48, %50 : vector<24x16xf32>
    %cst_34 = arith.constant 0.000000e+00 : f32
    %52 = vector.broadcast %cst_34 : f32 to vector<24x16xf32>
    %53 = arith.cmpf oge, %51, %52 : vector<24x16xf32>
    %cst_35 = arith.constant 4.000000e-01 : f32
    %54 = vector.broadcast %cst_35 : f32 to vector<24x16xf32>
    %55 = arith.mulf %54, %51 : vector<24x16xf32>
    %56 = arith.select %53, %51, %55 : vector<24x16xi1>, vector<24x16xf32>
    %c0_36 = arith.constant 0 : index
    %c0_37 = arith.constant 0 : index
    %57 = vector.load %arg7[%c0_36, %c0_37] : memref<16x160xbf16, #tpu.memory_space<vmem>>, vector<16x160xbf16>
    %58 = arith.truncf %8 : vector<24x16xf32> to vector<24x16xbf16>
    %cst_38 = arith.constant dense<0.000000e+00> : vector<24x160xf32>
    %59 = tpu.matmul %58, %57, %cst_38 {dimension_numbers = #tpu.dot_dimension_numbers<[1], [0], [0], [1], [0, 0, 1, 1], [], []>} : vector<24x16xbf16>, vector<16x160xbf16>, vector<24x160xf32> -> vector<24x160xf32>
    %c0_39 = arith.constant 0 : index
    %c0_40 = arith.constant 0 : index
    %60 = vector.load %arg8[%c0_39, %c0_40] : memref<1x160xf32, #tpu.memory_space<vmem>>, vector<1x160xf32>
    %61 = vector.broadcast %60 : vector<1x160xf32> to vector<24x160xf32>
    %62 = arith.addf %59, %61 : vector<24x160xf32>
    %cst_41 = arith.constant 0.000000e+00 : f32
    %63 = vector.broadcast %cst_41 : f32 to vector<24x160xf32>
    %64 = arith.cmpf oge, %62, %63 : vector<24x160xf32>
    %cst_42 = arith.constant 4.000000e-01 : f32
    %65 = vector.broadcast %cst_42 : f32 to vector<24x160xf32>
    %66 = arith.mulf %65, %62 : vector<24x160xf32>
    %67 = arith.select %64, %62, %66 : vector<24x160xi1>, vector<24x160xf32>
    %68 = arith.truncf %33 : vector<24x64xf32> to vector<24x64xbf16>
    %69 = arith.truncf %56 : vector<24x16xf32> to vector<24x16xbf16>
    %cst_43 = arith.constant 0.000000e+00 : f32
    %70 = vector.broadcast %cst_43 : f32 to vector<24x160xf32>
    %71 = arith.truncf %67 : vector<24x160xf32> to vector<24x160xbf16>
    %c0_44 = arith.constant 0 : index
    %c0_45 = arith.constant 0 : index
    %c0_46 = arith.constant 0 : index
    %c0_47 = arith.constant 0 : index
    %72 = vector.load %arg17[%c0_44, %c0_45, %c0_46, %c0_47] : memref<3x2x160x160xbf16, #tpu.memory_space<vmem>>, vector<1x1x160x160xbf16>
    %73 = vector.shape_cast %72 : vector<1x1x160x160xbf16> to vector<160x160xbf16>
    %cst_48 = arith.constant dense<0.000000e+00> : vector<24x160xf32>
    %74 = tpu.matmul %71, %73, %cst_48 {dimension_numbers = #tpu.dot_dimension_numbers<[1], [0], [0], [1], [0, 0, 1, 1], [], []>} : vector<24x160xbf16>, vector<160x160xbf16>, vector<24x160xf32> -> vector<24x160xf32>
    %c0_49 = arith.constant 0 : index
    %c0_50 = arith.constant 0 : index
    %c0_51 = arith.constant 0 : index
    %c0_52 = arith.constant 0 : index
    %75 = vector.load %arg18[%c0_49, %c0_50, %c0_51, %c0_52] : memref<3x2x64x160xbf16, #tpu.memory_space<vmem>>, vector<1x1x64x160xbf16>
    %76 = vector.shape_cast %75 : vector<1x1x64x160xbf16> to vector<64x160xbf16>
    %cst_53 = arith.constant dense<0.000000e+00> : vector<24x160xf32>
    %77 = tpu.matmul %68, %76, %cst_53 {dimension_numbers = #tpu.dot_dimension_numbers<[1], [0], [0], [1], [0, 0, 1, 1], [], []>} : vector<24x64xbf16>, vector<64x160xbf16>, vector<24x160xf32> -> vector<24x160xf32>
    %78 = arith.addf %74, %77 : vector<24x160xf32>
    %c0_54 = arith.constant 0 : index
    %c0_55 = arith.constant 0 : index
    %c0_56 = arith.constant 0 : index
    %c0_57 = arith.constant 0 : index
    %79 = vector.load %arg19[%c0_54, %c0_55, %c0_56, %c0_57] : memref<3x2x16x160xbf16, #tpu.memory_space<vmem>>, vector<1x1x16x160xbf16>
    %80 = vector.shape_cast %79 : vector<1x1x16x160xbf16> to vector<16x160xbf16>
    %cst_58 = arith.constant dense<0.000000e+00> : vector<24x160xf32>
    %81 = tpu.matmul %69, %80, %cst_58 {dimension_numbers = #tpu.dot_dimension_numbers<[1], [0], [0], [1], [0, 0, 1, 1], [], []>} : vector<24x16xbf16>, vector<16x160xbf16>, vector<24x160xf32> -> vector<24x160xf32>
    %82 = arith.addf %78, %81 : vector<24x160xf32>
    %c0_59 = arith.constant 0 : index
    %c0_60 = arith.constant 0 : index
    %c0_61 = arith.constant 0 : index
    %c0_62 = arith.constant 0 : index
    %83 = vector.load %arg20[%c0_59, %c0_60, %c0_61, %c0_62] : memref<3x2x1x160xf32, #tpu.memory_space<vmem>>, vector<1x1x1x160xf32>
    %84 = vector.shape_cast %83 : vector<1x1x1x160xf32> to vector<1x160xf32>
    %85 = vector.broadcast %84 : vector<1x160xf32> to vector<24x160xf32>
    %86 = arith.addf %82, %85 : vector<24x160xf32>
    %c0_63 = arith.constant 0 : index
    %c1 = arith.constant 1 : index
    %c0_64 = arith.constant 0 : index
    %c0_65 = arith.constant 0 : index
    %87 = vector.load %arg17[%c0_63, %c1, %c0_64, %c0_65] : memref<3x2x160x160xbf16, #tpu.memory_space<vmem>>, vector<1x1x160x160xbf16>
    %88 = vector.shape_cast %87 : vector<1x1x160x160xbf16> to vector<160x160xbf16>
    %cst_66 = arith.constant dense<0.000000e+00> : vector<24x160xf32>
    %89 = tpu.matmul %71, %88, %cst_66 {dimension_numbers = #tpu.dot_dimension_numbers<[1], [0], [0], [1], [0, 0, 1, 1], [], []>} : vector<24x160xbf16>, vector<160x160xbf16>, vector<24x160xf32> -> vector<24x160xf32>
    %c0_67 = arith.constant 0 : index
    %c1_68 = arith.constant 1 : index
    %c0_69 = arith.constant 0 : index
    %c0_70 = arith.constant 0 : index
    %90 = vector.load %arg18[%c0_67, %c1_68, %c0_69, %c0_70] : memref<3x2x64x160xbf16, #tpu.memory_space<vmem>>, vector<1x1x64x160xbf16>
    %91 = vector.shape_cast %90 : vector<1x1x64x160xbf16> to vector<64x160xbf16>
    %cst_71 = arith.constant dense<0.000000e+00> : vector<24x160xf32>
    %92 = tpu.matmul %68, %91, %cst_71 {dimension_numbers = #tpu.dot_dimension_numbers<[1], [0], [0], [1], [0, 0, 1, 1], [], []>} : vector<24x64xbf16>, vector<64x160xbf16>, vector<24x160xf32> -> vector<24x160xf32>
    %93 = arith.addf %89, %92 : vector<24x160xf32>
    %c0_72 = arith.constant 0 : index
    %c1_73 = arith.constant 1 : index
    %c0_74 = arith.constant 0 : index
    %c0_75 = arith.constant 0 : index
    %94 = vector.load %arg19[%c0_72, %c1_73, %c0_74, %c0_75] : memref<3x2x16x160xbf16, #tpu.memory_space<vmem>>, vector<1x1x16x160xbf16>
    %95 = vector.shape_cast %94 : vector<1x1x16x160xbf16> to vector<16x160xbf16>
    %cst_76 = arith.constant dense<0.000000e+00> : vector<24x160xf32>
    %96 = tpu.matmul %69, %95, %cst_76 {dimension_numbers = #tpu.dot_dimension_numbers<[1], [0], [0], [1], [0, 0, 1, 1], [], []>} : vector<24x16xbf16>, vector<16x160xbf16>, vector<24x160xf32> -> vector<24x160xf32>
    %97 = arith.addf %93, %96 : vector<24x160xf32>
    %c0_77 = arith.constant 0 : index
    %c1_78 = arith.constant 1 : index
    %c0_79 = arith.constant 0 : index
    %c0_80 = arith.constant 0 : index
    %98 = vector.load %arg20[%c0_77, %c1_78, %c0_79, %c0_80] : memref<3x2x1x160xf32, #tpu.memory_space<vmem>>, vector<1x1x1x160xf32>
    %99 = vector.shape_cast %98 : vector<1x1x1x160xf32> to vector<1x160xf32>
    %100 = vector.broadcast %99 : vector<1x160xf32> to vector<24x160xf32>
    %101 = arith.addf %97, %100 : vector<24x160xf32>
    %102 = arith.negf %86 : vector<24x160xf32>
    %103 = math.exp %102 : vector<24x160xf32>
    %cst_81 = arith.constant 1.000000e+00 : f32
    %104 = vector.broadcast %cst_81 : f32 to vector<24x160xf32>
    %105 = arith.addf %104, %103 : vector<24x160xf32>
    %106 = arith.divf %104, %105 : vector<24x160xf32>
    %107 = math.tanh %101 : vector<24x160xf32>
    %108 = arith.mulf %106, %107 : vector<24x160xf32>
    %109 = arith.truncf %108 : vector<24x160xf32> to vector<24x160xbf16>
    %c0_82 = arith.constant 0 : index
    %c0_83 = arith.constant 0 : index
    %c0_84 = arith.constant 0 : index
    %c0_85 = arith.constant 0 : index
    %110 = vector.load %arg21[%c0_82, %c0_83, %c0_84, %c0_85] : memref<3x2x160x160xbf16, #tpu.memory_space<vmem>>, vector<1x1x160x160xbf16>
    %111 = vector.shape_cast %110 : vector<1x1x160x160xbf16> to vector<160x160xbf16>
    %cst_86 = arith.constant dense<0.000000e+00> : vector<24x160xf32>
    %112 = tpu.matmul %109, %111, %cst_86 {dimension_numbers = #tpu.dot_dimension_numbers<[1], [0], [0], [1], [0, 0, 1, 1], [], []>} : vector<24x160xbf16>, vector<160x160xbf16>, vector<24x160xf32> -> vector<24x160xf32>
    %c0_87 = arith.constant 0 : index
    %c0_88 = arith.constant 0 : index
    %c0_89 = arith.constant 0 : index
    %c0_90 = arith.constant 0 : index
    %113 = vector.load %arg22[%c0_87, %c0_88, %c0_89, %c0_90] : memref<3x2x1x160xf32, #tpu.memory_space<vmem>>, vector<1x1x1x160xf32>
    %114 = vector.shape_cast %113 : vector<1x1x1x160xf32> to vector<1x160xf32>
    %115 = vector.broadcast %114 : vector<1x160xf32> to vector<24x160xf32>
    %116 = arith.addf %112, %115 : vector<24x160xf32>
    %cst_91 = arith.constant 0.000000e+00 : f32
    %117 = vector.broadcast %cst_91 : f32 to vector<24x160xf32>
    %118 = arith.cmpf oge, %116, %117 : vector<24x160xf32>
    %cst_92 = arith.constant 4.000000e-01 : f32
    %119 = vector.broadcast %cst_92 : f32 to vector<24x160xf32>
    %120 = arith.mulf %119, %116 : vector<24x160xf32>
    %121 = arith.select %118, %116, %120 : vector<24x160xi1>, vector<24x160xf32>
    %c0_93 = arith.constant 0 : index
    %c1_94 = arith.constant 1 : index
    %c0_95 = arith.constant 0 : index
    %c0_96 = arith.constant 0 : index
    %122 = vector.load %arg21[%c0_93, %c1_94, %c0_95, %c0_96] : memref<3x2x160x160xbf16, #tpu.memory_space<vmem>>, vector<1x1x160x160xbf16>
    %123 = vector.shape_cast %122 : vector<1x1x160x160xbf16> to vector<160x160xbf16>
    %cst_97 = arith.constant dense<0.000000e+00> : vector<24x160xf32>
    %124 = tpu.matmul %109, %123, %cst_97 {dimension_numbers = #tpu.dot_dimension_numbers<[1], [0], [0], [1], [0, 0, 1, 1], [], []>} : vector<24x160xbf16>, vector<160x160xbf16>, vector<24x160xf32> -> vector<24x160xf32>
    %c0_98 = arith.constant 0 : index
    %c1_99 = arith.constant 1 : index
    %c0_100 = arith.constant 0 : index
    %c0_101 = arith.constant 0 : index
    %125 = vector.load %arg22[%c0_98, %c1_99, %c0_100, %c0_101] : memref<3x2x1x160xf32, #tpu.memory_space<vmem>>, vector<1x1x1x160xf32>
    %126 = vector.shape_cast %125 : vector<1x1x1x160xf32> to vector<1x160xf32>
    %127 = vector.broadcast %126 : vector<1x160xf32> to vector<24x160xf32>
    %128 = arith.addf %124, %127 : vector<24x160xf32>
    %cst_102 = arith.constant 0.000000e+00 : f32
    %129 = vector.broadcast %cst_102 : f32 to vector<24x160xf32>
    %130 = arith.cmpf oge, %128, %129 : vector<24x160xf32>
    %cst_103 = arith.constant 4.000000e-01 : f32
    %131 = vector.broadcast %cst_103 : f32 to vector<24x160xf32>
    %132 = arith.mulf %131, %128 : vector<24x160xf32>
    %133 = arith.select %130, %128, %132 : vector<24x160xi1>, vector<24x160xf32>
    %134 = arith.addf %67, %121 : vector<24x160xf32>
    %cst_104 = arith.constant 0.707106769 : f32
    %135 = vector.broadcast %cst_104 : f32 to vector<24x160xf32>
    %136 = arith.mulf %134, %135 : vector<24x160xf32>
    %137 = arith.addf %70, %133 : vector<24x160xf32>
    %138 = arith.truncf %136 : vector<24x160xf32> to vector<24x160xbf16>
    %c1_105 = arith.constant 1 : index
    %c0_106 = arith.constant 0 : index
    %c0_107 = arith.constant 0 : index
    %c0_108 = arith.constant 0 : index
    %139 = vector.load %arg17[%c1_105, %c0_106, %c0_107, %c0_108] : memref<3x2x160x160xbf16, #tpu.memory_space<vmem>>, vector<1x1x160x160xbf16>
    %140 = vector.shape_cast %139 : vector<1x1x160x160xbf16> to vector<160x160xbf16>
    %cst_109 = arith.constant dense<0.000000e+00> : vector<24x160xf32>
    %141 = tpu.matmul %138, %140, %cst_109 {dimension_numbers = #tpu.dot_dimension_numbers<[1], [0], [0], [1], [0, 0, 1, 1], [], []>} : vector<24x160xbf16>, vector<160x160xbf16>, vector<24x160xf32> -> vector<24x160xf32>
    %c1_110 = arith.constant 1 : index
    %c0_111 = arith.constant 0 : index
    %c0_112 = arith.constant 0 : index
    %c0_113 = arith.constant 0 : index
    %142 = vector.load %arg18[%c1_110, %c0_111, %c0_112, %c0_113] : memref<3x2x64x160xbf16, #tpu.memory_space<vmem>>, vector<1x1x64x160xbf16>
    %143 = vector.shape_cast %142 : vector<1x1x64x160xbf16> to vector<64x160xbf16>
    %cst_114 = arith.constant dense<0.000000e+00> : vector<24x160xf32>
    %144 = tpu.matmul %68, %143, %cst_114 {dimension_numbers = #tpu.dot_dimension_numbers<[1], [0], [0], [1], [0, 0, 1, 1], [], []>} : vector<24x64xbf16>, vector<64x160xbf16>, vector<24x160xf32> -> vector<24x160xf32>
    %145 = arith.addf %141, %144 : vector<24x160xf32>
    %c1_115 = arith.constant 1 : index
    %c0_116 = arith.constant 0 : index
    %c0_117 = arith.constant 0 : index
    %c0_118 = arith.constant 0 : index
    %146 = vector.load %arg19[%c1_115, %c0_116, %c0_117, %c0_118] : memref<3x2x16x160xbf16, #tpu.memory_space<vmem>>, vector<1x1x16x160xbf16>
    %147 = vector.shape_cast %146 : vector<1x1x16x160xbf16> to vector<16x160xbf16>
    %cst_119 = arith.constant dense<0.000000e+00> : vector<24x160xf32>
    %148 = tpu.matmul %69, %147, %cst_119 {dimension_numbers = #tpu.dot_dimension_numbers<[1], [0], [0], [1], [0, 0, 1, 1], [], []>} : vector<24x16xbf16>, vector<16x160xbf16>, vector<24x160xf32> -> vector<24x160xf32>
    %149 = arith.addf %145, %148 : vector<24x160xf32>
    %c1_120 = arith.constant 1 : index
    %c0_121 = arith.constant 0 : index
    %c0_122 = arith.constant 0 : index
    %c0_123 = arith.constant 0 : index
    %150 = vector.load %arg20[%c1_120, %c0_121, %c0_122, %c0_123] : memref<3x2x1x160xf32, #tpu.memory_space<vmem>>, vector<1x1x1x160xf32>
    %151 = vector.shape_cast %150 : vector<1x1x1x160xf32> to vector<1x160xf32>
    %152 = vector.broadcast %151 : vector<1x160xf32> to vector<24x160xf32>
    %153 = arith.addf %149, %152 : vector<24x160xf32>
    %c1_124 = arith.constant 1 : index
    %c1_125 = arith.constant 1 : index
    %c0_126 = arith.constant 0 : index
    %c0_127 = arith.constant 0 : index
    %154 = vector.load %arg17[%c1_124, %c1_125, %c0_126, %c0_127] : memref<3x2x160x160xbf16, #tpu.memory_space<vmem>>, vector<1x1x160x160xbf16>
    %155 = vector.shape_cast %154 : vector<1x1x160x160xbf16> to vector<160x160xbf16>
    %cst_128 = arith.constant dense<0.000000e+00> : vector<24x160xf32>
    %156 = tpu.matmul %138, %155, %cst_128 {dimension_numbers = #tpu.dot_dimension_numbers<[1], [0], [0], [1], [0, 0, 1, 1], [], []>} : vector<24x160xbf16>, vector<160x160xbf16>, vector<24x160xf32> -> vector<24x160xf32>
    %c1_129 = arith.constant 1 : index
    %c1_130 = arith.constant 1 : index
    %c0_131 = arith.constant 0 : index
    %c0_132 = arith.constant 0 : index
    %157 = vector.load %arg18[%c1_129, %c1_130, %c0_131, %c0_132] : memref<3x2x64x160xbf16, #tpu.memory_space<vmem>>, vector<1x1x64x160xbf16>
    %158 = vector.shape_cast %157 : vector<1x1x64x160xbf16> to vector<64x160xbf16>
    %cst_133 = arith.constant dense<0.000000e+00> : vector<24x160xf32>
    %159 = tpu.matmul %68, %158, %cst_133 {dimension_numbers = #tpu.dot_dimension_numbers<[1], [0], [0], [1], [0, 0, 1, 1], [], []>} : vector<24x64xbf16>, vector<64x160xbf16>, vector<24x160xf32> -> vector<24x160xf32>
    %160 = arith.addf %156, %159 : vector<24x160xf32>
    %c1_134 = arith.constant 1 : index
    %c1_135 = arith.constant 1 : index
    %c0_136 = arith.constant 0 : index
    %c0_137 = arith.constant 0 : index
    %161 = vector.load %arg19[%c1_134, %c1_135, %c0_136, %c0_137] : memref<3x2x16x160xbf16, #tpu.memory_space<vmem>>, vector<1x1x16x160xbf16>
    %162 = vector.shape_cast %161 : vector<1x1x16x160xbf16> to vector<16x160xbf16>
    %cst_138 = arith.constant dense<0.000000e+00> : vector<24x160xf32>
    %163 = tpu.matmul %69, %162, %cst_138 {dimension_numbers = #tpu.dot_dimension_numbers<[1], [0], [0], [1], [0, 0, 1, 1], [], []>} : vector<24x16xbf16>, vector<16x160xbf16>, vector<24x160xf32> -> vector<24x160xf32>
    %164 = arith.addf %160, %163 : vector<24x160xf32>
    %c1_139 = arith.constant 1 : index
    %c1_140 = arith.constant 1 : index
    %c0_141 = arith.constant 0 : index
    %c0_142 = arith.constant 0 : index
    %165 = vector.load %arg20[%c1_139, %c1_140, %c0_141, %c0_142] : memref<3x2x1x160xf32, #tpu.memory_space<vmem>>, vector<1x1x1x160xf32>
    %166 = vector.shape_cast %165 : vector<1x1x1x160xf32> to vector<1x160xf32>
    %167 = vector.broadcast %166 : vector<1x160xf32> to vector<24x160xf32>
    %168 = arith.addf %164, %167 : vector<24x160xf32>
    %169 = arith.negf %153 : vector<24x160xf32>
    %170 = math.exp %169 : vector<24x160xf32>
    %cst_143 = arith.constant 1.000000e+00 : f32
    %171 = vector.broadcast %cst_143 : f32 to vector<24x160xf32>
    %172 = arith.addf %171, %170 : vector<24x160xf32>
    %173 = arith.divf %171, %172 : vector<24x160xf32>
    %174 = math.tanh %168 : vector<24x160xf32>
    %175 = arith.mulf %173, %174 : vector<24x160xf32>
    %176 = arith.truncf %175 : vector<24x160xf32> to vector<24x160xbf16>
    %c1_144 = arith.constant 1 : index
    %c0_145 = arith.constant 0 : index
    %c0_146 = arith.constant 0 : index
    %c0_147 = arith.constant 0 : index
    %177 = vector.load %arg21[%c1_144, %c0_145, %c0_146, %c0_147] : memref<3x2x160x160xbf16, #tpu.memory_space<vmem>>, vector<1x1x160x160xbf16>
    %178 = vector.shape_cast %177 : vector<1x1x160x160xbf16> to vector<160x160xbf16>
    %cst_148 = arith.constant dense<0.000000e+00> : vector<24x160xf32>
    %179 = tpu.matmul %176, %178, %cst_148 {dimension_numbers = #tpu.dot_dimension_numbers<[1], [0], [0], [1], [0, 0, 1, 1], [], []>} : vector<24x160xbf16>, vector<160x160xbf16>, vector<24x160xf32> -> vector<24x160xf32>
    %c1_149 = arith.constant 1 : index
    %c0_150 = arith.constant 0 : index
    %c0_151 = arith.constant 0 : index
    %c0_152 = arith.constant 0 : index
    %180 = vector.load %arg22[%c1_149, %c0_150, %c0_151, %c0_152] : memref<3x2x1x160xf32, #tpu.memory_space<vmem>>, vector<1x1x1x160xf32>
    %181 = vector.shape_cast %180 : vector<1x1x1x160xf32> to vector<1x160xf32>
    %182 = vector.broadcast %181 : vector<1x160xf32> to vector<24x160xf32>
    %183 = arith.addf %179, %182 : vector<24x160xf32>
    %cst_153 = arith.constant 0.000000e+00 : f32
    %184 = vector.broadcast %cst_153 : f32 to vector<24x160xf32>
    %185 = arith.cmpf oge, %183, %184 : vector<24x160xf32>
    %cst_154 = arith.constant 4.000000e-01 : f32
    %186 = vector.broadcast %cst_154 : f32 to vector<24x160xf32>
    %187 = arith.mulf %186, %183 : vector<24x160xf32>
    %188 = arith.select %185, %183, %187 : vector<24x160xi1>, vector<24x160xf32>
    %c1_155 = arith.constant 1 : index
    %c1_156 = arith.constant 1 : index
    %c0_157 = arith.constant 0 : index
    %c0_158 = arith.constant 0 : index
    %189 = vector.load %arg21[%c1_155, %c1_156, %c0_157, %c0_158] : memref<3x2x160x160xbf16, #tpu.memory_space<vmem>>, vector<1x1x160x160xbf16>
    %190 = vector.shape_cast %189 : vector<1x1x160x160xbf16> to vector<160x160xbf16>
    %cst_159 = arith.constant dense<0.000000e+00> : vector<24x160xf32>
    %191 = tpu.matmul %176, %190, %cst_159 {dimension_numbers = #tpu.dot_dimension_numbers<[1], [0], [0], [1], [0, 0, 1, 1], [], []>} : vector<24x160xbf16>, vector<160x160xbf16>, vector<24x160xf32> -> vector<24x160xf32>
    %c1_160 = arith.constant 1 : index
    %c1_161 = arith.constant 1 : index
    %c0_162 = arith.constant 0 : index
    %c0_163 = arith.constant 0 : index
    %192 = vector.load %arg22[%c1_160, %c1_161, %c0_162, %c0_163] : memref<3x2x1x160xf32, #tpu.memory_space<vmem>>, vector<1x1x1x160xf32>
    %193 = vector.shape_cast %192 : vector<1x1x1x160xf32> to vector<1x160xf32>
    %194 = vector.broadcast %193 : vector<1x160xf32> to vector<24x160xf32>
    %195 = arith.addf %191, %194 : vector<24x160xf32>
    %cst_164 = arith.constant 0.000000e+00 : f32
    %196 = vector.broadcast %cst_164 : f32 to vector<24x160xf32>
    %197 = arith.cmpf oge, %195, %196 : vector<24x160xf32>
    %cst_165 = arith.constant 4.000000e-01 : f32
    %198 = vector.broadcast %cst_165 : f32 to vector<24x160xf32>
    %199 = arith.mulf %198, %195 : vector<24x160xf32>
    %200 = arith.select %197, %195, %199 : vector<24x160xi1>, vector<24x160xf32>
    %201 = arith.addf %136, %188 : vector<24x160xf32>
    %cst_166 = arith.constant 0.707106769 : f32
    %202 = vector.broadcast %cst_166 : f32 to vector<24x160xf32>
    %203 = arith.mulf %201, %202 : vector<24x160xf32>
    %204 = arith.addf %137, %200 : vector<24x160xf32>
    %205 = arith.truncf %203 : vector<24x160xf32> to vector<24x160xbf16>
    %c2 = arith.constant 2 : index
    %c0_167 = arith.constant 0 : index
    %c0_168 = arith.constant 0 : index
    %c0_169 = arith.constant 0 : index
    %206 = vector.load %arg17[%c2, %c0_167, %c0_168, %c0_169] : memref<3x2x160x160xbf16, #tpu.memory_space<vmem>>, vector<1x1x160x160xbf16>
    %207 = vector.shape_cast %206 : vector<1x1x160x160xbf16> to vector<160x160xbf16>
    %cst_170 = arith.constant dense<0.000000e+00> : vector<24x160xf32>
    %208 = tpu.matmul %205, %207, %cst_170 {dimension_numbers = #tpu.dot_dimension_numbers<[1], [0], [0], [1], [0, 0, 1, 1], [], []>} : vector<24x160xbf16>, vector<160x160xbf16>, vector<24x160xf32> -> vector<24x160xf32>
    %c2_171 = arith.constant 2 : index
    %c0_172 = arith.constant 0 : index
    %c0_173 = arith.constant 0 : index
    %c0_174 = arith.constant 0 : index
    %209 = vector.load %arg18[%c2_171, %c0_172, %c0_173, %c0_174] : memref<3x2x64x160xbf16, #tpu.memory_space<vmem>>, vector<1x1x64x160xbf16>
    %210 = vector.shape_cast %209 : vector<1x1x64x160xbf16> to vector<64x160xbf16>
    %cst_175 = arith.constant dense<0.000000e+00> : vector<24x160xf32>
    %211 = tpu.matmul %68, %210, %cst_175 {dimension_numbers = #tpu.dot_dimension_numbers<[1], [0], [0], [1], [0, 0, 1, 1], [], []>} : vector<24x64xbf16>, vector<64x160xbf16>, vector<24x160xf32> -> vector<24x160xf32>
    %212 = arith.addf %208, %211 : vector<24x160xf32>
    %c2_176 = arith.constant 2 : index
    %c0_177 = arith.constant 0 : index
    %c0_178 = arith.constant 0 : index
    %c0_179 = arith.constant 0 : index
    %213 = vector.load %arg19[%c2_176, %c0_177, %c0_178, %c0_179] : memref<3x2x16x160xbf16, #tpu.memory_space<vmem>>, vector<1x1x16x160xbf16>
    %214 = vector.shape_cast %213 : vector<1x1x16x160xbf16> to vector<16x160xbf16>
    %cst_180 = arith.constant dense<0.000000e+00> : vector<24x160xf32>
    %215 = tpu.matmul %69, %214, %cst_180 {dimension_numbers = #tpu.dot_dimension_numbers<[1], [0], [0], [1], [0, 0, 1, 1], [], []>} : vector<24x16xbf16>, vector<16x160xbf16>, vector<24x160xf32> -> vector<24x160xf32>
    %216 = arith.addf %212, %215 : vector<24x160xf32>
    %c2_181 = arith.constant 2 : index
    %c0_182 = arith.constant 0 : index
    %c0_183 = arith.constant 0 : index
    %c0_184 = arith.constant 0 : index
    %217 = vector.load %arg20[%c2_181, %c0_182, %c0_183, %c0_184] : memref<3x2x1x160xf32, #tpu.memory_space<vmem>>, vector<1x1x1x160xf32>
    %218 = vector.shape_cast %217 : vector<1x1x1x160xf32> to vector<1x160xf32>
    %219 = vector.broadcast %218 : vector<1x160xf32> to vector<24x160xf32>
    %220 = arith.addf %216, %219 : vector<24x160xf32>
    %c2_185 = arith.constant 2 : index
    %c1_186 = arith.constant 1 : index
    %c0_187 = arith.constant 0 : index
    %c0_188 = arith.constant 0 : index
    %221 = vector.load %arg17[%c2_185, %c1_186, %c0_187, %c0_188] : memref<3x2x160x160xbf16, #tpu.memory_space<vmem>>, vector<1x1x160x160xbf16>
    %222 = vector.shape_cast %221 : vector<1x1x160x160xbf16> to vector<160x160xbf16>
    %cst_189 = arith.constant dense<0.000000e+00> : vector<24x160xf32>
    %223 = tpu.matmul %205, %222, %cst_189 {dimension_numbers = #tpu.dot_dimension_numbers<[1], [0], [0], [1], [0, 0, 1, 1], [], []>} : vector<24x160xbf16>, vector<160x160xbf16>, vector<24x160xf32> -> vector<24x160xf32>
    %c2_190 = arith.constant 2 : index
    %c1_191 = arith.constant 1 : index
    %c0_192 = arith.constant 0 : index
    %c0_193 = arith.constant 0 : index
    %224 = vector.load %arg18[%c2_190, %c1_191, %c0_192, %c0_193] : memref<3x2x64x160xbf16, #tpu.memory_space<vmem>>, vector<1x1x64x160xbf16>
    %225 = vector.shape_cast %224 : vector<1x1x64x160xbf16> to vector<64x160xbf16>
    %cst_194 = arith.constant dense<0.000000e+00> : vector<24x160xf32>
    %226 = tpu.matmul %68, %225, %cst_194 {dimension_numbers = #tpu.dot_dimension_numbers<[1], [0], [0], [1], [0, 0, 1, 1], [], []>} : vector<24x64xbf16>, vector<64x160xbf16>, vector<24x160xf32> -> vector<24x160xf32>
    %227 = arith.addf %223, %226 : vector<24x160xf32>
    %c2_195 = arith.constant 2 : index
    %c1_196 = arith.constant 1 : index
    %c0_197 = arith.constant 0 : index
    %c0_198 = arith.constant 0 : index
    %228 = vector.load %arg19[%c2_195, %c1_196, %c0_197, %c0_198] : memref<3x2x16x160xbf16, #tpu.memory_space<vmem>>, vector<1x1x16x160xbf16>
    %229 = vector.shape_cast %228 : vector<1x1x16x160xbf16> to vector<16x160xbf16>
    %cst_199 = arith.constant dense<0.000000e+00> : vector<24x160xf32>
    %230 = tpu.matmul %69, %229, %cst_199 {dimension_numbers = #tpu.dot_dimension_numbers<[1], [0], [0], [1], [0, 0, 1, 1], [], []>} : vector<24x16xbf16>, vector<16x160xbf16>, vector<24x160xf32> -> vector<24x160xf32>
    %231 = arith.addf %227, %230 : vector<24x160xf32>
    %c2_200 = arith.constant 2 : index
    %c1_201 = arith.constant 1 : index
    %c0_202 = arith.constant 0 : index
    %c0_203 = arith.constant 0 : index
    %232 = vector.load %arg20[%c2_200, %c1_201, %c0_202, %c0_203] : memref<3x2x1x160xf32, #tpu.memory_space<vmem>>, vector<1x1x1x160xf32>
    %233 = vector.shape_cast %232 : vector<1x1x1x160xf32> to vector<1x160xf32>
    %234 = vector.broadcast %233 : vector<1x160xf32> to vector<24x160xf32>
    %235 = arith.addf %231, %234 : vector<24x160xf32>
    %236 = arith.negf %220 : vector<24x160xf32>
    %237 = math.exp %236 : vector<24x160xf32>
    %cst_204 = arith.constant 1.000000e+00 : f32
    %238 = vector.broadcast %cst_204 : f32 to vector<24x160xf32>
    %239 = arith.addf %238, %237 : vector<24x160xf32>
    %240 = arith.divf %238, %239 : vector<24x160xf32>
    %241 = math.tanh %235 : vector<24x160xf32>
    %242 = arith.mulf %240, %241 : vector<24x160xf32>
    %243 = arith.truncf %242 : vector<24x160xf32> to vector<24x160xbf16>
    %c2_205 = arith.constant 2 : index
    %c1_206 = arith.constant 1 : index
    %c0_207 = arith.constant 0 : index
    %c0_208 = arith.constant 0 : index
    %244 = vector.load %arg21[%c2_205, %c1_206, %c0_207, %c0_208] : memref<3x2x160x160xbf16, #tpu.memory_space<vmem>>, vector<1x1x160x160xbf16>
    %245 = vector.shape_cast %244 : vector<1x1x160x160xbf16> to vector<160x160xbf16>
    %cst_209 = arith.constant dense<0.000000e+00> : vector<24x160xf32>
    %246 = tpu.matmul %243, %245, %cst_209 {dimension_numbers = #tpu.dot_dimension_numbers<[1], [0], [0], [1], [0, 0, 1, 1], [], []>} : vector<24x160xbf16>, vector<160x160xbf16>, vector<24x160xf32> -> vector<24x160xf32>
    %c2_210 = arith.constant 2 : index
    %c1_211 = arith.constant 1 : index
    %c0_212 = arith.constant 0 : index
    %c0_213 = arith.constant 0 : index
    %247 = vector.load %arg22[%c2_210, %c1_211, %c0_212, %c0_213] : memref<3x2x1x160xf32, #tpu.memory_space<vmem>>, vector<1x1x1x160xf32>
    %248 = vector.shape_cast %247 : vector<1x1x1x160xf32> to vector<1x160xf32>
    %249 = vector.broadcast %248 : vector<1x160xf32> to vector<24x160xf32>
    %250 = arith.addf %246, %249 : vector<24x160xf32>
    %cst_214 = arith.constant 0.000000e+00 : f32
    %251 = vector.broadcast %cst_214 : f32 to vector<24x160xf32>
    %252 = arith.cmpf oge, %250, %251 : vector<24x160xf32>
    %cst_215 = arith.constant 4.000000e-01 : f32
    %253 = vector.broadcast %cst_215 : f32 to vector<24x160xf32>
    %254 = arith.mulf %253, %250 : vector<24x160xf32>
    %255 = arith.select %252, %250, %254 : vector<24x160xi1>, vector<24x160xf32>
    %256 = arith.addf %204, %255 : vector<24x160xf32>
    %cst_216 = arith.constant 0.577350259 : f32
    %257 = vector.broadcast %cst_216 : f32 to vector<24x160xf32>
    %258 = arith.mulf %256, %257 : vector<24x160xf32>
    %c0_217 = arith.constant 0 : index
    %c0_218 = arith.constant 0 : index
    %259 = vector.load %arg23[%c0_217, %c0_218] : memref<160x144xbf16, #tpu.memory_space<vmem>>, vector<160x144xbf16>
    %260 = arith.truncf %258 : vector<24x160xf32> to vector<24x160xbf16>
    %cst_219 = arith.constant dense<0.000000e+00> : vector<24x144xf32>
    %261 = tpu.matmul %260, %259, %cst_219 {dimension_numbers = #tpu.dot_dimension_numbers<[1], [0], [0], [1], [0, 0, 1, 1], [], []>} : vector<24x160xbf16>, vector<160x144xbf16>, vector<24x144xf32> -> vector<24x144xf32>
    %c0_220 = arith.constant 0 : index
    %c0_221 = arith.constant 0 : index
    %262 = vector.load %arg24[%c0_220, %c0_221] : memref<1x144xf32, #tpu.memory_space<vmem>>, vector<1x144xf32>
    %263 = vector.broadcast %262 : vector<1x144xf32> to vector<24x144xf32>
    %264 = arith.addf %261, %263 : vector<24x144xf32>
    %cst_222 = arith.constant 0.000000e+00 : f32
    %265 = vector.broadcast %cst_222 : f32 to vector<24x144xf32>
    %266 = arith.cmpf oge, %264, %265 : vector<24x144xf32>
    %cst_223 = arith.constant 4.000000e-01 : f32
    %267 = vector.broadcast %cst_223 : f32 to vector<24x144xf32>
    %268 = arith.mulf %267, %264 : vector<24x144xf32>
    %269 = arith.select %266, %264, %268 : vector<24x144xi1>, vector<24x144xf32>
    %c0_224 = arith.constant 0 : index
    %c0_225 = arith.constant 0 : index
    %270 = vector.load %arg25[%c0_224, %c0_225] : memref<144x16xbf16, #tpu.memory_space<vmem>>, vector<144x16xbf16>
    %271 = arith.truncf %269 : vector<24x144xf32> to vector<24x144xbf16>
    %cst_226 = arith.constant dense<0.000000e+00> : vector<24x16xf32>
    %272 = tpu.matmul %271, %270, %cst_226 {dimension_numbers = #tpu.dot_dimension_numbers<[1], [0], [0], [1], [0, 0, 1, 1], [], []>} : vector<24x144xbf16>, vector<144x16xbf16>, vector<24x16xf32> -> vector<24x16xf32>
    %c0_227 = arith.constant 0 : index
    %c0_228 = arith.constant 0 : index
    %273 = vector.load %arg26[%c0_227, %c0_228] : memref<1x1xf32, #tpu.memory_space<vmem>>, vector<1x1xf32>
    %274 = vector.broadcast %273 : vector<1x1xf32> to vector<24x16xf32>
    %275 = arith.addf %272, %274 : vector<24x16xf32>
    %276 = arith.subf %275, %0 : vector<24x16xf32>
    %277 = arith.mulf %276, %276 : vector<24x16xf32>
    %278 = vector.shape_cast %277 : vector<24x16xf32> to vector<1x24x16xf32>
    %cst_229 = arith.constant dense<0.000000e+00> : vector<1xf32>
    %279 = vector.multi_reduction <add>, %278, %cst_229 [1, 2] : vector<1x24x16xf32> to vector<1xf32>
    %280 = vector.shape_cast %279 : vector<1xf32> to vector<1x1x1xf32>
    %281 = vector.extract %280[0, 0, 0] : f32 from vector<1x1x1xf32>
    %282 = vector.broadcast %281 : f32 to vector<1x1xf32>
    %c0_230 = arith.constant 0 : index
    %c0_231 = arith.constant 0 : index
    %283 = vector.load %arg27[%c0_230, %c0_231] : memref<1x1xf32, #tpu.memory_space<vmem>>, vector<1x1xf32>
    tpu.vector_store %arg27[%c0_230, %c0_231], %282 {strides = array<i32>} : memref<1x1xf32, #tpu.memory_space<vmem>>, vector<1x1xf32>,
    return
  }
  func.func @transform_0(%arg0: i32) -> (i32, i32) {
    %c0_i32 = arith.constant 0 : i32
    %c0_i32_0 = arith.constant 0 : i32
    %c0_i32_1 = arith.constant 0 : i32
    return %c0_i32, %c0_i32_0 : i32, i32
  }
  func.func @transform_1(%arg0: i32) -> (i32, i32) {
    %c0_i32 = arith.constant 0 : i32
    %c0_i32_0 = arith.constant 0 : i32
    %c0_i32_1 = arith.constant 0 : i32
    return %c0_i32, %c0_i32_0 : i32, i32
  }
  func.func @transform_2(%arg0: i32) -> (i32, i32) {
    %c0_i32 = arith.constant 0 : i32
    %c0_i32_0 = arith.constant 0 : i32
    %c0_i32_1 = arith.constant 0 : i32
    return %c0_i32, %c0_i32_0 : i32, i32
  }
  func.func @transform_3(%arg0: i32) -> (i32, i32) {
    %c0_i32 = arith.constant 0 : i32
    %c0_i32_0 = arith.constant 0 : i32
    %c0_i32_1 = arith.constant 0 : i32
    return %c0_i32, %c0_i32_0 : i32, i32
  }
  func.func @transform_4(%arg0: i32) -> (i32, i32) {
    %c0_i32 = arith.constant 0 : i32
    %c0_i32_0 = arith.constant 0 : i32
    %c0_i32_1 = arith.constant 0 : i32
    return %c0_i32, %c0_i32_0 : i32, i32
  }
  func.func @transform_5(%arg0: i32) -> (i32, i32) {
    %c0_i32 = arith.constant 0 : i32
    %c0_i32_0 = arith.constant 0 : i32
    %c0_i32_1 = arith.constant 0 : i32
    return %c0_i32, %c0_i32_0 : i32, i32
  }
  func.func @transform_6(%arg0: i32) -> (i32, i32) {
    %c0_i32 = arith.constant 0 : i32
    %c0_i32_0 = arith.constant 0 : i32
    %c0_i32_1 = arith.constant 0 : i32
    return %c0_i32, %c0_i32_0 : i32, i32
  }
  func.func @transform_7(%arg0: i32) -> (i32, i32) {
    %c0_i32 = arith.constant 0 : i32
    %c0_i32_0 = arith.constant 0 : i32
    %c0_i32_1 = arith.constant 0 : i32
    return %c0_i32, %c0_i32_0 : i32, i32
  }
  func.func @transform_8(%arg0: i32) -> (i32, i32) {
    %c0_i32 = arith.constant 0 : i32
    %c0_i32_0 = arith.constant 0 : i32
    %c0_i32_1 = arith.constant 0 : i32
    return %c0_i32, %c0_i32_0 : i32, i32
  }
  func.func @transform_9(%arg0: i32) -> (i32, i32) {
    %c0_i32 = arith.constant 0 : i32
    %c0_i32_0 = arith.constant 0 : i32
    %c0_i32_1 = arith.constant 0 : i32
    return %c0_i32, %c0_i32_0 : i32, i32
  }
  func.func @transform_10(%arg0: i32) -> (i32, i32) {
    %c0_i32 = arith.constant 0 : i32
    %c0_i32_0 = arith.constant 0 : i32
    %c0_i32_1 = arith.constant 0 : i32
    return %c0_i32, %c0_i32_0 : i32, i32
  }
  func.func @transform_11(%arg0: i32) -> (i32, i32) {
    %c0_i32 = arith.constant 0 : i32
    %c0_i32_0 = arith.constant 0 : i32
    %c0_i32_1 = arith.constant 0 : i32
    return %c0_i32, %c0_i32_0 : i32, i32
  }
  func.func @transform_12(%arg0: i32) -> (i32, i32) {
    %c0_i32 = arith.constant 0 : i32
    %c0_i32_0 = arith.constant 0 : i32
    %c0_i32_1 = arith.constant 0 : i32
    return %c0_i32, %c0_i32_0 : i32, i32
  }
  func.func @transform_13(%arg0: i32) -> (i32, i32) {
    %c0_i32 = arith.constant 0 : i32
    %c0_i32_0 = arith.constant 0 : i32
    %c0_i32_1 = arith.constant 0 : i32
    return %c0_i32, %c0_i32_0 : i32, i32
  }
  func.func @transform_14(%arg0: i32) -> (i32, i32) {
    %c0_i32 = arith.constant 0 : i32
    %c0_i32_0 = arith.constant 0 : i32
    %c0_i32_1 = arith.constant 0 : i32
    return %c0_i32, %c0_i32_0 : i32, i32
  }
  func.func @transform_15(%arg0: i32) -> (i32, i32) {
    %c0_i32 = arith.constant 0 : i32
    %c0_i32_0 = arith.constant 0 : i32
    %c0_i32_1 = arith.constant 0 : i32
    return %c0_i32, %c0_i32_0 : i32, i32
  }
  func.func @transform_16(%arg0: i32) -> (i32, i32, i32, i32) {
    %c0_i32 = arith.constant 0 : i32
    %c0_i32_0 = arith.constant 0 : i32
    %c0_i32_1 = arith.constant 0 : i32
    %c0_i32_2 = arith.constant 0 : i32
    %c0_i32_3 = arith.constant 0 : i32
    return %c0_i32, %c0_i32_0, %c0_i32_1, %c0_i32_2 : i32, i32, i32, i32
  }
  func.func @transform_17(%arg0: i32) -> (i32, i32, i32, i32) {
    %c0_i32 = arith.constant 0 : i32
    %c0_i32_0 = arith.constant 0 : i32
    %c0_i32_1 = arith.constant 0 : i32
    %c0_i32_2 = arith.constant 0 : i32
    %c0_i32_3 = arith.constant 0 : i32
    return %c0_i32, %c0_i32_0, %c0_i32_1, %c0_i32_2 : i32, i32, i32, i32
  }
  func.func @transform_18(%arg0: i32) -> (i32, i32, i32, i32) {
    %c0_i32 = arith.constant 0 : i32
    %c0_i32_0 = arith.constant 0 : i32
    %c0_i32_1 = arith.constant 0 : i32
    %c0_i32_2 = arith.constant 0 : i32
    %c0_i32_3 = arith.constant 0 : i32
    return %c0_i32, %c0_i32_0, %c0_i32_1, %c0_i32_2 : i32, i32, i32, i32
  }
  func.func @transform_19(%arg0: i32) -> (i32, i32, i32, i32) {
    %c0_i32 = arith.constant 0 : i32
    %c0_i32_0 = arith.constant 0 : i32
    %c0_i32_1 = arith.constant 0 : i32
    %c0_i32_2 = arith.constant 0 : i32
    %c0_i32_3 = arith.constant 0 : i32
    return %c0_i32, %c0_i32_0, %c0_i32_1, %c0_i32_2 : i32, i32, i32, i32
  }
  func.func @transform_20(%arg0: i32) -> (i32, i32, i32, i32) {
    %c0_i32 = arith.constant 0 : i32
    %c0_i32_0 = arith.constant 0 : i32
    %c0_i32_1 = arith.constant 0 : i32
    %c0_i32_2 = arith.constant 0 : i32
    %c0_i32_3 = arith.constant 0 : i32
    return %c0_i32, %c0_i32_0, %c0_i32_1, %c0_i32_2 : i32, i32, i32, i32
  }
  func.func @transform_21(%arg0: i32) -> (i32, i32, i32, i32) {
    %c0_i32 = arith.constant 0 : i32
    %c0_i32_0 = arith.constant 0 : i32
    %c0_i32_1 = arith.constant 0 : i32
    %c0_i32_2 = arith.constant 0 : i32
    %c0_i32_3 = arith.constant 0 : i32
    return %c0_i32, %c0_i32_0, %c0_i32_1, %c0_i32_2 : i32, i32, i32, i32
  }
  func.func @transform_22(%arg0: i32) -> (i32, i32) {
    %c0_i32 = arith.constant 0 : i32
    %c0_i32_0 = arith.constant 0 : i32
    %c0_i32_1 = arith.constant 0 : i32
    return %c0_i32, %c0_i32_0 : i32, i32
  }
  func.func @transform_23(%arg0: i32) -> (i32, i32) {
    %c0_i32 = arith.constant 0 : i32
    %c0_i32_0 = arith.constant 0 : i32
    %c0_i32_1 = arith.constant 0 : i32
    return %c0_i32, %c0_i32_0 : i32, i32
  }
  func.func @transform_24(%arg0: i32) -> (i32, i32) {
    %c0_i32 = arith.constant 0 : i32
    %c0_i32_0 = arith.constant 0 : i32
    %c0_i32_1 = arith.constant 0 : i32
    return %c0_i32, %c0_i32_0 : i32, i32
  }
  func.func @transform_25(%arg0: i32) -> (i32, i32) {
    %c0_i32 = arith.constant 0 : i32
    %c0_i32_0 = arith.constant 0 : i32
    %c0_i32_1 = arith.constant 0 : i32
    return %c0_i32, %c0_i32_0 : i32, i32
  }
  func.func @transform_26(%arg0: i32) -> (i32, i32) {
    %c0_i32 = arith.constant 0 : i32
    %c0_i32_0 = arith.constant 0 : i32
    %c0_i32_1 = arith.constant 0 : i32
    return %c0_i32, %c0_i32_0 : i32, i32
  }
}

</mosaic_0001>

<llo_original>
// kernel: forward.2
$region0: #{forward.2}
  #allocation0 [shape = 'u32[]', space=smem, size = 0x4, offset = 0x4, fixed_abs, tag = 'smem constant byte address 0x4 - core index']
  #allocation1 [shape = 'u32[144,128]{1,0:T(1,128)}', space=vmem, size = 0x12000, scoped, tag = 'internal scratch']
  %s0 = inlined_call_operand.vmem [shape: f32[24,68], index: 0, kind: input, shape index: {}]
  %s1 = inlined_call_operand.vmem [shape: f32[24,24], index: 1, kind: input, shape index: {}]
  %s2 = inlined_call_operand.vmem [shape: f32[24,32], index: 2, kind: input, shape index: {}]
  %s3 = inlined_call_operand.vmem [shape: bf16[68,32], index: 3, kind: input, shape index: {}]
  %s4 = inlined_call_operand.vmem [shape: f32[1,32], index: 4, kind: input, shape index: {}]
  %s5 = inlined_call_operand.vmem [shape: bf16[2,32,96], index: 5, kind: input, shape index: {}]
  %s6 = inlined_call_operand.vmem [shape: f32[2,1,96], index: 6, kind: input, shape index: {}]
  %s7 = inlined_call_operand.vmem [shape: bf16[2,32,32], index: 7, kind: input, shape index: {}]
  %s8 = inlined_call_operand.vmem [shape: f32[2,1,32], index: 8, kind: input, shape index: {}]
  %s9 = inlined_call_operand.vmem [shape: f32[2,1,32], index: 9, kind: input, shape index: {}]
  %s10 = inlined_call_operand.vmem [shape: f32[2,1,32], index: 10, kind: input, shape index: {}]
  %s11 = inlined_call_operand.vmem [shape: bf16[2,32,64], index: 11, kind: input, shape index: {}]
  %s12 = inlined_call_operand.vmem [shape: f32[2,1,64], index: 12, kind: input, shape index: {}]
  %s13 = inlined_call_operand.vmem [shape: bf16[2,64,32], index: 13, kind: input, shape index: {}]
  %s14 = inlined_call_operand.vmem [shape: f32[2,1,32], index: 14, kind: input, shape index: {}]
  %s15 = inlined_call_operand.vmem [shape: f32[2,1,32], index: 15, kind: input, shape index: {}]
  %s16 = inlined_call_operand.vmem [shape: f32[2,1,32], index: 16, kind: input, shape index: {}]
  %s17 = inlined_call_operand.vmem [shape: bf16[32,32], index: 17, kind: input, shape index: {}]
  %s18 = inlined_call_operand.vmem [shape: f32[1,32], index: 18, kind: input, shape index: {}]
  %s19 = inlined_call_operand.vmem [shape: f32[24,32], index: 19, kind: output, shape index: {}]
  %s20 = sld [smem:[#allocation0]]
  $region86: #{forward.2} parent=0
    _
  %s22 = ssub.s32 1, %s20
  %s23 = scalar_select 0, %s22, %s20
  // Predicated region
  $region2: #{forward.2} parent=0 // pred_check
    _
  $region3: #{forward.2} parent=0 // pred_check_branch
    %25 = sbr.rel (0) target = $region5
  $region4: #{forward.2} parent=0 // pred_region
    _
  $region5: #{forward.2} parent=0 // pred_fallthru
    _
  // Predicated region
  $region6: #{forward.2} parent=0 // pred_check
    _
  $region7: #{forward.2} parent=0 // pred_check_branch
    %27 = sbr.rel (0) target = $region9
  $region8: #{forward.2} parent=0 // pred_region
    _
  $region9: #{forward.2} parent=0 // pred_fallthru
    _
  // Predicated region
  $region10: #{forward.2} parent=0 // pred_check
    _
  $region11: #{forward.2} parent=0 // pred_check_branch
    %29 = sbr.rel (0) target = $region13
  $region12: #{forward.2} parent=0 // pred_region
    _
  $region13: #{forward.2} parent=0 // pred_fallthru
    _
  // Predicated region
  $region14: #{forward.2} parent=0 // pred_check
    _
  $region15: #{forward.2} parent=0 // pred_check_branch
    %31 = sbr.rel (0) target = $region17
  $region16: #{forward.2} parent=0 // pred_region
    _
  $region17: #{forward.2} parent=0 // pred_fallthru
    _
  // Predicated region
  $region18: #{forward.2} parent=0 // pred_check
    _
  $region19: #{forward.2} parent=0 // pred_check_branch
    %33 = sbr.rel (0) target = $region21
  $region20: #{forward.2} parent=0 // pred_region
    _
  $region21: #{forward.2} parent=0 // pred_fallthru
    _
  // Predicated region
  $region22: #{forward.2} parent=0 // pred_check
    _
  $region23: #{forward.2} parent=0 // pred_check_branch
    %35 = sbr.rel (0) target = $region25
  $region24: #{forward.2} parent=0 // pred_region
    _
  $region25: #{forward.2} parent=0 // pred_fallthru
    _
  // Predicated region
  $region26: #{forward.2} parent=0 // pred_check
    _
  $region27: #{forward.2} parent=0 // pred_check_branch
    %37 = sbr.rel (0) target = $region29
  $region28: #{forward.2} parent=0 // pred_region
    _
  $region29: #{forward.2} parent=0 // pred_fallthru
    _
  // Predicated region
  $region30: #{forward.2} parent=0 // pred_check
    _
  $region31: #{forward.2} parent=0 // pred_check_branch
    %39 = sbr.rel (0) target = $region33
  $region32: #{forward.2} parent=0 // pred_region
    _
  $region33: #{forward.2} parent=0 // pred_fallthru
    _
  // Predicated region
  $region34: #{forward.2} parent=0 // pred_check
    _
  $region35: #{forward.2} parent=0 // pred_check_branch
    %41 = sbr.rel (0) target = $region37
  $region36: #{forward.2} parent=0 // pred_region
    _
  $region37: #{forward.2} parent=0 // pred_fallthru
    _
  // Predicated region
  $region38: #{forward.2} parent=0 // pred_check
    _
  $region39: #{forward.2} parent=0 // pred_check_branch
    %43 = sbr.rel (0) target = $region41
  $region40: #{forward.2} parent=0 // pred_region
    _
  $region41: #{forward.2} parent=0 // pred_fallthru
    _
  // Predicated region
  $region42: #{forward.2} parent=0 // pred_check
    _
  $region43: #{forward.2} parent=0 // pred_check_branch
    %45 = sbr.rel (0) target = $region45
  $region44: #{forward.2} parent=0 // pred_region
    _
  $region45: #{forward.2} parent=0 // pred_fallthru
    _
  // Predicated region
  $region46: #{forward.2} parent=0 // pred_check
    _
  $region47: #{forward.2} parent=0 // pred_check_branch
    %47 = sbr.rel (0) target = $region49
  $region48: #{forward.2} parent=0 // pred_region
    _
  $region49: #{forward.2} parent=0 // pred_fallthru
    _
  // Predicated region
  $region50: #{forward.2} parent=0 // pred_check
    _
  $region51: #{forward.2} parent=0 // pred_check_branch
    %49 = sbr.rel (0) target = $region53
  $region52: #{forward.2} parent=0 // pred_region
    _
  $region53: #{forward.2} parent=0 // pred_fallthru
    _
  // Predicated region
  $region54: #{forward.2} parent=0 // pred_check
    _
  $region55: #{forward.2} parent=0 // pred_check_branch
    %51 = sbr.rel (0) target = $region57
  $region56: #{forward.2} parent=0 // pred_region
    _
  $region57: #{forward.2} parent=0 // pred_fallthru
    _
  // Predicated region
  $region58: #{forward.2} parent=0 // pred_check
    _
  $region59: #{forward.2} parent=0 // pred_check_branch
    %53 = sbr.rel (0) target = $region61
  $region60: #{forward.2} parent=0 // pred_region
    _
  $region61: #{forward.2} parent=0 // pred_fallthru
    _
  // Predicated region
  $region62: #{forward.2} parent=0 // pred_check
    _
  $region63: #{forward.2} parent=0 // pred_check_branch
    %55 = sbr.rel (0) target = $region65
  $region64: #{forward.2} parent=0 // pred_region
    _
  $region65: #{forward.2} parent=0 // pred_fallthru
    _
  // Predicated region
  $region66: #{forward.2} parent=0 // pred_check
    _
  $region67: #{forward.2} parent=0 // pred_check_branch
    %57 = sbr.rel (0) target = $region69
  $region68: #{forward.2} parent=0 // pred_region
    _
  $region69: #{forward.2} parent=0 // pred_fallthru
    _
  // Predicated region
  $region70: #{forward.2} parent=0 // pred_check
    _
  $region71: #{forward.2} parent=0 // pred_check_branch
    %59 = sbr.rel (0) target = $region73
  $region72: #{forward.2} parent=0 // pred_region
    _
  $region73: #{forward.2} parent=0 // pred_fallthru
    _
  // Predicated region
  $region74: #{forward.2} parent=0 // pred_check
    _
  $region75: #{forward.2} parent=0 // pred_check_branch
    %61 = sbr.rel (0) target = $region77
  $region76: #{forward.2} parent=0 // pred_region
    _
  $region77: #{forward.2} parent=0 // pred_fallthru
    _
  %v63 = vld [vmem:[%s0] sm:$0xff]
  %v64 = vld [vmem:[%s0 + $0x8] sm:$0xff]
  %v65 = vld [vmem:[%s0 + $0x10] sm:$0xff]
  %v66 = vld [vmem:[%s3] sm:$0xf]
  %v67 = vld [vmem:[%s3 + $0x4] sm:$0xf]
  %v68 = vld [vmem:[%s3 + $0x8] sm:$0xf]
  %v69 = vld [vmem:[%s3 + $0xc] sm:$0xf]
  %v70 = vld [vmem:[%s3 + $0x10] sm:$0xf]
  %v71 = vld [vmem:[%s3 + $0x14] sm:$0xf]
  %v72 = vld [vmem:[%s3 + $0x18] sm:$0xf]
  %v73 = vld [vmem:[%s3 + $0x1c] sm:$0xf]
  %v74 = vld [vmem:[%s3 + $0x20] sm:$0x3]
  %v75 = vpack.c.bf16 %v64, %v63
  %v76 = vpack.c.bf16 %v65, %v65
  %v77 = vld [vmem:[%s4] sm:$0x1]
  %v79 = vlaneseq
  %v80 = vshrl.u32 %v79, 7
  %v81 = vsub.s32 0, %v80
  %v82 = vrot.slane %v77, %v81
  %v93 = vunpack.c.l.b16 %v66
  %v94 = vunpack.c.l.b16 %v67
  %v95 = vunpack.c.l.b16 %v68
  %v96 = vunpack.c.l.b16 %v69
  %v97 = vunpack.c.l.b16 %v70
  %v98 = vunpack.c.l.b16 %v71
  %v99 = vunpack.c.l.b16 %v72
  %v100 = vunpack.c.l.b16 %v73
  %v101 = vunpack.c.l.b16 %v74
  %v102 = vpack.c.b16 %v94, %v93
  %v103 = vpack.c.b16 %v96, %v95
  %v104 = vpack.c.b16 %v98, %v97
  %v105 = vpack.c.b16 %v100, %v99
  %v106 = vpack.c.b16 %v101, %v101
  %vm111 = vcmask 556032
  %v113 = vsel %vm111, %v75, 0
  %v116 = vsel %vm111, %v76, 0
  %vm118 = vcmask 1041408
  %v120 = vsel %vm118, %v106, 0
  %122 = vmatprep.subr.bf16.mxu0 0
  %123 = vmatpush1.bf16.msra.mxu0 %v102
  %124 = vmatprep.subr.bf16.mxu0 0
  %125 = vmatpush1.bf16.msra.mxu0 %v103
  %126 = vmatprep.subr.bf16.mxu0 0
  %127 = vmatpush1.bf16.msra.mxu0 %v104
  %128 = vmatprep.subr.bf16.mxu0 0
  %129 = vmatpush1.bf16.msra.mxu0 %v105
  %130 = vmatprep.subr.bf16.mxu0 0
  %131 = vmatpush1.bf16.msra.mxu0 %v120
  %132 = vmatprep.subr.bf16.mxu0 0
  %133 = vmatpush1.bf16.msra.mxu0 0
  %134 = vmatprep.subr.bf16.mxu0 0
  %135 = vmatpush1.bf16.msra.mxu0 0
  %136 = vmatprep.subr.bf16.mxu0 0
  %137 = vmatpush1.bf16.msra.mxu0 0
  %138 = vmatprep.subr.bf16.mxu0 0
  %139 = vmatpush1.bf16.msra.mxu0 0
  %140 = vmatprep.subr.bf16.mxu0 0
  %141 = vmatpush1.bf16.msra.mxu0 0
  %142 = vmatprep.subr.bf16.mxu0 0
  %143 = vmatpush1.bf16.msra.mxu0 0
  %144 = vmatprep.subr.bf16.mxu0 0
  %145 = vmatpush1.bf16.msra.mxu0 0
  %146 = vmatprep.subr.bf16.mxu0 0
  %147 = vmatpush1.bf16.msra.mxu0 0
  %148 = vmatprep.subr.bf16.mxu0 0
  %149 = vmatpush1.bf16.msra.mxu0 0
  %150 = vmatprep.subr.bf16.mxu0 0
  %151 = vmatpush1.bf16.msra.mxu0 0
  %152 = vmatprep.subr.bf16.mxu0 0
  %153 = vmatpush1.bf16.msra.mxu0 0
  %154 = vmatprep.mubr.bf16.mxu0 0
  %155 = vmatmul.mubr.bf16.gmra.mrb[0].mxu0 %v113
  %v156 = vpop.f32.mrb[0].mxu0
  %v157 = vadd.f32 %v82, %v156
  %v158 = vpop.f32.mrb[0].mxu0
  %v159 = vpop.f32.mrb[0].mxu0
  %v160 = vadd.f32 %v82, %v159
  %v161 = vpop.f32.mrb[0].mxu0
  %162 = vmatprep.mubr.bf16.mxu0 0
  %163 = vmatmul.mubr.bf16.gmra.mrb[0].mxu0 %v116
  %v164 = vpop.f32.mrb[0].mxu0
  %v165 = vadd.f32 %v82, %v164
  %v166 = vpop.f32.mrb[0].mxu0
  %v167 = vpop.f32.mrb[0].mxu0
  %v168 = vpop.f32.mrb[0].mxu0
  %169 = vdwg.mxu0
  %v170 = vld [vmem:[%s2] sm:$0xff]
  %v171 = vld [vmem:[%s2 + $0x8] sm:$0xff]
  %v172 = vld [vmem:[%s2 + $0x10] sm:$0xff]
  %v173 = vadd.f32 %v157, %v170
  %v174 = vadd.f32 %v160, %v171
  %v175 = vadd.f32 %v165, %v172
  %v176 = vld [vmem:[%s1] sm:$0xff]
  %v177 = vld [vmem:[%s1 + $0x8] sm:$0xff]
  %v178 = vld [vmem:[%s1 + $0x10] sm:$0xff]
  %v179 = vld [vmem:[%s5] sm:$0xf]
  %v180 = vld [vmem:[%s5 + $0x4] sm:$0xf]
  %v181 = vld [vmem:[%s5 + $0x8] sm:$0xf]
  %v182 = vld [vmem:[%s5 + $0xc] sm:$0xf]
  %v183 = vpack.c.bf16 %v174, %v173
  %v184 = vpack.c.bf16 %v175, %v175
  %v185 = vld [vmem:[%s6] sm:$0x1]
  %v187 = vlaneseq
  %v188 = vshrl.u32 %v187, 7
  %v189 = vsub.s32 0, %v188
  %v190 = vrot.slane %v185, %v189
  %v196 = vunpack.c.l.b16 %v179
  %v197 = vunpack.c.l.b16 %v180
  %v198 = vunpack.c.l.b16 %v181
  %v199 = vunpack.c.l.b16 %v182
  %v200 = vpack.c.b16 %v197, %v196
  %v201 = vpack.c.b16 %v199, %v198
  %vm204 = vcmask 261120
  %v206 = vsel %vm204, %v183, 0
  %v209 = vsel %vm204, %v184, 0
  %211 = vmatprep.subr.bf16.mxu0 0
  %212 = vmatpush1.bf16.msra.mxu0 %v200
  %213 = vmatprep.subr.bf16.mxu0 0
  %214 = vmatpush1.bf16.msra.mxu0 %v201
  %215 = vmatprep.subr.bf16.mxu0 0
  %216 = vmatpush1.bf16.msra.mxu0 0
  %217 = vmatprep.subr.bf16.mxu0 0
  %218 = vmatpush1.bf16.msra.mxu0 0
  %219 = vmatprep.subr.bf16.mxu0 0
  %220 = vmatpush1.bf16.msra.mxu0 0
  %221 = vmatprep.subr.bf16.mxu0 0
  %222 = vmatpush1.bf16.msra.mxu0 0
  %223 = vmatprep.subr.bf16.mxu0 0
  %224 = vmatpush1.bf16.msra.mxu0 0
  %225 = vmatprep.subr.bf16.mxu0 0
  %226 = vmatpush1.bf16.msra.mxu0 0
  %227 = vmatprep.subr.bf16.mxu0 0
  %228 = vmatpush1.bf16.msra.mxu0 0
  %229 = vmatprep.subr.bf16.mxu0 0
  %230 = vmatpush1.bf16.msra.mxu0 0
  %231 = vmatprep.subr.bf16.mxu0 0
  %232 = vmatpush1.bf16.msra.mxu0 0
  %233 = vmatprep.subr.bf16.mxu0 0
  %234 = vmatpush1.bf16.msra.mxu0 0
  %235 = vmatprep.subr.bf16.mxu0 0
  %236 = vmatpush1.bf16.msra.mxu0 0
  %237 = vmatprep.subr.bf16.mxu0 0
  %238 = vmatpush1.bf16.msra.mxu0 0
  %239 = vmatprep.subr.bf16.mxu0 0
  %240 = vmatpush1.bf16.msra.mxu0 0
  %241 = vmatprep.subr.bf16.mxu0 0
  %242 = vmatpush1.bf16.msra.mxu0 0
  %243 = vmatprep.mubr.bf16.mxu0 0
  %244 = vmatmul.mubr.bf16.gmra.mrb[0].mxu0 %v206
  %v245 = vpop.f32.mrb[0].mxu0
  %v246 = vadd.f32 %v190, %v245
  %v247 = vpop.f32.mrb[0].mxu0
  %v248 = vpop.f32.mrb[0].mxu0
  %v249 = vadd.f32 %v190, %v248
  %v250 = vpop.f32.mrb[0].mxu0
  %251 = vmatprep.mubr.bf16.mxu0 0
  %252 = vmatmul.mubr.bf16.gmra.mrb[0].mxu0 %v209
  %v253 = vpop.f32.mrb[0].mxu0
  %v254 = vadd.f32 %v190, %v253
  %v255 = vpop.f32.mrb[0].mxu0
  %v256 = vpop.f32.mrb[0].mxu0
  %v257 = vpop.f32.mrb[0].mxu0
  %258 = vdwg.mxu0
  %262 = vrot.lane.b32.xlu0 %v246, 120
  %v263 = vpop.permute.xlu0 %262
  %264 = vrot.lane.b32.xlu0 %v249, 120
  %v265 = vpop.permute.xlu0 %264
  %266 = vrot.lane.b32.xlu0 %v254, 120
  %v267 = vpop.permute.xlu0 %266
  %271 = vrot.lane.b32.xlu0 %v246, 112
  %v272 = vpop.permute.xlu0 %271
  %273 = vrot.lane.b32.xlu0 %v249, 112
  %v274 = vpop.permute.xlu0 %273
  %275 = vrot.lane.b32.xlu0 %v254, 112
  %v276 = vpop.permute.xlu0 %275
  %280 = vrot.lane.b32.xlu0 %v246, 104
  %v281 = vpop.permute.xlu0 %280
  %282 = vrot.lane.b32.xlu0 %v249, 104
  %v283 = vpop.permute.xlu0 %282
  %284 = vrot.lane.b32.xlu0 %v254, 104
  %v285 = vpop.permute.xlu0 %284
  %v289 = vcombine.low %v246, %v272
  %v290 = vcombine.high %v246, %v272
  %v292 = vunpack.c.l.s4 1983009808
  %v293 = vunpack.c.0.s8 %v292
  %v294 = vlaneseq
  %v295 = vshrl.u32 %v294, 7
  %v296 = vsub.s32 %v293, %v295
  %v297 = vrot.slane %v289, %v296
  %v299 = vunpack.c.l.s4 1983009808
  %v300 = vunpack.c.0.s8 %v299
  %v301 = vlaneseq
  %v302 = vshrl.u32 %v301, 7
  %v303 = vsub.s32 %v300, %v302
  %v304 = vrot.slane %v290, %v303
  %v305 = vcombine.low %v263, %v281
  %v306 = vcombine.high %v263, %v281
  %v308 = vunpack.c.l.s4 1983009808
  %v309 = vunpack.c.0.s8 %v308
  %v310 = vlaneseq
  %v311 = vshrl.u32 %v310, 7
  %v312 = vsub.s32 %v309, %v311
  %v313 = vrot.slane %v305, %v312
  %v315 = vunpack.c.l.s4 1983009808
  %v316 = vunpack.c.0.s8 %v315
  %v317 = vlaneseq
  %v318 = vshrl.u32 %v317, 7
  %v319 = vsub.s32 %v316, %v318
  %v320 = vrot.slane %v306, %v319
  %v321 = vcombine.low %v297, %v313
  %v322 = vcombine.high %v297, %v313
  %v324 = vunpack.c.l.s4 1934713408
  %v325 = vunpack.c.0.s8 %v324
  %v326 = vlaneseq
  %v327 = vshrl.u32 %v326, 7
  %v328 = vsub.s32 %v325, %v327
  %v329 = vrot.slane %v321, %v328
  %v331 = vunpack.c.l.s4 1934713408
  %v332 = vunpack.c.0.s8 %v331
  %v333 = vlaneseq
  %v334 = vshrl.u32 %v333, 7
  %v335 = vsub.s32 %v332, %v334
  %v336 = vrot.slane %v322, %v335
  %v337 = vcombine.low %v304, %v320
  %v338 = vcombine.high %v304, %v320
  %v340 = vunpack.c.l.s4 1934713408
  %v341 = vunpack.c.0.s8 %v340
  %v342 = vlaneseq
  %v343 = vshrl.u32 %v342, 7
  %v344 = vsub.s32 %v341, %v343
  %v345 = vrot.slane %v337, %v344
  %v347 = vunpack.c.l.s4 1934713408
  %v348 = vunpack.c.0.s8 %v347
  %v349 = vlaneseq
  %v350 = vshrl.u32 %v349, 7
  %v351 = vsub.s32 %v348, %v350
  %v352 = vrot.slane %v338, %v351
  %v353 = vcombine.high %v329, 0.0
  %v354 = vcombine.high %v336, 0.0
  %v355 = vcombine.high %v345, 0.0
  %v356 = vcombine.high %v352, 0.0
  %v357 = vcombine.low %v249, %v274
  %v358 = vcombine.high %v249, %v274
  %v360 = vunpack.c.l.s4 1983009808
  %v361 = vunpack.c.0.s8 %v360
  %v362 = vlaneseq
  %v363 = vshrl.u32 %v362, 7
  %v364 = vsub.s32 %v361, %v363
  %v365 = vrot.slane %v357, %v364
  %v367 = vunpack.c.l.s4 1983009808
  %v368 = vunpack.c.0.s8 %v367
  %v369 = vlaneseq
  %v370 = vshrl.u32 %v369, 7
  %v371 = vsub.s32 %v368, %v370
  %v372 = vrot.slane %v358, %v371
  %v373 = vcombine.low %v265, %v283
  %v374 = vcombine.high %v265, %v283
  %v376 = vunpack.c.l.s4 1983009808
  %v377 = vunpack.c.0.s8 %v376
  %v378 = vlaneseq
  %v379 = vshrl.u32 %v378, 7
  %v380 = vsub.s32 %v377, %v379
  %v381 = vrot.slane %v373, %v380
  %v383 = vunpack.c.l.s4 1983009808
  %v384 = vunpack.c.0.s8 %v383
  %v385 = vlaneseq
  %v386 = vshrl.u32 %v385, 7
  %v387 = vsub.s32 %v384, %v386
  %v388 = vrot.slane %v374, %v387
  %v389 = vcombine.low %v365, %v381
  %v390 = vcombine.high %v365, %v381
  %v392 = vunpack.c.l.s4 1934713408
  %v393 = vunpack.c.0.s8 %v392
  %v394 = vlaneseq
  %v395 = vshrl.u32 %v394, 7
  %v396 = vsub.s32 %v393, %v395
  %v397 = vrot.slane %v389, %v396
  %v399 = vunpack.c.l.s4 1934713408
  %v400 = vunpack.c.0.s8 %v399
  %v401 = vlaneseq
  %v402 = vshrl.u32 %v401, 7
  %v403 = vsub.s32 %v400, %v402
  %v404 = vrot.slane %v390, %v403
  %v405 = vcombine.low %v372, %v388
  %v406 = vcombine.high %v372, %v388
  %v408 = vunpack.c.l.s4 1934713408
  %v409 = vunpack.c.0.s8 %v408
  %v410 = vlaneseq
  %v411 = vshrl.u32 %v410, 7
  %v412 = vsub.s32 %v409, %v411
  %v413 = vrot.slane %v405, %v412
  %v415 = vunpack.c.l.s4 1934713408
  %v416 = vunpack.c.0.s8 %v415
  %v417 = vlaneseq
  %v418 = vshrl.u32 %v417, 7
  %v419 = vsub.s32 %v416, %v418
  %v420 = vrot.slane %v406, %v419
  %v421 = vcombine.high %v397, 0.0
  %v422 = vcombine.high %v404, 0.0
  %v423 = vcombine.high %v413, 0.0
  %v424 = vcombine.high %v420, 0.0
  %v425 = vcombine.low %v254, %v276
  %v426 = vcombine.high %v254, %v276
  %v428 = vunpack.c.l.s4 1983009808
  %v429 = vunpack.c.0.s8 %v428
  %v430 = vlaneseq
  %v431 = vshrl.u32 %v430, 7
  %v432 = vsub.s32 %v429, %v431
  %v433 = vrot.slane %v425, %v432
  %v435 = vunpack.c.l.s4 1983009808
  %v436 = vunpack.c.0.s8 %v435
  %v437 = vlaneseq
  %v438 = vshrl.u32 %v437, 7
  %v439 = vsub.s32 %v436, %v438
  %v440 = vrot.slane %v426, %v439
  %v441 = vcombine.low %v267, %v285
  %v442 = vcombine.high %v267, %v285
  %v444 = vunpack.c.l.s4 1983009808
  %v445 = vunpack.c.0.s8 %v444
  %v446 = vlaneseq
  %v447 = vshrl.u32 %v446, 7
  %v448 = vsub.s32 %v445, %v447
  %v449 = vrot.slane %v441, %v448
  %v451 = vunpack.c.l.s4 1983009808
  %v452 = vunpack.c.0.s8 %v451
  %v453 = vlaneseq
  %v454 = vshrl.u32 %v453, 7
  %v455 = vsub.s32 %v452, %v454
  %v456 = vrot.slane %v442, %v455
  %v457 = vcombine.low %v433, %v449
  %v458 = vcombine.high %v433, %v449
  %v460 = vunpack.c.l.s4 1934713408
  %v461 = vunpack.c.0.s8 %v460
  %v462 = vlaneseq
  %v463 = vshrl.u32 %v462, 7
  %v464 = vsub.s32 %v461, %v463
  %v465 = vrot.slane %v457, %v464
  %v467 = vunpack.c.l.s4 1934713408
  %v468 = vunpack.c.0.s8 %v467
  %v469 = vlaneseq
  %v470 = vshrl.u32 %v469, 7
  %v471 = vsub.s32 %v468, %v470
  %v472 = vrot.slane %v458, %v471
  %v473 = vcombine.low %v440, %v456
  %v474 = vcombine.high %v440, %v456
  %v476 = vunpack.c.l.s4 1934713408
  %v477 = vunpack.c.0.s8 %v476
  %v478 = vlaneseq
  %v479 = vshrl.u32 %v478, 7
  %v480 = vsub.s32 %v477, %v479
  %v481 = vrot.slane %v473, %v480
  %v483 = vunpack.c.l.s4 1934713408
  %v484 = vunpack.c.0.s8 %v483
  %v485 = vlaneseq
  %v486 = vshrl.u32 %v485, 7
  %v487 = vsub.s32 %v484, %v486
  %v488 = vrot.slane %v474, %v487
  %v489 = vcombine.high %v465, 0.0
  %v490 = vcombine.high %v472, 0.0
  %v491 = vcombine.high %v481, 0.0
  %v492 = vcombine.high %v488, 0.0
  %v493 = vcombine.low %v329, %v336
  %v495 = vunpack.c.l.s4 1983009808
  %v496 = vunpack.c.0.s8 %v495
  %v497 = vlaneseq
  %v498 = vshrl.u32 %v497, 7
  %v499 = vsub.s32 %v496, %v498
  %v500 = vrot.slane %v493, %v499
  %v501 = vcombine.low %v353, %v354
  %v503 = vunpack.c.l.s4 1983009808
  %v504 = vunpack.c.0.s8 %v503
  %v505 = vlaneseq
  %v506 = vshrl.u32 %v505, 7
  %v507 = vsub.s32 %v504, %v506
  %v508 = vrot.slane %v501, %v507
  %v509 = vcombine.low %v345, %v352
  %v511 = vunpack.c.l.s4 1983009808
  %v512 = vunpack.c.0.s8 %v511
  %v513 = vlaneseq
  %v514 = vshrl.u32 %v513, 7
  %v515 = vsub.s32 %v512, %v514
  %v516 = vrot.slane %v509, %v515
  %v517 = vcombine.low %v355, %v356
  %v519 = vunpack.c.l.s4 1983009808
  %v520 = vunpack.c.0.s8 %v519
  %v521 = vlaneseq
  %v522 = vshrl.u32 %v521, 7
  %v523 = vsub.s32 %v520, %v522
  %v524 = vrot.slane %v517, %v523
  %v525 = vcombine.low %v500, %v508
  %v526 = vcombine.high %v500, %v508
  %v528 = vunpack.c.l.s4 1934713408
  %v529 = vunpack.c.0.s8 %v528
  %v530 = vlaneseq
  %v531 = vshrl.u32 %v530, 7
  %v532 = vsub.s32 %v529, %v531
  %v533 = vrot.slane %v525, %v532
  %v535 = vunpack.c.l.s4 1934713408
  %v536 = vunpack.c.0.s8 %v535
  %v537 = vlaneseq
  %v538 = vshrl.u32 %v537, 7
  %v539 = vsub.s32 %v536, %v538
  %v540 = vrot.slane %v526, %v539
  %v541 = vcombine.low %v516, %v524
  %v542 = vcombine.high %v516, %v524
  %v544 = vunpack.c.l.s4 1934713408
  %v545 = vunpack.c.0.s8 %v544
  %v546 = vlaneseq
  %v547 = vshrl.u32 %v546, 7
  %v548 = vsub.s32 %v545, %v547
  %v549 = vrot.slane %v541, %v548
  %v551 = vunpack.c.l.s4 1934713408
  %v552 = vunpack.c.0.s8 %v551
  %v553 = vlaneseq
  %v554 = vshrl.u32 %v553, 7
  %v555 = vsub.s32 %v552, %v554
  %v556 = vrot.slane %v542, %v555
  %v557 = vcombine.low %v533, %v549
  %v558 = vcombine.high %v533, %v549
  %v559 = vcombine.low %v540, %v556
  %v560 = vcombine.high %v540, %v556
  %v561 = vcombine.low %v397, %v404
  %v563 = vunpack.c.l.s4 1983009808
  %v564 = vunpack.c.0.s8 %v563
  %v565 = vlaneseq
  %v566 = vshrl.u32 %v565, 7
  %v567 = vsub.s32 %v564, %v566
  %v568 = vrot.slane %v561, %v567
  %v569 = vcombine.low %v421, %v422
  %v571 = vunpack.c.l.s4 1983009808
  %v572 = vunpack.c.0.s8 %v571
  %v573 = vlaneseq
  %v574 = vshrl.u32 %v573, 7
  %v575 = vsub.s32 %v572, %v574
  %v576 = vrot.slane %v569, %v575
  %v577 = vcombine.low %v413, %v420
  %v579 = vunpack.c.l.s4 1983009808
  %v580 = vunpack.c.0.s8 %v579
  %v581 = vlaneseq
  %v582 = vshrl.u32 %v581, 7
  %v583 = vsub.s32 %v580, %v582
  %v584 = vrot.slane %v577, %v583
  %v585 = vcombine.low %v423, %v424
  %v587 = vunpack.c.l.s4 1983009808
  %v588 = vunpack.c.0.s8 %v587
  %v589 = vlaneseq
  %v590 = vshrl.u32 %v589, 7
  %v591 = vsub.s32 %v588, %v590
  %v592 = vrot.slane %v585, %v591
  %v593 = vcombine.low %v568, %v576
  %v594 = vcombine.high %v568, %v576
  %v596 = vunpack.c.l.s4 1934713408
  %v597 = vunpack.c.0.s8 %v596
  %v598 = vlaneseq
  %v599 = vshrl.u32 %v598, 7
  %v600 = vsub.s32 %v597, %v599
  %v601 = vrot.slane %v593, %v600
  %v603 = vunpack.c.l.s4 1934713408
  %v604 = vunpack.c.0.s8 %v603
  %v605 = vlaneseq
  %v606 = vshrl.u32 %v605, 7
  %v607 = vsub.s32 %v604, %v606
  %v608 = vrot.slane %v594, %v607
  %v609 = vcombine.low %v584, %v592
  %v610 = vcombine.high %v584, %v592
  %v612 = vunpack.c.l.s4 1934713408
  %v613 = vunpack.c.0.s8 %v612
  %v614 = vlaneseq
  %v615 = vshrl.u32 %v614, 7
  %v616 = vsub.s32 %v613, %v615
  %v617 = vrot.slane %v609, %v616
  %v619 = vunpack.c.l.s4 1934713408
  %v620 = vunpack.c.0.s8 %v619
  %v621 = vlaneseq
  %v622 = vshrl.u32 %v621, 7
  %v623 = vsub.s32 %v620, %v622
  %v624 = vrot.slane %v610, %v623
  %v625 = vcombine.low %v601, %v617
  %v626 = vcombine.high %v601, %v617
  %v627 = vcombine.low %v608, %v624
  %v628 = vcombine.high %v608, %v624
  %v629 = vcombine.low %v465, %v472
  %v631 = vunpack.c.l.s4 1983009808
  %v632 = vunpack.c.0.s8 %v631
  %v633 = vlaneseq
  %v634 = vshrl.u32 %v633, 7
  %v635 = vsub.s32 %v632, %v634
  %v636 = vrot.slane %v629, %v635
  %v637 = vcombine.low %v489, %v490
  %v639 = vunpack.c.l.s4 1983009808
  %v640 = vunpack.c.0.s8 %v639
  %v641 = vlaneseq
  %v642 = vshrl.u32 %v641, 7
  %v643 = vsub.s32 %v640, %v642
  %v644 = vrot.slane %v637, %v643
  %v645 = vcombine.low %v481, %v488
  %v647 = vunpack.c.l.s4 1983009808
  %v648 = vunpack.c.0.s8 %v647
  %v649 = vlaneseq
  %v650 = vshrl.u32 %v649, 7
  %v651 = vsub.s32 %v648, %v650
  %v652 = vrot.slane %v645, %v651
  %v653 = vcombine.low %v491, %v492
  %v655 = vunpack.c.l.s4 1983009808
  %v656 = vunpack.c.0.s8 %v655
  %v657 = vlaneseq
  %v658 = vshrl.u32 %v657, 7
  %v659 = vsub.s32 %v656, %v658
  %v660 = vrot.slane %v653, %v659
  %v661 = vcombine.low %v636, %v644
  %v662 = vcombine.high %v636, %v644
  %v664 = vunpack.c.l.s4 1934713408
  %v665 = vunpack.c.0.s8 %v664
  %v666 = vlaneseq
  %v667 = vshrl.u32 %v666, 7
  %v668 = vsub.s32 %v665, %v667
  %v669 = vrot.slane %v661, %v668
  %v671 = vunpack.c.l.s4 1934713408
  %v672 = vunpack.c.0.s8 %v671
  %v673 = vlaneseq
  %v674 = vshrl.u32 %v673, 7
  %v675 = vsub.s32 %v672, %v674
  %v676 = vrot.slane %v662, %v675
  %v677 = vcombine.low %v652, %v660
  %v678 = vcombine.high %v652, %v660
  %v680 = vunpack.c.l.s4 1934713408
  %v681 = vunpack.c.0.s8 %v680
  %v682 = vlaneseq
  %v683 = vshrl.u32 %v682, 7
  %v684 = vsub.s32 %v681, %v683
  %v685 = vrot.slane %v677, %v684
  %v687 = vunpack.c.l.s4 1934713408
  %v688 = vunpack.c.0.s8 %v687
  %v689 = vlaneseq
  %v690 = vshrl.u32 %v689, 7
  %v691 = vsub.s32 %v688, %v690
  %v692 = vrot.slane %v678, %v691
  %v693 = vcombine.low %v669, %v685
  %v694 = vcombine.high %v669, %v685
  %v695 = vcombine.low %v676, %v692
  %v696 = vcombine.high %v676, %v692
  %697 = vrot.lane.b32.xlu0 %v246, 96
  %v698 = vpop.permute.xlu0 %697
  %699 = vrot.lane.b32.xlu0 %v249, 96
  %v700 = vpop.permute.xlu0 %699
  %701 = vrot.lane.b32.xlu0 %v254, 96
  %v702 = vpop.permute.xlu0 %701
  %703 = vrot.lane.b32.xlu0 %v263, 96
  %v704 = vpop.permute.xlu0 %703
  %705 = vrot.lane.b32.xlu0 %v265, 96
  %v706 = vpop.permute.xlu0 %705
  %707 = vrot.lane.b32.xlu0 %v267, 96
  %v708 = vpop.permute.xlu0 %707
  %709 = vrot.lane.b32.xlu0 %v272, 96
  %v710 = vpop.permute.xlu0 %709
  %711 = vrot.lane.b32.xlu0 %v274, 96
  %v712 = vpop.permute.xlu0 %711
  %713 = vrot.lane.b32.xlu0 %v276, 96
  %v714 = vpop.permute.xlu0 %713
  %715 = vrot.lane.b32.xlu0 %v281, 96
  %v716 = vpop.permute.xlu0 %715
  %717 = vrot.lane.b32.xlu0 %v283, 96
  %v718 = vpop.permute.xlu0 %717
  %719 = vrot.lane.b32.xlu0 %v285, 96
  %v720 = vpop.permute.xlu0 %719
  %v733 = vcombine.low %v698, %v710
  %v734 = vcombine.high %v698, %v710
  %v736 = vunpack.c.l.s4 1983009808
  %v737 = vunpack.c.0.s8 %v736
  %v738 = vlaneseq
  %v739 = vshrl.u32 %v738, 7
  %v740 = vsub.s32 %v737, %v739
  %v741 = vrot.slane %v733, %v740
  %v743 = vunpack.c.l.s4 1983009808
  %v744 = vunpack.c.0.s8 %v743
  %v745 = vlaneseq
  %v746 = vshrl.u32 %v745, 7
  %v747 = vsub.s32 %v744, %v746
  %v748 = vrot.slane %v734, %v747
  %v749 = vcombine.low %v704, %v716
  %v750 = vcombine.high %v704, %v716
  %v752 = vunpack.c.l.s4 1983009808
  %v753 = vunpack.c.0.s8 %v752
  %v754 = vlaneseq
  %v755 = vshrl.u32 %v754, 7
  %v756 = vsub.s32 %v753, %v755
  %v757 = vrot.slane %v749, %v756
  %v759 = vunpack.c.l.s4 1983009808
  %v760 = vunpack.c.0.s8 %v759
  %v761 = vlaneseq
  %v762 = vshrl.u32 %v761, 7
  %v763 = vsub.s32 %v760, %v762
  %v764 = vrot.slane %v750, %v763
  %v765 = vcombine.low %v741, %v757
  %v766 = vcombine.high %v741, %v757
  %v768 = vunpack.c.l.s4 1934713408
  %v769 = vunpack.c.0.s8 %v768
  %v770 = vlaneseq
  %v771 = vshrl.u32 %v770, 7
  %v772 = vsub.s32 %v769, %v771
  %v773 = vrot.slane %v765, %v772
  %v775 = vunpack.c.l.s4 1934713408
  %v776 = vunpack.c.0.s8 %v775
  %v777 = vlaneseq
  %v778 = vshrl.u32 %v777, 7
  %v779 = vsub.s32 %v776, %v778
  %v780 = vrot.slane %v766, %v779
  %v781 = vcombine.low %v748, %v764
  %v782 = vcombine.high %v748, %v764
  %v784 = vunpack.c.l.s4 1934713408
  %v785 = vunpack.c.0.s8 %v784
  %v786 = vlaneseq
  %v787 = vshrl.u32 %v786, 7
  %v788 = vsub.s32 %v785, %v787
  %v789 = vrot.slane %v781, %v788
  %v791 = vunpack.c.l.s4 1934713408
  %v792 = vunpack.c.0.s8 %v791
  %v793 = vlaneseq
  %v794 = vshrl.u32 %v793, 7
  %v795 = vsub.s32 %v792, %v794
  %v796 = vrot.slane %v782, %v795
  %v797 = vcombine.high %v773, 0.0
  %v798 = vcombine.high %v780, 0.0
  %v799 = vcombine.high %v789, 0.0
  %v800 = vcombine.high %v796, 0.0
  %v801 = vcombine.low %v700, %v712
  %v802 = vcombine.high %v700, %v712
  %v804 = vunpack.c.l.s4 1983009808
  %v805 = vunpack.c.0.s8 %v804
  %v806 = vlaneseq
  %v807 = vshrl.u32 %v806, 7
  %v808 = vsub.s32 %v805, %v807
  %v809 = vrot.slane %v801, %v808
  %v811 = vunpack.c.l.s4 1983009808
  %v812 = vunpack.c.0.s8 %v811
  %v813 = vlaneseq
  %v814 = vshrl.u32 %v813, 7
  %v815 = vsub.s32 %v812, %v814
  %v816 = vrot.slane %v802, %v815
  %v817 = vcombine.low %v706, %v718
  %v818 = vcombine.high %v706, %v718
  %v820 = vunpack.c.l.s4 1983009808
  %v821 = vunpack.c.0.s8 %v820
  %v822 = vlaneseq
  %v823 = vshrl.u32 %v822, 7
  %v824 = vsub.s32 %v821, %v823
  %v825 = vrot.slane %v817, %v824
  %v827 = vunpack.c.l.s4 1983009808
  %v828 = vunpack.c.0.s8 %v827
  %v829 = vlaneseq
  %v830 = vshrl.u32 %v829, 7
  %v831 = vsub.s32 %v828, %v830
  %v832 = vrot.slane %v818, %v831
  %v833 = vcombine.low %v809, %v825
  %v834 = vcombine.high %v809, %v825
  %v836 = vunpack.c.l.s4 1934713408
  %v837 = vunpack.c.0.s8 %v836
  %v838 = vlaneseq
  %v839 = vshrl.u32 %v838, 7
  %v840 = vsub.s32 %v837, %v839
  %v841 = vrot.slane %v833, %v840
  %v843 = vunpack.c.l.s4 1934713408
  %v844 = vunpack.c.0.s8 %v843
  %v845 = vlaneseq
  %v846 = vshrl.u32 %v845, 7
  %v847 = vsub.s32 %v844, %v846
  %v848 = vrot.slane %v834, %v847
  %v849 = vcombine.low %v816, %v832
  %v850 = vcombine.high %v816, %v832
  %v852 = vunpack.c.l.s4 1934713408
  %v853 = vunpack.c.0.s8 %v852
  %v854 = vlaneseq
  %v855 = vshrl.u32 %v854, 7
  %v856 = vsub.s32 %v853, %v855
  %v857 = vrot.slane %v849, %v856
  %v859 = vunpack.c.l.s4 1934713408
  %v860 = vunpack.c.0.s8 %v859
  %v861 = vlaneseq
  %v862 = vshrl.u32 %v861, 7
  %v863 = vsub.s32 %v860, %v862
  %v864 = vrot.slane %v850, %v863
  %v865 = vcombine.high %v841, 0.0
  %v866 = vcombine.high %v848, 0.0
  %v867 = vcombine.high %v857, 0.0
  %v868 = vcombine.high %v864, 0.0
  %v869 = vcombine.low %v702, %v714
  %v870 = vcombine.high %v702, %v714
  %v872 = vunpack.c.l.s4 1983009808
  %v873 = vunpack.c.0.s8 %v872
  %v874 = vlaneseq
  %v875 = vshrl.u32 %v874, 7
  %v876 = vsub.s32 %v873, %v875
  %v877 = vrot.slane %v869, %v876
  %v879 = vunpack.c.l.s4 1983009808
  %v880 = vunpack.c.0.s8 %v879
  %v881 = vlaneseq
  %v882 = vshrl.u32 %v881, 7
  %v883 = vsub.s32 %v880, %v882
  %v884 = vrot.slane %v870, %v883
  %v885 = vcombine.low %v708, %v720
  %v886 = vcombine.high %v708, %v720
  %v888 = vunpack.c.l.s4 1983009808
  %v889 = vunpack.c.0.s8 %v888
  %v890 = vlaneseq
  %v891 = vshrl.u32 %v890, 7
  %v892 = vsub.s32 %v889, %v891
  %v893 = vrot.slane %v885, %v892
  %v895 = vunpack.c.l.s4 1983009808
  %v896 = vunpack.c.0.s8 %v895
  %v897 = vlaneseq
  %v898 = vshrl.u32 %v897, 7
  %v899 = vsub.s32 %v896, %v898
  %v900 = vrot.slane %v886, %v899
  %v901 = vcombine.low %v877, %v893
  %v902 = vcombine.high %v877, %v893
  %v904 = vunpack.c.l.s4 1934713408
  %v905 = vunpack.c.0.s8 %v904
  %v906 = vlaneseq
  %v907 = vshrl.u32 %v906, 7
  %v908 = vsub.s32 %v905, %v907
  %v909 = vrot.slane %v901, %v908
  %v911 = vunpack.c.l.s4 1934713408
  %v912 = vunpack.c.0.s8 %v911
  %v913 = vlaneseq
  %v914 = vshrl.u32 %v913, 7
  %v915 = vsub.s32 %v912, %v914
  %v916 = vrot.slane %v902, %v915
  %v917 = vcombine.low %v884, %v900
  %v918 = vcombine.high %v884, %v900
  %v920 = vunpack.c.l.s4 1934713408
  %v921 = vunpack.c.0.s8 %v920
  %v922 = vlaneseq
  %v923 = vshrl.u32 %v922, 7
  %v924 = vsub.s32 %v921, %v923
  %v925 = vrot.slane %v917, %v924
  %v927 = vunpack.c.l.s4 1934713408
  %v928 = vunpack.c.0.s8 %v927
  %v929 = vlaneseq
  %v930 = vshrl.u32 %v929, 7
  %v931 = vsub.s32 %v928, %v930
  %v932 = vrot.slane %v918, %v931
  %v933 = vcombine.high %v909, 0.0
  %v934 = vcombine.high %v916, 0.0
  %v935 = vcombine.high %v925, 0.0
  %v936 = vcombine.high %v932, 0.0
  %v937 = vcombine.low %v773, %v780
  %v939 = vunpack.c.l.s4 1983009808
  %v940 = vunpack.c.0.s8 %v939
  %v941 = vlaneseq
  %v942 = vshrl.u32 %v941, 7
  %v943 = vsub.s32 %v940, %v942
  %v944 = vrot.slane %v937, %v943
  %v945 = vcombine.low %v797, %v798
  %v947 = vunpack.c.l.s4 1983009808
  %v948 = vunpack.c.0.s8 %v947
  %v949 = vlaneseq
  %v950 = vshrl.u32 %v949, 7
  %v951 = vsub.s32 %v948, %v950
  %v952 = vrot.slane %v945, %v951
  %v953 = vcombine.low %v789, %v796
  %v955 = vunpack.c.l.s4 1983009808
  %v956 = vunpack.c.0.s8 %v955
  %v957 = vlaneseq
  %v958 = vshrl.u32 %v957, 7
  %v959 = vsub.s32 %v956, %v958
  %v960 = vrot.slane %v953, %v959
  %v961 = vcombine.low %v799, %v800
  %v963 = vunpack.c.l.s4 1983009808
  %v964 = vunpack.c.0.s8 %v963
  %v965 = vlaneseq
  %v966 = vshrl.u32 %v965, 7
  %v967 = vsub.s32 %v964, %v966
  %v968 = vrot.slane %v961, %v967
  %v969 = vcombine.low %v944, %v952
  %v970 = vcombine.high %v944, %v952
  %v972 = vunpack.c.l.s4 1934713408
  %v973 = vunpack.c.0.s8 %v972
  %v974 = vlaneseq
  %v975 = vshrl.u32 %v974, 7
  %v976 = vsub.s32 %v973, %v975
  %v977 = vrot.slane %v969, %v976
  %v979 = vunpack.c.l.s4 1934713408
  %v980 = vunpack.c.0.s8 %v979
  %v981 = vlaneseq
  %v982 = vshrl.u32 %v981, 7
  %v983 = vsub.s32 %v980, %v982
  %v984 = vrot.slane %v970, %v983
  %v985 = vcombine.low %v960, %v968
  %v986 = vcombine.high %v960, %v968
  %v988 = vunpack.c.l.s4 1934713408
  %v989 = vunpack.c.0.s8 %v988
  %v990 = vlaneseq
  %v991 = vshrl.u32 %v990, 7
  %v992 = vsub.s32 %v989, %v991
  %v993 = vrot.slane %v985, %v992
  %v995 = vunpack.c.l.s4 1934713408
  %v996 = vunpack.c.0.s8 %v995
  %v997 = vlaneseq
  %v998 = vshrl.u32 %v997, 7
  %v999 = vsub.s32 %v996, %v998
  %v1000 = vrot.slane %v986, %v999
  %v1001 = vcombine.low %v977, %v993
  %v1002 = vcombine.high %v977, %v993
  %v1003 = vcombine.low %v984, %v1000
  %v1004 = vcombine.high %v984, %v1000
  %v1005 = vcombine.low %v841, %v848
  %v1007 = vunpack.c.l.s4 1983009808
  %v1008 = vunpack.c.0.s8 %v1007
  %v1009 = vlaneseq
  %v1010 = vshrl.u32 %v1009, 7
  %v1011 = vsub.s32 %v1008, %v1010
  %v1012 = vrot.slane %v1005, %v1011
  %v1013 = vcombine.low %v865, %v866
  %v1015 = vunpack.c.l.s4 1983009808
  %v1016 = vunpack.c.0.s8 %v1015
  %v1017 = vlaneseq
  %v1018 = vshrl.u32 %v1017, 7
  %v1019 = vsub.s32 %v1016, %v1018
  %v1020 = vrot.slane %v1013, %v1019
  %v1021 = vcombine.low %v857, %v864
  %v1023 = vunpack.c.l.s4 1983009808
  %v1024 = vunpack.c.0.s8 %v1023
  %v1025 = vlaneseq
  %v1026 = vshrl.u32 %v1025, 7
  %v1027 = vsub.s32 %v1024, %v1026
  %v1028 = vrot.slane %v1021, %v1027
  %v1029 = vcombine.low %v867, %v868
  %v1031 = vunpack.c.l.s4 1983009808
  %v1032 = vunpack.c.0.s8 %v1031
  %v1033 = vlaneseq
  %v1034 = vshrl.u32 %v1033, 7
  %v1035 = vsub.s32 %v1032, %v1034
  %v1036 = vrot.slane %v1029, %v1035
  %v1037 = vcombine.low %v1012, %v1020
  %v1038 = vcombine.high %v1012, %v1020
  %v1040 = vunpack.c.l.s4 1934713408
  %v1041 = vunpack.c.0.s8 %v1040
  %v1042 = vlaneseq
  %v1043 = vshrl.u32 %v1042, 7
  %v1044 = vsub.s32 %v1041, %v1043
  %v1045 = vrot.slane %v1037, %v1044
  %v1047 = vunpack.c.l.s4 1934713408
  %v1048 = vunpack.c.0.s8 %v1047
  %v1049 = vlaneseq
  %v1050 = vshrl.u32 %v1049, 7
  %v1051 = vsub.s32 %v1048, %v1050
  %v1052 = vrot.slane %v1038, %v1051
  %v1053 = vcombine.low %v1028, %v1036
  %v1054 = vcombine.high %v1028, %v1036
  %v1056 = vunpack.c.l.s4 1934713408
  %v1057 = vunpack.c.0.s8 %v1056
  %v1058 = vlaneseq
  %v1059 = vshrl.u32 %v1058, 7
  %v1060 = vsub.s32 %v1057, %v1059
  %v1061 = vrot.slane %v1053, %v1060
  %v1063 = vunpack.c.l.s4 1934713408
  %v1064 = vunpack.c.0.s8 %v1063
  %v1065 = vlaneseq
  %v1066 = vshrl.u32 %v1065, 7
  %v1067 = vsub.s32 %v1064, %v1066
  %v1068 = vrot.slane %v1054, %v1067
  %v1069 = vcombine.low %v1045, %v1061
  %v1070 = vcombine.high %v1045, %v1061
  %v1071 = vcombine.low %v1052, %v1068
  %v1072 = vcombine.high %v1052, %v1068
  %v1073 = vcombine.low %v909, %v916
  %v1075 = vunpack.c.l.s4 1983009808
  %v1076 = vunpack.c.0.s8 %v1075
  %v1077 = vlaneseq
  %v1078 = vshrl.u32 %v1077, 7
  %v1079 = vsub.s32 %v1076, %v1078
  %v1080 = vrot.slane %v1073, %v1079
  %v1081 = vcombine.low %v933, %v934
  %v1083 = vunpack.c.l.s4 1983009808
  %v1084 = vunpack.c.0.s8 %v1083
  %v1085 = vlaneseq
  %v1086 = vshrl.u32 %v1085, 7
  %v1087 = vsub.s32 %v1084, %v1086
  %v1088 = vrot.slane %v1081, %v1087
  %v1089 = vcombine.low %v925, %v932
  %v1091 = vunpack.c.l.s4 1983009808
  %v1092 = vunpack.c.0.s8 %v1091
  %v1093 = vlaneseq
  %v1094 = vshrl.u32 %v1093, 7
  %v1095 = vsub.s32 %v1092, %v1094
  %v1096 = vrot.slane %v1089, %v1095
  %v1097 = vcombine.low %v935, %v936
  %v1099 = vunpack.c.l.s4 1983009808
  %v1100 = vunpack.c.0.s8 %v1099
  %v1101 = vlaneseq
  %v1102 = vshrl.u32 %v1101, 7
  %v1103 = vsub.s32 %v1100, %v1102
  %v1104 = vrot.slane %v1097, %v1103
  %v1105 = vcombine.low %v1080, %v1088
  %v1106 = vcombine.high %v1080, %v1088
  %v1108 = vunpack.c.l.s4 1934713408
  %v1109 = vunpack.c.0.s8 %v1108
  %v1110 = vlaneseq
  %v1111 = vshrl.u32 %v1110, 7
  %v1112 = vsub.s32 %v1109, %v1111
  %v1113 = vrot.slane %v1105, %v1112
  %v1115 = vunpack.c.l.s4 1934713408
  %v1116 = vunpack.c.0.s8 %v1115
  %v1117 = vlaneseq
  %v1118 = vshrl.u32 %v1117, 7
  %v1119 = vsub.s32 %v1116, %v1118
  %v1120 = vrot.slane %v1106, %v1119
  %v1121 = vcombine.low %v1096, %v1104
  %v1122 = vcombine.high %v1096, %v1104
  %v1124 = vunpack.c.l.s4 1934713408
  %v1125 = vunpack.c.0.s8 %v1124
  %v1126 = vlaneseq
  %v1127 = vshrl.u32 %v1126, 7
  %v1128 = vsub.s32 %v1125, %v1127
  %v1129 = vrot.slane %v1121, %v1128
  %v1131 = vunpack.c.l.s4 1934713408
  %v1132 = vunpack.c.0.s8 %v1131
  %v1133 = vlaneseq
  %v1134 = vshrl.u32 %v1133, 7
  %v1135 = vsub.s32 %v1132, %v1134
  %v1136 = vrot.slane %v1122, %v1135
  %v1137 = vcombine.low %v1113, %v1129
  %v1138 = vcombine.high %v1113, %v1129
  %v1139 = vcombine.low %v1120, %v1136
  %v1140 = vcombine.high %v1120, %v1136
  %1141 = vrot.lane.b32.xlu0 %v246, 64
  %v1142 = vpop.permute.xlu0 %1141
  %1143 = vrot.lane.b32.xlu0 %v249, 64
  %v1144 = vpop.permute.xlu0 %1143
  %1145 = vrot.lane.b32.xlu0 %v254, 64
  %v1146 = vpop.permute.xlu0 %1145
  %1147 = vrot.lane.b32.xlu0 %v263, 64
  %v1148 = vpop.permute.xlu0 %1147
  %1149 = vrot.lane.b32.xlu0 %v265, 64
  %v1150 = vpop.permute.xlu0 %1149
  %1151 = vrot.lane.b32.xlu0 %v267, 64
  %v1152 = vpop.permute.xlu0 %1151
  %1153 = vrot.lane.b32.xlu0 %v272, 64
  %v1154 = vpop.permute.xlu0 %1153
  %1155 = vrot.lane.b32.xlu0 %v274, 64
  %v1156 = vpop.permute.xlu0 %1155
  %1157 = vrot.lane.b32.xlu0 %v276, 64
  %v1158 = vpop.permute.xlu0 %1157
  %1159 = vrot.lane.b32.xlu0 %v281, 64
  %v1160 = vpop.permute.xlu0 %1159
  %1161 = vrot.lane.b32.xlu0 %v283, 64
  %v1162 = vpop.permute.xlu0 %1161
  %1163 = vrot.lane.b32.xlu0 %v285, 64
  %v1164 = vpop.permute.xlu0 %1163
  %v1177 = vcombine.low %v1142, %v1154
  %v1178 = vcombine.high %v1142, %v1154
  %v1180 = vunpack.c.l.s4 1983009808
  %v1181 = vunpack.c.0.s8 %v1180
  %v1182 = vlaneseq
  %v1183 = vshrl.u32 %v1182, 7
  %v1184 = vsub.s32 %v1181, %v1183
  %v1185 = vrot.slane %v1177, %v1184
  %v1187 = vunpack.c.l.s4 1983009808
  %v1188 = vunpack.c.0.s8 %v1187
  %v1189 = vlaneseq
  %v1190 = vshrl.u32 %v1189, 7
  %v1191 = vsub.s32 %v1188, %v1190
  %v1192 = vrot.slane %v1178, %v1191
  %v1193 = vcombine.low %v1148, %v1160
  %v1194 = vcombine.high %v1148, %v1160
  %v1196 = vunpack.c.l.s4 1983009808
  %v1197 = vunpack.c.0.s8 %v1196
  %v1198 = vlaneseq
  %v1199 = vshrl.u32 %v1198, 7
  %v1200 = vsub.s32 %v1197, %v1199
  %v1201 = vrot.slane %v1193, %v1200
  %v1203 = vunpack.c.l.s4 1983009808
  %v1204 = vunpack.c.0.s8 %v1203
  %v1205 = vlaneseq
  %v1206 = vshrl.u32 %v1205, 7
  %v1207 = vsub.s32 %v1204, %v1206
  %v1208 = vrot.slane %v1194, %v1207
  %v1209 = vcombine.low %v1185, %v1201
  %v1210 = vcombine.high %v1185, %v1201
  %v1212 = vunpack.c.l.s4 1934713408
  %v1213 = vunpack.c.0.s8 %v1212
  %v1214 = vlaneseq
  %v1215 = vshrl.u32 %v1214, 7
  %v1216 = vsub.s32 %v1213, %v1215
  %v1217 = vrot.slane %v1209, %v1216
  %v1219 = vunpack.c.l.s4 1934713408
  %v1220 = vunpack.c.0.s8 %v1219
  %v1221 = vlaneseq
  %v1222 = vshrl.u32 %v1221, 7
  %v1223 = vsub.s32 %v1220, %v1222
  %v1224 = vrot.slane %v1210, %v1223
  %v1225 = vcombine.low %v1192, %v1208
  %v1226 = vcombine.high %v1192, %v1208
  %v1228 = vunpack.c.l.s4 1934713408
  %v1229 = vunpack.c.0.s8 %v1228
  %v1230 = vlaneseq
  %v1231 = vshrl.u32 %v1230, 7
  %v1232 = vsub.s32 %v1229, %v1231
  %v1233 = vrot.slane %v1225, %v1232
  %v1235 = vunpack.c.l.s4 1934713408
  %v1236 = vunpack.c.0.s8 %v1235
  %v1237 = vlaneseq
  %v1238 = vshrl.u32 %v1237, 7
  %v1239 = vsub.s32 %v1236, %v1238
  %v1240 = vrot.slane %v1226, %v1239
  %v1241 = vcombine.high %v1217, 0.0
  %v1242 = vcombine.high %v1224, 0.0
  %v1243 = vcombine.high %v1233, 0.0
  %v1244 = vcombine.high %v1240, 0.0
  %v1245 = vcombine.low %v1144, %v1156
  %v1246 = vcombine.high %v1144, %v1156
  %v1248 = vunpack.c.l.s4 1983009808
  %v1249 = vunpack.c.0.s8 %v1248
  %v1250 = vlaneseq
  %v1251 = vshrl.u32 %v1250, 7
  %v1252 = vsub.s32 %v1249, %v1251
  %v1253 = vrot.slane %v1245, %v1252
  %v1255 = vunpack.c.l.s4 1983009808
  %v1256 = vunpack.c.0.s8 %v1255
  %v1257 = vlaneseq
  %v1258 = vshrl.u32 %v1257, 7
  %v1259 = vsub.s32 %v1256, %v1258
  %v1260 = vrot.slane %v1246, %v1259
  %v1261 = vcombine.low %v1150, %v1162
  %v1262 = vcombine.high %v1150, %v1162
  %v1264 = vunpack.c.l.s4 1983009808
  %v1265 = vunpack.c.0.s8 %v1264
  %v1266 = vlaneseq
  %v1267 = vshrl.u32 %v1266, 7
  %v1268 = vsub.s32 %v1265, %v1267
  %v1269 = vrot.slane %v1261, %v1268
  %v1271 = vunpack.c.l.s4 1983009808
  %v1272 = vunpack.c.0.s8 %v1271
  %v1273 = vlaneseq
  %v1274 = vshrl.u32 %v1273, 7
  %v1275 = vsub.s32 %v1272, %v1274
  %v1276 = vrot.slane %v1262, %v1275
  %v1277 = vcombine.low %v1253, %v1269
  %v1278 = vcombine.high %v1253, %v1269
  %v1280 = vunpack.c.l.s4 1934713408
  %v1281 = vunpack.c.0.s8 %v1280
  %v1282 = vlaneseq
  %v1283 = vshrl.u32 %v1282, 7
  %v1284 = vsub.s32 %v1281, %v1283
  %v1285 = vrot.slane %v1277, %v1284
  %v1287 = vunpack.c.l.s4 1934713408
  %v1288 = vunpack.c.0.s8 %v1287
  %v1289 = vlaneseq
  %v1290 = vshrl.u32 %v1289, 7
  %v1291 = vsub.s32 %v1288, %v1290
  %v1292 = vrot.slane %v1278, %v1291
  %v1293 = vcombine.low %v1260, %v1276
  %v1294 = vcombine.high %v1260, %v1276
  %v1296 = vunpack.c.l.s4 1934713408
  %v1297 = vunpack.c.0.s8 %v1296
  %v1298 = vlaneseq
  %v1299 = vshrl.u32 %v1298, 7
  %v1300 = vsub.s32 %v1297, %v1299
  %v1301 = vrot.slane %v1293, %v1300
  %v1303 = vunpack.c.l.s4 1934713408
  %v1304 = vunpack.c.0.s8 %v1303
  %v1305 = vlaneseq
  %v1306 = vshrl.u32 %v1305, 7
  %v1307 = vsub.s32 %v1304, %v1306
  %v1308 = vrot.slane %v1294, %v1307
  %v1309 = vcombine.high %v1285, 0.0
  %v1310 = vcombine.high %v1292, 0.0
  %v1311 = vcombine.high %v1301, 0.0
  %v1312 = vcombine.high %v1308, 0.0
  %v1313 = vcombine.low %v1146, %v1158
  %v1314 = vcombine.high %v1146, %v1158
  %v1316 = vunpack.c.l.s4 1983009808
  %v1317 = vunpack.c.0.s8 %v1316
  %v1318 = vlaneseq
  %v1319 = vshrl.u32 %v1318, 7
  %v1320 = vsub.s32 %v1317, %v1319
  %v1321 = vrot.slane %v1313, %v1320
  %v1323 = vunpack.c.l.s4 1983009808
  %v1324 = vunpack.c.0.s8 %v1323
  %v1325 = vlaneseq
  %v1326 = vshrl.u32 %v1325, 7
  %v1327 = vsub.s32 %v1324, %v1326
  %v1328 = vrot.slane %v1314, %v1327
  %v1329 = vcombine.low %v1152, %v1164
  %v1330 = vcombine.high %v1152, %v1164
  %v1332 = vunpack.c.l.s4 1983009808
  %v1333 = vunpack.c.0.s8 %v1332
  %v1334 = vlaneseq
  %v1335 = vshrl.u32 %v1334, 7
  %v1336 = vsub.s32 %v1333, %v1335
  %v1337 = vrot.slane %v1329, %v1336
  %v1339 = vunpack.c.l.s4 1983009808
  %v1340 = vunpack.c.0.s8 %v1339
  %v1341 = vlaneseq
  %v1342 = vshrl.u32 %v1341, 7
  %v1343 = vsub.s32 %v1340, %v1342
  %v1344 = vrot.slane %v1330, %v1343
  %v1345 = vcombine.low %v1321, %v1337
  %v1346 = vcombine.high %v1321, %v1337
  %v1348 = vunpack.c.l.s4 1934713408
  %v1349 = vunpack.c.0.s8 %v1348
  %v1350 = vlaneseq
  %v1351 = vshrl.u32 %v1350, 7
  %v1352 = vsub.s32 %v1349, %v1351
  %v1353 = vrot.slane %v1345, %v1352
  %v1355 = vunpack.c.l.s4 1934713408
  %v1356 = vunpack.c.0.s8 %v1355
  %v1357 = vlaneseq
  %v1358 = vshrl.u32 %v1357, 7
  %v1359 = vsub.s32 %v1356, %v1358
  %v1360 = vrot.slane %v1346, %v1359
  %v1361 = vcombine.low %v1328, %v1344
  %v1362 = vcombine.high %v1328, %v1344
  %v1364 = vunpack.c.l.s4 1934713408
  %v1365 = vunpack.c.0.s8 %v1364
  %v1366 = vlaneseq
  %v1367 = vshrl.u32 %v1366, 7
  %v1368 = vsub.s32 %v1365, %v1367
  %v1369 = vrot.slane %v1361, %v1368
  %v1371 = vunpack.c.l.s4 1934713408
  %v1372 = vunpack.c.0.s8 %v1371
  %v1373 = vlaneseq
  %v1374 = vshrl.u32 %v1373, 7
  %v1375 = vsub.s32 %v1372, %v1374
  %v1376 = vrot.slane %v1362, %v1375
  %v1377 = vcombine.high %v1353, 0.0
  %v1378 = vcombine.high %v1360, 0.0
  %v1379 = vcombine.high %v1369, 0.0
  %v1380 = vcombine.high %v1376, 0.0
  %v1381 = vcombine.low %v1217, %v1224
  %v1383 = vunpack.c.l.s4 1983009808
  %v1384 = vunpack.c.0.s8 %v1383
  %v1385 = vlaneseq
  %v1386 = vshrl.u32 %v1385, 7
  %v1387 = vsub.s32 %v1384, %v1386
  %v1388 = vrot.slane %v1381, %v1387
  %v1389 = vcombine.low %v1241, %v1242
  %v1391 = vunpack.c.l.s4 1983009808
  %v1392 = vunpack.c.0.s8 %v1391
  %v1393 = vlaneseq
  %v1394 = vshrl.u32 %v1393, 7
  %v1395 = vsub.s32 %v1392, %v1394
  %v1396 = vrot.slane %v1389, %v1395
  %v1397 = vcombine.low %v1233, %v1240
  %v1399 = vunpack.c.l.s4 1983009808
  %v1400 = vunpack.c.0.s8 %v1399
  %v1401 = vlaneseq
  %v1402 = vshrl.u32 %v1401, 7
  %v1403 = vsub.s32 %v1400, %v1402
  %v1404 = vrot.slane %v1397, %v1403
  %v1405 = vcombine.low %v1243, %v1244
  %v1407 = vunpack.c.l.s4 1983009808
  %v1408 = vunpack.c.0.s8 %v1407
  %v1409 = vlaneseq
  %v1410 = vshrl.u32 %v1409, 7
  %v1411 = vsub.s32 %v1408, %v1410
  %v1412 = vrot.slane %v1405, %v1411
  %v1413 = vcombine.low %v1388, %v1396
  %v1414 = vcombine.high %v1388, %v1396
  %v1416 = vunpack.c.l.s4 1934713408
  %v1417 = vunpack.c.0.s8 %v1416
  %v1418 = vlaneseq
  %v1419 = vshrl.u32 %v1418, 7
  %v1420 = vsub.s32 %v1417, %v1419
  %v1421 = vrot.slane %v1413, %v1420
  %v1423 = vunpack.c.l.s4 1934713408
  %v1424 = vunpack.c.0.s8 %v1423
  %v1425 = vlaneseq
  %v1426 = vshrl.u32 %v1425, 7
  %v1427 = vsub.s32 %v1424, %v1426
  %v1428 = vrot.slane %v1414, %v1427
  %v1429 = vcombine.low %v1404, %v1412
  %v1430 = vcombine.high %v1404, %v1412
  %v1432 = vunpack.c.l.s4 1934713408
  %v1433 = vunpack.c.0.s8 %v1432
  %v1434 = vlaneseq
  %v1435 = vshrl.u32 %v1434, 7
  %v1436 = vsub.s32 %v1433, %v1435
  %v1437 = vrot.slane %v1429, %v1436
  %v1439 = vunpack.c.l.s4 1934713408
  %v1440 = vunpack.c.0.s8 %v1439
  %v1441 = vlaneseq
  %v1442 = vshrl.u32 %v1441, 7
  %v1443 = vsub.s32 %v1440, %v1442
  %v1444 = vrot.slane %v1430, %v1443
  %v1445 = vcombine.low %v1421, %v1437
  %v1446 = vcombine.high %v1421, %v1437
  %v1447 = vcombine.low %v1428, %v1444
  %v1448 = vcombine.high %v1428, %v1444
  %v1449 = vcombine.low %v1285, %v1292
  %v1451 = vunpack.c.l.s4 1983009808
  %v1452 = vunpack.c.0.s8 %v1451
  %v1453 = vlaneseq
  %v1454 = vshrl.u32 %v1453, 7
  %v1455 = vsub.s32 %v1452, %v1454
  %v1456 = vrot.slane %v1449, %v1455
  %v1457 = vcombine.low %v1309, %v1310
  %v1459 = vunpack.c.l.s4 1983009808
  %v1460 = vunpack.c.0.s8 %v1459
  %v1461 = vlaneseq
  %v1462 = vshrl.u32 %v1461, 7
  %v1463 = vsub.s32 %v1460, %v1462
  %v1464 = vrot.slane %v1457, %v1463
  %v1465 = vcombine.low %v1301, %v1308
  %v1467 = vunpack.c.l.s4 1983009808
  %v1468 = vunpack.c.0.s8 %v1467
  %v1469 = vlaneseq
  %v1470 = vshrl.u32 %v1469, 7
  %v1471 = vsub.s32 %v1468, %v1470
  %v1472 = vrot.slane %v1465, %v1471
  %v1473 = vcombine.low %v1311, %v1312
  %v1475 = vunpack.c.l.s4 1983009808
  %v1476 = vunpack.c.0.s8 %v1475
  %v1477 = vlaneseq
  %v1478 = vshrl.u32 %v1477, 7
  %v1479 = vsub.s32 %v1476, %v1478
  %v1480 = vrot.slane %v1473, %v1479
  %v1481 = vcombine.low %v1456, %v1464
  %v1482 = vcombine.high %v1456, %v1464
  %v1484 = vunpack.c.l.s4 1934713408
  %v1485 = vunpack.c.0.s8 %v1484
  %v1486 = vlaneseq
  %v1487 = vshrl.u32 %v1486, 7
  %v1488 = vsub.s32 %v1485, %v1487
  %v1489 = vrot.slane %v1481, %v1488
  %v1491 = vunpack.c.l.s4 1934713408
  %v1492 = vunpack.c.0.s8 %v1491
  %v1493 = vlaneseq
  %v1494 = vshrl.u32 %v1493, 7
  %v1495 = vsub.s32 %v1492, %v1494
  %v1496 = vrot.slane %v1482, %v1495
  %v1497 = vcombine.low %v1472, %v1480
  %v1498 = vcombine.high %v1472, %v1480
  %v1500 = vunpack.c.l.s4 1934713408
  %v1501 = vunpack.c.0.s8 %v1500
  %v1502 = vlaneseq
  %v1503 = vshrl.u32 %v1502, 7
  %v1504 = vsub.s32 %v1501, %v1503
  %v1505 = vrot.slane %v1497, %v1504
  %v1507 = vunpack.c.l.s4 1934713408
  %v1508 = vunpack.c.0.s8 %v1507
  %v1509 = vlaneseq
  %v1510 = vshrl.u32 %v1509, 7
  %v1511 = vsub.s32 %v1508, %v1510
  %v1512 = vrot.slane %v1498, %v1511
  %v1513 = vcombine.low %v1489, %v1505
  %v1514 = vcombine.high %v1489, %v1505
  %v1515 = vcombine.low %v1496, %v1512
  %v1516 = vcombine.high %v1496, %v1512
  %v1517 = vcombine.low %v1353, %v1360
  %v1519 = vunpack.c.l.s4 1983009808
  %v1520 = vunpack.c.0.s8 %v1519
  %v1521 = vlaneseq
  %v1522 = vshrl.u32 %v1521, 7
  %v1523 = vsub.s32 %v1520, %v1522
  %v1524 = vrot.slane %v1517, %v1523
  %v1525 = vcombine.low %v1377, %v1378
  %v1527 = vunpack.c.l.s4 1983009808
  %v1528 = vunpack.c.0.s8 %v1527
  %v1529 = vlaneseq
  %v1530 = vshrl.u32 %v1529, 7
  %v1531 = vsub.s32 %v1528, %v1530
  %v1532 = vrot.slane %v1525, %v1531
  %v1533 = vcombine.low %v1369, %v1376
  %v1535 = vunpack.c.l.s4 1983009808
  %v1536 = vunpack.c.0.s8 %v1535
  %v1537 = vlaneseq
  %v1538 = vshrl.u32 %v1537, 7
  %v1539 = vsub.s32 %v1536, %v1538
  %v1540 = vrot.slane %v1533, %v1539
  %v1541 = vcombine.low %v1379, %v1380
  %v1543 = vunpack.c.l.s4 1983009808
  %v1544 = vunpack.c.0.s8 %v1543
  %v1545 = vlaneseq
  %v1546 = vshrl.u32 %v1545, 7
  %v1547 = vsub.s32 %v1544, %v1546
  %v1548 = vrot.slane %v1541, %v1547
  %v1549 = vcombine.low %v1524, %v1532
  %v1550 = vcombine.high %v1524, %v1532
  %v1552 = vunpack.c.l.s4 1934713408
  %v1553 = vunpack.c.0.s8 %v1552
  %v1554 = vlaneseq
  %v1555 = vshrl.u32 %v1554, 7
  %v1556 = vsub.s32 %v1553, %v1555
  %v1557 = vrot.slane %v1549, %v1556
  %v1559 = vunpack.c.l.s4 1934713408
  %v1560 = vunpack.c.0.s8 %v1559
  %v1561 = vlaneseq
  %v1562 = vshrl.u32 %v1561, 7
  %v1563 = vsub.s32 %v1560, %v1562
  %v1564 = vrot.slane %v1550, %v1563
  %v1565 = vcombine.low %v1540, %v1548
  %v1566 = vcombine.high %v1540, %v1548
  %v1568 = vunpack.c.l.s4 1934713408
  %v1569 = vunpack.c.0.s8 %v1568
  %v1570 = vlaneseq
  %v1571 = vshrl.u32 %v1570, 7
  %v1572 = vsub.s32 %v1569, %v1571
  %v1573 = vrot.slane %v1565, %v1572
  %v1575 = vunpack.c.l.s4 1934713408
  %v1576 = vunpack.c.0.s8 %v1575
  %v1577 = vlaneseq
  %v1578 = vshrl.u32 %v1577, 7
  %v1579 = vsub.s32 %v1576, %v1578
  %v1580 = vrot.slane %v1566, %v1579
  %v1581 = vcombine.low %v1557, %v1573
  %v1582 = vcombine.high %v1557, %v1573
  %v1583 = vcombine.low %v1564, %v1580
  %v1584 = vcombine.high %v1564, %v1580
  %v1585 = vpack.c.bf16 %v625, %v557
  %v1586 = vpack.c.bf16 %v693, %v693
  %v1587 = vpack.c.bf16 %v626, %v558
  %v1588 = vpack.c.bf16 %v694, %v694
  %v1589 = vpack.c.bf16 %v627, %v559
  %v1590 = vpack.c.bf16 %v695, %v695
  %v1591 = vpack.c.bf16 %v628, %v560
  %v1592 = vpack.c.bf16 %v696, %v696
  %v1593 = vpack.c.bf16 %v1069, %v1001
  %v1594 = vpack.c.bf16 %v1137, %v1137
  %v1595 = vpack.c.bf16 %v1070, %v1002
  %v1596 = vpack.c.bf16 %v1138, %v1138
  %v1597 = vpack.c.bf16 %v1071, %v1003
  %v1598 = vpack.c.bf16 %v1139, %v1139
  %v1599 = vpack.c.bf16 %v1072, %v1004
  %v1600 = vpack.c.bf16 %v1140, %v1140
  %vm1601 = vcmask 64512
  %v1603 = vsel %vm1601, %v1585, 0
  %v1606 = vsel %vm1601, %v1586, 0
  %v1609 = vsel %vm1601, %v1593, 0
  %v1612 = vsel %vm1601, %v1594, 0
  %1614 = vmatprep.subr.bf16.mxu0 0
  %1615 = vmatpush1.bf16.xpose.msra.mxu0 %v1609
  %1616 = vmatprep.subr.bf16.mxu0 0
  %1617 = vmatpush1.bf16.xpose.msra.mxu0 %v1612
  %1618 = vmatprep.subr.bf16.mxu0 0
  %1619 = vmatpush1.bf16.xpose.msra.mxu0 0
  %1620 = vmatprep.subr.bf16.mxu0 0
  %1621 = vmatpush1.bf16.xpose.msra.mxu0 0
  %1622 = vmatprep.subr.bf16.mxu0 0
  %1623 = vmatpush1.bf16.xpose.msra.mxu0 0
  %1624 = vmatprep.subr.bf16.mxu0 0
  %1625 = vmatpush1.bf16.xpose.msra.mxu0 0
  %1626 = vmatprep.subr.bf16.mxu0 0
  %1627 = vmatpush1.bf16.xpose.msra.mxu0 0
  %1628 = vmatprep.subr.bf16.mxu0 0
  %1629 = vmatpush1.bf16.xpose.msra.mxu0 0
  %1630 = vmatprep.subr.bf16.mxu0 0
  %1631 = vmatpush1.bf16.xpose.msra.mxu0 0
  %1632 = vmatprep.subr.bf16.mxu0 0
  %1633 = vmatpush1.bf16.xpose.msra.mxu0 0
  %1634 = vmatprep.subr.bf16.mxu0 0
  %1635 = vmatpush1.bf16.xpose.msra.mxu0 0
  %1636 = vmatprep.subr.bf16.mxu0 0
  %1637 = vmatpush1.bf16.xpose.msra.mxu0 0
  %1638 = vmatprep.subr.bf16.mxu0 0
  %1639 = vmatpush1.bf16.xpose.msra.mxu0 0
  %1640 = vmatprep.subr.bf16.mxu0 0
  %1641 = vmatpush1.bf16.xpose.msra.mxu0 0
  %1642 = vmatprep.subr.bf16.mxu0 0
  %1643 = vmatpush1.bf16.xpose.msra.mxu0 0
  %1644 = vmatprep.subr.bf16.mxu0 0
  %1645 = vmatpush1.bf16.xpose.msra.mxu0 0
  %1646 = vmatprep.mubr.bf16.mxu0 0
  %1647 = vmatmul.mubr.bf16.gmra.mrb[0].mxu0 %v1603
  %v1648 = vpop.f32.mrb[0].mxu0
  %v1649 = vadd.f32 0.0, %v1648
  %v1650 = vpop.f32.mrb[0].mxu0
  %v1651 = vpop.f32.mrb[0].mxu0
  %v1652 = vadd.f32 0.0, %v1651
  %v1653 = vpop.f32.mrb[0].mxu0
  %1654 = vmatprep.mubr.bf16.mxu0 0
  %1655 = vmatmul.mubr.bf16.gmra.mrb[0].mxu0 %v1606
  %v1656 = vpop.f32.mrb[0].mxu0
  %v1657 = vadd.f32 0.0, %v1656
  %v1658 = vpop.f32.mrb[0].mxu0
  %v1659 = vpop.f32.mrb[0].mxu0
  %v1660 = vpop.f32.mrb[0].mxu0
  %1661 = vdwg.mxu0
  %v1663 = vsel %vm1601, %v1587, 0
  %v1666 = vsel %vm1601, %v1588, 0
  %v1669 = vsel %vm1601, %v1595, 0
  %v1672 = vsel %vm1601, %v1596, 0
  %1674 = vmatprep.subr.bf16.mxu0 0
  %1675 = vmatpush1.bf16.xpose.msra.mxu0 %v1669
  %1676 = vmatprep.subr.bf16.mxu0 0
  %1677 = vmatpush1.bf16.xpose.msra.mxu0 %v1672
  %1678 = vmatprep.subr.bf16.mxu0 0
  %1679 = vmatpush1.bf16.xpose.msra.mxu0 0
  %1680 = vmatprep.subr.bf16.mxu0 0
  %1681 = vmatpush1.bf16.xpose.msra.mxu0 0
  %1682 = vmatprep.subr.bf16.mxu0 0
  %1683 = vmatpush1.bf16.xpose.msra.mxu0 0
  %1684 = vmatprep.subr.bf16.mxu0 0
  %1685 = vmatpush1.bf16.xpose.msra.mxu0 0
  %1686 = vmatprep.subr.bf16.mxu0 0
  %1687 = vmatpush1.bf16.xpose.msra.mxu0 0
  %1688 = vmatprep.subr.bf16.mxu0 0
  %1689 = vmatpush1.bf16.xpose.msra.mxu0 0
  %1690 = vmatprep.subr.bf16.mxu0 0
  %1691 = vmatpush1.bf16.xpose.msra.mxu0 0
  %1692 = vmatprep.subr.bf16.mxu0 0
  %1693 = vmatpush1.bf16.xpose.msra.mxu0 0
  %1694 = vmatprep.subr.bf16.mxu0 0
  %1695 = vmatpush1.bf16.xpose.msra.mxu0 0
  %1696 = vmatprep.subr.bf16.mxu0 0
  %1697 = vmatpush1.bf16.xpose.msra.mxu0 0
  %1698 = vmatprep.subr.bf16.mxu0 0
  %1699 = vmatpush1.bf16.xpose.msra.mxu0 0
  %1700 = vmatprep.subr.bf16.mxu0 0
  %1701 = vmatpush1.bf16.xpose.msra.mxu0 0
  %1702 = vmatprep.subr.bf16.mxu0 0
  %1703 = vmatpush1.bf16.xpose.msra.mxu0 0
  %1704 = vmatprep.subr.bf16.mxu0 0
  %1705 = vmatpush1.bf16.xpose.msra.mxu0 0
  %1706 = vmatprep.mubr.bf16.mxu0 0
  %1707 = vmatmul.mubr.bf16.gmra.mrb[0].mxu0 %v1663
  %v1708 = vpop.f32.mrb[0].mxu0
  %v1709 = vadd.f32 0.0, %v1708
  %v1710 = vpop.f32.mrb[0].mxu0
  %v1711 = vpop.f32.mrb[0].mxu0
  %v1712 = vadd.f32 0.0, %v1711
  %v1713 = vpop.f32.mrb[0].mxu0
  %1714 = vmatprep.mubr.bf16.mxu0 0
  %1715 = vmatmul.mubr.bf16.gmra.mrb[0].mxu0 %v1666
  %v1716 = vpop.f32.mrb[0].mxu0
  %v1717 = vadd.f32 0.0, %v1716
  %v1718 = vpop.f32.mrb[0].mxu0
  %v1719 = vpop.f32.mrb[0].mxu0
  %v1720 = vpop.f32.mrb[0].mxu0
  %1721 = vdwg.mxu0
  %v1723 = vsel %vm1601, %v1589, 0
  %v1726 = vsel %vm1601, %v1590, 0
  %v1729 = vsel %vm1601, %v1597, 0
  %v1732 = vsel %vm1601, %v1598, 0
  %1734 = vmatprep.subr.bf16.mxu0 0
  %1735 = vmatpush1.bf16.xpose.msra.mxu0 %v1729
  %1736 = vmatprep.subr.bf16.mxu0 0
  %1737 = vmatpush1.bf16.xpose.msra.mxu0 %v1732
  %1738 = vmatprep.subr.bf16.mxu0 0
  %1739 = vmatpush1.bf16.xpose.msra.mxu0 0
  %1740 = vmatprep.subr.bf16.mxu0 0
  %1741 = vmatpush1.bf16.xpose.msra.mxu0 0
  %1742 = vmatprep.subr.bf16.mxu0 0
  %1743 = vmatpush1.bf16.xpose.msra.mxu0 0
  %1744 = vmatprep.subr.bf16.mxu0 0
  %1745 = vmatpush1.bf16.xpose.msra.mxu0 0
  %1746 = vmatprep.subr.bf16.mxu0 0
  %1747 = vmatpush1.bf16.xpose.msra.mxu0 0
  %1748 = vmatprep.subr.bf16.mxu0 0
  %1749 = vmatpush1.bf16.xpose.msra.mxu0 0
  %1750 = vmatprep.subr.bf16.mxu0 0
  %1751 = vmatpush1.bf16.xpose.msra.mxu0 0
  %1752 = vmatprep.subr.bf16.mxu0 0
  %1753 = vmatpush1.bf16.xpose.msra.mxu0 0
  %1754 = vmatprep.subr.bf16.mxu0 0
  %1755 = vmatpush1.bf16.xpose.msra.mxu0 0
  %1756 = vmatprep.subr.bf16.mxu0 0
  %1757 = vmatpush1.bf16.xpose.msra.mxu0 0
  %1758 = vmatprep.subr.bf16.mxu0 0
  %1759 = vmatpush1.bf16.xpose.msra.mxu0 0
  %1760 = vmatprep.subr.bf16.mxu0 0
  %1761 = vmatpush1.bf16.xpose.msra.mxu0 0
  %1762 = vmatprep.subr.bf16.mxu0 0
  %1763 = vmatpush1.bf16.xpose.msra.mxu0 0
  %1764 = vmatprep.subr.bf16.mxu0 0
  %1765 = vmatpush1.bf16.xpose.msra.mxu0 0
  %1766 = vmatprep.mubr.bf16.mxu0 0
  %1767 = vmatmul.mubr.bf16.gmra.mrb[0].mxu0 %v1723
  %v1768 = vpop.f32.mrb[0].mxu0
  %v1769 = vadd.f32 0.0, %v1768
  %v1770 = vpop.f32.mrb[0].mxu0
  %v1771 = vpop.f32.mrb[0].mxu0
  %v1772 = vadd.f32 0.0, %v1771
  %v1773 = vpop.f32.mrb[0].mxu0
  %1774 = vmatprep.mubr.bf16.mxu0 0
  %1775 = vmatmul.mubr.bf16.gmra.mrb[0].mxu0 %v1726
  %v1776 = vpop.f32.mrb[0].mxu0
  %v1777 = vadd.f32 0.0, %v1776
  %v1778 = vpop.f32.mrb[0].mxu0
  %v1779 = vpop.f32.mrb[0].mxu0
  %v1780 = vpop.f32.mrb[0].mxu0
  %1781 = vdwg.mxu0
  %v1783 = vsel %vm1601, %v1591, 0
  %v1786 = vsel %vm1601, %v1592, 0
  %v1789 = vsel %vm1601, %v1599, 0
  %v1792 = vsel %vm1601, %v1600, 0
  %1794 = vmatprep.subr.bf16.mxu0 0
  %1795 = vmatpush1.bf16.xpose.msra.mxu0 %v1789
  %1796 = vmatprep.subr.bf16.mxu0 0
  %1797 = vmatpush1.bf16.xpose.msra.mxu0 %v1792
  %1798 = vmatprep.subr.bf16.mxu0 0
  %1799 = vmatpush1.bf16.xpose.msra.mxu0 0
  %1800 = vmatprep.subr.bf16.mxu0 0
  %1801 = vmatpush1.bf16.xpose.msra.mxu0 0
  %1802 = vmatprep.subr.bf16.mxu0 0
  %1803 = vmatpush1.bf16.xpose.msra.mxu0 0
  %1804 = vmatprep.subr.bf16.mxu0 0
  %1805 = vmatpush1.bf16.xpose.msra.mxu0 0
  %1806 = vmatprep.subr.bf16.mxu0 0
  %1807 = vmatpush1.bf16.xpose.msra.mxu0 0
  %1808 = vmatprep.subr.bf16.mxu0 0
  %1809 = vmatpush1.bf16.xpose.msra.mxu0 0
  %1810 = vmatprep.subr.bf16.mxu0 0
  %1811 = vmatpush1.bf16.xpose.msra.mxu0 0
  %1812 = vmatprep.subr.bf16.mxu0 0
  %1813 = vmatpush1.bf16.xpose.msra.mxu0 0
  %1814 = vmatprep.subr.bf16.mxu0 0
  %1815 = vmatpush1.bf16.xpose.msra.mxu0 0
  %1816 = vmatprep.subr.bf16.mxu0 0
  %1817 = vmatpush1.bf16.xpose.msra.mxu0 0
  %1818 = vmatprep.subr.bf16.mxu0 0
  %1819 = vmatpush1.bf16.xpose.msra.mxu0 0
  %1820 = vmatprep.subr.bf16.mxu0 0
  %1821 = vmatpush1.bf16.xpose.msra.mxu0 0
  %1822 = vmatprep.subr.bf16.mxu0 0
  %1823 = vmatpush1.bf16.xpose.msra.mxu0 0
  %1824 = vmatprep.subr.bf16.mxu0 0
  %1825 = vmatpush1.bf16.xpose.msra.mxu0 0
  %1826 = vmatprep.mubr.bf16.mxu0 0
  %1827 = vmatmul.mubr.bf16.gmra.mrb[0].mxu0 %v1783
  %v1828 = vpop.f32.mrb[0].mxu0
  %v1829 = vadd.f32 0.0, %v1828
  %v1830 = vpop.f32.mrb[0].mxu0
  %v1831 = vpop.f32.mrb[0].mxu0
  %v1832 = vadd.f32 0.0, %v1831
  %v1833 = vpop.f32.mrb[0].mxu0
  %1834 = vmatprep.mubr.bf16.mxu0 0
  %1835 = vmatmul.mubr.bf16.gmra.mrb[0].mxu0 %v1786
  %v1836 = vpop.f32.mrb[0].mxu0
  %v1837 = vadd.f32 0.0, %v1836
  %v1838 = vpop.f32.mrb[0].mxu0
  %v1839 = vpop.f32.mrb[0].mxu0
  %v1840 = vpop.f32.mrb[0].mxu0
  %1841 = vdwg.mxu0
  %v1842 = vmul.f32 %v1649, 0.35355338
  %v1843 = vmul.f32 %v1652, 0.35355338
  %v1844 = vmul.f32 %v1657, 0.35355338
  %v1845 = vmul.f32 %v1709, 0.35355338
  %v1846 = vmul.f32 %v1712, 0.35355338
  %v1847 = vmul.f32 %v1717, 0.35355338
  %v1848 = vmul.f32 %v1769, 0.35355338
  %v1849 = vmul.f32 %v1772, 0.35355338
  %v1850 = vmul.f32 %v1777, 0.35355338
  %v1851 = vmul.f32 %v1829, 0.35355338
  %v1852 = vmul.f32 %v1832, 0.35355338
  %v1853 = vmul.f32 %v1837, 0.35355338
  %v1854 = vadd.f32 %v1842, %v176
  %v1855 = vadd.f32 %v1843, %v177
  %v1856 = vadd.f32 %v1844, %v178
  %v1857 = vadd.f32 %v1845, %v176
  %v1858 = vadd.f32 %v1846, %v177
  %v1859 = vadd.f32 %v1847, %v178
  %v1860 = vadd.f32 %v1848, %v176
  %v1861 = vadd.f32 %v1849, %v177
  %v1862 = vadd.f32 %v1850, %v178
  %v1863 = vadd.f32 %v1851, %v176
  %v1864 = vadd.f32 %v1852, %v177
  %v1865 = vadd.f32 %v1853, %v178
  %vm1866 = vcmask 195584
  %v1867 = vsel %vm1866, %v1854, -inf
  %1868 = vmax.xlane.f32.xlu0 %v1867
  %v1869 = vpop.xlane.xlu0 %1868
  %v1870 = vsel %vm1866, %v1855, -inf
  %1871 = vmax.xlane.f32.xlu0 %v1870
  %v1872 = vpop.xlane.xlu0 %1871
  %v1873 = vsel %vm1866, %v1856, -inf
  %1874 = vmax.xlane.f32.xlu0 %v1873
  %v1875 = vpop.xlane.xlu0 %1874
  %v1876 = vsel %vm1866, %v1857, -inf
  %1877 = vmax.xlane.f32.xlu0 %v1876
  %v1878 = vpop.xlane.xlu0 %1877
  %v1879 = vsel %vm1866, %v1858, -inf
  %1880 = vmax.xlane.f32.xlu0 %v1879
  %v1881 = vpop.xlane.xlu0 %1880
  %v1882 = vsel %vm1866, %v1859, -inf
  %1883 = vmax.xlane.f32.xlu0 %v1882
  %v1884 = vpop.xlane.xlu0 %1883
  %v1885 = vsel %vm1866, %v1860, -inf
  %1886 = vmax.xlane.f32.xlu0 %v1885
  %v1887 = vpop.xlane.xlu0 %1886
  %v1888 = vsel %vm1866, %v1861, -inf
  %1889 = vmax.xlane.f32.xlu0 %v1888
  %v1890 = vpop.xlane.xlu0 %1889
  %v1891 = vsel %vm1866, %v1862, -inf
  %1892 = vmax.xlane.f32.xlu0 %v1891
  %v1893 = vpop.xlane.xlu0 %1892
  %v1894 = vsel %vm1866, %v1863, -inf
  %1895 = vmax.xlane.f32.xlu0 %v1894
  %v1896 = vpop.xlane.xlu0 %1895
  %v1897 = vsel %vm1866, %v1864, -inf
  %1898 = vmax.xlane.f32.xlu0 %v1897
  %v1899 = vpop.xlane.xlu0 %1898
  %v1900 = vsel %vm1866, %v1865, -inf
  %1901 = vmax.xlane.f32.xlu0 %v1900
  %v1902 = vpop.xlane.xlu0 %1901
  %v1903 = vsub.f32 %v1854, %v1869
  %v1904 = vsub.f32 %v1855, %v1872
  %v1905 = vsub.f32 %v1856, %v1875
  %v1906 = vsub.f32 %v1857, %v1878
  %v1907 = vsub.f32 %v1858, %v1881
  %v1908 = vsub.f32 %v1859, %v1884
  %v1909 = vsub.f32 %v1860, %v1887
  %v1910 = vsub.f32 %v1861, %v1890
  %v1911 = vsub.f32 %v1862, %v1893
  %v1912 = vsub.f32 %v1863, %v1896
  %v1913 = vsub.f32 %v1864, %v1899
  %v1914 = vsub.f32 %v1865, %v1902
  %v1915 = vmul.f32 %v1903, 1.442695
  %v1916 = vpow.pop %v1915
  %v1917 = vmul.f32 %v1904, 1.442695
  %v1918 = vpow.pop %v1917
  %v1919 = vmul.f32 %v1905, 1.442695
  %v1920 = vpow.pop %v1919
  %v1921 = vmul.f32 %v1906, 1.442695
  %v1922 = vpow.pop %v1921
  %v1923 = vmul.f32 %v1907, 1.442695
  %v1924 = vpow.pop %v1923
  %v1925 = vmul.f32 %v1908, 1.442695
  %v1926 = vpow.pop %v1925
  %v1927 = vmul.f32 %v1909, 1.442695
  %v1928 = vpow.pop %v1927
  %v1929 = vmul.f32 %v1910, 1.442695
  %v1930 = vpow.pop %v1929
  %v1931 = vmul.f32 %v1911, 1.442695
  %v1932 = vpow.pop %v1931
  %v1933 = vmul.f32 %v1912, 1.442695
  %v1934 = vpow.pop %v1933
  %v1935 = vmul.f32 %v1913, 1.442695
  %v1936 = vpow.pop %v1935
  %v1937 = vmul.f32 %v1914, 1.442695
  %v1938 = vpow.pop %v1937
  %v1939 = vsel %vm1866, %v1916, 0.0
  %1940 = vadd.xlane.f32.xlu0 %v1939
  %v1941 = vpop.xlane.xlu0 %1940
  %v1942 = vsel %vm1866, %v1918, 0.0
  %1943 = vadd.xlane.f32.xlu0 %v1942
  %v1944 = vpop.xlane.xlu0 %1943
  %v1945 = vsel %vm1866, %v1920, 0.0
  %1946 = vadd.xlane.f32.xlu0 %v1945
  %v1947 = vpop.xlane.xlu0 %1946
  %v1948 = vsel %vm1866, %v1922, 0.0
  %1949 = vadd.xlane.f32.xlu0 %v1948
  %v1950 = vpop.xlane.xlu0 %1949
  %v1951 = vsel %vm1866, %v1924, 0.0
  %1952 = vadd.xlane.f32.xlu0 %v1951
  %v1953 = vpop.xlane.xlu0 %1952
  %v1954 = vsel %vm1866, %v1926, 0.0
  %1955 = vadd.xlane.f32.xlu0 %v1954
  %v1956 = vpop.xlane.xlu0 %1955
  %v1957 = vsel %vm1866, %v1928, 0.0
  %1958 = vadd.xlane.f32.xlu0 %v1957
  %v1959 = vpop.xlane.xlu0 %1958
  %v1960 = vsel %vm1866, %v1930, 0.0
  %1961 = vadd.xlane.f32.xlu0 %v1960
  %v1962 = vpop.xlane.xlu0 %1961
  %v1963 = vsel %vm1866, %v1932, 0.0
  %1964 = vadd.xlane.f32.xlu0 %v1963
  %v1965 = vpop.xlane.xlu0 %1964
  %v1966 = vsel %vm1866, %v1934, 0.0
  %1967 = vadd.xlane.f32.xlu0 %v1966
  %v1968 = vpop.xlane.xlu0 %1967
  %v1969 = vsel %vm1866, %v1936, 0.0
  %1970 = vadd.xlane.f32.xlu0 %v1969
  %v1971 = vpop.xlane.xlu0 %1970
  %v1972 = vsel %vm1866, %v1938, 0.0
  %1973 = vadd.xlane.f32.xlu0 %v1972
  %v1974 = vpop.xlane.xlu0 %1973
  %v1975 = vrcp.pop %v1941
  %v1976 = vmul.f32 %v1916, %v1975
  %v1977 = vrcp.pop %v1944
  %v1978 = vmul.f32 %v1918, %v1977
  %v1979 = vrcp.pop %v1947
  %v1980 = vmul.f32 %v1920, %v1979
  %v1981 = vrcp.pop %v1950
  %v1982 = vmul.f32 %v1922, %v1981
  %v1983 = vrcp.pop %v1953
  %v1984 = vmul.f32 %v1924, %v1983
  %v1985 = vrcp.pop %v1956
  %v1986 = vmul.f32 %v1926, %v1985
  %v1987 = vrcp.pop %v1959
  %v1988 = vmul.f32 %v1928, %v1987
  %v1989 = vrcp.pop %v1962
  %v1990 = vmul.f32 %v1930, %v1989
  %v1991 = vrcp.pop %v1965
  %v1992 = vmul.f32 %v1932, %v1991
  %v1993 = vrcp.pop %v1968
  %v1994 = vmul.f32 %v1934, %v1993
  %v1995 = vrcp.pop %v1971
  %v1996 = vmul.f32 %v1936, %v1995
  %v1997 = vrcp.pop %v1974
  %v1998 = vmul.f32 %v1938, %v1997
  %v1999 = vpack.c.bf16 %v1978, %v1976
  %v2000 = vpack.c.bf16 %v1980, %v1980
  %v2001 = vpack.c.bf16 %v1984, %v1982
  %v2002 = vpack.c.bf16 %v1986, %v1986
  %v2003 = vpack.c.bf16 %v1990, %v1988
  %v2004 = vpack.c.bf16 %v1992, %v1992
  %v2005 = vpack.c.bf16 %v1996, %v1994
  %v2006 = vpack.c.bf16 %v1998, %v1998
  %v2007 = vpack.c.bf16 %v1513, %v1445
  %v2008 = vpack.c.bf16 %v1581, %v1581
  %v2009 = vpack.c.bf16 %v1514, %v1446
  %v2010 = vpack.c.bf16 %v1582, %v1582
  %v2011 = vpack.c.bf16 %v1515, %v1447
  %v2012 = vpack.c.bf16 %v1583, %v1583
  %v2013 = vpack.c.bf16 %v1516, %v1448
  %v2014 = vpack.c.bf16 %v1584, %v1584
  %v2016 = vsel %vm1866, %v1999, 0
  %v2019 = vsel %vm1866, %v2000, 0
  %vm2021 = vcmask 1043456
  %v2023 = vsel %vm2021, %v2008, 0
  %2025 = vmatprep.subr.bf16.mxu0 0
  %2026 = vmatpush1.bf16.msra.mxu0 %v2007
  %2027 = vmatprep.subr.bf16.mxu0 0
  %2028 = vmatpush1.bf16.msra.mxu0 %v2023
  %2029 = vmatprep.subr.bf16.mxu0 0
  %2030 = vmatpush1.bf16.msra.mxu0 0
  %2031 = vmatprep.subr.bf16.mxu0 0
  %2032 = vmatpush1.bf16.msra.mxu0 0
  %2033 = vmatprep.subr.bf16.mxu0 0
  %2034 = vmatpush1.bf16.msra.mxu0 0
  %2035 = vmatprep.subr.bf16.mxu0 0
  %2036 = vmatpush1.bf16.msra.mxu0 0
  %2037 = vmatprep.subr.bf16.mxu0 0
  %2038 = vmatpush1.bf16.msra.mxu0 0
  %2039 = vmatprep.subr.bf16.mxu0 0
  %2040 = vmatpush1.bf16.msra.mxu0 0
  %2041 = vmatprep.subr.bf16.mxu0 0
  %2042 = vmatpush1.bf16.msra.mxu0 0
  %2043 = vmatprep.subr.bf16.mxu0 0
  %2044 = vmatpush1.bf16.msra.mxu0 0
  %2045 = vmatprep.subr.bf16.mxu0 0
  %2046 = vmatpush1.bf16.msra.mxu0 0
  %2047 = vmatprep.subr.bf16.mxu0 0
  %2048 = vmatpush1.bf16.msra.mxu0 0
  %2049 = vmatprep.subr.bf16.mxu0 0
  %2050 = vmatpush1.bf16.msra.mxu0 0
  %2051 = vmatprep.subr.bf16.mxu0 0
  %2052 = vmatpush1.bf16.msra.mxu0 0
  %2053 = vmatprep.subr.bf16.mxu0 0
  %2054 = vmatpush1.bf16.msra.mxu0 0
  %2055 = vmatprep.subr.bf16.mxu0 0
  %2056 = vmatpush1.bf16.msra.mxu0 0
  %2057 = vmatprep.mubr.bf16.mxu0 0
  %2058 = vmatmul.mubr.bf16.gmra.mrb[0].mxu0 %v2016
  %v2059 = vpop.f32.mrb[0].mxu0
  %v2060 = vadd.f32 0.0, %v2059
  %v2061 = vpop.f32.mrb[0].mxu0
  %v2062 = vpop.f32.mrb[0].mxu0
  %v2063 = vadd.f32 0.0, %v2062
  %v2064 = vpop.f32.mrb[0].mxu0
  %2065 = vmatprep.mubr.bf16.mxu0 0
  %2066 = vmatmul.mubr.bf16.gmra.mrb[0].mxu0 %v2019
  %v2067 = vpop.f32.mrb[0].mxu0
  %v2068 = vadd.f32 0.0, %v2067
  %v2069 = vpop.f32.mrb[0].mxu0
  %v2070 = vpop.f32.mrb[0].mxu0
  %v2071 = vpop.f32.mrb[0].mxu0
  %2072 = vdwg.mxu0
  %v2074 = vsel %vm1866, %v2001, 0
  %v2077 = vsel %vm1866, %v2002, 0
  %v2080 = vsel %vm2021, %v2010, 0
  %2082 = vmatprep.subr.bf16.mxu0 0
  %2083 = vmatpush1.bf16.msra.mxu0 %v2009
  %2084 = vmatprep.subr.bf16.mxu0 0
  %2085 = vmatpush1.bf16.msra.mxu0 %v2080
  %2086 = vmatprep.subr.bf16.mxu0 0
  %2087 = vmatpush1.bf16.msra.mxu0 0
  %2088 = vmatprep.subr.bf16.mxu0 0
  %2089 = vmatpush1.bf16.msra.mxu0 0
  %2090 = vmatprep.subr.bf16.mxu0 0
  %2091 = vmatpush1.bf16.msra.mxu0 0
  %2092 = vmatprep.subr.bf16.mxu0 0
  %2093 = vmatpush1.bf16.msra.mxu0 0
  %2094 = vmatprep.subr.bf16.mxu0 0
  %2095 = vmatpush1.bf16.msra.mxu0 0
  %2096 = vmatprep.subr.bf16.mxu0 0
  %2097 = vmatpush1.bf16.msra.mxu0 0
  %2098 = vmatprep.subr.bf16.mxu0 0
  %2099 = vmatpush1.bf16.msra.mxu0 0
  %2100 = vmatprep.subr.bf16.mxu0 0
  %2101 = vmatpush1.bf16.msra.mxu0 0
  %2102 = vmatprep.subr.bf16.mxu0 0
  %2103 = vmatpush1.bf16.msra.mxu0 0
  %2104 = vmatprep.subr.bf16.mxu0 0
  %2105 = vmatpush1.bf16.msra.mxu0 0
  %2106 = vmatprep.subr.bf16.mxu0 0
  %2107 = vmatpush1.bf16.msra.mxu0 0
  %2108 = vmatprep.subr.bf16.mxu0 0
  %2109 = vmatpush1.bf16.msra.mxu0 0
  %2110 = vmatprep.subr.bf16.mxu0 0
  %2111 = vmatpush1.bf16.msra.mxu0 0
  %2112 = vmatprep.subr.bf16.mxu0 0
  %2113 = vmatpush1.bf16.msra.mxu0 0
  %2114 = vmatprep.mubr.bf16.mxu0 0
  %2115 = vmatmul.mubr.bf16.gmra.mrb[0].mxu0 %v2074
  %v2116 = vpop.f32.mrb[0].mxu0
  %v2117 = vadd.f32 0.0, %v2116
  %v2118 = vpop.f32.mrb[0].mxu0
  %v2119 = vpop.f32.mrb[0].mxu0
  %v2120 = vadd.f32 0.0, %v2119
  %v2121 = vpop.f32.mrb[0].mxu0
  %2122 = vmatprep.mubr.bf16.mxu0 0
  %2123 = vmatmul.mubr.bf16.gmra.mrb[0].mxu0 %v2077
  %v2124 = vpop.f32.mrb[0].mxu0
  %v2125 = vadd.f32 0.0, %v2124
  %v2126 = vpop.f32.mrb[0].mxu0
  %v2127 = vpop.f32.mrb[0].mxu0
  %v2128 = vpop.f32.mrb[0].mxu0
  %2129 = vdwg.mxu0
  %v2131 = vsel %vm1866, %v2003, 0
  %v2134 = vsel %vm1866, %v2004, 0
  %v2137 = vsel %vm2021, %v2012, 0
  %2139 = vmatprep.subr.bf16.mxu0 0
  %2140 = vmatpush1.bf16.msra.mxu0 %v2011
  %2141 = vmatprep.subr.bf16.mxu0 0
  %2142 = vmatpush1.bf16.msra.mxu0 %v2137
  %2143 = vmatprep.subr.bf16.mxu0 0
  %2144 = vmatpush1.bf16.msra.mxu0 0
  %2145 = vmatprep.subr.bf16.mxu0 0
  %2146 = vmatpush1.bf16.msra.mxu0 0
  %2147 = vmatprep.subr.bf16.mxu0 0
  %2148 = vmatpush1.bf16.msra.mxu0 0
  %2149 = vmatprep.subr.bf16.mxu0 0
  %2150 = vmatpush1.bf16.msra.mxu0 0
  %2151 = vmatprep.subr.bf16.mxu0 0
  %2152 = vmatpush1.bf16.msra.mxu0 0
  %2153 = vmatprep.subr.bf16.mxu0 0
  %2154 = vmatpush1.bf16.msra.mxu0 0
  %2155 = vmatprep.subr.bf16.mxu0 0
  %2156 = vmatpush1.bf16.msra.mxu0 0
  %2157 = vmatprep.subr.bf16.mxu0 0
  %2158 = vmatpush1.bf16.msra.mxu0 0
  %2159 = vmatprep.subr.bf16.mxu0 0
  %2160 = vmatpush1.bf16.msra.mxu0 0
  %2161 = vmatprep.subr.bf16.mxu0 0
  %2162 = vmatpush1.bf16.msra.mxu0 0
  %2163 = vmatprep.subr.bf16.mxu0 0
  %2164 = vmatpush1.bf16.msra.mxu0 0
  %2165 = vmatprep.subr.bf16.mxu0 0
  %2166 = vmatpush1.bf16.msra.mxu0 0
  %2167 = vmatprep.subr.bf16.mxu0 0
  %2168 = vmatpush1.bf16.msra.mxu0 0
  %2169 = vmatprep.subr.bf16.mxu0 0
  %2170 = vmatpush1.bf16.msra.mxu0 0
  %2171 = vmatprep.mubr.bf16.mxu0 0
  %2172 = vmatmul.mubr.bf16.gmra.mrb[0].mxu0 %v2131
  %v2173 = vpop.f32.mrb[0].mxu0
  %v2174 = vadd.f32 0.0, %v2173
  %v2175 = vpop.f32.mrb[0].mxu0
  %v2176 = vpop.f32.mrb[0].mxu0
  %v2177 = vadd.f32 0.0, %v2176
  %v2178 = vpop.f32.mrb[0].mxu0
  %2179 = vmatprep.mubr.bf16.mxu0 0
  %2180 = vmatmul.mubr.bf16.gmra.mrb[0].mxu0 %v2134
  %v2181 = vpop.f32.mrb[0].mxu0
  %v2182 = vadd.f32 0.0, %v2181
  %v2183 = vpop.f32.mrb[0].mxu0
  %v2184 = vpop.f32.mrb[0].mxu0
  %v2185 = vpop.f32.mrb[0].mxu0
  %2186 = vdwg.mxu0
  %v2188 = vsel %vm1866, %v2005, 0
  %v2191 = vsel %vm1866, %v2006, 0
  %v2194 = vsel %vm2021, %v2014, 0
  %2196 = vmatprep.subr.bf16.mxu0 0
  %2197 = vmatpush1.bf16.msra.mxu0 %v2013
  %2198 = vmatprep.subr.bf16.mxu0 0
  %2199 = vmatpush1.bf16.msra.mxu0 %v2194
  %2200 = vmatprep.subr.bf16.mxu0 0
  %2201 = vmatpush1.bf16.msra.mxu0 0
  %2202 = vmatprep.subr.bf16.mxu0 0
  %2203 = vmatpush1.bf16.msra.mxu0 0
  %2204 = vmatprep.subr.bf16.mxu0 0
  %2205 = vmatpush1.bf16.msra.mxu0 0
  %2206 = vmatprep.subr.bf16.mxu0 0
  %2207 = vmatpush1.bf16.msra.mxu0 0
  %2208 = vmatprep.subr.bf16.mxu0 0
  %2209 = vmatpush1.bf16.msra.mxu0 0
  %2210 = vmatprep.subr.bf16.mxu0 0
  %2211 = vmatpush1.bf16.msra.mxu0 0
  %2212 = vmatprep.subr.bf16.mxu0 0
  %2213 = vmatpush1.bf16.msra.mxu0 0
  %2214 = vmatprep.subr.bf16.mxu0 0
  %2215 = vmatpush1.bf16.msra.mxu0 0
  %2216 = vmatprep.subr.bf16.mxu0 0
  %2217 = vmatpush1.bf16.msra.mxu0 0
  %2218 = vmatprep.subr.bf16.mxu0 0
  %2219 = vmatpush1.bf16.msra.mxu0 0
  %2220 = vmatprep.subr.bf16.mxu0 0
  %2221 = vmatpush1.bf16.msra.mxu0 0
  %2222 = vmatprep.subr.bf16.mxu0 0
  %2223 = vmatpush1.bf16.msra.mxu0 0
  %2224 = vmatprep.subr.bf16.mxu0 0
  %2225 = vmatpush1.bf16.msra.mxu0 0
  %2226 = vmatprep.subr.bf16.mxu0 0
  %2227 = vmatpush1.bf16.msra.mxu0 0
  %2228 = vmatprep.mubr.bf16.mxu0 0
  %2229 = vmatmul.mubr.bf16.gmra.mrb[0].mxu0 %v2188
  %v2230 = vpop.f32.mrb[0].mxu0
  %v2231 = vadd.f32 0.0, %v2230
  %v2232 = vpop.f32.mrb[0].mxu0
  %v2233 = vpop.f32.mrb[0].mxu0
  %v2234 = vadd.f32 0.0, %v2233
  %v2235 = vpop.f32.mrb[0].mxu0
  %2236 = vmatprep.mubr.bf16.mxu0 0
  %2237 = vmatmul.mubr.bf16.gmra.mrb[0].mxu0 %v2191
  %v2238 = vpop.f32.mrb[0].mxu0
  %v2239 = vadd.f32 0.0, %v2238
  %v2240 = vpop.f32.mrb[0].mxu0
  %v2241 = vpop.f32.mrb[0].mxu0
  %v2242 = vpop.f32.mrb[0].mxu0
  %2243 = vdwg.mxu0
  %v2244 = vcombine.low %v2060, %v2174
  %v2245 = vcombine.high %v2060, %v2174
  %v2247 = vunpack.c.l.s4 1983009808
  %v2248 = vunpack.c.0.s8 %v2247
  %v2249 = vlaneseq
  %v2250 = vshrl.u32 %v2249, 7
  %v2251 = vsub.s32 %v2248, %v2250
  %v2252 = vrot.slane %v2244, %v2251
  %v2254 = vunpack.c.l.s4 1983009808
  %v2255 = vunpack.c.0.s8 %v2254
  %v2256 = vlaneseq
  %v2257 = vshrl.u32 %v2256, 7
  %v2258 = vsub.s32 %v2255, %v2257
  %v2259 = vrot.slane %v2245, %v2258
  %v2260 = vcombine.low %v2117, %v2231
  %v2261 = vcombine.high %v2117, %v2231
  %v2263 = vunpack.c.l.s4 1983009808
  %v2264 = vunpack.c.0.s8 %v2263
  %v2265 = vlaneseq
  %v2266 = vshrl.u32 %v2265, 7
  %v2267 = vsub.s32 %v2264, %v2266
  %v2268 = vrot.slane %v2260, %v2267
  %v2270 = vunpack.c.l.s4 1983009808
  %v2271 = vunpack.c.0.s8 %v2270
  %v2272 = vlaneseq
  %v2273 = vshrl.u32 %v2272, 7
  %v2274 = vsub.s32 %v2271, %v2273
  %v2275 = vrot.slane %v2261, %v2274
  %v2276 = vcombine.low %v2252, %v2268
  %v2277 = vcombine.high %v2252, %v2268
  %v2279 = vunpack.c.l.s4 1934713408
  %v2280 = vunpack.c.0.s8 %v2279
  %v2281 = vlaneseq
  %v2282 = vshrl.u32 %v2281, 7
  %v2283 = vsub.s32 %v2280, %v2282
  %v2284 = vrot.slane %v2276, %v2283
  %v2286 = vunpack.c.l.s4 1934713408
  %v2287 = vunpack.c.0.s8 %v2286
  %v2288 = vlaneseq
  %v2289 = vshrl.u32 %v2288, 7
  %v2290 = vsub.s32 %v2287, %v2289
  %v2291 = vrot.slane %v2277, %v2290
  %v2292 = vcombine.low %v2259, %v2275
  %v2293 = vcombine.high %v2259, %v2275
  %v2295 = vunpack.c.l.s4 1934713408
  %v2296 = vunpack.c.0.s8 %v2295
  %v2297 = vlaneseq
  %v2298 = vshrl.u32 %v2297, 7
  %v2299 = vsub.s32 %v2296, %v2298
  %v2300 = vrot.slane %v2292, %v2299
  %v2302 = vunpack.c.l.s4 1934713408
  %v2303 = vunpack.c.0.s8 %v2302
  %v2304 = vlaneseq
  %v2305 = vshrl.u32 %v2304, 7
  %v2306 = vsub.s32 %v2303, %v2305
  %v2307 = vrot.slane %v2293, %v2306
  %v2308 = vcombine.high %v2284, 0.0
  %v2309 = vcombine.high %v2291, 0.0
  %v2310 = vcombine.high %v2300, 0.0
  %v2311 = vcombine.high %v2307, 0.0
  %v2312 = vcombine.low %v2063, %v2177
  %v2313 = vcombine.high %v2063, %v2177
  %v2315 = vunpack.c.l.s4 1983009808
  %v2316 = vunpack.c.0.s8 %v2315
  %v2317 = vlaneseq
  %v2318 = vshrl.u32 %v2317, 7
  %v2319 = vsub.s32 %v2316, %v2318
  %v2320 = vrot.slane %v2312, %v2319
  %v2322 = vunpack.c.l.s4 1983009808
  %v2323 = vunpack.c.0.s8 %v2322
  %v2324 = vlaneseq
  %v2325 = vshrl.u32 %v2324, 7
  %v2326 = vsub.s32 %v2323, %v2325
  %v2327 = vrot.slane %v2313, %v2326
  %v2328 = vcombine.low %v2120, %v2234
  %v2329 = vcombine.high %v2120, %v2234
  %v2331 = vunpack.c.l.s4 1983009808
  %v2332 = vunpack.c.0.s8 %v2331
  %v2333 = vlaneseq
  %v2334 = vshrl.u32 %v2333, 7
  %v2335 = vsub.s32 %v2332, %v2334
  %v2336 = vrot.slane %v2328, %v2335
  %v2338 = vunpack.c.l.s4 1983009808
  %v2339 = vunpack.c.0.s8 %v2338
  %v2340 = vlaneseq
  %v2341 = vshrl.u32 %v2340, 7
  %v2342 = vsub.s32 %v2339, %v2341
  %v2343 = vrot.slane %v2329, %v2342
  %v2344 = vcombine.low %v2320, %v2336
  %v2345 = vcombine.high %v2320, %v2336
  %v2347 = vunpack.c.l.s4 1934713408
  %v2348 = vunpack.c.0.s8 %v2347
  %v2349 = vlaneseq
  %v2350 = vshrl.u32 %v2349, 7
  %v2351 = vsub.s32 %v2348, %v2350
  %v2352 = vrot.slane %v2344, %v2351
  %v2354 = vunpack.c.l.s4 1934713408
  %v2355 = vunpack.c.0.s8 %v2354
  %v2356 = vlaneseq
  %v2357 = vshrl.u32 %v2356, 7
  %v2358 = vsub.s32 %v2355, %v2357
  %v2359 = vrot.slane %v2345, %v2358
  %v2360 = vcombine.low %v2327, %v2343
  %v2361 = vcombine.high %v2327, %v2343
  %v2363 = vunpack.c.l.s4 1934713408
  %v2364 = vunpack.c.0.s8 %v2363
  %v2365 = vlaneseq
  %v2366 = vshrl.u32 %v2365, 7
  %v2367 = vsub.s32 %v2364, %v2366
  %v2368 = vrot.slane %v2360, %v2367
  %v2370 = vunpack.c.l.s4 1934713408
  %v2371 = vunpack.c.0.s8 %v2370
  %v2372 = vlaneseq
  %v2373 = vshrl.u32 %v2372, 7
  %v2374 = vsub.s32 %v2371, %v2373
  %v2375 = vrot.slane %v2361, %v2374
  %v2376 = vcombine.high %v2352, 0.0
  %v2377 = vcombine.high %v2359, 0.0
  %v2378 = vcombine.high %v2368, 0.0
  %v2379 = vcombine.high %v2375, 0.0
  %v2380 = vcombine.low %v2068, %v2182
  %v2381 = vcombine.high %v2068, %v2182
  %v2383 = vunpack.c.l.s4 1983009808
  %v2384 = vunpack.c.0.s8 %v2383
  %v2385 = vlaneseq
  %v2386 = vshrl.u32 %v2385, 7
  %v2387 = vsub.s32 %v2384, %v2386
  %v2388 = vrot.slane %v2380, %v2387
  %v2390 = vunpack.c.l.s4 1983009808
  %v2391 = vunpack.c.0.s8 %v2390
  %v2392 = vlaneseq
  %v2393 = vshrl.u32 %v2392, 7
  %v2394 = vsub.s32 %v2391, %v2393
  %v2395 = vrot.slane %v2381, %v2394
  %v2396 = vcombine.low %v2125, %v2239
  %v2397 = vcombine.high %v2125, %v2239
  %v2399 = vunpack.c.l.s4 1983009808
  %v2400 = vunpack.c.0.s8 %v2399
  %v2401 = vlaneseq
  %v2402 = vshrl.u32 %v2401, 7
  %v2403 = vsub.s32 %v2400, %v2402
  %v2404 = vrot.slane %v2396, %v2403
  %v2406 = vunpack.c.l.s4 1983009808
  %v2407 = vunpack.c.0.s8 %v2406
  %v2408 = vlaneseq
  %v2409 = vshrl.u32 %v2408, 7
  %v2410 = vsub.s32 %v2407, %v2409
  %v2411 = vrot.slane %v2397, %v2410
  %v2412 = vcombine.low %v2388, %v2404
  %v2413 = vcombine.high %v2388, %v2404
  %v2415 = vunpack.c.l.s4 1934713408
  %v2416 = vunpack.c.0.s8 %v2415
  %v2417 = vlaneseq
  %v2418 = vshrl.u32 %v2417, 7
  %v2419 = vsub.s32 %v2416, %v2418
  %v2420 = vrot.slane %v2412, %v2419
  %v2422 = vunpack.c.l.s4 1934713408
  %v2423 = vunpack.c.0.s8 %v2422
  %v2424 = vlaneseq
  %v2425 = vshrl.u32 %v2424, 7
  %v2426 = vsub.s32 %v2423, %v2425
  %v2427 = vrot.slane %v2413, %v2426
  %v2428 = vcombine.low %v2395, %v2411
  %v2429 = vcombine.high %v2395, %v2411
  %v2431 = vunpack.c.l.s4 1934713408
  %v2432 = vunpack.c.0.s8 %v2431
  %v2433 = vlaneseq
  %v2434 = vshrl.u32 %v2433, 7
  %v2435 = vsub.s32 %v2432, %v2434
  %v2436 = vrot.slane %v2428, %v2435
  %v2438 = vunpack.c.l.s4 1934713408
  %v2439 = vunpack.c.0.s8 %v2438
  %v2440 = vlaneseq
  %v2441 = vshrl.u32 %v2440, 7
  %v2442 = vsub.s32 %v2439, %v2441
  %v2443 = vrot.slane %v2429, %v2442
  %v2444 = vcombine.high %v2420, 0.0
  %v2445 = vcombine.high %v2427, 0.0
  %v2446 = vcombine.high %v2436, 0.0
  %v2447 = vcombine.high %v2443, 0.0
  %v2448 = vcombine.low %v2284, %v2291
  %v2450 = vunpack.c.l.s4 1983009808
  %v2451 = vunpack.c.0.s8 %v2450
  %v2452 = vlaneseq
  %v2453 = vshrl.u32 %v2452, 7
  %v2454 = vsub.s32 %v2451, %v2453
  %v2455 = vrot.slane %v2448, %v2454
  %v2456 = vcombine.low %v2308, %v2309
  %v2458 = vunpack.c.l.s4 1983009808
  %v2459 = vunpack.c.0.s8 %v2458
  %v2460 = vlaneseq
  %v2461 = vshrl.u32 %v2460, 7
  %v2462 = vsub.s32 %v2459, %v2461
  %v2463 = vrot.slane %v2456, %v2462
  %v2464 = vcombine.low %v2300, %v2307
  %v2466 = vunpack.c.l.s4 1983009808
  %v2467 = vunpack.c.0.s8 %v2466
  %v2468 = vlaneseq
  %v2469 = vshrl.u32 %v2468, 7
  %v2470 = vsub.s32 %v2467, %v2469
  %v2471 = vrot.slane %v2464, %v2470
  %v2472 = vcombine.low %v2310, %v2311
  %v2474 = vunpack.c.l.s4 1983009808
  %v2475 = vunpack.c.0.s8 %v2474
  %v2476 = vlaneseq
  %v2477 = vshrl.u32 %v2476, 7
  %v2478 = vsub.s32 %v2475, %v2477
  %v2479 = vrot.slane %v2472, %v2478
  %v2480 = vcombine.low %v2455, %v2463
  %v2481 = vcombine.high %v2455, %v2463
  %v2483 = vunpack.c.l.s4 1934713408
  %v2484 = vunpack.c.0.s8 %v2483
  %v2485 = vlaneseq
  %v2486 = vshrl.u32 %v2485, 7
  %v2487 = vsub.s32 %v2484, %v2486
  %v2488 = vrot.slane %v2480, %v2487
  %v2490 = vunpack.c.l.s4 1934713408
  %v2491 = vunpack.c.0.s8 %v2490
  %v2492 = vlaneseq
  %v2493 = vshrl.u32 %v2492, 7
  %v2494 = vsub.s32 %v2491, %v2493
  %v2495 = vrot.slane %v2481, %v2494
  %v2496 = vcombine.low %v2471, %v2479
  %v2497 = vcombine.high %v2471, %v2479
  %v2499 = vunpack.c.l.s4 1934713408
  %v2500 = vunpack.c.0.s8 %v2499
  %v2501 = vlaneseq
  %v2502 = vshrl.u32 %v2501, 7
  %v2503 = vsub.s32 %v2500, %v2502
  %v2504 = vrot.slane %v2496, %v2503
  %v2506 = vunpack.c.l.s4 1934713408
  %v2507 = vunpack.c.0.s8 %v2506
  %v2508 = vlaneseq
  %v2509 = vshrl.u32 %v2508, 7
  %v2510 = vsub.s32 %v2507, %v2509
  %v2511 = vrot.slane %v2497, %v2510
  %v2512 = vcombine.low %v2488, %v2504
  %v2513 = vcombine.high %v2488, %v2504
  %v2514 = vcombine.low %v2495, %v2511
  %v2515 = vcombine.high %v2495, %v2511
  %v2516 = vcombine.low %v2352, %v2359
  %v2518 = vunpack.c.l.s4 1983009808
  %v2519 = vunpack.c.0.s8 %v2518
  %v2520 = vlaneseq
  %v2521 = vshrl.u32 %v2520, 7
  %v2522 = vsub.s32 %v2519, %v2521
  %v2523 = vrot.slane %v2516, %v2522
  %v2524 = vcombine.low %v2376, %v2377
  %v2526 = vunpack.c.l.s4 1983009808
  %v2527 = vunpack.c.0.s8 %v2526
  %v2528 = vlaneseq
  %v2529 = vshrl.u32 %v2528, 7
  %v2530 = vsub.s32 %v2527, %v2529
  %v2531 = vrot.slane %v2524, %v2530
  %v2532 = vcombine.low %v2368, %v2375
  %v2534 = vunpack.c.l.s4 1983009808
  %v2535 = vunpack.c.0.s8 %v2534
  %v2536 = vlaneseq
  %v2537 = vshrl.u32 %v2536, 7
  %v2538 = vsub.s32 %v2535, %v2537
  %v2539 = vrot.slane %v2532, %v2538
  %v2540 = vcombine.low %v2378, %v2379
  %v2542 = vunpack.c.l.s4 1983009808
  %v2543 = vunpack.c.0.s8 %v2542
  %v2544 = vlaneseq
  %v2545 = vshrl.u32 %v2544, 7
  %v2546 = vsub.s32 %v2543, %v2545
  %v2547 = vrot.slane %v2540, %v2546
  %v2548 = vcombine.low %v2523, %v2531
  %v2549 = vcombine.high %v2523, %v2531
  %v2551 = vunpack.c.l.s4 1934713408
  %v2552 = vunpack.c.0.s8 %v2551
  %v2553 = vlaneseq
  %v2554 = vshrl.u32 %v2553, 7
  %v2555 = vsub.s32 %v2552, %v2554
  %v2556 = vrot.slane %v2548, %v2555
  %v2558 = vunpack.c.l.s4 1934713408
  %v2559 = vunpack.c.0.s8 %v2558
  %v2560 = vlaneseq
  %v2561 = vshrl.u32 %v2560, 7
  %v2562 = vsub.s32 %v2559, %v2561
  %v2563 = vrot.slane %v2549, %v2562
  %v2564 = vcombine.low %v2539, %v2547
  %v2565 = vcombine.high %v2539, %v2547
  %v2567 = vunpack.c.l.s4 1934713408
  %v2568 = vunpack.c.0.s8 %v2567
  %v2569 = vlaneseq
  %v2570 = vshrl.u32 %v2569, 7
  %v2571 = vsub.s32 %v2568, %v2570
  %v2572 = vrot.slane %v2564, %v2571
  %v2574 = vunpack.c.l.s4 1934713408
  %v2575 = vunpack.c.0.s8 %v2574
  %v2576 = vlaneseq
  %v2577 = vshrl.u32 %v2576, 7
  %v2578 = vsub.s32 %v2575, %v2577
  %v2579 = vrot.slane %v2565, %v2578
  %v2580 = vcombine.low %v2556, %v2572
  %v2581 = vcombine.high %v2556, %v2572
  %v2582 = vcombine.low %v2563, %v2579
  %v2583 = vcombine.high %v2563, %v2579
  %v2584 = vcombine.low %v2420, %v2427
  %v2586 = vunpack.c.l.s4 1983009808
  %v2587 = vunpack.c.0.s8 %v2586
  %v2588 = vlaneseq
  %v2589 = vshrl.u32 %v2588, 7
  %v2590 = vsub.s32 %v2587, %v2589
  %v2591 = vrot.slane %v2584, %v2590
  %v2592 = vcombine.low %v2444, %v2445
  %v2594 = vunpack.c.l.s4 1983009808
  %v2595 = vunpack.c.0.s8 %v2594
  %v2596 = vlaneseq
  %v2597 = vshrl.u32 %v2596, 7
  %v2598 = vsub.s32 %v2595, %v2597
  %v2599 = vrot.slane %v2592, %v2598
  %v2600 = vcombine.low %v2436, %v2443
  %v2602 = vunpack.c.l.s4 1983009808
  %v2603 = vunpack.c.0.s8 %v2602
  %v2604 = vlaneseq
  %v2605 = vshrl.u32 %v2604, 7
  %v2606 = vsub.s32 %v2603, %v2605
  %v2607 = vrot.slane %v2600, %v2606
  %v2608 = vcombine.low %v2446, %v2447
  %v2610 = vunpack.c.l.s4 1983009808
  %v2611 = vunpack.c.0.s8 %v2610
  %v2612 = vlaneseq
  %v2613 = vshrl.u32 %v2612, 7
  %v2614 = vsub.s32 %v2611, %v2613
  %v2615 = vrot.slane %v2608, %v2614
  %v2616 = vcombine.low %v2591, %v2599
  %v2617 = vcombine.high %v2591, %v2599
  %v2619 = vunpack.c.l.s4 1934713408
  %v2620 = vunpack.c.0.s8 %v2619
  %v2621 = vlaneseq
  %v2622 = vshrl.u32 %v2621, 7
  %v2623 = vsub.s32 %v2620, %v2622
  %v2624 = vrot.slane %v2616, %v2623
  %v2626 = vunpack.c.l.s4 1934713408
  %v2627 = vunpack.c.0.s8 %v2626
  %v2628 = vlaneseq
  %v2629 = vshrl.u32 %v2628, 7
  %v2630 = vsub.s32 %v2627, %v2629
  %v2631 = vrot.slane %v2617, %v2630
  %v2632 = vcombine.low %v2607, %v2615
  %v2633 = vcombine.high %v2607, %v2615
  %v2635 = vunpack.c.l.s4 1934713408
  %v2636 = vunpack.c.0.s8 %v2635
  %v2637 = vlaneseq
  %v2638 = vshrl.u32 %v2637, 7
  %v2639 = vsub.s32 %v2636, %v2638
  %v2640 = vrot.slane %v2632, %v2639
  %v2642 = vunpack.c.l.s4 1934713408
  %v2643 = vunpack.c.0.s8 %v2642
  %v2644 = vlaneseq
  %v2645 = vshrl.u32 %v2644, 7
  %v2646 = vsub.s32 %v2643, %v2645
  %v2647 = vrot.slane %v2633, %v2646
  %v2648 = vcombine.low %v2624, %v2640
  %v2649 = vcombine.high %v2624, %v2640
  %v2650 = vcombine.low %v2631, %v2647
  %v2651 = vcombine.high %v2631, %v2647
  %2655 = vrot.lane.b32.xlu0 %v2513, 8
  %v2656 = vpop.permute.xlu0 %2655
  %2657 = vrot.lane.b32.xlu0 %v2581, 8
  %v2658 = vpop.permute.xlu0 %2657
  %2659 = vrot.lane.b32.xlu0 %v2649, 8
  %v2660 = vpop.permute.xlu0 %2659
  %2667 = vrot.lane.b32.xlu0 %v2514, 16
  %v2668 = vpop.permute.xlu0 %2667
  %2669 = vrot.lane.b32.xlu0 %v2582, 16
  %v2670 = vpop.permute.xlu0 %2669
  %2671 = vrot.lane.b32.xlu0 %v2650, 16
  %v2672 = vpop.permute.xlu0 %2671
  %2679 = vrot.lane.b32.xlu0 %v2515, 24
  %v2680 = vpop.permute.xlu0 %2679
  %2681 = vrot.lane.b32.xlu0 %v2583, 24
  %v2682 = vpop.permute.xlu0 %2681
  %2683 = vrot.lane.b32.xlu0 %v2651, 24
  %v2684 = vpop.permute.xlu0 %2683
  %v2688 = vsel %vm1601, %v2512, %v2656
  %v2689 = vsel %vm1601, %v2580, %v2658
  %v2690 = vsel %vm1601, %v2648, %v2660
  %vm2691 = vcmask 130048
  %v2692 = vsel %vm2691, %v2688, %v2668
  %v2693 = vsel %vm2691, %v2689, %v2670
  %v2694 = vsel %vm2691, %v2690, %v2672
  %v2695 = vsel %vm1866, %v2692, %v2680
  %v2696 = vsel %vm1866, %v2693, %v2682
  %v2697 = vsel %vm1866, %v2694, %v2684
  %v2698 = vld [vmem:[%s7] sm:$0xf]
  %v2699 = vld [vmem:[%s7 + $0x4] sm:$0xf]
  %v2700 = vld [vmem:[%s7 + $0x8] sm:$0xf]
  %v2701 = vld [vmem:[%s7 + $0xc] sm:$0xf]
  %v2702 = vpack.c.bf16 %v2696, %v2695
  %v2703 = vpack.c.bf16 %v2697, %v2697
  %v2704 = vld [vmem:[%s8] sm:$0x1]
  %v2706 = vlaneseq
  %v2707 = vshrl.u32 %v2706, 7
  %v2708 = vsub.s32 0, %v2707
  %v2709 = vrot.slane %v2704, %v2708
  %v2715 = vunpack.c.l.b16 %v2698
  %v2716 = vunpack.c.l.b16 %v2699
  %v2717 = vunpack.c.l.b16 %v2700
  %v2718 = vunpack.c.l.b16 %v2701
  %v2719 = vpack.c.b16 %v2716, %v2715
  %v2720 = vpack.c.b16 %v2718, %v2717
  %v2724 = vsel %vm204, %v2702, 0
  %v2727 = vsel %vm204, %v2703, 0
  %2729 = vmatprep.subr.bf16.mxu0 0
  %2730 = vmatpush1.bf16.msra.mxu0 %v2719
  %2731 = vmatprep.subr.bf16.mxu0 0
  %2732 = vmatpush1.bf16.msra.mxu0 %v2720
  %2733 = vmatprep.subr.bf16.mxu0 0
  %2734 = vmatpush1.bf16.msra.mxu0 0
  %2735 = vmatprep.subr.bf16.mxu0 0
  %2736 = vmatpush1.bf16.msra.mxu0 0
  %2737 = vmatprep.subr.bf16.mxu0 0
  %2738 = vmatpush1.bf16.msra.mxu0 0
  %2739 = vmatprep.subr.bf16.mxu0 0
  %2740 = vmatpush1.bf16.msra.mxu0 0
  %2741 = vmatprep.subr.bf16.mxu0 0
  %2742 = vmatpush1.bf16.msra.mxu0 0
  %2743 = vmatprep.subr.bf16.mxu0 0
  %2744 = vmatpush1.bf16.msra.mxu0 0
  %2745 = vmatprep.subr.bf16.mxu0 0
  %2746 = vmatpush1.bf16.msra.mxu0 0
  %2747 = vmatprep.subr.bf16.mxu0 0
  %2748 = vmatpush1.bf16.msra.mxu0 0
  %2749 = vmatprep.subr.bf16.mxu0 0
  %2750 = vmatpush1.bf16.msra.mxu0 0
  %2751 = vmatprep.subr.bf16.mxu0 0
  %2752 = vmatpush1.bf16.msra.mxu0 0
  %2753 = vmatprep.subr.bf16.mxu0 0
  %2754 = vmatpush1.bf16.msra.mxu0 0
  %2755 = vmatprep.subr.bf16.mxu0 0
  %2756 = vmatpush1.bf16.msra.mxu0 0
  %2757 = vmatprep.subr.bf16.mxu0 0
  %2758 = vmatpush1.bf16.msra.mxu0 0
  %2759 = vmatprep.subr.bf16.mxu0 0
  %2760 = vmatpush1.bf16.msra.mxu0 0
  %2761 = vmatprep.mubr.bf16.mxu0 0
  %2762 = vmatmul.mubr.bf16.gmra.mrb[0].mxu0 %v2724
  %v2763 = vpop.f32.mrb[0].mxu0
  %v2764 = vadd.f32 %v2709, %v2763
  %v2765 = vpop.f32.mrb[0].mxu0
  %v2766 = vpop.f32.mrb[0].mxu0
  %v2767 = vadd.f32 %v2709, %v2766
  %v2768 = vpop.f32.mrb[0].mxu0
  %2769 = vmatprep.mubr.bf16.mxu0 0
  %2770 = vmatmul.mubr.bf16.gmra.mrb[0].mxu0 %v2727
  %v2771 = vpop.f32.mrb[0].mxu0
  %v2772 = vadd.f32 %v2709, %v2771
  %v2773 = vpop.f32.mrb[0].mxu0
  %v2774 = vpop.f32.mrb[0].mxu0
  %v2775 = vpop.f32.mrb[0].mxu0
  %2776 = vdwg.mxu0
  %v2777 = vadd.f32 %v173, %v2764
  %v2778 = vadd.f32 %v174, %v2767
  %v2779 = vadd.f32 %v175, %v2772
  %v2780 = vld [vmem:[%s9] sm:$0x1]
  %v2781 = vld [vmem:[%s10] sm:$0x1]
  %v2782 = vsel %vm204, %v2777, 0.0
  %2783 = vadd.xlane.f32.xlu0 %v2782
  %v2784 = vpop.xlane.xlu0 %2783
  %v2785 = vsel %vm204, %v2778, 0.0
  %2786 = vadd.xlane.f32.xlu0 %v2785
  %v2787 = vpop.xlane.xlu0 %2786
  %v2788 = vsel %vm204, %v2779, 0.0
  %2789 = vadd.xlane.f32.xlu0 %v2788
  %v2790 = vpop.xlane.xlu0 %2789
  %v2791 = vrcp.pop 32.0
  %v2792 = vmul.f32 %v2784, %v2791
  %v2793 = vmul.f32 %v2787, %v2791
  %v2794 = vmul.f32 %v2790, %v2791
  %v2795 = vsub.f32 %v2777, %v2792
  %v2796 = vsub.f32 %v2778, %v2793
  %v2797 = vsub.f32 %v2779, %v2794
  %v2798 = vmul.f32 %v2795, %v2795
  %v2799 = vmul.f32 %v2796, %v2796
  %v2800 = vmul.f32 %v2797, %v2797
  %v2801 = vsel %vm204, %v2798, 0.0
  %2802 = vadd.xlane.f32.xlu0 %v2801
  %v2803 = vpop.xlane.xlu0 %2802
  %v2804 = vsel %vm204, %v2799, 0.0
  %2805 = vadd.xlane.f32.xlu0 %v2804
  %v2806 = vpop.xlane.xlu0 %2805
  %v2807 = vsel %vm204, %v2800, 0.0
  %2808 = vadd.xlane.f32.xlu0 %v2807
  %v2809 = vpop.xlane.xlu0 %2808
  %v2810 = vmul.f32 %v2803, %v2791
  %v2811 = vmul.f32 %v2806, %v2791
  %v2812 = vmul.f32 %v2809, %v2791
  %v2813 = vadd.f32 %v2810, 1e-05
  %v2814 = vadd.f32 %v2811, 1e-05
  %v2815 = vadd.f32 %v2812, 1e-05
  %v2816 = vrsqrt.pop %v2813
  %v2817 = vrsqrt.pop %v2814
  %v2818 = vrsqrt.pop %v2815
  %v2819 = vmul.f32 %v2795, %v2816
  %v2820 = vmul.f32 %v2796, %v2817
  %v2821 = vmul.f32 %v2797, %v2818
  %v2823 = vlaneseq
  %v2824 = vshrl.u32 %v2823, 7
  %v2825 = vsub.s32 0, %v2824
  %v2826 = vrot.slane %v2780, %v2825
  %v2828 = vmul.f32 %v2819, %v2826
  %v2829 = vmul.f32 %v2820, %v2826
  %v2830 = vmul.f32 %v2821, %v2826
  %v2832 = vlaneseq
  %v2833 = vshrl.u32 %v2832, 7
  %v2834 = vsub.s32 0, %v2833
  %v2835 = vrot.slane %v2781, %v2834
  %v2837 = vadd.f32 %v2828, %v2835
  %v2838 = vadd.f32 %v2829, %v2835
  %v2839 = vadd.f32 %v2830, %v2835
  %v2840 = vld [vmem:[%s11] sm:$0xf]
  %v2841 = vld [vmem:[%s11 + $0x4] sm:$0xf]
  %v2842 = vld [vmem:[%s11 + $0x8] sm:$0xf]
  %v2843 = vld [vmem:[%s11 + $0xc] sm:$0xf]
  %v2844 = vpack.c.bf16 %v2838, %v2837
  %v2845 = vpack.c.bf16 %v2839, %v2839
  %v2846 = vld [vmem:[%s12] sm:$0x1]
  %v2848 = vlaneseq
  %v2849 = vshrl.u32 %v2848, 7
  %v2850 = vsub.s32 0, %v2849
  %v2851 = vrot.slane %v2846, %v2850
  %v2857 = vunpack.c.l.b16 %v2840
  %v2858 = vunpack.c.l.b16 %v2841
  %v2859 = vunpack.c.l.b16 %v2842
  %v2860 = vunpack.c.l.b16 %v2843
  %v2861 = vpack.c.b16 %v2858, %v2857
  %v2862 = vpack.c.b16 %v2860, %v2859
  %v2866 = vsel %vm204, %v2844, 0
  %v2869 = vsel %vm204, %v2845, 0
  %2871 = vmatprep.subr.bf16.mxu0 0
  %2872 = vmatpush1.bf16.msra.mxu0 %v2861
  %2873 = vmatprep.subr.bf16.mxu0 0
  %2874 = vmatpush1.bf16.msra.mxu0 %v2862
  %2875 = vmatprep.subr.bf16.mxu0 0
  %2876 = vmatpush1.bf16.msra.mxu0 0
  %2877 = vmatprep.subr.bf16.mxu0 0
  %2878 = vmatpush1.bf16.msra.mxu0 0
  %2879 = vmatprep.subr.bf16.mxu0 0
  %2880 = vmatpush1.bf16.msra.mxu0 0
  %2881 = vmatprep.subr.bf16.mxu0 0
  %2882 = vmatpush1.bf16.msra.mxu0 0
  %2883 = vmatprep.subr.bf16.mxu0 0
  %2884 = vmatpush1.bf16.msra.mxu0 0
  %2885 = vmatprep.subr.bf16.mxu0 0
  %2886 = vmatpush1.bf16.msra.mxu0 0
  %2887 = vmatprep.subr.bf16.mxu0 0
  %2888 = vmatpush1.bf16.msra.mxu0 0
  %2889 = vmatprep.subr.bf16.mxu0 0
  %2890 = vmatpush1.bf16.msra.mxu0 0
  %2891 = vmatprep.subr.bf16.mxu0 0
  %2892 = vmatpush1.bf16.msra.mxu0 0
  %2893 = vmatprep.subr.bf16.mxu0 0
  %2894 = vmatpush1.bf16.msra.mxu0 0
  %2895 = vmatprep.subr.bf16.mxu0 0
  %2896 = vmatpush1.bf16.msra.mxu0 0
  %2897 = vmatprep.subr.bf16.mxu0 0
  %2898 = vmatpush1.bf16.msra.mxu0 0
  %2899 = vmatprep.subr.bf16.mxu0 0
  %2900 = vmatpush1.bf16.msra.mxu0 0
  %2901 = vmatprep.subr.bf16.mxu0 0
  %2902 = vmatpush1.bf16.msra.mxu0 0
  %2903 = vmatprep.mubr.bf16.mxu0 0
  %2904 = vmatmul.mubr.bf16.gmra.mrb[0].mxu0 %v2866
  %v2905 = vpop.f32.mrb[0].mxu0
  %v2906 = vadd.f32 %v2851, %v2905
  %v2907 = vpop.f32.mrb[0].mxu0
  %v2908 = vpop.f32.mrb[0].mxu0
  %v2909 = vadd.f32 %v2851, %v2908
  %v2910 = vpop.f32.mrb[0].mxu0
  %2911 = vmatprep.mubr.bf16.mxu0 0
  %2912 = vmatmul.mubr.bf16.gmra.mrb[0].mxu0 %v2869
  %v2913 = vpop.f32.mrb[0].mxu0
  %v2914 = vadd.f32 %v2851, %v2913
  %v2915 = vpop.f32.mrb[0].mxu0
  %v2916 = vpop.f32.mrb[0].mxu0
  %v2917 = vpop.f32.mrb[0].mxu0
  %2918 = vdwg.mxu0
  %v2919 = vmul.f32 %v2906, %v2906
  %v2920 = vmul.f32 %v2909, %v2909
  %v2921 = vmul.f32 %v2914, %v2914
  %v2922 = vmul.f32 %v2906, %v2919
  %v2923 = vmul.f32 %v2909, %v2920
  %v2924 = vmul.f32 %v2914, %v2921
  %v2925 = vmul.f32 %v2922, 0.044715
  %v2926 = vmul.f32 %v2923, 0.044715
  %v2927 = vmul.f32 %v2924, 0.044715
  %v2928 = vadd.f32 %v2906, %v2925
  %v2929 = vadd.f32 %v2909, %v2926
  %v2930 = vadd.f32 %v2914, %v2927
  %v2931 = vmul.f32 %v2928, 0.7978846
  %v2932 = vmul.f32 %v2929, 0.7978846
  %v2933 = vmul.f32 %v2930, 0.7978846
  %v2934 = vtanh.pop %v2931
  %v2935 = vtanh.pop %v2932
  %v2936 = vtanh.pop %v2933
  %v2937 = vadd.f32 %v2934, 1.0
  %v2938 = vadd.f32 %v2935, 1.0
  %v2939 = vadd.f32 %v2936, 1.0
  %v2940 = vmul.f32 %v2937, 0.5
  %v2941 = vmul.f32 %v2938, 0.5
  %v2942 = vmul.f32 %v2939, 0.5
  %v2943 = vmul.f32 %v2906, %v2940
  %v2944 = vmul.f32 %v2909, %v2941
  %v2945 = vmul.f32 %v2914, %v2942
  %v2946 = vld [vmem:[%s13] sm:$0xf]
  %v2947 = vld [vmem:[%s13 + $0x4] sm:$0xf]
  %v2948 = vld [vmem:[%s13 + $0x8] sm:$0xf]
  %v2949 = vld [vmem:[%s13 + $0xc] sm:$0xf]
  %v2950 = vld [vmem:[%s13 + $0x10] sm:$0xf]
  %v2951 = vld [vmem:[%s13 + $0x14] sm:$0xf]
  %v2952 = vld [vmem:[%s13 + $0x18] sm:$0xf]
  %v2953 = vld [vmem:[%s13 + $0x1c] sm:$0xf]
  %v2954 = vpack.c.bf16 %v2944, %v2943
  %v2955 = vpack.c.bf16 %v2945, %v2945
  %v2956 = vld [vmem:[%s14] sm:$0x1]
  %v2958 = vlaneseq
  %v2959 = vshrl.u32 %v2958, 7
  %v2960 = vsub.s32 0, %v2959
  %v2961 = vrot.slane %v2956, %v2960
  %v2971 = vunpack.c.l.b16 %v2946
  %v2972 = vunpack.c.l.b16 %v2947
  %v2973 = vunpack.c.l.b16 %v2948
  %v2974 = vunpack.c.l.b16 %v2949
  %v2975 = vunpack.c.l.b16 %v2950
  %v2976 = vunpack.c.l.b16 %v2951
  %v2977 = vunpack.c.l.b16 %v2952
  %v2978 = vunpack.c.l.b16 %v2953
  %v2979 = vpack.c.b16 %v2972, %v2971
  %v2980 = vpack.c.b16 %v2974, %v2973
  %v2981 = vpack.c.b16 %v2976, %v2975
  %v2982 = vpack.c.b16 %v2978, %v2977
  %vm2987 = vcmask 523264
  %v2989 = vsel %vm2987, %v2954, 0
  %v2992 = vsel %vm2987, %v2955, 0
  %2994 = vmatprep.subr.bf16.mxu0 0
  %2995 = vmatpush1.bf16.msra.mxu0 %v2979
  %2996 = vmatprep.subr.bf16.mxu0 0
  %2997 = vmatpush1.bf16.msra.mxu0 %v2980
  %2998 = vmatprep.subr.bf16.mxu0 0
  %2999 = vmatpush1.bf16.msra.mxu0 %v2981
  %3000 = vmatprep.subr.bf16.mxu0 0
  %3001 = vmatpush1.bf16.msra.mxu0 %v2982
  %3002 = vmatprep.subr.bf16.mxu0 0
  %3003 = vmatpush1.bf16.msra.mxu0 0
  %3004 = vmatprep.subr.bf16.mxu0 0
  %3005 = vmatpush1.bf16.msra.mxu0 0
  %3006 = vmatprep.subr.bf16.mxu0 0
  %3007 = vmatpush1.bf16.msra.mxu0 0
  %3008 = vmatprep.subr.bf16.mxu0 0
  %3009 = vmatpush1.bf16.msra.mxu0 0
  %3010 = vmatprep.subr.bf16.mxu0 0
  %3011 = vmatpush1.bf16.msra.mxu0 0
  %3012 = vmatprep.subr.bf16.mxu0 0
  %3013 = vmatpush1.bf16.msra.mxu0 0
  %3014 = vmatprep.subr.bf16.mxu0 0
  %3015 = vmatpush1.bf16.msra.mxu0 0
  %3016 = vmatprep.subr.bf16.mxu0 0
  %3017 = vmatpush1.bf16.msra.mxu0 0
  %3018 = vmatprep.subr.bf16.mxu0 0
  %3019 = vmatpush1.bf16.msra.mxu0 0
  %3020 = vmatprep.subr.bf16.mxu0 0
  %3021 = vmatpush1.bf16.msra.mxu0 0
  %3022 = vmatprep.subr.bf16.mxu0 0
  %3023 = vmatpush1.bf16.msra.mxu0 0
  %3024 = vmatprep.subr.bf16.mxu0 0
  %3025 = vmatpush1.bf16.msra.mxu0 0
  %3026 = vmatprep.mubr.bf16.mxu0 0
  %3027 = vmatmul.mubr.bf16.gmra.mrb[0].mxu0 %v2989
  %v3028 = vpop.f32.mrb[0].mxu0
  %v3029 = vadd.f32 %v2961, %v3028
  %v3030 = vpop.f32.mrb[0].mxu0
  %v3031 = vpop.f32.mrb[0].mxu0
  %v3032 = vadd.f32 %v2961, %v3031
  %v3033 = vpop.f32.mrb[0].mxu0
  %3034 = vmatprep.mubr.bf16.mxu0 0
  %3035 = vmatmul.mubr.bf16.gmra.mrb[0].mxu0 %v2992
  %v3036 = vpop.f32.mrb[0].mxu0
  %v3037 = vadd.f32 %v2961, %v3036
  %v3038 = vpop.f32.mrb[0].mxu0
  %v3039 = vpop.f32.mrb[0].mxu0
  %v3040 = vpop.f32.mrb[0].mxu0
  %3041 = vdwg.mxu0
  %v3042 = vadd.f32 %v2837, %v3029
  %v3043 = vadd.f32 %v2838, %v3032
  %v3044 = vadd.f32 %v2839, %v3037
  %v3045 = vld [vmem:[%s15] sm:$0x1]
  %v3046 = vld [vmem:[%s16] sm:$0x1]
  %v3047 = vsel %vm204, %v3042, 0.0
  %3048 = vadd.xlane.f32.xlu0 %v3047
  %v3049 = vpop.xlane.xlu0 %3048
  %v3050 = vsel %vm204, %v3043, 0.0
  %3051 = vadd.xlane.f32.xlu0 %v3050
  %v3052 = vpop.xlane.xlu0 %3051
  %v3053 = vsel %vm204, %v3044, 0.0
  %3054 = vadd.xlane.f32.xlu0 %v3053
  %v3055 = vpop.xlane.xlu0 %3054
  %v3056 = vmul.f32 %v3049, %v2791
  %v3057 = vmul.f32 %v3052, %v2791
  %v3058 = vmul.f32 %v3055, %v2791
  %v3059 = vsub.f32 %v3042, %v3056
  %v3060 = vsub.f32 %v3043, %v3057
  %v3061 = vsub.f32 %v3044, %v3058
  %v3062 = vmul.f32 %v3059, %v3059
  %v3063 = vmul.f32 %v3060, %v3060
  %v3064 = vmul.f32 %v3061, %v3061
  %v3065 = vsel %vm204, %v3062, 0.0
  %3066 = vadd.xlane.f32.xlu0 %v3065
  %v3067 = vpop.xlane.xlu0 %3066
  %v3068 = vsel %vm204, %v3063, 0.0
  %3069 = vadd.xlane.f32.xlu0 %v3068
  %v3070 = vpop.xlane.xlu0 %3069
  %v3071 = vsel %vm204, %v3064, 0.0
  %3072 = vadd.xlane.f32.xlu0 %v3071
  %v3073 = vpop.xlane.xlu0 %3072
  %v3074 = vmul.f32 %v3067, %v2791
  %v3075 = vmul.f32 %v3070, %v2791
  %v3076 = vmul.f32 %v3073, %v2791
  %v3077 = vadd.f32 %v3074, 1e-05
  %v3078 = vadd.f32 %v3075, 1e-05
  %v3079 = vadd.f32 %v3076, 1e-05
  %v3080 = vrsqrt.pop %v3077
  %v3081 = vrsqrt.pop %v3078
  %v3082 = vrsqrt.pop %v3079
  %v3083 = vmul.f32 %v3059, %v3080
  %v3084 = vmul.f32 %v3060, %v3081
  %v3085 = vmul.f32 %v3061, %v3082
  %v3087 = vlaneseq
  %v3088 = vshrl.u32 %v3087, 7
  %v3089 = vsub.s32 0, %v3088
  %v3090 = vrot.slane %v3045, %v3089
  %v3092 = vmul.f32 %v3083, %v3090
  %v3093 = vmul.f32 %v3084, %v3090
  %v3094 = vmul.f32 %v3085, %v3090
  %v3096 = vlaneseq
  %v3097 = vshrl.u32 %v3096, 7
  %v3098 = vsub.s32 0, %v3097
  %v3099 = vrot.slane %v3046, %v3098
  %v3101 = vadd.f32 %v3092, %v3099
  %v3102 = vadd.f32 %v3093, %v3099
  %v3103 = vadd.f32 %v3094, %v3099
  %s3104 = scalar_lea.vmem %s5, 16
  %v3105 = vld [vmem:[%s3104] sm:$0xf]
  %v3106 = vld [vmem:[%s3104 + $0x4] sm:$0xf]
  %v3107 = vld [vmem:[%s3104 + $0x8] sm:$0xf]
  %v3108 = vld [vmem:[%s3104 + $0xc] sm:$0xf]
  %v3109 = vpack.c.bf16 %v3102, %v3101
  %v3110 = vpack.c.bf16 %v3103, %v3103
  %s3111 = scalar_lea.vmem %s6, 1
  %v3112 = vld [vmem:[%s3111] sm:$0x1]
  %v3114 = vlaneseq
  %v3115 = vshrl.u32 %v3114, 7
  %v3116 = vsub.s32 0, %v3115
  %v3117 = vrot.slane %v3112, %v3116
  %v3123 = vunpack.c.l.b16 %v3105
  %v3124 = vunpack.c.l.b16 %v3106
  %v3125 = vunpack.c.l.b16 %v3107
  %v3126 = vunpack.c.l.b16 %v3108
  %v3127 = vpack.c.b16 %v3124, %v3123
  %v3128 = vpack.c.b16 %v3126, %v3125
  %v3132 = vsel %vm204, %v3109, 0
  %v3135 = vsel %vm204, %v3110, 0
  %3137 = vmatprep.subr.bf16.mxu0 0
  %3138 = vmatpush1.bf16.msra.mxu0 %v3127
  %3139 = vmatprep.subr.bf16.mxu0 0
  %3140 = vmatpush1.bf16.msra.mxu0 %v3128
  %3141 = vmatprep.subr.bf16.mxu0 0
  %3142 = vmatpush1.bf16.msra.mxu0 0
  %3143 = vmatprep.subr.bf16.mxu0 0
  %3144 = vmatpush1.bf16.msra.mxu0 0
  %3145 = vmatprep.subr.bf16.mxu0 0
  %3146 = vmatpush1.bf16.msra.mxu0 0
  %3147 = vmatprep.subr.bf16.mxu0 0
  %3148 = vmatpush1.bf16.msra.mxu0 0
  %3149 = vmatprep.subr.bf16.mxu0 0
  %3150 = vmatpush1.bf16.msra.mxu0 0
  %3151 = vmatprep.subr.bf16.mxu0 0
  %3152 = vmatpush1.bf16.msra.mxu0 0
  %3153 = vmatprep.subr.bf16.mxu0 0
  %3154 = vmatpush1.bf16.msra.mxu0 0
  %3155 = vmatprep.subr.bf16.mxu0 0
  %3156 = vmatpush1.bf16.msra.mxu0 0
  %3157 = vmatprep.subr.bf16.mxu0 0
  %3158 = vmatpush1.bf16.msra.mxu0 0
  %3159 = vmatprep.subr.bf16.mxu0 0
  %3160 = vmatpush1.bf16.msra.mxu0 0
  %3161 = vmatprep.subr.bf16.mxu0 0
  %3162 = vmatpush1.bf16.msra.mxu0 0
  %3163 = vmatprep.subr.bf16.mxu0 0
  %3164 = vmatpush1.bf16.msra.mxu0 0
  %3165 = vmatprep.subr.bf16.mxu0 0
  %3166 = vmatpush1.bf16.msra.mxu0 0
  %3167 = vmatprep.subr.bf16.mxu0 0
  %3168 = vmatpush1.bf16.msra.mxu0 0
  %3169 = vmatprep.mubr.bf16.mxu0 0
  %3170 = vmatmul.mubr.bf16.gmra.mrb[0].mxu0 %v3132
  %v3171 = vpop.f32.mrb[0].mxu0
  %v3172 = vadd.f32 %v3117, %v3171
  %v3173 = vpop.f32.mrb[0].mxu0
  %v3174 = vpop.f32.mrb[0].mxu0
  %v3175 = vadd.f32 %v3117, %v3174
  %v3176 = vpop.f32.mrb[0].mxu0
  %3177 = vmatprep.mubr.bf16.mxu0 0
  %3178 = vmatmul.mubr.bf16.gmra.mrb[0].mxu0 %v3135
  %v3179 = vpop.f32.mrb[0].mxu0
  %v3180 = vadd.f32 %v3117, %v3179
  %v3181 = vpop.f32.mrb[0].mxu0
  %v3182 = vpop.f32.mrb[0].mxu0
  %v3183 = vpop.f32.mrb[0].mxu0
  %3184 = vdwg.mxu0
  %3188 = vrot.lane.b32.xlu0 %v3172, 120
  %v3189 = vpop.permute.xlu0 %3188
  %3190 = vrot.lane.b32.xlu0 %v3175, 120
  %v3191 = vpop.permute.xlu0 %3190
  %3192 = vrot.lane.b32.xlu0 %v3180, 120
  %v3193 = vpop.permute.xlu0 %3192
  %3197 = vrot.lane.b32.xlu0 %v3172, 112
  %v3198 = vpop.permute.xlu0 %3197
  %3199 = vrot.lane.b32.xlu0 %v3175, 112
  %v3200 = vpop.permute.xlu0 %3199
  %3201 = vrot.lane.b32.xlu0 %v3180, 112
  %v3202 = vpop.permute.xlu0 %3201
  %3206 = vrot.lane.b32.xlu0 %v3172, 104
  %v3207 = vpop.permute.xlu0 %3206
  %3208 = vrot.lane.b32.xlu0 %v3175, 104
  %v3209 = vpop.permute.xlu0 %3208
  %3210 = vrot.lane.b32.xlu0 %v3180, 104
  %v3211 = vpop.permute.xlu0 %3210
  %v3215 = vcombine.low %v3172, %v3198
  %v3216 = vcombine.high %v3172, %v3198
  %v3218 = vunpack.c.l.s4 1983009808
  %v3219 = vunpack.c.0.s8 %v3218
  %v3220 = vlaneseq
  %v3221 = vshrl.u32 %v3220, 7
  %v3222 = vsub.s32 %v3219, %v3221
  %v3223 = vrot.slane %v3215, %v3222
  %v3225 = vunpack.c.l.s4 1983009808
  %v3226 = vunpack.c.0.s8 %v3225
  %v3227 = vlaneseq
  %v3228 = vshrl.u32 %v3227, 7
  %v3229 = vsub.s32 %v3226, %v3228
  %v3230 = vrot.slane %v3216, %v3229
  %v3231 = vcombine.low %v3189, %v3207
  %v3232 = vcombine.high %v3189, %v3207
  %v3234 = vunpack.c.l.s4 1983009808
  %v3235 = vunpack.c.0.s8 %v3234
  %v3236 = vlaneseq
  %v3237 = vshrl.u32 %v3236, 7
  %v3238 = vsub.s32 %v3235, %v3237
  %v3239 = vrot.slane %v3231, %v3238
  %v3241 = vunpack.c.l.s4 1983009808
  %v3242 = vunpack.c.0.s8 %v3241
  %v3243 = vlaneseq
  %v3244 = vshrl.u32 %v3243, 7
  %v3245 = vsub.s32 %v3242, %v3244
  %v3246 = vrot.slane %v3232, %v3245
  %v3247 = vcombine.low %v3223, %v3239
  %v3248 = vcombine.high %v3223, %v3239
  %v3250 = vunpack.c.l.s4 1934713408
  %v3251 = vunpack.c.0.s8 %v3250
  %v3252 = vlaneseq
  %v3253 = vshrl.u32 %v3252, 7
  %v3254 = vsub.s32 %v3251, %v3253
  %v3255 = vrot.slane %v3247, %v3254
  %v3257 = vunpack.c.l.s4 1934713408
  %v3258 = vunpack.c.0.s8 %v3257
  %v3259 = vlaneseq
  %v3260 = vshrl.u32 %v3259, 7
  %v3261 = vsub.s32 %v3258, %v3260
  %v3262 = vrot.slane %v3248, %v3261
  %v3263 = vcombine.low %v3230, %v3246
  %v3264 = vcombine.high %v3230, %v3246
  %v3266 = vunpack.c.l.s4 1934713408
  %v3267 = vunpack.c.0.s8 %v3266
  %v3268 = vlaneseq
  %v3269 = vshrl.u32 %v3268, 7
  %v3270 = vsub.s32 %v3267, %v3269
  %v3271 = vrot.slane %v3263, %v3270
  %v3273 = vunpack.c.l.s4 1934713408
  %v3274 = vunpack.c.0.s8 %v3273
  %v3275 = vlaneseq
  %v3276 = vshrl.u32 %v3275, 7
  %v3277 = vsub.s32 %v3274, %v3276
  %v3278 = vrot.slane %v3264, %v3277
  %v3279 = vcombine.high %v3255, 0.0
  %v3280 = vcombine.high %v3262, 0.0
  %v3281 = vcombine.high %v3271, 0.0
  %v3282 = vcombine.high %v3278, 0.0
  %v3283 = vcombine.low %v3175, %v3200
  %v3284 = vcombine.high %v3175, %v3200
  %v3286 = vunpack.c.l.s4 1983009808
  %v3287 = vunpack.c.0.s8 %v3286
  %v3288 = vlaneseq
  %v3289 = vshrl.u32 %v3288, 7
  %v3290 = vsub.s32 %v3287, %v3289
  %v3291 = vrot.slane %v3283, %v3290
  %v3293 = vunpack.c.l.s4 1983009808
  %v3294 = vunpack.c.0.s8 %v3293
  %v3295 = vlaneseq
  %v3296 = vshrl.u32 %v3295, 7
  %v3297 = vsub.s32 %v3294, %v3296
  %v3298 = vrot.slane %v3284, %v3297
  %v3299 = vcombine.low %v3191, %v3209
  %v3300 = vcombine.high %v3191, %v3209
  %v3302 = vunpack.c.l.s4 1983009808
  %v3303 = vunpack.c.0.s8 %v3302
  %v3304 = vlaneseq
  %v3305 = vshrl.u32 %v3304, 7
  %v3306 = vsub.s32 %v3303, %v3305
  %v3307 = vrot.slane %v3299, %v3306
  %v3309 = vunpack.c.l.s4 1983009808
  %v3310 = vunpack.c.0.s8 %v3309
  %v3311 = vlaneseq
  %v3312 = vshrl.u32 %v3311, 7
  %v3313 = vsub.s32 %v3310, %v3312
  %v3314 = vrot.slane %v3300, %v3313
  %v3315 = vcombine.low %v3291, %v3307
  %v3316 = vcombine.high %v3291, %v3307
  %v3318 = vunpack.c.l.s4 1934713408
  %v3319 = vunpack.c.0.s8 %v3318
  %v3320 = vlaneseq
  %v3321 = vshrl.u32 %v3320, 7
  %v3322 = vsub.s32 %v3319, %v3321
  %v3323 = vrot.slane %v3315, %v3322
  %v3325 = vunpack.c.l.s4 1934713408
  %v3326 = vunpack.c.0.s8 %v3325
  %v3327 = vlaneseq
  %v3328 = vshrl.u32 %v3327, 7
  %v3329 = vsub.s32 %v3326, %v3328
  %v3330 = vrot.slane %v3316, %v3329
  %v3331 = vcombine.low %v3298, %v3314
  %v3332 = vcombine.high %v3298, %v3314
  %v3334 = vunpack.c.l.s4 1934713408
  %v3335 = vunpack.c.0.s8 %v3334
  %v3336 = vlaneseq
  %v3337 = vshrl.u32 %v3336, 7
  %v3338 = vsub.s32 %v3335, %v3337
  %v3339 = vrot.slane %v3331, %v3338
  %v3341 = vunpack.c.l.s4 1934713408
  %v3342 = vunpack.c.0.s8 %v3341
  %v3343 = vlaneseq
  %v3344 = vshrl.u32 %v3343, 7
  %v3345 = vsub.s32 %v3342, %v3344
  %v3346 = vrot.slane %v3332, %v3345
  %v3347 = vcombine.high %v3323, 0.0
  %v3348 = vcombine.high %v3330, 0.0
  %v3349 = vcombine.high %v3339, 0.0
  %v3350 = vcombine.high %v3346, 0.0
  %v3351 = vcombine.low %v3180, %v3202
  %v3352 = vcombine.high %v3180, %v3202
  %v3354 = vunpack.c.l.s4 1983009808
  %v3355 = vunpack.c.0.s8 %v3354
  %v3356 = vlaneseq
  %v3357 = vshrl.u32 %v3356, 7
  %v3358 = vsub.s32 %v3355, %v3357
  %v3359 = vrot.slane %v3351, %v3358
  %v3361 = vunpack.c.l.s4 1983009808
  %v3362 = vunpack.c.0.s8 %v3361
  %v3363 = vlaneseq
  %v3364 = vshrl.u32 %v3363, 7
  %v3365 = vsub.s32 %v3362, %v3364
  %v3366 = vrot.slane %v3352, %v3365
  %v3367 = vcombine.low %v3193, %v3211
  %v3368 = vcombine.high %v3193, %v3211
  %v3370 = vunpack.c.l.s4 1983009808
  %v3371 = vunpack.c.0.s8 %v3370
  %v3372 = vlaneseq
  %v3373 = vshrl.u32 %v3372, 7
  %v3374 = vsub.s32 %v3371, %v3373
  %v3375 = vrot.slane %v3367, %v3374
  %v3377 = vunpack.c.l.s4 1983009808
  %v3378 = vunpack.c.0.s8 %v3377
  %v3379 = vlaneseq
  %v3380 = vshrl.u32 %v3379, 7
  %v3381 = vsub.s32 %v3378, %v3380
  %v3382 = vrot.slane %v3368, %v3381
  %v3383 = vcombine.low %v3359, %v3375
  %v3384 = vcombine.high %v3359, %v3375
  %v3386 = vunpack.c.l.s4 1934713408
  %v3387 = vunpack.c.0.s8 %v3386
  %v3388 = vlaneseq
  %v3389 = vshrl.u32 %v3388, 7
  %v3390 = vsub.s32 %v3387, %v3389
  %v3391 = vrot.slane %v3383, %v3390
  %v3393 = vunpack.c.l.s4 1934713408
  %v3394 = vunpack.c.0.s8 %v3393
  %v3395 = vlaneseq
  %v3396 = vshrl.u32 %v3395, 7
  %v3397 = vsub.s32 %v3394, %v3396
  %v3398 = vrot.slane %v3384, %v3397
  %v3399 = vcombine.low %v3366, %v3382
  %v3400 = vcombine.high %v3366, %v3382
  %v3402 = vunpack.c.l.s4 1934713408
  %v3403 = vunpack.c.0.s8 %v3402
  %v3404 = vlaneseq
  %v3405 = vshrl.u32 %v3404, 7
  %v3406 = vsub.s32 %v3403, %v3405
  %v3407 = vrot.slane %v3399, %v3406
  %v3409 = vunpack.c.l.s4 1934713408
  %v3410 = vunpack.c.0.s8 %v3409
  %v3411 = vlaneseq
  %v3412 = vshrl.u32 %v3411, 7
  %v3413 = vsub.s32 %v3410, %v3412
  %v3414 = vrot.slane %v3400, %v3413
  %v3415 = vcombine.high %v3391, 0.0
  %v3416 = vcombine.high %v3398, 0.0
  %v3417 = vcombine.high %v3407, 0.0
  %v3418 = vcombine.high %v3414, 0.0
  %v3419 = vcombine.low %v3255, %v3262
  %v3421 = vunpack.c.l.s4 1983009808
  %v3422 = vunpack.c.0.s8 %v3421
  %v3423 = vlaneseq
  %v3424 = vshrl.u32 %v3423, 7
  %v3425 = vsub.s32 %v3422, %v3424
  %v3426 = vrot.slane %v3419, %v3425
  %v3427 = vcombine.low %v3279, %v3280
  %v3429 = vunpack.c.l.s4 1983009808
  %v3430 = vunpack.c.0.s8 %v3429
  %v3431 = vlaneseq
  %v3432 = vshrl.u32 %v3431, 7
  %v3433 = vsub.s32 %v3430, %v3432
  %v3434 = vrot.slane %v3427, %v3433
  %v3435 = vcombine.low %v3271, %v3278
  %v3437 = vunpack.c.l.s4 1983009808
  %v3438 = vunpack.c.0.s8 %v3437
  %v3439 = vlaneseq
  %v3440 = vshrl.u32 %v3439, 7
  %v3441 = vsub.s32 %v3438, %v3440
  %v3442 = vrot.slane %v3435, %v3441
  %v3443 = vcombine.low %v3281, %v3282
  %v3445 = vunpack.c.l.s4 1983009808
  %v3446 = vunpack.c.0.s8 %v3445
  %v3447 = vlaneseq
  %v3448 = vshrl.u32 %v3447, 7
  %v3449 = vsub.s32 %v3446, %v3448
  %v3450 = vrot.slane %v3443, %v3449
  %v3451 = vcombine.low %v3426, %v3434
  %v3452 = vcombine.high %v3426, %v3434
  %v3454 = vunpack.c.l.s4 1934713408
  %v3455 = vunpack.c.0.s8 %v3454
  %v3456 = vlaneseq
  %v3457 = vshrl.u32 %v3456, 7
  %v3458 = vsub.s32 %v3455, %v3457
  %v3459 = vrot.slane %v3451, %v3458
  %v3461 = vunpack.c.l.s4 1934713408
  %v3462 = vunpack.c.0.s8 %v3461
  %v3463 = vlaneseq
  %v3464 = vshrl.u32 %v3463, 7
  %v3465 = vsub.s32 %v3462, %v3464
  %v3466 = vrot.slane %v3452, %v3465
  %v3467 = vcombine.low %v3442, %v3450
  %v3468 = vcombine.high %v3442, %v3450
  %v3470 = vunpack.c.l.s4 1934713408
  %v3471 = vunpack.c.0.s8 %v3470
  %v3472 = vlaneseq
  %v3473 = vshrl.u32 %v3472, 7
  %v3474 = vsub.s32 %v3471, %v3473
  %v3475 = vrot.slane %v3467, %v3474
  %v3477 = vunpack.c.l.s4 1934713408
  %v3478 = vunpack.c.0.s8 %v3477
  %v3479 = vlaneseq
  %v3480 = vshrl.u32 %v3479, 7
  %v3481 = vsub.s32 %v3478, %v3480
  %v3482 = vrot.slane %v3468, %v3481
  %v3483 = vcombine.low %v3459, %v3475
  %v3484 = vcombine.high %v3459, %v3475
  %v3485 = vcombine.low %v3466, %v3482
  %v3486 = vcombine.high %v3466, %v3482
  %v3487 = vcombine.low %v3323, %v3330
  %v3489 = vunpack.c.l.s4 1983009808
  %v3490 = vunpack.c.0.s8 %v3489
  %v3491 = vlaneseq
  %v3492 = vshrl.u32 %v3491, 7
  %v3493 = vsub.s32 %v3490, %v3492
  %v3494 = vrot.slane %v3487, %v3493
  %v3495 = vcombine.low %v3347, %v3348
  %v3497 = vunpack.c.l.s4 1983009808
  %v3498 = vunpack.c.0.s8 %v3497
  %v3499 = vlaneseq
  %v3500 = vshrl.u32 %v3499, 7
  %v3501 = vsub.s32 %v3498, %v3500
  %v3502 = vrot.slane %v3495, %v3501
  %v3503 = vcombine.low %v3339, %v3346
  %v3505 = vunpack.c.l.s4 1983009808
  %v3506 = vunpack.c.0.s8 %v3505
  %v3507 = vlaneseq
  %v3508 = vshrl.u32 %v3507, 7
  %v3509 = vsub.s32 %v3506, %v3508
  %v3510 = vrot.slane %v3503, %v3509
  %v3511 = vcombine.low %v3349, %v3350
  %v3513 = vunpack.c.l.s4 1983009808
  %v3514 = vunpack.c.0.s8 %v3513
  %v3515 = vlaneseq
  %v3516 = vshrl.u32 %v3515, 7
  %v3517 = vsub.s32 %v3514, %v3516
  %v3518 = vrot.slane %v3511, %v3517
  %v3519 = vcombine.low %v3494, %v3502
  %v3520 = vcombine.high %v3494, %v3502
  %v3522 = vunpack.c.l.s4 1934713408
  %v3523 = vunpack.c.0.s8 %v3522
  %v3524 = vlaneseq
  %v3525 = vshrl.u32 %v3524, 7
  %v3526 = vsub.s32 %v3523, %v3525
  %v3527 = vrot.slane %v3519, %v3526
  %v3529 = vunpack.c.l.s4 1934713408
  %v3530 = vunpack.c.0.s8 %v3529
  %v3531 = vlaneseq
  %v3532 = vshrl.u32 %v3531, 7
  %v3533 = vsub.s32 %v3530, %v3532
  %v3534 = vrot.slane %v3520, %v3533
  %v3535 = vcombine.low %v3510, %v3518
  %v3536 = vcombine.high %v3510, %v3518
  %v3538 = vunpack.c.l.s4 1934713408
  %v3539 = vunpack.c.0.s8 %v3538
  %v3540 = vlaneseq
  %v3541 = vshrl.u32 %v3540, 7
  %v3542 = vsub.s32 %v3539, %v3541
  %v3543 = vrot.slane %v3535, %v3542
  %v3545 = vunpack.c.l.s4 1934713408
  %v3546 = vunpack.c.0.s8 %v3545
  %v3547 = vlaneseq
  %v3548 = vshrl.u32 %v3547, 7
  %v3549 = vsub.s32 %v3546, %v3548
  %v3550 = vrot.slane %v3536, %v3549
  %v3551 = vcombine.low %v3527, %v3543
  %v3552 = vcombine.high %v3527, %v3543
  %v3553 = vcombine.low %v3534, %v3550
  %v3554 = vcombine.high %v3534, %v3550
  %v3555 = vcombine.low %v3391, %v3398
  %v3557 = vunpack.c.l.s4 1983009808
  %v3558 = vunpack.c.0.s8 %v3557
  %v3559 = vlaneseq
  %v3560 = vshrl.u32 %v3559, 7
  %v3561 = vsub.s32 %v3558, %v3560
  %v3562 = vrot.slane %v3555, %v3561
  %v3563 = vcombine.low %v3415, %v3416
  %v3565 = vunpack.c.l.s4 1983009808
  %v3566 = vunpack.c.0.s8 %v3565
  %v3567 = vlaneseq
  %v3568 = vshrl.u32 %v3567, 7
  %v3569 = vsub.s32 %v3566, %v3568
  %v3570 = vrot.slane %v3563, %v3569
  %v3571 = vcombine.low %v3407, %v3414
  %v3573 = vunpack.c.l.s4 1983009808
  %v3574 = vunpack.c.0.s8 %v3573
  %v3575 = vlaneseq
  %v3576 = vshrl.u32 %v3575, 7
  %v3577 = vsub.s32 %v3574, %v3576
  %v3578 = vrot.slane %v3571, %v3577
  %v3579 = vcombine.low %v3417, %v3418
  %v3581 = vunpack.c.l.s4 1983009808
  %v3582 = vunpack.c.0.s8 %v3581
  %v3583 = vlaneseq
  %v3584 = vshrl.u32 %v3583, 7
  %v3585 = vsub.s32 %v3582, %v3584
  %v3586 = vrot.slane %v3579, %v3585
  %v3587 = vcombine.low %v3562, %v3570
  %v3588 = vcombine.high %v3562, %v3570
  %v3590 = vunpack.c.l.s4 1934713408
  %v3591 = vunpack.c.0.s8 %v3590
  %v3592 = vlaneseq
  %v3593 = vshrl.u32 %v3592, 7
  %v3594 = vsub.s32 %v3591, %v3593
  %v3595 = vrot.slane %v3587, %v3594
  %v3597 = vunpack.c.l.s4 1934713408
  %v3598 = vunpack.c.0.s8 %v3597
  %v3599 = vlaneseq
  %v3600 = vshrl.u32 %v3599, 7
  %v3601 = vsub.s32 %v3598, %v3600
  %v3602 = vrot.slane %v3588, %v3601
  %v3603 = vcombine.low %v3578, %v3586
  %v3604 = vcombine.high %v3578, %v3586
  %v3606 = vunpack.c.l.s4 1934713408
  %v3607 = vunpack.c.0.s8 %v3606
  %v3608 = vlaneseq
  %v3609 = vshrl.u32 %v3608, 7
  %v3610 = vsub.s32 %v3607, %v3609
  %v3611 = vrot.slane %v3603, %v3610
  %v3613 = vunpack.c.l.s4 1934713408
  %v3614 = vunpack.c.0.s8 %v3613
  %v3615 = vlaneseq
  %v3616 = vshrl.u32 %v3615, 7
  %v3617 = vsub.s32 %v3614, %v3616
  %v3618 = vrot.slane %v3604, %v3617
  %v3619 = vcombine.low %v3595, %v3611
  %v3620 = vcombine.high %v3595, %v3611
  %v3621 = vcombine.low %v3602, %v3618
  %v3622 = vcombine.high %v3602, %v3618
  %3623 = vrot.lane.b32.xlu0 %v3172, 96
  %v3624 = vpop.permute.xlu0 %3623
  %3625 = vrot.lane.b32.xlu0 %v3175, 96
  %v3626 = vpop.permute.xlu0 %3625
  %3627 = vrot.lane.b32.xlu0 %v3180, 96
  %v3628 = vpop.permute.xlu0 %3627
  %3629 = vrot.lane.b32.xlu0 %v3189, 96
  %v3630 = vpop.permute.xlu0 %3629
  %3631 = vrot.lane.b32.xlu0 %v3191, 96
  %v3632 = vpop.permute.xlu0 %3631
  %3633 = vrot.lane.b32.xlu0 %v3193, 96
  %v3634 = vpop.permute.xlu0 %3633
  %3635 = vrot.lane.b32.xlu0 %v3198, 96
  %v3636 = vpop.permute.xlu0 %3635
  %3637 = vrot.lane.b32.xlu0 %v3200, 96
  %v3638 = vpop.permute.xlu0 %3637
  %3639 = vrot.lane.b32.xlu0 %v3202, 96
  %v3640 = vpop.permute.xlu0 %3639
  %3641 = vrot.lane.b32.xlu0 %v3207, 96
  %v3642 = vpop.permute.xlu0 %3641
  %3643 = vrot.lane.b32.xlu0 %v3209, 96
  %v3644 = vpop.permute.xlu0 %3643
  %3645 = vrot.lane.b32.xlu0 %v3211, 96
  %v3646 = vpop.permute.xlu0 %3645
  %v3659 = vcombine.low %v3624, %v3636
  %v3660 = vcombine.high %v3624, %v3636
  %v3662 = vunpack.c.l.s4 1983009808
  %v3663 = vunpack.c.0.s8 %v3662
  %v3664 = vlaneseq
  %v3665 = vshrl.u32 %v3664, 7
  %v3666 = vsub.s32 %v3663, %v3665
  %v3667 = vrot.slane %v3659, %v3666
  %v3669 = vunpack.c.l.s4 1983009808
  %v3670 = vunpack.c.0.s8 %v3669
  %v3671 = vlaneseq
  %v3672 = vshrl.u32 %v3671, 7
  %v3673 = vsub.s32 %v3670, %v3672
  %v3674 = vrot.slane %v3660, %v3673
  %v3675 = vcombine.low %v3630, %v3642
  %v3676 = vcombine.high %v3630, %v3642
  %v3678 = vunpack.c.l.s4 1983009808
  %v3679 = vunpack.c.0.s8 %v3678
  %v3680 = vlaneseq
  %v3681 = vshrl.u32 %v3680, 7
  %v3682 = vsub.s32 %v3679, %v3681
  %v3683 = vrot.slane %v3675, %v3682
  %v3685 = vunpack.c.l.s4 1983009808
  %v3686 = vunpack.c.0.s8 %v3685
  %v3687 = vlaneseq
  %v3688 = vshrl.u32 %v3687, 7
  %v3689 = vsub.s32 %v3686, %v3688
  %v3690 = vrot.slane %v3676, %v3689
  %v3691 = vcombine.low %v3667, %v3683
  %v3692 = vcombine.high %v3667, %v3683
  %v3694 = vunpack.c.l.s4 1934713408
  %v3695 = vunpack.c.0.s8 %v3694
  %v3696 = vlaneseq
  %v3697 = vshrl.u32 %v3696, 7
  %v3698 = vsub.s32 %v3695, %v3697
  %v3699 = vrot.slane %v3691, %v3698
  %v3701 = vunpack.c.l.s4 1934713408
  %v3702 = vunpack.c.0.s8 %v3701
  %v3703 = vlaneseq
  %v3704 = vshrl.u32 %v3703, 7
  %v3705 = vsub.s32 %v3702, %v3704
  %v3706 = vrot.slane %v3692, %v3705
  %v3707 = vcombine.low %v3674, %v3690
  %v3708 = vcombine.high %v3674, %v3690
  %v3710 = vunpack.c.l.s4 1934713408
  %v3711 = vunpack.c.0.s8 %v3710
  %v3712 = vlaneseq
  %v3713 = vshrl.u32 %v3712, 7
  %v3714 = vsub.s32 %v3711, %v3713
  %v3715 = vrot.slane %v3707, %v3714
  %v3717 = vunpack.c.l.s4 1934713408
  %v3718 = vunpack.c.0.s8 %v3717
  %v3719 = vlaneseq
  %v3720 = vshrl.u32 %v3719, 7
  %v3721 = vsub.s32 %v3718, %v3720
  %v3722 = vrot.slane %v3708, %v3721
  %v3723 = vcombine.high %v3699, 0.0
  %v3724 = vcombine.high %v3706, 0.0
  %v3725 = vcombine.high %v3715, 0.0
  %v3726 = vcombine.high %v3722, 0.0
  %v3727 = vcombine.low %v3626, %v3638
  %v3728 = vcombine.high %v3626, %v3638
  %v3730 = vunpack.c.l.s4 1983009808
  %v3731 = vunpack.c.0.s8 %v3730
  %v3732 = vlaneseq
  %v3733 = vshrl.u32 %v3732, 7
  %v3734 = vsub.s32 %v3731, %v3733
  %v3735 = vrot.slane %v3727, %v3734
  %v3737 = vunpack.c.l.s4 1983009808
  %v3738 = vunpack.c.0.s8 %v3737
  %v3739 = vlaneseq
  %v3740 = vshrl.u32 %v3739, 7
  %v3741 = vsub.s32 %v3738, %v3740
  %v3742 = vrot.slane %v3728, %v3741
  %v3743 = vcombine.low %v3632, %v3644
  %v3744 = vcombine.high %v3632, %v3644
  %v3746 = vunpack.c.l.s4 1983009808
  %v3747 = vunpack.c.0.s8 %v3746
  %v3748 = vlaneseq
  %v3749 = vshrl.u32 %v3748, 7
  %v3750 = vsub.s32 %v3747, %v3749
  %v3751 = vrot.slane %v3743, %v3750
  %v3753 = vunpack.c.l.s4 1983009808
  %v3754 = vunpack.c.0.s8 %v3753
  %v3755 = vlaneseq
  %v3756 = vshrl.u32 %v3755, 7
  %v3757 = vsub.s32 %v3754, %v3756
  %v3758 = vrot.slane %v3744, %v3757
  %v3759 = vcombine.low %v3735, %v3751
  %v3760 = vcombine.high %v3735, %v3751
  %v3762 = vunpack.c.l.s4 1934713408
  %v3763 = vunpack.c.0.s8 %v3762
  %v3764 = vlaneseq
  %v3765 = vshrl.u32 %v3764, 7
  %v3766 = vsub.s32 %v3763, %v3765
  %v3767 = vrot.slane %v3759, %v3766
  %v3769 = vunpack.c.l.s4 1934713408
  %v3770 = vunpack.c.0.s8 %v3769
  %v3771 = vlaneseq
  %v3772 = vshrl.u32 %v3771, 7
  %v3773 = vsub.s32 %v3770, %v3772
  %v3774 = vrot.slane %v3760, %v3773
  %v3775 = vcombine.low %v3742, %v3758
  %v3776 = vcombine.high %v3742, %v3758
  %v3778 = vunpack.c.l.s4 1934713408
  %v3779 = vunpack.c.0.s8 %v3778
  %v3780 = vlaneseq
  %v3781 = vshrl.u32 %v3780, 7
  %v3782 = vsub.s32 %v3779, %v3781
  %v3783 = vrot.slane %v3775, %v3782
  %v3785 = vunpack.c.l.s4 1934713408
  %v3786 = vunpack.c.0.s8 %v3785
  %v3787 = vlaneseq
  %v3788 = vshrl.u32 %v3787, 7
  %v3789 = vsub.s32 %v3786, %v3788
  %v3790 = vrot.slane %v3776, %v3789
  %v3791 = vcombine.high %v3767, 0.0
  %v3792 = vcombine.high %v3774, 0.0
  %v3793 = vcombine.high %v3783, 0.0
  %v3794 = vcombine.high %v3790, 0.0
  %v3795 = vcombine.low %v3628, %v3640
  %v3796 = vcombine.high %v3628, %v3640
  %v3798 = vunpack.c.l.s4 1983009808
  %v3799 = vunpack.c.0.s8 %v3798
  %v3800 = vlaneseq
  %v3801 = vshrl.u32 %v3800, 7
  %v3802 = vsub.s32 %v3799, %v3801
  %v3803 = vrot.slane %v3795, %v3802
  %v3805 = vunpack.c.l.s4 1983009808
  %v3806 = vunpack.c.0.s8 %v3805
  %v3807 = vlaneseq
  %v3808 = vshrl.u32 %v3807, 7
  %v3809 = vsub.s32 %v3806, %v3808
  %v3810 = vrot.slane %v3796, %v3809
  %v3811 = vcombine.low %v3634, %v3646
  %v3812 = vcombine.high %v3634, %v3646
  %v3814 = vunpack.c.l.s4 1983009808
  %v3815 = vunpack.c.0.s8 %v3814
  %v3816 = vlaneseq
  %v3817 = vshrl.u32 %v3816, 7
  %v3818 = vsub.s32 %v3815, %v3817
  %v3819 = vrot.slane %v3811, %v3818
  %v3821 = vunpack.c.l.s4 1983009808
  %v3822 = vunpack.c.0.s8 %v3821
  %v3823 = vlaneseq
  %v3824 = vshrl.u32 %v3823, 7
  %v3825 = vsub.s32 %v3822, %v3824
  %v3826 = vrot.slane %v3812, %v3825
  %v3827 = vcombine.low %v3803, %v3819
  %v3828 = vcombine.high %v3803, %v3819
  %v3830 = vunpack.c.l.s4 1934713408
  %v3831 = vunpack.c.0.s8 %v3830
  %v3832 = vlaneseq
  %v3833 = vshrl.u32 %v3832, 7
  %v3834 = vsub.s32 %v3831, %v3833
  %v3835 = vrot.slane %v3827, %v3834
  %v3837 = vunpack.c.l.s4 1934713408
  %v3838 = vunpack.c.0.s8 %v3837
  %v3839 = vlaneseq
  %v3840 = vshrl.u32 %v3839, 7
  %v3841 = vsub.s32 %v3838, %v3840
  %v3842 = vrot.slane %v3828, %v3841
  %v3843 = vcombine.low %v3810, %v3826
  %v3844 = vcombine.high %v3810, %v3826
  %v3846 = vunpack.c.l.s4 1934713408
  %v3847 = vunpack.c.0.s8 %v3846
  %v3848 = vlaneseq
  %v3849 = vshrl.u32 %v3848, 7
  %v3850 = vsub.s32 %v3847, %v3849
  %v3851 = vrot.slane %v3843, %v3850
  %v3853 = vunpack.c.l.s4 1934713408
  %v3854 = vunpack.c.0.s8 %v3853
  %v3855 = vlaneseq
  %v3856 = vshrl.u32 %v3855, 7
  %v3857 = vsub.s32 %v3854, %v3856
  %v3858 = vrot.slane %v3844, %v3857
  %v3859 = vcombine.high %v3835, 0.0
  %v3860 = vcombine.high %v3842, 0.0
  %v3861 = vcombine.high %v3851, 0.0
  %v3862 = vcombine.high %v3858, 0.0
  %v3863 = vcombine.low %v3699, %v3706
  %v3865 = vunpack.c.l.s4 1983009808
  %v3866 = vunpack.c.0.s8 %v3865
  %v3867 = vlaneseq
  %v3868 = vshrl.u32 %v3867, 7
  %v3869 = vsub.s32 %v3866, %v3868
  %v3870 = vrot.slane %v3863, %v3869
  %v3871 = vcombine.low %v3723, %v3724
  %v3873 = vunpack.c.l.s4 1983009808
  %v3874 = vunpack.c.0.s8 %v3873
  %v3875 = vlaneseq
  %v3876 = vshrl.u32 %v3875, 7
  %v3877 = vsub.s32 %v3874, %v3876
  %v3878 = vrot.slane %v3871, %v3877
  %v3879 = vcombine.low %v3715, %v3722
  %v3881 = vunpack.c.l.s4 1983009808
  %v3882 = vunpack.c.0.s8 %v3881
  %v3883 = vlaneseq
  %v3884 = vshrl.u32 %v3883, 7
  %v3885 = vsub.s32 %v3882, %v3884
  %v3886 = vrot.slane %v3879, %v3885
  %v3887 = vcombine.low %v3725, %v3726
  %v3889 = vunpack.c.l.s4 1983009808
  %v3890 = vunpack.c.0.s8 %v3889
  %v3891 = vlaneseq
  %v3892 = vshrl.u32 %v3891, 7
  %v3893 = vsub.s32 %v3890, %v3892
  %v3894 = vrot.slane %v3887, %v3893
  %v3895 = vcombine.low %v3870, %v3878
  %v3896 = vcombine.high %v3870, %v3878
  %v3898 = vunpack.c.l.s4 1934713408
  %v3899 = vunpack.c.0.s8 %v3898
  %v3900 = vlaneseq
  %v3901 = vshrl.u32 %v3900, 7
  %v3902 = vsub.s32 %v3899, %v3901
  %v3903 = vrot.slane %v3895, %v3902
  %v3905 = vunpack.c.l.s4 1934713408
  %v3906 = vunpack.c.0.s8 %v3905
  %v3907 = vlaneseq
  %v3908 = vshrl.u32 %v3907, 7
  %v3909 = vsub.s32 %v3906, %v3908
  %v3910 = vrot.slane %v3896, %v3909
  %v3911 = vcombine.low %v3886, %v3894
  %v3912 = vcombine.high %v3886, %v3894
  %v3914 = vunpack.c.l.s4 1934713408
  %v3915 = vunpack.c.0.s8 %v3914
  %v3916 = vlaneseq
  %v3917 = vshrl.u32 %v3916, 7
  %v3918 = vsub.s32 %v3915, %v3917
  %v3919 = vrot.slane %v3911, %v3918
  %v3921 = vunpack.c.l.s4 1934713408
  %v3922 = vunpack.c.0.s8 %v3921
  %v3923 = vlaneseq
  %v3924 = vshrl.u32 %v3923, 7
  %v3925 = vsub.s32 %v3922, %v3924
  %v3926 = vrot.slane %v3912, %v3925
  %v3927 = vcombine.low %v3903, %v3919
  %v3928 = vcombine.high %v3903, %v3919
  %v3929 = vcombine.low %v3910, %v3926
  %v3930 = vcombine.high %v3910, %v3926
  %v3931 = vcombine.low %v3767, %v3774
  %v3933 = vunpack.c.l.s4 1983009808
  %v3934 = vunpack.c.0.s8 %v3933
  %v3935 = vlaneseq
  %v3936 = vshrl.u32 %v3935, 7
  %v3937 = vsub.s32 %v3934, %v3936
  %v3938 = vrot.slane %v3931, %v3937
  %v3939 = vcombine.low %v3791, %v3792
  %v3941 = vunpack.c.l.s4 1983009808
  %v3942 = vunpack.c.0.s8 %v3941
  %v3943 = vlaneseq
  %v3944 = vshrl.u32 %v3943, 7
  %v3945 = vsub.s32 %v3942, %v3944
  %v3946 = vrot.slane %v3939, %v3945
  %v3947 = vcombine.low %v3783, %v3790
  %v3949 = vunpack.c.l.s4 1983009808
  %v3950 = vunpack.c.0.s8 %v3949
  %v3951 = vlaneseq
  %v3952 = vshrl.u32 %v3951, 7
  %v3953 = vsub.s32 %v3950, %v3952
  %v3954 = vrot.slane %v3947, %v3953
  %v3955 = vcombine.low %v3793, %v3794
  %v3957 = vunpack.c.l.s4 1983009808
  %v3958 = vunpack.c.0.s8 %v3957
  %v3959 = vlaneseq
  %v3960 = vshrl.u32 %v3959, 7
  %v3961 = vsub.s32 %v3958, %v3960
  %v3962 = vrot.slane %v3955, %v3961
  %v3963 = vcombine.low %v3938, %v3946
  %v3964 = vcombine.high %v3938, %v3946
  %v3966 = vunpack.c.l.s4 1934713408
  %v3967 = vunpack.c.0.s8 %v3966
  %v3968 = vlaneseq
  %v3969 = vshrl.u32 %v3968, 7
  %v3970 = vsub.s32 %v3967, %v3969
  %v3971 = vrot.slane %v3963, %v3970
  %v3973 = vunpack.c.l.s4 1934713408
  %v3974 = vunpack.c.0.s8 %v3973
  %v3975 = vlaneseq
  %v3976 = vshrl.u32 %v3975, 7
  %v3977 = vsub.s32 %v3974, %v3976
  %v3978 = vrot.slane %v3964, %v3977
  %v3979 = vcombine.low %v3954, %v3962
  %v3980 = vcombine.high %v3954, %v3962
  %v3982 = vunpack.c.l.s4 1934713408
  %v3983 = vunpack.c.0.s8 %v3982
  %v3984 = vlaneseq
  %v3985 = vshrl.u32 %v3984, 7
  %v3986 = vsub.s32 %v3983, %v3985
  %v3987 = vrot.slane %v3979, %v3986
  %v3989 = vunpack.c.l.s4 1934713408
  %v3990 = vunpack.c.0.s8 %v3989
  %v3991 = vlaneseq
  %v3992 = vshrl.u32 %v3991, 7
  %v3993 = vsub.s32 %v3990, %v3992
  %v3994 = vrot.slane %v3980, %v3993
  %v3995 = vcombine.low %v3971, %v3987
  %v3996 = vcombine.high %v3971, %v3987
  %v3997 = vcombine.low %v3978, %v3994
  %v3998 = vcombine.high %v3978, %v3994
  %v3999 = vcombine.low %v3835, %v3842
  %v4001 = vunpack.c.l.s4 1983009808
  %v4002 = vunpack.c.0.s8 %v4001
  %v4003 = vlaneseq
  %v4004 = vshrl.u32 %v4003, 7
  %v4005 = vsub.s32 %v4002, %v4004
  %v4006 = vrot.slane %v3999, %v4005
  %v4007 = vcombine.low %v3859, %v3860
  %v4009 = vunpack.c.l.s4 1983009808
  %v4010 = vunpack.c.0.s8 %v4009
  %v4011 = vlaneseq
  %v4012 = vshrl.u32 %v4011, 7
  %v4013 = vsub.s32 %v4010, %v4012
  %v4014 = vrot.slane %v4007, %v4013
  %v4015 = vcombine.low %v3851, %v3858
  %v4017 = vunpack.c.l.s4 1983009808
  %v4018 = vunpack.c.0.s8 %v4017
  %v4019 = vlaneseq
  %v4020 = vshrl.u32 %v4019, 7
  %v4021 = vsub.s32 %v4018, %v4020
  %v4022 = vrot.slane %v4015, %v4021
  %v4023 = vcombine.low %v3861, %v3862
  %v4025 = vunpack.c.l.s4 1983009808
  %v4026 = vunpack.c.0.s8 %v4025
  %v4027 = vlaneseq
  %v4028 = vshrl.u32 %v4027, 7
  %v4029 = vsub.s32 %v4026, %v4028
  %v4030 = vrot.slane %v4023, %v4029
  %v4031 = vcombine.low %v4006, %v4014
  %v4032 = vcombine.high %v4006, %v4014
  %v4034 = vunpack.c.l.s4 1934713408
  %v4035 = vunpack.c.0.s8 %v4034
  %v4036 = vlaneseq
  %v4037 = vshrl.u32 %v4036, 7
  %v4038 = vsub.s32 %v4035, %v4037
  %v4039 = vrot.slane %v4031, %v4038
  %v4041 = vunpack.c.l.s4 1934713408
  %v4042 = vunpack.c.0.s8 %v4041
  %v4043 = vlaneseq
  %v4044 = vshrl.u32 %v4043, 7
  %v4045 = vsub.s32 %v4042, %v4044
  %v4046 = vrot.slane %v4032, %v4045
  %v4047 = vcombine.low %v4022, %v4030
  %v4048 = vcombine.high %v4022, %v4030
  %v4050 = vunpack.c.l.s4 1934713408
  %v4051 = vunpack.c.0.s8 %v4050
  %v4052 = vlaneseq
  %v4053 = vshrl.u32 %v4052, 7
  %v4054 = vsub.s32 %v4051, %v4053
  %v4055 = vrot.slane %v4047, %v4054
  %v4057 = vunpack.c.l.s4 1934713408
  %v4058 = vunpack.c.0.s8 %v4057
  %v4059 = vlaneseq
  %v4060 = vshrl.u32 %v4059, 7
  %v4061 = vsub.s32 %v4058, %v4060
  %v4062 = vrot.slane %v4048, %v4061
  %v4063 = vcombine.low %v4039, %v4055
  %v4064 = vcombine.high %v4039, %v4055
  %v4065 = vcombine.low %v4046, %v4062
  %v4066 = vcombine.high %v4046, %v4062
  %4067 = vrot.lane.b32.xlu0 %v3172, 64
  %v4068 = vpop.permute.xlu0 %4067
  %4069 = vrot.lane.b32.xlu0 %v3175, 64
  %v4070 = vpop.permute.xlu0 %4069
  %4071 = vrot.lane.b32.xlu0 %v3180, 64
  %v4072 = vpop.permute.xlu0 %4071
  %4073 = vrot.lane.b32.xlu0 %v3189, 64
  %v4074 = vpop.permute.xlu0 %4073
  %4075 = vrot.lane.b32.xlu0 %v3191, 64
  %v4076 = vpop.permute.xlu0 %4075
  %4077 = vrot.lane.b32.xlu0 %v3193, 64
  %v4078 = vpop.permute.xlu0 %4077
  %4079 = vrot.lane.b32.xlu0 %v3198, 64
  %v4080 = vpop.permute.xlu0 %4079
  %4081 = vrot.lane.b32.xlu0 %v3200, 64
  %v4082 = vpop.permute.xlu0 %4081
  %4083 = vrot.lane.b32.xlu0 %v3202, 64
  %v4084 = vpop.permute.xlu0 %4083
  %4085 = vrot.lane.b32.xlu0 %v3207, 64
  %v4086 = vpop.permute.xlu0 %4085
  %4087 = vrot.lane.b32.xlu0 %v3209, 64
  %v4088 = vpop.permute.xlu0 %4087
  %4089 = vrot.lane.b32.xlu0 %v3211, 64
  %v4090 = vpop.permute.xlu0 %4089
  %v4103 = vcombine.low %v4068, %v4080
  %v4104 = vcombine.high %v4068, %v4080
  %v4106 = vunpack.c.l.s4 1983009808
  %v4107 = vunpack.c.0.s8 %v4106
  %v4108 = vlaneseq
  %v4109 = vshrl.u32 %v4108, 7
  %v4110 = vsub.s32 %v4107, %v4109
  %v4111 = vrot.slane %v4103, %v4110
  %v4113 = vunpack.c.l.s4 1983009808
  %v4114 = vunpack.c.0.s8 %v4113
  %v4115 = vlaneseq
  %v4116 = vshrl.u32 %v4115, 7
  %v4117 = vsub.s32 %v4114, %v4116
  %v4118 = vrot.slane %v4104, %v4117
  %v4119 = vcombine.low %v4074, %v4086
  %v4120 = vcombine.high %v4074, %v4086
  %v4122 = vunpack.c.l.s4 1983009808
  %v4123 = vunpack.c.0.s8 %v4122
  %v4124 = vlaneseq
  %v4125 = vshrl.u32 %v4124, 7
  %v4126 = vsub.s32 %v4123, %v4125
  %v4127 = vrot.slane %v4119, %v4126
  %v4129 = vunpack.c.l.s4 1983009808
  %v4130 = vunpack.c.0.s8 %v4129
  %v4131 = vlaneseq
  %v4132 = vshrl.u32 %v4131, 7
  %v4133 = vsub.s32 %v4130, %v4132
  %v4134 = vrot.slane %v4120, %v4133
  %v4135 = vcombine.low %v4111, %v4127
  %v4136 = vcombine.high %v4111, %v4127
  %v4138 = vunpack.c.l.s4 1934713408
  %v4139 = vunpack.c.0.s8 %v4138
  %v4140 = vlaneseq
  %v4141 = vshrl.u32 %v4140, 7
  %v4142 = vsub.s32 %v4139, %v4141
  %v4143 = vrot.slane %v4135, %v4142
  %v4145 = vunpack.c.l.s4 1934713408
  %v4146 = vunpack.c.0.s8 %v4145
  %v4147 = vlaneseq
  %v4148 = vshrl.u32 %v4147, 7
  %v4149 = vsub.s32 %v4146, %v4148
  %v4150 = vrot.slane %v4136, %v4149
  %v4151 = vcombine.low %v4118, %v4134
  %v4152 = vcombine.high %v4118, %v4134
  %v4154 = vunpack.c.l.s4 1934713408
  %v4155 = vunpack.c.0.s8 %v4154
  %v4156 = vlaneseq
  %v4157 = vshrl.u32 %v4156, 7
  %v4158 = vsub.s32 %v4155, %v4157
  %v4159 = vrot.slane %v4151, %v4158
  %v4161 = vunpack.c.l.s4 1934713408
  %v4162 = vunpack.c.0.s8 %v4161
  %v4163 = vlaneseq
  %v4164 = vshrl.u32 %v4163, 7
  %v4165 = vsub.s32 %v4162, %v4164
  %v4166 = vrot.slane %v4152, %v4165
  %v4167 = vcombine.high %v4143, 0.0
  %v4168 = vcombine.high %v4150, 0.0
  %v4169 = vcombine.high %v4159, 0.0
  %v4170 = vcombine.high %v4166, 0.0
  %v4171 = vcombine.low %v4070, %v4082
  %v4172 = vcombine.high %v4070, %v4082
  %v4174 = vunpack.c.l.s4 1983009808
  %v4175 = vunpack.c.0.s8 %v4174
  %v4176 = vlaneseq
  %v4177 = vshrl.u32 %v4176, 7
  %v4178 = vsub.s32 %v4175, %v4177
  %v4179 = vrot.slane %v4171, %v4178
  %v4181 = vunpack.c.l.s4 1983009808
  %v4182 = vunpack.c.0.s8 %v4181
  %v4183 = vlaneseq
  %v4184 = vshrl.u32 %v4183, 7
  %v4185 = vsub.s32 %v4182, %v4184
  %v4186 = vrot.slane %v4172, %v4185
  %v4187 = vcombine.low %v4076, %v4088
  %v4188 = vcombine.high %v4076, %v4088
  %v4190 = vunpack.c.l.s4 1983009808
  %v4191 = vunpack.c.0.s8 %v4190
  %v4192 = vlaneseq
  %v4193 = vshrl.u32 %v4192, 7
  %v4194 = vsub.s32 %v4191, %v4193
  %v4195 = vrot.slane %v4187, %v4194
  %v4197 = vunpack.c.l.s4 1983009808
  %v4198 = vunpack.c.0.s8 %v4197
  %v4199 = vlaneseq
  %v4200 = vshrl.u32 %v4199, 7
  %v4201 = vsub.s32 %v4198, %v4200
  %v4202 = vrot.slane %v4188, %v4201
  %v4203 = vcombine.low %v4179, %v4195
  %v4204 = vcombine.high %v4179, %v4195
  %v4206 = vunpack.c.l.s4 1934713408
  %v4207 = vunpack.c.0.s8 %v4206
  %v4208 = vlaneseq
  %v4209 = vshrl.u32 %v4208, 7
  %v4210 = vsub.s32 %v4207, %v4209
  %v4211 = vrot.slane %v4203, %v4210
  %v4213 = vunpack.c.l.s4 1934713408
  %v4214 = vunpack.c.0.s8 %v4213
  %v4215 = vlaneseq
  %v4216 = vshrl.u32 %v4215, 7
  %v4217 = vsub.s32 %v4214, %v4216
  %v4218 = vrot.slane %v4204, %v4217
  %v4219 = vcombine.low %v4186, %v4202
  %v4220 = vcombine.high %v4186, %v4202
  %v4222 = vunpack.c.l.s4 1934713408
  %v4223 = vunpack.c.0.s8 %v4222
  %v4224 = vlaneseq
  %v4225 = vshrl.u32 %v4224, 7
  %v4226 = vsub.s32 %v4223, %v4225
  %v4227 = vrot.slane %v4219, %v4226
  %v4229 = vunpack.c.l.s4 1934713408
  %v4230 = vunpack.c.0.s8 %v4229
  %v4231 = vlaneseq
  %v4232 = vshrl.u32 %v4231, 7
  %v4233 = vsub.s32 %v4230, %v4232
  %v4234 = vrot.slane %v4220, %v4233
  %v4235 = vcombine.high %v4211, 0.0
  %v4236 = vcombine.high %v4218, 0.0
  %v4237 = vcombine.high %v4227, 0.0
  %v4238 = vcombine.high %v4234, 0.0
  %v4239 = vcombine.low %v4072, %v4084
  %v4240 = vcombine.high %v4072, %v4084
  %v4242 = vunpack.c.l.s4 1983009808
  %v4243 = vunpack.c.0.s8 %v4242
  %v4244 = vlaneseq
  %v4245 = vshrl.u32 %v4244, 7
  %v4246 = vsub.s32 %v4243, %v4245
  %v4247 = vrot.slane %v4239, %v4246
  %v4249 = vunpack.c.l.s4 1983009808
  %v4250 = vunpack.c.0.s8 %v4249
  %v4251 = vlaneseq
  %v4252 = vshrl.u32 %v4251, 7
  %v4253 = vsub.s32 %v4250, %v4252
  %v4254 = vrot.slane %v4240, %v4253
  %v4255 = vcombine.low %v4078, %v4090
  %v4256 = vcombine.high %v4078, %v4090
  %v4258 = vunpack.c.l.s4 1983009808
  %v4259 = vunpack.c.0.s8 %v4258
  %v4260 = vlaneseq
  %v4261 = vshrl.u32 %v4260, 7
  %v4262 = vsub.s32 %v4259, %v4261
  %v4263 = vrot.slane %v4255, %v4262
  %v4265 = vunpack.c.l.s4 1983009808
  %v4266 = vunpack.c.0.s8 %v4265
  %v4267 = vlaneseq
  %v4268 = vshrl.u32 %v4267, 7
  %v4269 = vsub.s32 %v4266, %v4268
  %v4270 = vrot.slane %v4256, %v4269
  %v4271 = vcombine.low %v4247, %v4263
  %v4272 = vcombine.high %v4247, %v4263
  %v4274 = vunpack.c.l.s4 1934713408
  %v4275 = vunpack.c.0.s8 %v4274
  %v4276 = vlaneseq
  %v4277 = vshrl.u32 %v4276, 7
  %v4278 = vsub.s32 %v4275, %v4277
  %v4279 = vrot.slane %v4271, %v4278
  %v4281 = vunpack.c.l.s4 1934713408
  %v4282 = vunpack.c.0.s8 %v4281
  %v4283 = vlaneseq
  %v4284 = vshrl.u32 %v4283, 7
  %v4285 = vsub.s32 %v4282, %v4284
  %v4286 = vrot.slane %v4272, %v4285
  %v4287 = vcombine.low %v4254, %v4270
  %v4288 = vcombine.high %v4254, %v4270
  %v4290 = vunpack.c.l.s4 1934713408
  %v4291 = vunpack.c.0.s8 %v4290
  %v4292 = vlaneseq
  %v4293 = vshrl.u32 %v4292, 7
  %v4294 = vsub.s32 %v4291, %v4293
  %v4295 = vrot.slane %v4287, %v4294
  %v4297 = vunpack.c.l.s4 1934713408
  %v4298 = vunpack.c.0.s8 %v4297
  %v4299 = vlaneseq
  %v4300 = vshrl.u32 %v4299, 7
  %v4301 = vsub.s32 %v4298, %v4300
  %v4302 = vrot.slane %v4288, %v4301
  %v4303 = vcombine.high %v4279, 0.0
  %v4304 = vcombine.high %v4286, 0.0
  %v4305 = vcombine.high %v4295, 0.0
  %v4306 = vcombine.high %v4302, 0.0
  %v4307 = vcombine.low %v4143, %v4150
  %v4309 = vunpack.c.l.s4 1983009808
  %v4310 = vunpack.c.0.s8 %v4309
  %v4311 = vlaneseq
  %v4312 = vshrl.u32 %v4311, 7
  %v4313 = vsub.s32 %v4310, %v4312
  %v4314 = vrot.slane %v4307, %v4313
  %v4315 = vcombine.low %v4167, %v4168
  %v4317 = vunpack.c.l.s4 1983009808
  %v4318 = vunpack.c.0.s8 %v4317
  %v4319 = vlaneseq
  %v4320 = vshrl.u32 %v4319, 7
  %v4321 = vsub.s32 %v4318, %v4320
  %v4322 = vrot.slane %v4315, %v4321
  %v4323 = vcombine.low %v4159, %v4166
  %v4325 = vunpack.c.l.s4 1983009808
  %v4326 = vunpack.c.0.s8 %v4325
  %v4327 = vlaneseq
  %v4328 = vshrl.u32 %v4327, 7
  %v4329 = vsub.s32 %v4326, %v4328
  %v4330 = vrot.slane %v4323, %v4329
  %v4331 = vcombine.low %v4169, %v4170
  %v4333 = vunpack.c.l.s4 1983009808
  %v4334 = vunpack.c.0.s8 %v4333
  %v4335 = vlaneseq
  %v4336 = vshrl.u32 %v4335, 7
  %v4337 = vsub.s32 %v4334, %v4336
  %v4338 = vrot.slane %v4331, %v4337
  %v4339 = vcombine.low %v4314, %v4322
  %v4340 = vcombine.high %v4314, %v4322
  %v4342 = vunpack.c.l.s4 1934713408
  %v4343 = vunpack.c.0.s8 %v4342
  %v4344 = vlaneseq
  %v4345 = vshrl.u32 %v4344, 7
  %v4346 = vsub.s32 %v4343, %v4345
  %v4347 = vrot.slane %v4339, %v4346
  %v4349 = vunpack.c.l.s4 1934713408
  %v4350 = vunpack.c.0.s8 %v4349
  %v4351 = vlaneseq
  %v4352 = vshrl.u32 %v4351, 7
  %v4353 = vsub.s32 %v4350, %v4352
  %v4354 = vrot.slane %v4340, %v4353
  %v4355 = vcombine.low %v4330, %v4338
  %v4356 = vcombine.high %v4330, %v4338
  %v4358 = vunpack.c.l.s4 1934713408
  %v4359 = vunpack.c.0.s8 %v4358
  %v4360 = vlaneseq
  %v4361 = vshrl.u32 %v4360, 7
  %v4362 = vsub.s32 %v4359, %v4361
  %v4363 = vrot.slane %v4355, %v4362
  %v4365 = vunpack.c.l.s4 1934713408
  %v4366 = vunpack.c.0.s8 %v4365
  %v4367 = vlaneseq
  %v4368 = vshrl.u32 %v4367, 7
  %v4369 = vsub.s32 %v4366, %v4368
  %v4370 = vrot.slane %v4356, %v4369
  %v4371 = vcombine.low %v4347, %v4363
  %v4372 = vcombine.high %v4347, %v4363
  %v4373 = vcombine.low %v4354, %v4370
  %v4374 = vcombine.high %v4354, %v4370
  %v4375 = vcombine.low %v4211, %v4218
  %v4377 = vunpack.c.l.s4 1983009808
  %v4378 = vunpack.c.0.s8 %v4377
  %v4379 = vlaneseq
  %v4380 = vshrl.u32 %v4379, 7
  %v4381 = vsub.s32 %v4378, %v4380
  %v4382 = vrot.slane %v4375, %v4381
  %v4383 = vcombine.low %v4235, %v4236
  %v4385 = vunpack.c.l.s4 1983009808
  %v4386 = vunpack.c.0.s8 %v4385
  %v4387 = vlaneseq
  %v4388 = vshrl.u32 %v4387, 7
  %v4389 = vsub.s32 %v4386, %v4388
  %v4390 = vrot.slane %v4383, %v4389
  %v4391 = vcombine.low %v4227, %v4234
  %v4393 = vunpack.c.l.s4 1983009808
  %v4394 = vunpack.c.0.s8 %v4393
  %v4395 = vlaneseq
  %v4396 = vshrl.u32 %v4395, 7
  %v4397 = vsub.s32 %v4394, %v4396
  %v4398 = vrot.slane %v4391, %v4397
  %v4399 = vcombine.low %v4237, %v4238
  %v4401 = vunpack.c.l.s4 1983009808
  %v4402 = vunpack.c.0.s8 %v4401
  %v4403 = vlaneseq
  %v4404 = vshrl.u32 %v4403, 7
  %v4405 = vsub.s32 %v4402, %v4404
  %v4406 = vrot.slane %v4399, %v4405
  %v4407 = vcombine.low %v4382, %v4390
  %v4408 = vcombine.high %v4382, %v4390
  %v4410 = vunpack.c.l.s4 1934713408
  %v4411 = vunpack.c.0.s8 %v4410
  %v4412 = vlaneseq
  %v4413 = vshrl.u32 %v4412, 7
  %v4414 = vsub.s32 %v4411, %v4413
  %v4415 = vrot.slane %v4407, %v4414
  %v4417 = vunpack.c.l.s4 1934713408
  %v4418 = vunpack.c.0.s8 %v4417
  %v4419 = vlaneseq
  %v4420 = vshrl.u32 %v4419, 7
  %v4421 = vsub.s32 %v4418, %v4420
  %v4422 = vrot.slane %v4408, %v4421
  %v4423 = vcombine.low %v4398, %v4406
  %v4424 = vcombine.high %v4398, %v4406
  %v4426 = vunpack.c.l.s4 1934713408
  %v4427 = vunpack.c.0.s8 %v4426
  %v4428 = vlaneseq
  %v4429 = vshrl.u32 %v4428, 7
  %v4430 = vsub.s32 %v4427, %v4429
  %v4431 = vrot.slane %v4423, %v4430
  %v4433 = vunpack.c.l.s4 1934713408
  %v4434 = vunpack.c.0.s8 %v4433
  %v4435 = vlaneseq
  %v4436 = vshrl.u32 %v4435, 7
  %v4437 = vsub.s32 %v4434, %v4436
  %v4438 = vrot.slane %v4424, %v4437
  %v4439 = vcombine.low %v4415, %v4431
  %v4440 = vcombine.high %v4415, %v4431
  %v4441 = vcombine.low %v4422, %v4438
  %v4442 = vcombine.high %v4422, %v4438
  %v4443 = vcombine.low %v4279, %v4286
  %v4445 = vunpack.c.l.s4 1983009808
  %v4446 = vunpack.c.0.s8 %v4445
  %v4447 = vlaneseq
  %v4448 = vshrl.u32 %v4447, 7
  %v4449 = vsub.s32 %v4446, %v4448
  %v4450 = vrot.slane %v4443, %v4449
  %v4451 = vcombine.low %v4303, %v4304
  %v4453 = vunpack.c.l.s4 1983009808
  %v4454 = vunpack.c.0.s8 %v4453
  %v4455 = vlaneseq
  %v4456 = vshrl.u32 %v4455, 7
  %v4457 = vsub.s32 %v4454, %v4456
  %v4458 = vrot.slane %v4451, %v4457
  %v4459 = vcombine.low %v4295, %v4302
  %v4461 = vunpack.c.l.s4 1983009808
  %v4462 = vunpack.c.0.s8 %v4461
  %v4463 = vlaneseq
  %v4464 = vshrl.u32 %v4463, 7
  %v4465 = vsub.s32 %v4462, %v4464
  %v4466 = vrot.slane %v4459, %v4465
  %v4467 = vcombine.low %v4305, %v4306
  %v4469 = vunpack.c.l.s4 1983009808
  %v4470 = vunpack.c.0.s8 %v4469
  %v4471 = vlaneseq
  %v4472 = vshrl.u32 %v4471, 7
  %v4473 = vsub.s32 %v4470, %v4472
  %v4474 = vrot.slane %v4467, %v4473
  %v4475 = vcombine.low %v4450, %v4458
  %v4476 = vcombine.high %v4450, %v4458
  %v4478 = vunpack.c.l.s4 1934713408
  %v4479 = vunpack.c.0.s8 %v4478
  %v4480 = vlaneseq
  %v4481 = vshrl.u32 %v4480, 7
  %v4482 = vsub.s32 %v4479, %v4481
  %v4483 = vrot.slane %v4475, %v4482
  %v4485 = vunpack.c.l.s4 1934713408
  %v4486 = vunpack.c.0.s8 %v4485
  %v4487 = vlaneseq
  %v4488 = vshrl.u32 %v4487, 7
  %v4489 = vsub.s32 %v4486, %v4488
  %v4490 = vrot.slane %v4476, %v4489
  %v4491 = vcombine.low %v4466, %v4474
  %v4492 = vcombine.high %v4466, %v4474
  %v4494 = vunpack.c.l.s4 1934713408
  %v4495 = vunpack.c.0.s8 %v4494
  %v4496 = vlaneseq
  %v4497 = vshrl.u32 %v4496, 7
  %v4498 = vsub.s32 %v4495, %v4497
  %v4499 = vrot.slane %v4491, %v4498
  %v4501 = vunpack.c.l.s4 1934713408
  %v4502 = vunpack.c.0.s8 %v4501
  %v4503 = vlaneseq
  %v4504 = vshrl.u32 %v4503, 7
  %v4505 = vsub.s32 %v4502, %v4504
  %v4506 = vrot.slane %v4492, %v4505
  %v4507 = vcombine.low %v4483, %v4499
  %v4508 = vcombine.high %v4483, %v4499
  %v4509 = vcombine.low %v4490, %v4506
  %v4510 = vcombine.high %v4490, %v4506
  %v4511 = vpack.c.bf16 %v3551, %v3483
  %v4512 = vpack.c.bf16 %v3619, %v3619
  %v4513 = vpack.c.bf16 %v3552, %v3484
  %v4514 = vpack.c.bf16 %v3620, %v3620
  %v4515 = vpack.c.bf16 %v3553, %v3485
  %v4516 = vpack.c.bf16 %v3621, %v3621
  %v4517 = vpack.c.bf16 %v3554, %v3486
  %v4518 = vpack.c.bf16 %v3622, %v3622
  %v4519 = vpack.c.bf16 %v3995, %v3927
  %v4520 = vpack.c.bf16 %v4063, %v4063
  %v4521 = vpack.c.bf16 %v3996, %v3928
  %v4522 = vpack.c.bf16 %v4064, %v4064
  %v4523 = vpack.c.bf16 %v3997, %v3929
  %v4524 = vpack.c.bf16 %v4065, %v4065
  %v4525 = vpack.c.bf16 %v3998, %v3930
  %v4526 = vpack.c.bf16 %v4066, %v4066
  %v4528 = vsel %vm1601, %v4511, 0
  %v4531 = vsel %vm1601, %v4512, 0
  %v4534 = vsel %vm1601, %v4519, 0
  %v4537 = vsel %vm1601, %v4520, 0
  %4539 = vmatprep.subr.bf16.mxu0 0
  %4540 = vmatpush1.bf16.xpose.msra.mxu0 %v4534
  %4541 = vmatprep.subr.bf16.mxu0 0
  %4542 = vmatpush1.bf16.xpose.msra.mxu0 %v4537
  %4543 = vmatprep.subr.bf16.mxu0 0
  %4544 = vmatpush1.bf16.xpose.msra.mxu0 0
  %4545 = vmatprep.subr.bf16.mxu0 0
  %4546 = vmatpush1.bf16.xpose.msra.mxu0 0
  %4547 = vmatprep.subr.bf16.mxu0 0
  %4548 = vmatpush1.bf16.xpose.msra.mxu0 0
  %4549 = vmatprep.subr.bf16.mxu0 0
  %4550 = vmatpush1.bf16.xpose.msra.mxu0 0
  %4551 = vmatprep.subr.bf16.mxu0 0
  %4552 = vmatpush1.bf16.xpose.msra.mxu0 0
  %4553 = vmatprep.subr.bf16.mxu0 0
  %4554 = vmatpush1.bf16.xpose.msra.mxu0 0
  %4555 = vmatprep.subr.bf16.mxu0 0
  %4556 = vmatpush1.bf16.xpose.msra.mxu0 0
  %4557 = vmatprep.subr.bf16.mxu0 0
  %4558 = vmatpush1.bf16.xpose.msra.mxu0 0
  %4559 = vmatprep.subr.bf16.mxu0 0
  %4560 = vmatpush1.bf16.xpose.msra.mxu0 0
  %4561 = vmatprep.subr.bf16.mxu0 0
  %4562 = vmatpush1.bf16.xpose.msra.mxu0 0
  %4563 = vmatprep.subr.bf16.mxu0 0
  %4564 = vmatpush1.bf16.xpose.msra.mxu0 0
  %4565 = vmatprep.subr.bf16.mxu0 0
  %4566 = vmatpush1.bf16.xpose.msra.mxu0 0
  %4567 = vmatprep.subr.bf16.mxu0 0
  %4568 = vmatpush1.bf16.xpose.msra.mxu0 0
  %4569 = vmatprep.subr.bf16.mxu0 0
  %4570 = vmatpush1.bf16.xpose.msra.mxu0 0
  %4571 = vmatprep.mubr.bf16.mxu0 0
  %4572 = vmatmul.mubr.bf16.gmra.mrb[0].mxu0 %v4528
  %v4573 = vpop.f32.mrb[0].mxu0
  %v4574 = vadd.f32 0.0, %v4573
  %v4575 = vpop.f32.mrb[0].mxu0
  %v4576 = vpop.f32.mrb[0].mxu0
  %v4577 = vadd.f32 0.0, %v4576
  %v4578 = vpop.f32.mrb[0].mxu0
  %4579 = vmatprep.mubr.bf16.mxu0 0
  %4580 = vmatmul.mubr.bf16.gmra.mrb[0].mxu0 %v4531
  %v4581 = vpop.f32.mrb[0].mxu0
  %v4582 = vadd.f32 0.0, %v4581
  %v4583 = vpop.f32.mrb[0].mxu0
  %v4584 = vpop.f32.mrb[0].mxu0
  %v4585 = vpop.f32.mrb[0].mxu0
  %4586 = vdwg.mxu0
  %v4588 = vsel %vm1601, %v4513, 0
  %v4591 = vsel %vm1601, %v4514, 0
  %v4594 = vsel %vm1601, %v4521, 0
  %v4597 = vsel %vm1601, %v4522, 0
  %4599 = vmatprep.subr.bf16.mxu0 0
  %4600 = vmatpush1.bf16.xpose.msra.mxu0 %v4594
  %4601 = vmatprep.subr.bf16.mxu0 0
  %4602 = vmatpush1.bf16.xpose.msra.mxu0 %v4597
  %4603 = vmatprep.subr.bf16.mxu0 0
  %4604 = vmatpush1.bf16.xpose.msra.mxu0 0
  %4605 = vmatprep.subr.bf16.mxu0 0
  %4606 = vmatpush1.bf16.xpose.msra.mxu0 0
  %4607 = vmatprep.subr.bf16.mxu0 0
  %4608 = vmatpush1.bf16.xpose.msra.mxu0 0
  %4609 = vmatprep.subr.bf16.mxu0 0
  %4610 = vmatpush1.bf16.xpose.msra.mxu0 0
  %4611 = vmatprep.subr.bf16.mxu0 0
  %4612 = vmatpush1.bf16.xpose.msra.mxu0 0
  %4613 = vmatprep.subr.bf16.mxu0 0
  %4614 = vmatpush1.bf16.xpose.msra.mxu0 0
  %4615 = vmatprep.subr.bf16.mxu0 0
  %4616 = vmatpush1.bf16.xpose.msra.mxu0 0
  %4617 = vmatprep.subr.bf16.mxu0 0
  %4618 = vmatpush1.bf16.xpose.msra.mxu0 0
  %4619 = vmatprep.subr.bf16.mxu0 0
  %4620 = vmatpush1.bf16.xpose.msra.mxu0 0
  %4621 = vmatprep.subr.bf16.mxu0 0
  %4622 = vmatpush1.bf16.xpose.msra.mxu0 0
  %4623 = vmatprep.subr.bf16.mxu0 0
  %4624 = vmatpush1.bf16.xpose.msra.mxu0 0
  %4625 = vmatprep.subr.bf16.mxu0 0
  %4626 = vmatpush1.bf16.xpose.msra.mxu0 0
  %4627 = vmatprep.subr.bf16.mxu0 0
  %4628 = vmatpush1.bf16.xpose.msra.mxu0 0
  %4629 = vmatprep.subr.bf16.mxu0 0
  %4630 = vmatpush1.bf16.xpose.msra.mxu0 0
  %4631 = vmatprep.mubr.bf16.mxu0 0
  %4632 = vmatmul.mubr.bf16.gmra.mrb[0].mxu0 %v4588
  %v4633 = vpop.f32.mrb[0].mxu0
  %v4634 = vadd.f32 0.0, %v4633
  %v4635 = vpop.f32.mrb[0].mxu0
  %v4636 = vpop.f32.mrb[0].mxu0
  %v4637 = vadd.f32 0.0, %v4636
  %v4638 = vpop.f32.mrb[0].mxu0
  %4639 = vmatprep.mubr.bf16.mxu0 0
  %4640 = vmatmul.mubr.bf16.gmra.mrb[0].mxu0 %v4591
  %v4641 = vpop.f32.mrb[0].mxu0
  %v4642 = vadd.f32 0.0, %v4641
  %v4643 = vpop.f32.mrb[0].mxu0
  %v4644 = vpop.f32.mrb[0].mxu0
  %v4645 = vpop.f32.mrb[0].mxu0
  %4646 = vdwg.mxu0
  %v4648 = vsel %vm1601, %v4515, 0
  %v4651 = vsel %vm1601, %v4516, 0
  %v4654 = vsel %vm1601, %v4523, 0
  %v4657 = vsel %vm1601, %v4524, 0
  %4659 = vmatprep.subr.bf16.mxu0 0
  %4660 = vmatpush1.bf16.xpose.msra.mxu0 %v4654
  %4661 = vmatprep.subr.bf16.mxu0 0
  %4662 = vmatpush1.bf16.xpose.msra.mxu0 %v4657
  %4663 = vmatprep.subr.bf16.mxu0 0
  %4664 = vmatpush1.bf16.xpose.msra.mxu0 0
  %4665 = vmatprep.subr.bf16.mxu0 0
  %4666 = vmatpush1.bf16.xpose.msra.mxu0 0
  %4667 = vmatprep.subr.bf16.mxu0 0
  %4668 = vmatpush1.bf16.xpose.msra.mxu0 0
  %4669 = vmatprep.subr.bf16.mxu0 0
  %4670 = vmatpush1.bf16.xpose.msra.mxu0 0
  %4671 = vmatprep.subr.bf16.mxu0 0
  %4672 = vmatpush1.bf16.xpose.msra.mxu0 0
  %4673 = vmatprep.subr.bf16.mxu0 0
  %4674 = vmatpush1.bf16.xpose.msra.mxu0 0
  %4675 = vmatprep.subr.bf16.mxu0 0
  %4676 = vmatpush1.bf16.xpose.msra.mxu0 0
  %4677 = vmatprep.subr.bf16.mxu0 0
  %4678 = vmatpush1.bf16.xpose.msra.mxu0 0
  %4679 = vmatprep.subr.bf16.mxu0 0
  %4680 = vmatpush1.bf16.xpose.msra.mxu0 0
  %4681 = vmatprep.subr.bf16.mxu0 0
  %4682 = vmatpush1.bf16.xpose.msra.mxu0 0
  %4683 = vmatprep.subr.bf16.mxu0 0
  %4684 = vmatpush1.bf16.xpose.msra.mxu0 0
  %4685 = vmatprep.subr.bf16.mxu0 0
  %4686 = vmatpush1.bf16.xpose.msra.mxu0 0
  %4687 = vmatprep.subr.bf16.mxu0 0
  %4688 = vmatpush1.bf16.xpose.msra.mxu0 0
  %4689 = vmatprep.subr.bf16.mxu0 0
  %4690 = vmatpush1.bf16.xpose.msra.mxu0 0
  %4691 = vmatprep.mubr.bf16.mxu0 0
  %4692 = vmatmul.mubr.bf16.gmra.mrb[0].mxu0 %v4648
  %v4693 = vpop.f32.mrb[0].mxu0
  %v4694 = vadd.f32 0.0, %v4693
  %v4695 = vpop.f32.mrb[0].mxu0
  %v4696 = vpop.f32.mrb[0].mxu0
  %v4697 = vadd.f32 0.0, %v4696
  %v4698 = vpop.f32.mrb[0].mxu0
  %4699 = vmatprep.mubr.bf16.mxu0 0
  %4700 = vmatmul.mubr.bf16.gmra.mrb[0].mxu0 %v4651
  %v4701 = vpop.f32.mrb[0].mxu0
  %v4702 = vadd.f32 0.0, %v4701
  %v4703 = vpop.f32.mrb[0].mxu0
  %v4704 = vpop.f32.mrb[0].mxu0
  %v4705 = vpop.f32.mrb[0].mxu0
  %4706 = vdwg.mxu0
  %v4708 = vsel %vm1601, %v4517, 0
  %v4711 = vsel %vm1601, %v4518, 0
  %v4714 = vsel %vm1601, %v4525, 0
  %v4717 = vsel %vm1601, %v4526, 0
  %4719 = vmatprep.subr.bf16.mxu0 0
  %4720 = vmatpush1.bf16.xpose.msra.mxu0 %v4714
  %4721 = vmatprep.subr.bf16.mxu0 0
  %4722 = vmatpush1.bf16.xpose.msra.mxu0 %v4717
  %4723 = vmatprep.subr.bf16.mxu0 0
  %4724 = vmatpush1.bf16.xpose.msra.mxu0 0
  %4725 = vmatprep.subr.bf16.mxu0 0
  %4726 = vmatpush1.bf16.xpose.msra.mxu0 0
  %4727 = vmatprep.subr.bf16.mxu0 0
  %4728 = vmatpush1.bf16.xpose.msra.mxu0 0
  %4729 = vmatprep.subr.bf16.mxu0 0
  %4730 = vmatpush1.bf16.xpose.msra.mxu0 0
  %4731 = vmatprep.subr.bf16.mxu0 0
  %4732 = vmatpush1.bf16.xpose.msra.mxu0 0
  %4733 = vmatprep.subr.bf16.mxu0 0
  %4734 = vmatpush1.bf16.xpose.msra.mxu0 0
  %4735 = vmatprep.subr.bf16.mxu0 0
  %4736 = vmatpush1.bf16.xpose.msra.mxu0 0
  %4737 = vmatprep.subr.bf16.mxu0 0
  %4738 = vmatpush1.bf16.xpose.msra.mxu0 0
  %4739 = vmatprep.subr.bf16.mxu0 0
  %4740 = vmatpush1.bf16.xpose.msra.mxu0 0
  %4741 = vmatprep.subr.bf16.mxu0 0
  %4742 = vmatpush1.bf16.xpose.msra.mxu0 0
  %4743 = vmatprep.subr.bf16.mxu0 0
  %4744 = vmatpush1.bf16.xpose.msra.mxu0 0
  %4745 = vmatprep.subr.bf16.mxu0 0
  %4746 = vmatpush1.bf16.xpose.msra.mxu0 0
  %4747 = vmatprep.subr.bf16.mxu0 0
  %4748 = vmatpush1.bf16.xpose.msra.mxu0 0
  %4749 = vmatprep.subr.bf16.mxu0 0
  %4750 = vmatpush1.bf16.xpose.msra.mxu0 0
  %4751 = vmatprep.mubr.bf16.mxu0 0
  %4752 = vmatmul.mubr.bf16.gmra.mrb[0].mxu0 %v4708
  %v4753 = vpop.f32.mrb[0].mxu0
  %v4754 = vadd.f32 0.0, %v4753
  %v4755 = vpop.f32.mrb[0].mxu0
  %v4756 = vpop.f32.mrb[0].mxu0
  %v4757 = vadd.f32 0.0, %v4756
  %v4758 = vpop.f32.mrb[0].mxu0
  %4759 = vmatprep.mubr.bf16.mxu0 0
  %4760 = vmatmul.mubr.bf16.gmra.mrb[0].mxu0 %v4711
  %v4761 = vpop.f32.mrb[0].mxu0
  %v4762 = vadd.f32 0.0, %v4761
  %v4763 = vpop.f32.mrb[0].mxu0
  %v4764 = vpop.f32.mrb[0].mxu0
  %v4765 = vpop.f32.mrb[0].mxu0
  %4766 = vdwg.mxu0
  %v4767 = vmul.f32 %v4574, 0.35355338
  %v4768 = vmul.f32 %v4577, 0.35355338
  %v4769 = vmul.f32 %v4582, 0.35355338
  %v4770 = vmul.f32 %v4634, 0.35355338
  %v4771 = vmul.f32 %v4637, 0.35355338
  %v4772 = vmul.f32 %v4642, 0.35355338
  %v4773 = vmul.f32 %v4694, 0.35355338
  %v4774 = vmul.f32 %v4697, 0.35355338
  %v4775 = vmul.f32 %v4702, 0.35355338
  %v4776 = vmul.f32 %v4754, 0.35355338
  %v4777 = vmul.f32 %v4757, 0.35355338
  %v4778 = vmul.f32 %v4762, 0.35355338
  %v4779 = vadd.f32 %v4767, %v176
  %v4780 = vadd.f32 %v4768, %v177
  %v4781 = vadd.f32 %v4769, %v178
  %v4782 = vadd.f32 %v4770, %v176
  %v4783 = vadd.f32 %v4771, %v177
  %v4784 = vadd.f32 %v4772, %v178
  %v4785 = vadd.f32 %v4773, %v176
  %v4786 = vadd.f32 %v4774, %v177
  %v4787 = vadd.f32 %v4775, %v178
  %v4788 = vadd.f32 %v4776, %v176
  %v4789 = vadd.f32 %v4777, %v177
  %v4790 = vadd.f32 %v4778, %v178
  %v4791 = vsel %vm1866, %v4779, -inf
  %4792 = vmax.xlane.f32.xlu0 %v4791
  %v4793 = vpop.xlane.xlu0 %4792
  %v4794 = vsel %vm1866, %v4780, -inf
  %4795 = vmax.xlane.f32.xlu0 %v4794
  %v4796 = vpop.xlane.xlu0 %4795
  %v4797 = vsel %vm1866, %v4781, -inf
  %4798 = vmax.xlane.f32.xlu0 %v4797
  %v4799 = vpop.xlane.xlu0 %4798
  %v4800 = vsel %vm1866, %v4782, -inf
  %4801 = vmax.xlane.f32.xlu0 %v4800
  %v4802 = vpop.xlane.xlu0 %4801
  %v4803 = vsel %vm1866, %v4783, -inf
  %4804 = vmax.xlane.f32.xlu0 %v4803
  %v4805 = vpop.xlane.xlu0 %4804
  %v4806 = vsel %vm1866, %v4784, -inf
  %4807 = vmax.xlane.f32.xlu0 %v4806
  %v4808 = vpop.xlane.xlu0 %4807
  %v4809 = vsel %vm1866, %v4785, -inf
  %4810 = vmax.xlane.f32.xlu0 %v4809
  %v4811 = vpop.xlane.xlu0 %4810
  %v4812 = vsel %vm1866, %v4786, -inf
  %4813 = vmax.xlane.f32.xlu0 %v4812
  %v4814 = vpop.xlane.xlu0 %4813
  %v4815 = vsel %vm1866, %v4787, -inf
  %4816 = vmax.xlane.f32.xlu0 %v4815
  %v4817 = vpop.xlane.xlu0 %4816
  %v4818 = vsel %vm1866, %v4788, -inf
  %4819 = vmax.xlane.f32.xlu0 %v4818
  %v4820 = vpop.xlane.xlu0 %4819
  %v4821 = vsel %vm1866, %v4789, -inf
  %4822 = vmax.xlane.f32.xlu0 %v4821
  %v4823 = vpop.xlane.xlu0 %4822
  %v4824 = vsel %vm1866, %v4790, -inf
  %4825 = vmax.xlane.f32.xlu0 %v4824
  %v4826 = vpop.xlane.xlu0 %4825
  %v4827 = vsub.f32 %v4779, %v4793
  %v4828 = vsub.f32 %v4780, %v4796
  %v4829 = vsub.f32 %v4781, %v4799
  %v4830 = vsub.f32 %v4782, %v4802
  %v4831 = vsub.f32 %v4783, %v4805
  %v4832 = vsub.f32 %v4784, %v4808
  %v4833 = vsub.f32 %v4785, %v4811
  %v4834 = vsub.f32 %v4786, %v4814
  %v4835 = vsub.f32 %v4787, %v4817
  %v4836 = vsub.f32 %v4788, %v4820
  %v4837 = vsub.f32 %v4789, %v4823
  %v4838 = vsub.f32 %v4790, %v4826
  %v4839 = vmul.f32 %v4827, 1.442695
  %v4840 = vpow.pop %v4839
  %v4841 = vmul.f32 %v4828, 1.442695
  %v4842 = vpow.pop %v4841
  %v4843 = vmul.f32 %v4829, 1.442695
  %v4844 = vpow.pop %v4843
  %v4845 = vmul.f32 %v4830, 1.442695
  %v4846 = vpow.pop %v4845
  %v4847 = vmul.f32 %v4831, 1.442695
  %v4848 = vpow.pop %v4847
  %v4849 = vmul.f32 %v4832, 1.442695
  %v4850 = vpow.pop %v4849
  %v4851 = vmul.f32 %v4833, 1.442695
  %v4852 = vpow.pop %v4851
  %v4853 = vmul.f32 %v4834, 1.442695
  %v4854 = vpow.pop %v4853
  %v4855 = vmul.f32 %v4835, 1.442695
  %v4856 = vpow.pop %v4855
  %v4857 = vmul.f32 %v4836, 1.442695
  %v4858 = vpow.pop %v4857
  %v4859 = vmul.f32 %v4837, 1.442695
  %v4860 = vpow.pop %v4859
  %v4861 = vmul.f32 %v4838, 1.442695
  %v4862 = vpow.pop %v4861
  %v4863 = vsel %vm1866, %v4840, 0.0
  %4864 = vadd.xlane.f32.xlu0 %v4863
  %v4865 = vpop.xlane.xlu0 %4864
  %v4866 = vsel %vm1866, %v4842, 0.0
  %4867 = vadd.xlane.f32.xlu0 %v4866
  %v4868 = vpop.xlane.xlu0 %4867
  %v4869 = vsel %vm1866, %v4844, 0.0
  %4870 = vadd.xlane.f32.xlu0 %v4869
  %v4871 = vpop.xlane.xlu0 %4870
  %v4872 = vsel %vm1866, %v4846, 0.0
  %4873 = vadd.xlane.f32.xlu0 %v4872
  %v4874 = vpop.xlane.xlu0 %4873
  %v4875 = vsel %vm1866, %v4848, 0.0
  %4876 = vadd.xlane.f32.xlu0 %v4875
  %v4877 = vpop.xlane.xlu0 %4876
  %v4878 = vsel %vm1866, %v4850, 0.0
  %4879 = vadd.xlane.f32.xlu0 %v4878
  %v4880 = vpop.xlane.xlu0 %4879
  %v4881 = vsel %vm1866, %v4852, 0.0
  %4882 = vadd.xlane.f32.xlu0 %v4881
  %v4883 = vpop.xlane.xlu0 %4882
  %v4884 = vsel %vm1866, %v4854, 0.0
  %4885 = vadd.xlane.f32.xlu0 %v4884
  %v4886 = vpop.xlane.xlu0 %4885
  %v4887 = vsel %vm1866, %v4856, 0.0
  %4888 = vadd.xlane.f32.xlu0 %v4887
  %v4889 = vpop.xlane.xlu0 %4888
  %v4890 = vsel %vm1866, %v4858, 0.0
  %4891 = vadd.xlane.f32.xlu0 %v4890
  %v4892 = vpop.xlane.xlu0 %4891
  %v4893 = vsel %vm1866, %v4860, 0.0
  %4894 = vadd.xlane.f32.xlu0 %v4893
  %v4895 = vpop.xlane.xlu0 %4894
  %v4896 = vsel %vm1866, %v4862, 0.0
  %4897 = vadd.xlane.f32.xlu0 %v4896
  %v4898 = vpop.xlane.xlu0 %4897
  %v4899 = vrcp.pop %v4865
  %v4900 = vmul.f32 %v4840, %v4899
  %v4901 = vrcp.pop %v4868
  %v4902 = vmul.f32 %v4842, %v4901
  %v4903 = vrcp.pop %v4871
  %v4904 = vmul.f32 %v4844, %v4903
  %v4905 = vrcp.pop %v4874
  %v4906 = vmul.f32 %v4846, %v4905
  %v4907 = vrcp.pop %v4877
  %v4908 = vmul.f32 %v4848, %v4907
  %v4909 = vrcp.pop %v4880
  %v4910 = vmul.f32 %v4850, %v4909
  %v4911 = vrcp.pop %v4883
  %v4912 = vmul.f32 %v4852, %v4911
  %v4913 = vrcp.pop %v4886
  %v4914 = vmul.f32 %v4854, %v4913
  %v4915 = vrcp.pop %v4889
  %v4916 = vmul.f32 %v4856, %v4915
  %v4917 = vrcp.pop %v4892
  %v4918 = vmul.f32 %v4858, %v4917
  %v4919 = vrcp.pop %v4895
  %v4920 = vmul.f32 %v4860, %v4919
  %v4921 = vrcp.pop %v4898
  %v4922 = vmul.f32 %v4862, %v4921
  %v4923 = vpack.c.bf16 %v4902, %v4900
  %v4924 = vpack.c.bf16 %v4904, %v4904
  %v4925 = vpack.c.bf16 %v4908, %v4906
  %v4926 = vpack.c.bf16 %v4910, %v4910
  %v4927 = vpack.c.bf16 %v4914, %v4912
  %v4928 = vpack.c.bf16 %v4916, %v4916
  %v4929 = vpack.c.bf16 %v4920, %v4918
  %v4930 = vpack.c.bf16 %v4922, %v4922
  %v4931 = vpack.c.bf16 %v4439, %v4371
  %v4932 = vpack.c.bf16 %v4507, %v4507
  %v4933 = vpack.c.bf16 %v4440, %v4372
  %v4934 = vpack.c.bf16 %v4508, %v4508
  %v4935 = vpack.c.bf16 %v4441, %v4373
  %v4936 = vpack.c.bf16 %v4509, %v4509
  %v4937 = vpack.c.bf16 %v4442, %v4374
  %v4938 = vpack.c.bf16 %v4510, %v4510
  %v4940 = vsel %vm1866, %v4923, 0
  %v4943 = vsel %vm1866, %v4924, 0
  %v4946 = vsel %vm2021, %v4932, 0
  %4948 = vmatprep.subr.bf16.mxu0 0
  %4949 = vmatpush1.bf16.msra.mxu0 %v4931
  %4950 = vmatprep.subr.bf16.mxu0 0
  %4951 = vmatpush1.bf16.msra.mxu0 %v4946
  %4952 = vmatprep.subr.bf16.mxu0 0
  %4953 = vmatpush1.bf16.msra.mxu0 0
  %4954 = vmatprep.subr.bf16.mxu0 0
  %4955 = vmatpush1.bf16.msra.mxu0 0
  %4956 = vmatprep.subr.bf16.mxu0 0
  %4957 = vmatpush1.bf16.msra.mxu0 0
  %4958 = vmatprep.subr.bf16.mxu0 0
  %4959 = vmatpush1.bf16.msra.mxu0 0
  %4960 = vmatprep.subr.bf16.mxu0 0
  %4961 = vmatpush1.bf16.msra.mxu0 0
  %4962 = vmatprep.subr.bf16.mxu0 0
  %4963 = vmatpush1.bf16.msra.mxu0 0
  %4964 = vmatprep.subr.bf16.mxu0 0
  %4965 = vmatpush1.bf16.msra.mxu0 0
  %4966 = vmatprep.subr.bf16.mxu0 0
  %4967 = vmatpush1.bf16.msra.mxu0 0
  %4968 = vmatprep.subr.bf16.mxu0 0
  %4969 = vmatpush1.bf16.msra.mxu0 0
  %4970 = vmatprep.subr.bf16.mxu0 0
  %4971 = vmatpush1.bf16.msra.mxu0 0
  %4972 = vmatprep.subr.bf16.mxu0 0
  %4973 = vmatpush1.bf16.msra.mxu0 0
  %4974 = vmatprep.subr.bf16.mxu0 0
  %4975 = vmatpush1.bf16.msra.mxu0 0
  %4976 = vmatprep.subr.bf16.mxu0 0
  %4977 = vmatpush1.bf16.msra.mxu0 0
  %4978 = vmatprep.subr.bf16.mxu0 0
  %4979 = vmatpush1.bf16.msra.mxu0 0
  %4980 = vmatprep.mubr.bf16.mxu0 0
  %4981 = vmatmul.mubr.bf16.gmra.mrb[0].mxu0 %v4940
  %v4982 = vpop.f32.mrb[0].mxu0
  %v4983 = vadd.f32 0.0, %v4982
  %v4984 = vpop.f32.mrb[0].mxu0
  %v4985 = vpop.f32.mrb[0].mxu0
  %v4986 = vadd.f32 0.0, %v4985
  %v4987 = vpop.f32.mrb[0].mxu0
  %4988 = vmatprep.mubr.bf16.mxu0 0
  %4989 = vmatmul.mubr.bf16.gmra.mrb[0].mxu0 %v4943
  %v4990 = vpop.f32.mrb[0].mxu0
  %v4991 = vadd.f32 0.0, %v4990
  %v4992 = vpop.f32.mrb[0].mxu0
  %v4993 = vpop.f32.mrb[0].mxu0
  %v4994 = vpop.f32.mrb[0].mxu0
  %4995 = vdwg.mxu0
  %v4997 = vsel %vm1866, %v4925, 0
  %v5000 = vsel %vm1866, %v4926, 0
  %v5003 = vsel %vm2021, %v4934, 0
  %5005 = vmatprep.subr.bf16.mxu0 0
  %5006 = vmatpush1.bf16.msra.mxu0 %v4933
  %5007 = vmatprep.subr.bf16.mxu0 0
  %5008 = vmatpush1.bf16.msra.mxu0 %v5003
  %5009 = vmatprep.subr.bf16.mxu0 0
  %5010 = vmatpush1.bf16.msra.mxu0 0
  %5011 = vmatprep.subr.bf16.mxu0 0
  %5012 = vmatpush1.bf16.msra.mxu0 0
  %5013 = vmatprep.subr.bf16.mxu0 0
  %5014 = vmatpush1.bf16.msra.mxu0 0
  %5015 = vmatprep.subr.bf16.mxu0 0
  %5016 = vmatpush1.bf16.msra.mxu0 0
  %5017 = vmatprep.subr.bf16.mxu0 0
  %5018 = vmatpush1.bf16.msra.mxu0 0
  %5019 = vmatprep.subr.bf16.mxu0 0
  %5020 = vmatpush1.bf16.msra.mxu0 0
  %5021 = vmatprep.subr.bf16.mxu0 0
  %5022 = vmatpush1.bf16.msra.mxu0 0
  %5023 = vmatprep.subr.bf16.mxu0 0
  %5024 = vmatpush1.bf16.msra.mxu0 0
  %5025 = vmatprep.subr.bf16.mxu0 0
  %5026 = vmatpush1.bf16.msra.mxu0 0
  %5027 = vmatprep.subr.bf16.mxu0 0
  %5028 = vmatpush1.bf16.msra.mxu0 0
  %5029 = vmatprep.subr.bf16.mxu0 0
  %5030 = vmatpush1.bf16.msra.mxu0 0
  %5031 = vmatprep.subr.bf16.mxu0 0
  %5032 = vmatpush1.bf16.msra.mxu0 0
  %5033 = vmatprep.subr.bf16.mxu0 0
  %5034 = vmatpush1.bf16.msra.mxu0 0
  %5035 = vmatprep.subr.bf16.mxu0 0
  %5036 = vmatpush1.bf16.msra.mxu0 0
  %5037 = vmatprep.mubr.bf16.mxu0 0
  %5038 = vmatmul.mubr.bf16.gmra.mrb[0].mxu0 %v4997
  %v5039 = vpop.f32.mrb[0].mxu0
  %v5040 = vadd.f32 0.0, %v5039
  %v5041 = vpop.f32.mrb[0].mxu0
  %v5042 = vpop.f32.mrb[0].mxu0
  %v5043 = vadd.f32 0.0, %v5042
  %v5044 = vpop.f32.mrb[0].mxu0
  %5045 = vmatprep.mubr.bf16.mxu0 0
  %5046 = vmatmul.mubr.bf16.gmra.mrb[0].mxu0 %v5000
  %v5047 = vpop.f32.mrb[0].mxu0
  %v5048 = vadd.f32 0.0, %v5047
  %v5049 = vpop.f32.mrb[0].mxu0
  %v5050 = vpop.f32.mrb[0].mxu0
  %v5051 = vpop.f32.mrb[0].mxu0
  %5052 = vdwg.mxu0
  %v5054 = vsel %vm1866, %v4927, 0
  %v5057 = vsel %vm1866, %v4928, 0
  %v5060 = vsel %vm2021, %v4936, 0
  %5062 = vmatprep.subr.bf16.mxu0 0
  %5063 = vmatpush1.bf16.msra.mxu0 %v4935
  %5064 = vmatprep.subr.bf16.mxu0 0
  %5065 = vmatpush1.bf16.msra.mxu0 %v5060
  %5066 = vmatprep.subr.bf16.mxu0 0
  %5067 = vmatpush1.bf16.msra.mxu0 0
  %5068 = vmatprep.subr.bf16.mxu0 0
  %5069 = vmatpush1.bf16.msra.mxu0 0
  %5070 = vmatprep.subr.bf16.mxu0 0
  %5071 = vmatpush1.bf16.msra.mxu0 0
  %5072 = vmatprep.subr.bf16.mxu0 0
  %5073 = vmatpush1.bf16.msra.mxu0 0
  %5074 = vmatprep.subr.bf16.mxu0 0
  %5075 = vmatpush1.bf16.msra.mxu0 0
  %5076 = vmatprep.subr.bf16.mxu0 0
  %5077 = vmatpush1.bf16.msra.mxu0 0
  %5078 = vmatprep.subr.bf16.mxu0 0
  %5079 = vmatpush1.bf16.msra.mxu0 0
  %5080 = vmatprep.subr.bf16.mxu0 0
  %5081 = vmatpush1.bf16.msra.mxu0 0
  %5082 = vmatprep.subr.bf16.mxu0 0
  %5083 = vmatpush1.bf16.msra.mxu0 0
  %5084 = vmatprep.subr.bf16.mxu0 0
  %5085 = vmatpush1.bf16.msra.mxu0 0
  %5086 = vmatprep.subr.bf16.mxu0 0
  %5087 = vmatpush1.bf16.msra.mxu0 0
  %5088 = vmatprep.subr.bf16.mxu0 0
  %5089 = vmatpush1.bf16.msra.mxu0 0
  %5090 = vmatprep.subr.bf16.mxu0 0
  %5091 = vmatpush1.bf16.msra.mxu0 0
  %5092 = vmatprep.subr.bf16.mxu0 0
  %5093 = vmatpush1.bf16.msra.mxu0 0
  %5094 = vmatprep.mubr.bf16.mxu0 0
  %5095 = vmatmul.mubr.bf16.gmra.mrb[0].mxu0 %v5054
  %v5096 = vpop.f32.mrb[0].mxu0
  %v5097 = vadd.f32 0.0, %v5096
  %v5098 = vpop.f32.mrb[0].mxu0
  %v5099 = vpop.f32.mrb[0].mxu0
  %v5100 = vadd.f32 0.0, %v5099
  %v5101 = vpop.f32.mrb[0].mxu0
  %5102 = vmatprep.mubr.bf16.mxu0 0
  %5103 = vmatmul.mubr.bf16.gmra.mrb[0].mxu0 %v5057
  %v5104 = vpop.f32.mrb[0].mxu0
  %v5105 = vadd.f32 0.0, %v5104
  %v5106 = vpop.f32.mrb[0].mxu0
  %v5107 = vpop.f32.mrb[0].mxu0
  %v5108 = vpop.f32.mrb[0].mxu0
  %5109 = vdwg.mxu0
  %v5111 = vsel %vm1866, %v4929, 0
  %v5114 = vsel %vm1866, %v4930, 0
  %v5117 = vsel %vm2021, %v4938, 0
  %5119 = vmatprep.subr.bf16.mxu0 0
  %5120 = vmatpush1.bf16.msra.mxu0 %v4937
  %5121 = vmatprep.subr.bf16.mxu0 0
  %5122 = vmatpush1.bf16.msra.mxu0 %v5117
  %5123 = vmatprep.subr.bf16.mxu0 0
  %5124 = vmatpush1.bf16.msra.mxu0 0
  %5125 = vmatprep.subr.bf16.mxu0 0
  %5126 = vmatpush1.bf16.msra.mxu0 0
  %5127 = vmatprep.subr.bf16.mxu0 0
  %5128 = vmatpush1.bf16.msra.mxu0 0
  %5129 = vmatprep.subr.bf16.mxu0 0
  %5130 = vmatpush1.bf16.msra.mxu0 0
  %5131 = vmatprep.subr.bf16.mxu0 0
  %5132 = vmatpush1.bf16.msra.mxu0 0
  %5133 = vmatprep.subr.bf16.mxu0 0
  %5134 = vmatpush1.bf16.msra.mxu0 0
  %5135 = vmatprep.subr.bf16.mxu0 0
  %5136 = vmatpush1.bf16.msra.mxu0 0
  %5137 = vmatprep.subr.bf16.mxu0 0
  %5138 = vmatpush1.bf16.msra.mxu0 0
  %5139 = vmatprep.subr.bf16.mxu0 0
  %5140 = vmatpush1.bf16.msra.mxu0 0
  %5141 = vmatprep.subr.bf16.mxu0 0
  %5142 = vmatpush1.bf16.msra.mxu0 0
  %5143 = vmatprep.subr.bf16.mxu0 0
  %5144 = vmatpush1.bf16.msra.mxu0 0
  %5145 = vmatprep.subr.bf16.mxu0 0
  %5146 = vmatpush1.bf16.msra.mxu0 0
  %5147 = vmatprep.subr.bf16.mxu0 0
  %5148 = vmatpush1.bf16.msra.mxu0 0
  %5149 = vmatprep.subr.bf16.mxu0 0
  %5150 = vmatpush1.bf16.msra.mxu0 0
  %5151 = vmatprep.mubr.bf16.mxu0 0
  %5152 = vmatmul.mubr.bf16.gmra.mrb[0].mxu0 %v5111
  %v5153 = vpop.f32.mrb[0].mxu0
  %v5154 = vadd.f32 0.0, %v5153
  %v5155 = vpop.f32.mrb[0].mxu0
  %v5156 = vpop.f32.mrb[0].mxu0
  %v5157 = vadd.f32 0.0, %v5156
  %v5158 = vpop.f32.mrb[0].mxu0
  %5159 = vmatprep.mubr.bf16.mxu0 0
  %5160 = vmatmul.mubr.bf16.gmra.mrb[0].mxu0 %v5114
  %v5161 = vpop.f32.mrb[0].mxu0
  %v5162 = vadd.f32 0.0, %v5161
  %v5163 = vpop.f32.mrb[0].mxu0
  %v5164 = vpop.f32.mrb[0].mxu0
  %v5165 = vpop.f32.mrb[0].mxu0
  %5166 = vdwg.mxu0
  %v5167 = vcombine.low %v4983, %v5097
  %v5168 = vcombine.high %v4983, %v5097
  %v5170 = vunpack.c.l.s4 1983009808
  %v5171 = vunpack.c.0.s8 %v5170
  %v5172 = vlaneseq
  %v5173 = vshrl.u32 %v5172, 7
  %v5174 = vsub.s32 %v5171, %v5173
  %v5175 = vrot.slane %v5167, %v5174
  %v5177 = vunpack.c.l.s4 1983009808
  %v5178 = vunpack.c.0.s8 %v5177
  %v5179 = vlaneseq
  %v5180 = vshrl.u32 %v5179, 7
  %v5181 = vsub.s32 %v5178, %v5180
  %v5182 = vrot.slane %v5168, %v5181
  %v5183 = vcombine.low %v5040, %v5154
  %v5184 = vcombine.high %v5040, %v5154
  %v5186 = vunpack.c.l.s4 1983009808
  %v5187 = vunpack.c.0.s8 %v5186
  %v5188 = vlaneseq
  %v5189 = vshrl.u32 %v5188, 7
  %v5190 = vsub.s32 %v5187, %v5189
  %v5191 = vrot.slane %v5183, %v5190
  %v5193 = vunpack.c.l.s4 1983009808
  %v5194 = vunpack.c.0.s8 %v5193
  %v5195 = vlaneseq
  %v5196 = vshrl.u32 %v5195, 7
  %v5197 = vsub.s32 %v5194, %v5196
  %v5198 = vrot.slane %v5184, %v5197
  %v5199 = vcombine.low %v5175, %v5191
  %v5200 = vcombine.high %v5175, %v5191
  %v5202 = vunpack.c.l.s4 1934713408
  %v5203 = vunpack.c.0.s8 %v5202
  %v5204 = vlaneseq
  %v5205 = vshrl.u32 %v5204, 7
  %v5206 = vsub.s32 %v5203, %v5205
  %v5207 = vrot.slane %v5199, %v5206
  %v5209 = vunpack.c.l.s4 1934713408
  %v5210 = vunpack.c.0.s8 %v5209
  %v5211 = vlaneseq
  %v5212 = vshrl.u32 %v5211, 7
  %v5213 = vsub.s32 %v5210, %v5212
  %v5214 = vrot.slane %v5200, %v5213
  %v5215 = vcombine.low %v5182, %v5198
  %v5216 = vcombine.high %v5182, %v5198
  %v5218 = vunpack.c.l.s4 1934713408
  %v5219 = vunpack.c.0.s8 %v5218
  %v5220 = vlaneseq
  %v5221 = vshrl.u32 %v5220, 7
  %v5222 = vsub.s32 %v5219, %v5221
  %v5223 = vrot.slane %v5215, %v5222
  %v5225 = vunpack.c.l.s4 1934713408
  %v5226 = vunpack.c.0.s8 %v5225
  %v5227 = vlaneseq
  %v5228 = vshrl.u32 %v5227, 7
  %v5229 = vsub.s32 %v5226, %v5228
  %v5230 = vrot.slane %v5216, %v5229
  %v5231 = vcombine.high %v5207, 0.0
  %v5232 = vcombine.high %v5214, 0.0
  %v5233 = vcombine.high %v5223, 0.0
  %v5234 = vcombine.high %v5230, 0.0
  %v5235 = vcombine.low %v4986, %v5100
  %v5236 = vcombine.high %v4986, %v5100
  %v5238 = vunpack.c.l.s4 1983009808
  %v5239 = vunpack.c.0.s8 %v5238
  %v5240 = vlaneseq
  %v5241 = vshrl.u32 %v5240, 7
  %v5242 = vsub.s32 %v5239, %v5241
  %v5243 = vrot.slane %v5235, %v5242
  %v5245 = vunpack.c.l.s4 1983009808
  %v5246 = vunpack.c.0.s8 %v5245
  %v5247 = vlaneseq
  %v5248 = vshrl.u32 %v5247, 7
  %v5249 = vsub.s32 %v5246, %v5248
  %v5250 = vrot.slane %v5236, %v5249
  %v5251 = vcombine.low %v5043, %v5157
  %v5252 = vcombine.high %v5043, %v5157
  %v5254 = vunpack.c.l.s4 1983009808
  %v5255 = vunpack.c.0.s8 %v5254
  %v5256 = vlaneseq
  %v5257 = vshrl.u32 %v5256, 7
  %v5258 = vsub.s32 %v5255, %v5257
  %v5259 = vrot.slane %v5251, %v5258
  %v5261 = vunpack.c.l.s4 1983009808
  %v5262 = vunpack.c.0.s8 %v5261
  %v5263 = vlaneseq
  %v5264 = vshrl.u32 %v5263, 7
  %v5265 = vsub.s32 %v5262, %v5264
  %v5266 = vrot.slane %v5252, %v5265
  %v5267 = vcombine.low %v5243, %v5259
  %v5268 = vcombine.high %v5243, %v5259
  %v5270 = vunpack.c.l.s4 1934713408
  %v5271 = vunpack.c.0.s8 %v5270
  %v5272 = vlaneseq
  %v5273 = vshrl.u32 %v5272, 7
  %v5274 = vsub.s32 %v5271, %v5273
  %v5275 = vrot.slane %v5267, %v5274
  %v5277 = vunpack.c.l.s4 1934713408
  %v5278 = vunpack.c.0.s8 %v5277
  %v5279 = vlaneseq
  %v5280 = vshrl.u32 %v5279, 7
  %v5281 = vsub.s32 %v5278, %v5280
  %v5282 = vrot.slane %v5268, %v5281
  %v5283 = vcombine.low %v5250, %v5266
  %v5284 = vcombine.high %v5250, %v5266
  %v5286 = vunpack.c.l.s4 1934713408
  %v5287 = vunpack.c.0.s8 %v5286
  %v5288 = vlaneseq
  %v5289 = vshrl.u32 %v5288, 7
  %v5290 = vsub.s32 %v5287, %v5289
  %v5291 = vrot.slane %v5283, %v5290
  %v5293 = vunpack.c.l.s4 1934713408
  %v5294 = vunpack.c.0.s8 %v5293
  %v5295 = vlaneseq
  %v5296 = vshrl.u32 %v5295, 7
  %v5297 = vsub.s32 %v5294, %v5296
  %v5298 = vrot.slane %v5284, %v5297
  %v5299 = vcombine.high %v5275, 0.0
  %v5300 = vcombine.high %v5282, 0.0
  %v5301 = vcombine.high %v5291, 0.0
  %v5302 = vcombine.high %v5298, 0.0
  %v5303 = vcombine.low %v4991, %v5105
  %v5304 = vcombine.high %v4991, %v5105
  %v5306 = vunpack.c.l.s4 1983009808
  %v5307 = vunpack.c.0.s8 %v5306
  %v5308 = vlaneseq
  %v5309 = vshrl.u32 %v5308, 7
  %v5310 = vsub.s32 %v5307, %v5309
  %v5311 = vrot.slane %v5303, %v5310
  %v5313 = vunpack.c.l.s4 1983009808
  %v5314 = vunpack.c.0.s8 %v5313
  %v5315 = vlaneseq
  %v5316 = vshrl.u32 %v5315, 7
  %v5317 = vsub.s32 %v5314, %v5316
  %v5318 = vrot.slane %v5304, %v5317
  %v5319 = vcombine.low %v5048, %v5162
  %v5320 = vcombine.high %v5048, %v5162
  %v5322 = vunpack.c.l.s4 1983009808
  %v5323 = vunpack.c.0.s8 %v5322
  %v5324 = vlaneseq
  %v5325 = vshrl.u32 %v5324, 7
  %v5326 = vsub.s32 %v5323, %v5325
  %v5327 = vrot.slane %v5319, %v5326
  %v5329 = vunpack.c.l.s4 1983009808
  %v5330 = vunpack.c.0.s8 %v5329
  %v5331 = vlaneseq
  %v5332 = vshrl.u32 %v5331, 7
  %v5333 = vsub.s32 %v5330, %v5332
  %v5334 = vrot.slane %v5320, %v5333
  %v5335 = vcombine.low %v5311, %v5327
  %v5336 = vcombine.high %v5311, %v5327
  %v5338 = vunpack.c.l.s4 1934713408
  %v5339 = vunpack.c.0.s8 %v5338
  %v5340 = vlaneseq
  %v5341 = vshrl.u32 %v5340, 7
  %v5342 = vsub.s32 %v5339, %v5341
  %v5343 = vrot.slane %v5335, %v5342
  %v5345 = vunpack.c.l.s4 1934713408
  %v5346 = vunpack.c.0.s8 %v5345
  %v5347 = vlaneseq
  %v5348 = vshrl.u32 %v5347, 7
  %v5349 = vsub.s32 %v5346, %v5348
  %v5350 = vrot.slane %v5336, %v5349
  %v5351 = vcombine.low %v5318, %v5334
  %v5352 = vcombine.high %v5318, %v5334
  %v5354 = vunpack.c.l.s4 1934713408
  %v5355 = vunpack.c.0.s8 %v5354
  %v5356 = vlaneseq
  %v5357 = vshrl.u32 %v5356, 7
  %v5358 = vsub.s32 %v5355, %v5357
  %v5359 = vrot.slane %v5351, %v5358
  %v5361 = vunpack.c.l.s4 1934713408
  %v5362 = vunpack.c.0.s8 %v5361
  %v5363 = vlaneseq
  %v5364 = vshrl.u32 %v5363, 7
  %v5365 = vsub.s32 %v5362, %v5364
  %v5366 = vrot.slane %v5352, %v5365
  %v5367 = vcombine.high %v5343, 0.0
  %v5368 = vcombine.high %v5350, 0.0
  %v5369 = vcombine.high %v5359, 0.0
  %v5370 = vcombine.high %v5366, 0.0
  %v5371 = vcombine.low %v5207, %v5214
  %v5373 = vunpack.c.l.s4 1983009808
  %v5374 = vunpack.c.0.s8 %v5373
  %v5375 = vlaneseq
  %v5376 = vshrl.u32 %v5375, 7
  %v5377 = vsub.s32 %v5374, %v5376
  %v5378 = vrot.slane %v5371, %v5377
  %v5379 = vcombine.low %v5231, %v5232
  %v5381 = vunpack.c.l.s4 1983009808
  %v5382 = vunpack.c.0.s8 %v5381
  %v5383 = vlaneseq
  %v5384 = vshrl.u32 %v5383, 7
  %v5385 = vsub.s32 %v5382, %v5384
  %v5386 = vrot.slane %v5379, %v5385
  %v5387 = vcombine.low %v5223, %v5230
  %v5389 = vunpack.c.l.s4 1983009808
  %v5390 = vunpack.c.0.s8 %v5389
  %v5391 = vlaneseq
  %v5392 = vshrl.u32 %v5391, 7
  %v5393 = vsub.s32 %v5390, %v5392
  %v5394 = vrot.slane %v5387, %v5393
  %v5395 = vcombine.low %v5233, %v5234
  %v5397 = vunpack.c.l.s4 1983009808
  %v5398 = vunpack.c.0.s8 %v5397
  %v5399 = vlaneseq
  %v5400 = vshrl.u32 %v5399, 7
  %v5401 = vsub.s32 %v5398, %v5400
  %v5402 = vrot.slane %v5395, %v5401
  %v5403 = vcombine.low %v5378, %v5386
  %v5404 = vcombine.high %v5378, %v5386
  %v5406 = vunpack.c.l.s4 1934713408
  %v5407 = vunpack.c.0.s8 %v5406
  %v5408 = vlaneseq
  %v5409 = vshrl.u32 %v5408, 7
  %v5410 = vsub.s32 %v5407, %v5409
  %v5411 = vrot.slane %v5403, %v5410
  %v5413 = vunpack.c.l.s4 1934713408
  %v5414 = vunpack.c.0.s8 %v5413
  %v5415 = vlaneseq
  %v5416 = vshrl.u32 %v5415, 7
  %v5417 = vsub.s32 %v5414, %v5416
  %v5418 = vrot.slane %v5404, %v5417
  %v5419 = vcombine.low %v5394, %v5402
  %v5420 = vcombine.high %v5394, %v5402
  %v5422 = vunpack.c.l.s4 1934713408
  %v5423 = vunpack.c.0.s8 %v5422
  %v5424 = vlaneseq
  %v5425 = vshrl.u32 %v5424, 7
  %v5426 = vsub.s32 %v5423, %v5425
  %v5427 = vrot.slane %v5419, %v5426
  %v5429 = vunpack.c.l.s4 1934713408
  %v5430 = vunpack.c.0.s8 %v5429
  %v5431 = vlaneseq
  %v5432 = vshrl.u32 %v5431, 7
  %v5433 = vsub.s32 %v5430, %v5432
  %v5434 = vrot.slane %v5420, %v5433
  %v5435 = vcombine.low %v5411, %v5427
  %v5436 = vcombine.high %v5411, %v5427
  %v5437 = vcombine.low %v5418, %v5434
  %v5438 = vcombine.high %v5418, %v5434
  %v5439 = vcombine.low %v5275, %v5282
  %v5441 = vunpack.c.l.s4 1983009808
  %v5442 = vunpack.c.0.s8 %v5441
  %v5443 = vlaneseq
  %v5444 = vshrl.u32 %v5443, 7
  %v5445 = vsub.s32 %v5442, %v5444
  %v5446 = vrot.slane %v5439, %v5445
  %v5447 = vcombine.low %v5299, %v5300
  %v5449 = vunpack.c.l.s4 1983009808
  %v5450 = vunpack.c.0.s8 %v5449
  %v5451 = vlaneseq
  %v5452 = vshrl.u32 %v5451, 7
  %v5453 = vsub.s32 %v5450, %v5452
  %v5454 = vrot.slane %v5447, %v5453
  %v5455 = vcombine.low %v5291, %v5298
  %v5457 = vunpack.c.l.s4 1983009808
  %v5458 = vunpack.c.0.s8 %v5457
  %v5459 = vlaneseq
  %v5460 = vshrl.u32 %v5459, 7
  %v5461 = vsub.s32 %v5458, %v5460
  %v5462 = vrot.slane %v5455, %v5461
  %v5463 = vcombine.low %v5301, %v5302
  %v5465 = vunpack.c.l.s4 1983009808
  %v5466 = vunpack.c.0.s8 %v5465
  %v5467 = vlaneseq
  %v5468 = vshrl.u32 %v5467, 7
  %v5469 = vsub.s32 %v5466, %v5468
  %v5470 = vrot.slane %v5463, %v5469
  %v5471 = vcombine.low %v5446, %v5454
  %v5472 = vcombine.high %v5446, %v5454
  %v5474 = vunpack.c.l.s4 1934713408
  %v5475 = vunpack.c.0.s8 %v5474
  %v5476 = vlaneseq
  %v5477 = vshrl.u32 %v5476, 7
  %v5478 = vsub.s32 %v5475, %v5477
  %v5479 = vrot.slane %v5471, %v5478
  %v5481 = vunpack.c.l.s4 1934713408
  %v5482 = vunpack.c.0.s8 %v5481
  %v5483 = vlaneseq
  %v5484 = vshrl.u32 %v5483, 7
  %v5485 = vsub.s32 %v5482, %v5484
  %v5486 = vrot.slane %v5472, %v5485
  %v5487 = vcombine.low %v5462, %v5470
  %v5488 = vcombine.high %v5462, %v5470
  %v5490 = vunpack.c.l.s4 1934713408
  %v5491 = vunpack.c.0.s8 %v5490
  %v5492 = vlaneseq
  %v5493 = vshrl.u32 %v5492, 7
  %v5494 = vsub.s32 %v5491, %v5493
  %v5495 = vrot.slane %v5487, %v5494
  %v5497 = vunpack.c.l.s4 1934713408
  %v5498 = vunpack.c.0.s8 %v5497
  %v5499 = vlaneseq
  %v5500 = vshrl.u32 %v5499, 7
  %v5501 = vsub.s32 %v5498, %v5500
  %v5502 = vrot.slane %v5488, %v5501
  %v5503 = vcombine.low %v5479, %v5495
  %v5504 = vcombine.high %v5479, %v5495
  %v5505 = vcombine.low %v5486, %v5502
  %v5506 = vcombine.high %v5486, %v5502
  %v5507 = vcombine.low %v5343, %v5350
  %v5509 = vunpack.c.l.s4 1983009808
  %v5510 = vunpack.c.0.s8 %v5509
  %v5511 = vlaneseq
  %v5512 = vshrl.u32 %v5511, 7
  %v5513 = vsub.s32 %v5510, %v5512
  %v5514 = vrot.slane %v5507, %v5513
  %v5515 = vcombine.low %v5367, %v5368
  %v5517 = vunpack.c.l.s4 1983009808
  %v5518 = vunpack.c.0.s8 %v5517
  %v5519 = vlaneseq
  %v5520 = vshrl.u32 %v5519, 7
  %v5521 = vsub.s32 %v5518, %v5520
  %v5522 = vrot.slane %v5515, %v5521
  %v5523 = vcombine.low %v5359, %v5366
  %v5525 = vunpack.c.l.s4 1983009808
  %v5526 = vunpack.c.0.s8 %v5525
  %v5527 = vlaneseq
  %v5528 = vshrl.u32 %v5527, 7
  %v5529 = vsub.s32 %v5526, %v5528
  %v5530 = vrot.slane %v5523, %v5529
  %v5531 = vcombine.low %v5369, %v5370
  %v5533 = vunpack.c.l.s4 1983009808
  %v5534 = vunpack.c.0.s8 %v5533
  %v5535 = vlaneseq
  %v5536 = vshrl.u32 %v5535, 7
  %v5537 = vsub.s32 %v5534, %v5536
  %v5538 = vrot.slane %v5531, %v5537
  %v5539 = vcombine.low %v5514, %v5522
  %v5540 = vcombine.high %v5514, %v5522
  %v5542 = vunpack.c.l.s4 1934713408
  %v5543 = vunpack.c.0.s8 %v5542
  %v5544 = vlaneseq
  %v5545 = vshrl.u32 %v5544, 7
  %v5546 = vsub.s32 %v5543, %v5545
  %v5547 = vrot.slane %v5539, %v5546
  %v5549 = vunpack.c.l.s4 1934713408
  %v5550 = vunpack.c.0.s8 %v5549
  %v5551 = vlaneseq
  %v5552 = vshrl.u32 %v5551, 7
  %v5553 = vsub.s32 %v5550, %v5552
  %v5554 = vrot.slane %v5540, %v5553
  %v5555 = vcombine.low %v5530, %v5538
  %v5556 = vcombine.high %v5530, %v5538
  %v5558 = vunpack.c.l.s4 1934713408
  %v5559 = vunpack.c.0.s8 %v5558
  %v5560 = vlaneseq
  %v5561 = vshrl.u32 %v5560, 7
  %v5562 = vsub.s32 %v5559, %v5561
  %v5563 = vrot.slane %v5555, %v5562
  %v5565 = vunpack.c.l.s4 1934713408
  %v5566 = vunpack.c.0.s8 %v5565
  %v5567 = vlaneseq
  %v5568 = vshrl.u32 %v5567, 7
  %v5569 = vsub.s32 %v5566, %v5568
  %v5570 = vrot.slane %v5556, %v5569
  %v5571 = vcombine.low %v5547, %v5563
  %v5572 = vcombine.high %v5547, %v5563
  %v5573 = vcombine.low %v5554, %v5570
  %v5574 = vcombine.high %v5554, %v5570
  %5578 = vrot.lane.b32.xlu0 %v5436, 8
  %v5579 = vpop.permute.xlu0 %5578
  %5580 = vrot.lane.b32.xlu0 %v5504, 8
  %v5581 = vpop.permute.xlu0 %5580
  %5582 = vrot.lane.b32.xlu0 %v5572, 8
  %v5583 = vpop.permute.xlu0 %5582
  %5590 = vrot.lane.b32.xlu0 %v5437, 16
  %v5591 = vpop.permute.xlu0 %5590
  %5592 = vrot.lane.b32.xlu0 %v5505, 16
  %v5593 = vpop.permute.xlu0 %5592
  %5594 = vrot.lane.b32.xlu0 %v5573, 16
  %v5595 = vpop.permute.xlu0 %5594
  %5602 = vrot.lane.b32.xlu0 %v5438, 24
  %v5603 = vpop.permute.xlu0 %5602
  %5604 = vrot.lane.b32.xlu0 %v5506, 24
  %v5605 = vpop.permute.xlu0 %5604
  %5606 = vrot.lane.b32.xlu0 %v5574, 24
  %v5607 = vpop.permute.xlu0 %5606
  %v5611 = vsel %vm1601, %v5435, %v5579
  %v5612 = vsel %vm1601, %v5503, %v5581
  %v5613 = vsel %vm1601, %v5571, %v5583
  %v5614 = vsel %vm2691, %v5611, %v5591
  %v5615 = vsel %vm2691, %v5612, %v5593
  %v5616 = vsel %vm2691, %v5613, %v5595
  %v5617 = vsel %vm1866, %v5614, %v5603
  %v5618 = vsel %vm1866, %v5615, %v5605
  %v5619 = vsel %vm1866, %v5616, %v5607
  %s5620 = scalar_lea.vmem %s7, 16
  %v5621 = vld [vmem:[%s5620] sm:$0xf]
  %v5622 = vld [vmem:[%s5620 + $0x4] sm:$0xf]
  %v5623 = vld [vmem:[%s5620 + $0x8] sm:$0xf]
  %v5624 = vld [vmem:[%s5620 + $0xc] sm:$0xf]
  %v5625 = vpack.c.bf16 %v5618, %v5617
  %v5626 = vpack.c.bf16 %v5619, %v5619
  %s5627 = scalar_lea.vmem %s8, 1
  %v5628 = vld [vmem:[%s5627] sm:$0x1]
  %v5630 = vlaneseq
  %v5631 = vshrl.u32 %v5630, 7
  %v5632 = vsub.s32 0, %v5631
  %v5633 = vrot.slane %v5628, %v5632
  %v5639 = vunpack.c.l.b16 %v5621
  %v5640 = vunpack.c.l.b16 %v5622
  %v5641 = vunpack.c.l.b16 %v5623
  %v5642 = vunpack.c.l.b16 %v5624
  %v5643 = vpack.c.b16 %v5640, %v5639
  %v5644 = vpack.c.b16 %v5642, %v5641
  %v5648 = vsel %vm204, %v5625, 0
  %v5651 = vsel %vm204, %v5626, 0
  %5653 = vmatprep.subr.bf16.mxu0 0
  %5654 = vmatpush1.bf16.msra.mxu0 %v5643
  %5655 = vmatprep.subr.bf16.mxu0 0
  %5656 = vmatpush1.bf16.msra.mxu0 %v5644
  %5657 = vmatprep.subr.bf16.mxu0 0
  %5658 = vmatpush1.bf16.msra.mxu0 0
  %5659 = vmatprep.subr.bf16.mxu0 0
  %5660 = vmatpush1.bf16.msra.mxu0 0
  %5661 = vmatprep.subr.bf16.mxu0 0
  %5662 = vmatpush1.bf16.msra.mxu0 0
  %5663 = vmatprep.subr.bf16.mxu0 0
  %5664 = vmatpush1.bf16.msra.mxu0 0
  %5665 = vmatprep.subr.bf16.mxu0 0
  %5666 = vmatpush1.bf16.msra.mxu0 0
  %5667 = vmatprep.subr.bf16.mxu0 0
  %5668 = vmatpush1.bf16.msra.mxu0 0
  %5669 = vmatprep.subr.bf16.mxu0 0
  %5670 = vmatpush1.bf16.msra.mxu0 0
  %5671 = vmatprep.subr.bf16.mxu0 0
  %5672 = vmatpush1.bf16.msra.mxu0 0
  %5673 = vmatprep.subr.bf16.mxu0 0
  %5674 = vmatpush1.bf16.msra.mxu0 0
  %5675 = vmatprep.subr.bf16.mxu0 0
  %5676 = vmatpush1.bf16.msra.mxu0 0
  %5677 = vmatprep.subr.bf16.mxu0 0
  %5678 = vmatpush1.bf16.msra.mxu0 0
  %5679 = vmatprep.subr.bf16.mxu0 0
  %5680 = vmatpush1.bf16.msra.mxu0 0
  %5681 = vmatprep.subr.bf16.mxu0 0
  %5682 = vmatpush1.bf16.msra.mxu0 0
  %5683 = vmatprep.subr.bf16.mxu0 0
  %5684 = vmatpush1.bf16.msra.mxu0 0
  %5685 = vmatprep.mubr.bf16.mxu0 0
  %5686 = vmatmul.mubr.bf16.gmra.mrb[0].mxu0 %v5648
  %v5687 = vpop.f32.mrb[0].mxu0
  %v5688 = vadd.f32 %v5633, %v5687
  %v5689 = vpop.f32.mrb[0].mxu0
  %v5690 = vpop.f32.mrb[0].mxu0
  %v5691 = vadd.f32 %v5633, %v5690
  %v5692 = vpop.f32.mrb[0].mxu0
  %5693 = vmatprep.mubr.bf16.mxu0 0
  %5694 = vmatmul.mubr.bf16.gmra.mrb[0].mxu0 %v5651
  %v5695 = vpop.f32.mrb[0].mxu0
  %v5696 = vadd.f32 %v5633, %v5695
  %v5697 = vpop.f32.mrb[0].mxu0
  %v5698 = vpop.f32.mrb[0].mxu0
  %v5699 = vpop.f32.mrb[0].mxu0
  %5700 = vdwg.mxu0
  %v5701 = vadd.f32 %v3101, %v5688
  %v5702 = vadd.f32 %v3102, %v5691
  %v5703 = vadd.f32 %v3103, %v5696
  %s5704 = scalar_lea.vmem %s9, 1
  %v5705 = vld [vmem:[%s5704] sm:$0x1]
  %s5706 = scalar_lea.vmem %s10, 1
  %v5707 = vld [vmem:[%s5706] sm:$0x1]
  %v5708 = vsel %vm204, %v5701, 0.0
  %5709 = vadd.xlane.f32.xlu0 %v5708
  %v5710 = vpop.xlane.xlu0 %5709
  %v5711 = vsel %vm204, %v5702, 0.0
  %5712 = vadd.xlane.f32.xlu0 %v5711
  %v5713 = vpop.xlane.xlu0 %5712
  %v5714 = vsel %vm204, %v5703, 0.0
  %5715 = vadd.xlane.f32.xlu0 %v5714
  %v5716 = vpop.xlane.xlu0 %5715
  %v5717 = vmul.f32 %v5710, %v2791
  %v5718 = vmul.f32 %v5713, %v2791
  %v5719 = vmul.f32 %v5716, %v2791
  %v5720 = vsub.f32 %v5701, %v5717
  %v5721 = vsub.f32 %v5702, %v5718
  %v5722 = vsub.f32 %v5703, %v5719
  %v5723 = vmul.f32 %v5720, %v5720
  %v5724 = vmul.f32 %v5721, %v5721
  %v5725 = vmul.f32 %v5722, %v5722
  %v5726 = vsel %vm204, %v5723, 0.0
  %5727 = vadd.xlane.f32.xlu0 %v5726
  %v5728 = vpop.xlane.xlu0 %5727
  %v5729 = vsel %vm204, %v5724, 0.0
  %5730 = vadd.xlane.f32.xlu0 %v5729
  %v5731 = vpop.xlane.xlu0 %5730
  %v5732 = vsel %vm204, %v5725, 0.0
  %5733 = vadd.xlane.f32.xlu0 %v5732
  %v5734 = vpop.xlane.xlu0 %5733
  %v5735 = vmul.f32 %v5728, %v2791
  %v5736 = vmul.f32 %v5731, %v2791
  %v5737 = vmul.f32 %v5734, %v2791
  %v5738 = vadd.f32 %v5735, 1e-05
  %v5739 = vadd.f32 %v5736, 1e-05
  %v5740 = vadd.f32 %v5737, 1e-05
  %v5741 = vrsqrt.pop %v5738
  %v5742 = vrsqrt.pop %v5739
  %v5743 = vrsqrt.pop %v5740
  %v5744 = vmul.f32 %v5720, %v5741
  %v5745 = vmul.f32 %v5721, %v5742
  %v5746 = vmul.f32 %v5722, %v5743
  %v5748 = vlaneseq
  %v5749 = vshrl.u32 %v5748, 7
  %v5750 = vsub.s32 0, %v5749
  %v5751 = vrot.slane %v5705, %v5750
  %v5753 = vmul.f32 %v5744, %v5751
  %v5754 = vmul.f32 %v5745, %v5751
  %v5755 = vmul.f32 %v5746, %v5751
  %v5757 = vlaneseq
  %v5758 = vshrl.u32 %v5757, 7
  %v5759 = vsub.s32 0, %v5758
  %v5760 = vrot.slane %v5707, %v5759
  %v5762 = vadd.f32 %v5753, %v5760
  %v5763 = vadd.f32 %v5754, %v5760
  %v5764 = vadd.f32 %v5755, %v5760
  %s5765 = scalar_lea.vmem %s11, 16
  %v5766 = vld [vmem:[%s5765] sm:$0xf]
  %v5767 = vld [vmem:[%s5765 + $0x4] sm:$0xf]
  %v5768 = vld [vmem:[%s5765 + $0x8] sm:$0xf]
  %v5769 = vld [vmem:[%s5765 + $0xc] sm:$0xf]
  %v5770 = vpack.c.bf16 %v5763, %v5762
  %v5771 = vpack.c.bf16 %v5764, %v5764
  %s5772 = scalar_lea.vmem %s12, 1
  %v5773 = vld [vmem:[%s5772] sm:$0x1]
  %v5775 = vlaneseq
  %v5776 = vshrl.u32 %v5775, 7
  %v5777 = vsub.s32 0, %v5776
  %v5778 = vrot.slane %v5773, %v5777
  %v5784 = vunpack.c.l.b16 %v5766
  %v5785 = vunpack.c.l.b16 %v5767
  %v5786 = vunpack.c.l.b16 %v5768
  %v5787 = vunpack.c.l.b16 %v5769
  %v5788 = vpack.c.b16 %v5785, %v5784
  %v5789 = vpack.c.b16 %v5787, %v5786
  %v5793 = vsel %vm204, %v5770, 0
  %v5796 = vsel %vm204, %v5771, 0
  %5798 = vmatprep.subr.bf16.mxu0 0
  %5799 = vmatpush1.bf16.msra.mxu0 %v5788
  %5800 = vmatprep.subr.bf16.mxu0 0
  %5801 = vmatpush1.bf16.msra.mxu0 %v5789
  %5802 = vmatprep.subr.bf16.mxu0 0
  %5803 = vmatpush1.bf16.msra.mxu0 0
  %5804 = vmatprep.subr.bf16.mxu0 0
  %5805 = vmatpush1.bf16.msra.mxu0 0
  %5806 = vmatprep.subr.bf16.mxu0 0
  %5807 = vmatpush1.bf16.msra.mxu0 0
  %5808 = vmatprep.subr.bf16.mxu0 0
  %5809 = vmatpush1.bf16.msra.mxu0 0
  %5810 = vmatprep.subr.bf16.mxu0 0
  %5811 = vmatpush1.bf16.msra.mxu0 0
  %5812 = vmatprep.subr.bf16.mxu0 0
  %5813 = vmatpush1.bf16.msra.mxu0 0
  %5814 = vmatprep.subr.bf16.mxu0 0
  %5815 = vmatpush1.bf16.msra.mxu0 0
  %5816 = vmatprep.subr.bf16.mxu0 0
  %5817 = vmatpush1.bf16.msra.mxu0 0
  %5818 = vmatprep.subr.bf16.mxu0 0
  %5819 = vmatpush1.bf16.msra.mxu0 0
  %5820 = vmatprep.subr.bf16.mxu0 0
  %5821 = vmatpush1.bf16.msra.mxu0 0
  %5822 = vmatprep.subr.bf16.mxu0 0
  %5823 = vmatpush1.bf16.msra.mxu0 0
  %5824 = vmatprep.subr.bf16.mxu0 0
  %5825 = vmatpush1.bf16.msra.mxu0 0
  %5826 = vmatprep.subr.bf16.mxu0 0
  %5827 = vmatpush1.bf16.msra.mxu0 0
  %5828 = vmatprep.subr.bf16.mxu0 0
  %5829 = vmatpush1.bf16.msra.mxu0 0
  %5830 = vmatprep.mubr.bf16.mxu0 0
  %5831 = vmatmul.mubr.bf16.gmra.mrb[0].mxu0 %v5793
  %v5832 = vpop.f32.mrb[0].mxu0
  %v5833 = vadd.f32 %v5778, %v5832
  %v5834 = vpop.f32.mrb[0].mxu0
  %v5835 = vpop.f32.mrb[0].mxu0
  %v5836 = vadd.f32 %v5778, %v5835
  %v5837 = vpop.f32.mrb[0].mxu0
  %5838 = vmatprep.mubr.bf16.mxu0 0
  %5839 = vmatmul.mubr.bf16.gmra.mrb[0].mxu0 %v5796
  %v5840 = vpop.f32.mrb[0].mxu0
  %v5841 = vadd.f32 %v5778, %v5840
  %v5842 = vpop.f32.mrb[0].mxu0
  %v5843 = vpop.f32.mrb[0].mxu0
  %v5844 = vpop.f32.mrb[0].mxu0
  %5845 = vdwg.mxu0
  %v5846 = vmul.f32 %v5833, %v5833
  %v5847 = vmul.f32 %v5836, %v5836
  %v5848 = vmul.f32 %v5841, %v5841
  %v5849 = vmul.f32 %v5833, %v5846
  %v5850 = vmul.f32 %v5836, %v5847
  %v5851 = vmul.f32 %v5841, %v5848
  %v5852 = vmul.f32 %v5849, 0.044715
  %v5853 = vmul.f32 %v5850, 0.044715
  %v5854 = vmul.f32 %v5851, 0.044715
  %v5855 = vadd.f32 %v5833, %v5852
  %v5856 = vadd.f32 %v5836, %v5853
  %v5857 = vadd.f32 %v5841, %v5854
  %v5858 = vmul.f32 %v5855, 0.7978846
  %v5859 = vmul.f32 %v5856, 0.7978846
  %v5860 = vmul.f32 %v5857, 0.7978846
  %v5861 = vtanh.pop %v5858
  %v5862 = vtanh.pop %v5859
  %v5863 = vtanh.pop %v5860
  %v5864 = vadd.f32 %v5861, 1.0
  %v5865 = vadd.f32 %v5862, 1.0
  %v5866 = vadd.f32 %v5863, 1.0
  %v5867 = vmul.f32 %v5864, 0.5
  %v5868 = vmul.f32 %v5865, 0.5
  %v5869 = vmul.f32 %v5866, 0.5
  %v5870 = vmul.f32 %v5833, %v5867
  %v5871 = vmul.f32 %v5836, %v5868
  %v5872 = vmul.f32 %v5841, %v5869
  %s5873 = scalar_lea.vmem %s13, 32
  %v5874 = vld [vmem:[%s5873] sm:$0xf]
  %v5875 = vld [vmem:[%s5873 + $0x4] sm:$0xf]
  %v5876 = vld [vmem:[%s5873 + $0x8] sm:$0xf]
  %v5877 = vld [vmem:[%s5873 + $0xc] sm:$0xf]
  %v5878 = vld [vmem:[%s5873 + $0x10] sm:$0xf]
  %v5879 = vld [vmem:[%s5873 + $0x14] sm:$0xf]
  %v5880 = vld [vmem:[%s5873 + $0x18] sm:$0xf]
  %v5881 = vld [vmem:[%s5873 + $0x1c] sm:$0xf]
  %v5882 = vpack.c.bf16 %v5871, %v5870
  %v5883 = vpack.c.bf16 %v5872, %v5872
  %s5884 = scalar_lea.vmem %s14, 1
  %v5885 = vld [vmem:[%s5884] sm:$0x1]
  %v5887 = vlaneseq
  %v5888 = vshrl.u32 %v5887, 7
  %v5889 = vsub.s32 0, %v5888
  %v5890 = vrot.slane %v5885, %v5889
  %v5900 = vunpack.c.l.b16 %v5874
  %v5901 = vunpack.c.l.b16 %v5875
  %v5902 = vunpack.c.l.b16 %v5876
  %v5903 = vunpack.c.l.b16 %v5877
  %v5904 = vunpack.c.l.b16 %v5878
  %v5905 = vunpack.c.l.b16 %v5879
  %v5906 = vunpack.c.l.b16 %v5880
  %v5907 = vunpack.c.l.b16 %v5881
  %v5908 = vpack.c.b16 %v5901, %v5900
  %v5909 = vpack.c.b16 %v5903, %v5902
  %v5910 = vpack.c.b16 %v5905, %v5904
  %v5911 = vpack.c.b16 %v5907, %v5906
  %v5917 = vsel %vm2987, %v5882, 0
  %v5920 = vsel %vm2987, %v5883, 0
  %5922 = vmatprep.subr.bf16.mxu0 0
  %5923 = vmatpush1.bf16.msra.mxu0 %v5908
  %5924 = vmatprep.subr.bf16.mxu0 0
  %5925 = vmatpush1.bf16.msra.mxu0 %v5909
  %5926 = vmatprep.subr.bf16.mxu0 0
  %5927 = vmatpush1.bf16.msra.mxu0 %v5910
  %5928 = vmatprep.subr.bf16.mxu0 0
  %5929 = vmatpush1.bf16.msra.mxu0 %v5911
  %5930 = vmatprep.subr.bf16.mxu0 0
  %5931 = vmatpush1.bf16.msra.mxu0 0
  %5932 = vmatprep.subr.bf16.mxu0 0
  %5933 = vmatpush1.bf16.msra.mxu0 0
  %5934 = vmatprep.subr.bf16.mxu0 0
  %5935 = vmatpush1.bf16.msra.mxu0 0
  %5936 = vmatprep.subr.bf16.mxu0 0
  %5937 = vmatpush1.bf16.msra.mxu0 0
  %5938 = vmatprep.subr.bf16.mxu0 0
  %5939 = vmatpush1.bf16.msra.mxu0 0
  %5940 = vmatprep.subr.bf16.mxu0 0
  %5941 = vmatpush1.bf16.msra.mxu0 0
  %5942 = vmatprep.subr.bf16.mxu0 0
  %5943 = vmatpush1.bf16.msra.mxu0 0
  %5944 = vmatprep.subr.bf16.mxu0 0
  %5945 = vmatpush1.bf16.msra.mxu0 0
  %5946 = vmatprep.subr.bf16.mxu0 0
  %5947 = vmatpush1.bf16.msra.mxu0 0
  %5948 = vmatprep.subr.bf16.mxu0 0
  %5949 = vmatpush1.bf16.msra.mxu0 0
  %5950 = vmatprep.subr.bf16.mxu0 0
  %5951 = vmatpush1.bf16.msra.mxu0 0
  %5952 = vmatprep.subr.bf16.mxu0 0
  %5953 = vmatpush1.bf16.msra.mxu0 0
  %5954 = vmatprep.mubr.bf16.mxu0 0
  %5955 = vmatmul.mubr.bf16.gmra.mrb[0].mxu0 %v5917
  %v5956 = vpop.f32.mrb[0].mxu0
  %v5957 = vadd.f32 %v5890, %v5956
  %v5958 = vpop.f32.mrb[0].mxu0
  %v5959 = vpop.f32.mrb[0].mxu0
  %v5960 = vadd.f32 %v5890, %v5959
  %v5961 = vpop.f32.mrb[0].mxu0
  %5962 = vmatprep.mubr.bf16.mxu0 0
  %5963 = vmatmul.mubr.bf16.gmra.mrb[0].mxu0 %v5920
  %v5964 = vpop.f32.mrb[0].mxu0
  %v5965 = vadd.f32 %v5890, %v5964
  %v5966 = vpop.f32.mrb[0].mxu0
  %v5967 = vpop.f32.mrb[0].mxu0
  %v5968 = vpop.f32.mrb[0].mxu0
  %5969 = vdwg.mxu0
  %v5970 = vadd.f32 %v5762, %v5957
  %v5971 = vadd.f32 %v5763, %v5960
  %v5972 = vadd.f32 %v5764, %v5965
  %s5973 = scalar_lea.vmem %s15, 1
  %v5974 = vld [vmem:[%s5973] sm:$0x1]
  %s5975 = scalar_lea.vmem %s16, 1
  %v5976 = vld [vmem:[%s5975] sm:$0x1]
  %v5977 = vsel %vm204, %v5970, 0.0
  %5978 = vadd.xlane.f32.xlu0 %v5977
  %v5979 = vpop.xlane.xlu0 %5978
  %v5980 = vsel %vm204, %v5971, 0.0
  %5981 = vadd.xlane.f32.xlu0 %v5980
  %v5982 = vpop.xlane.xlu0 %5981
  %v5983 = vsel %vm204, %v5972, 0.0
  %5984 = vadd.xlane.f32.xlu0 %v5983
  %v5985 = vpop.xlane.xlu0 %5984
  %v5986 = vmul.f32 %v5979, %v2791
  %v5987 = vmul.f32 %v5982, %v2791
  %v5988 = vmul.f32 %v5985, %v2791
  %v5989 = vsub.f32 %v5970, %v5986
  %v5990 = vsub.f32 %v5971, %v5987
  %v5991 = vsub.f32 %v5972, %v5988
  %v5992 = vmul.f32 %v5989, %v5989
  %v5993 = vmul.f32 %v5990, %v5990
  %v5994 = vmul.f32 %v5991, %v5991
  %v5995 = vsel %vm204, %v5992, 0.0
  %5996 = vadd.xlane.f32.xlu0 %v5995
  %v5997 = vpop.xlane.xlu0 %5996
  %v5998 = vsel %vm204, %v5993, 0.0
  %5999 = vadd.xlane.f32.xlu0 %v5998
  %v6000 = vpop.xlane.xlu0 %5999
  %v6001 = vsel %vm204, %v5994, 0.0
  %6002 = vadd.xlane.f32.xlu0 %v6001
  %v6003 = vpop.xlane.xlu0 %6002
  %v6004 = vmul.f32 %v5997, %v2791
  %v6005 = vmul.f32 %v6000, %v2791
  %v6006 = vmul.f32 %v6003, %v2791
  %v6007 = vadd.f32 %v6004, 1e-05
  %v6008 = vadd.f32 %v6005, 1e-05
  %v6009 = vadd.f32 %v6006, 1e-05
  %v6010 = vrsqrt.pop %v6007
  %v6011 = vrsqrt.pop %v6008
  %v6012 = vrsqrt.pop %v6009
  %v6013 = vmul.f32 %v5989, %v6010
  %v6014 = vmul.f32 %v5990, %v6011
  %v6015 = vmul.f32 %v5991, %v6012
  %v6017 = vlaneseq
  %v6018 = vshrl.u32 %v6017, 7
  %v6019 = vsub.s32 0, %v6018
  %v6020 = vrot.slane %v5974, %v6019
  %v6022 = vmul.f32 %v6013, %v6020
  %v6023 = vmul.f32 %v6014, %v6020
  %v6024 = vmul.f32 %v6015, %v6020
  %v6026 = vlaneseq
  %v6027 = vshrl.u32 %v6026, 7
  %v6028 = vsub.s32 0, %v6027
  %v6029 = vrot.slane %v5976, %v6028
  %v6031 = vadd.f32 %v6022, %v6029
  %v6032 = vadd.f32 %v6023, %v6029
  %v6033 = vadd.f32 %v6024, %v6029
  %v6034 = vld [vmem:[%s17] sm:$0xf]
  %v6035 = vld [vmem:[%s17 + $0x4] sm:$0xf]
  %v6036 = vld [vmem:[%s17 + $0x8] sm:$0xf]
  %v6037 = vld [vmem:[%s17 + $0xc] sm:$0xf]
  %v6038 = vpack.c.bf16 %v6032, %v6031
  %v6039 = vpack.c.bf16 %v6033, %v6033
  %v6040 = vld [vmem:[%s18] sm:$0x1]
  %v6042 = vlaneseq
  %v6043 = vshrl.u32 %v6042, 7
  %v6044 = vsub.s32 0, %v6043
  %v6045 = vrot.slane %v6040, %v6044
  %v6051 = vunpack.c.l.b16 %v6034
  %v6052 = vunpack.c.l.b16 %v6035
  %v6053 = vunpack.c.l.b16 %v6036
  %v6054 = vunpack.c.l.b16 %v6037
  %v6055 = vpack.c.b16 %v6052, %v6051
  %v6056 = vpack.c.b16 %v6054, %v6053
  %v6060 = vsel %vm204, %v6038, 0
  %v6063 = vsel %vm204, %v6039, 0
  %6065 = vmatprep.subr.bf16.mxu0 0
  %6066 = vmatpush1.bf16.msra.mxu0 %v6055
  %6067 = vmatprep.subr.bf16.mxu0 0
  %6068 = vmatpush1.bf16.msra.mxu0 %v6056
  %6069 = vmatprep.subr.bf16.mxu0 0
  %6070 = vmatpush1.bf16.msra.mxu0 0
  %6071 = vmatprep.subr.bf16.mxu0 0
  %6072 = vmatpush1.bf16.msra.mxu0 0
  %6073 = vmatprep.subr.bf16.mxu0 0
  %6074 = vmatpush1.bf16.msra.mxu0 0
  %6075 = vmatprep.subr.bf16.mxu0 0
  %6076 = vmatpush1.bf16.msra.mxu0 0
  %6077 = vmatprep.subr.bf16.mxu0 0
  %6078 = vmatpush1.bf16.msra.mxu0 0
  %6079 = vmatprep.subr.bf16.mxu0 0
  %6080 = vmatpush1.bf16.msra.mxu0 0
  %6081 = vmatprep.subr.bf16.mxu0 0
  %6082 = vmatpush1.bf16.msra.mxu0 0
  %6083 = vmatprep.subr.bf16.mxu0 0
  %6084 = vmatpush1.bf16.msra.mxu0 0
  %6085 = vmatprep.subr.bf16.mxu0 0
  %6086 = vmatpush1.bf16.msra.mxu0 0
  %6087 = vmatprep.subr.bf16.mxu0 0
  %6088 = vmatpush1.bf16.msra.mxu0 0
  %6089 = vmatprep.subr.bf16.mxu0 0
  %6090 = vmatpush1.bf16.msra.mxu0 0
  %6091 = vmatprep.subr.bf16.mxu0 0
  %6092 = vmatpush1.bf16.msra.mxu0 0
  %6093 = vmatprep.subr.bf16.mxu0 0
  %6094 = vmatpush1.bf16.msra.mxu0 0
  %6095 = vmatprep.subr.bf16.mxu0 0
  %6096 = vmatpush1.bf16.msra.mxu0 0
  %6097 = vmatprep.mubr.bf16.mxu0 0
  %6098 = vmatmul.mubr.bf16.gmra.mrb[0].mxu0 %v6060
  %v6099 = vpop.f32.mrb[0].mxu0
  %v6100 = vadd.f32 %v6045, %v6099
  %v6101 = vpop.f32.mrb[0].mxu0
  %v6102 = vpop.f32.mrb[0].mxu0
  %v6103 = vadd.f32 %v6045, %v6102
  %v6104 = vpop.f32.mrb[0].mxu0
  %6105 = vmatprep.mubr.bf16.mxu0 0
  %6106 = vmatmul.mubr.bf16.gmra.mrb[0].mxu0 %v6063
  %v6107 = vpop.f32.mrb[0].mxu0
  %v6108 = vadd.f32 %v6045, %v6107
  %v6109 = vpop.f32.mrb[0].mxu0
  %v6110 = vpop.f32.mrb[0].mxu0
  %v6111 = vpop.f32.mrb[0].mxu0
  %6112 = vdwg.mxu0
  %6113 = vst.msk [vmem:[%s19] sm:$0xff] %vm204, %v6100
  %6114 = vst.msk [vmem:[%s19 + $0x8] sm:$0xff] %vm204, %v6103
  %6115 = vst.msk [vmem:[%s19 + $0x10] sm:$0xff] %vm204, %v6108
  // Predicated region
  $region78: #{forward.2} parent=0 // pred_check
    _
  $region79: #{forward.2} parent=0 // pred_check_branch
    %6117 = sbr.rel (0) target = $region81
  $region80: #{forward.2} parent=0 // pred_region
    _
  $region81: #{forward.2} parent=0 // pred_fallthru
    _
  // Predicated region
  $region82: #{forward.2} parent=0 // pred_check
    _
  $region83: #{forward.2} parent=0 // pred_check_branch
    %6119 = sbr.rel (0) target = $region85
  $region84: #{forward.2} parent=0 // pred_region
    _
  $region85: #{forward.2} parent=0 // pred_fallthru
    _

// kernel: forward.3
$region0: #{forward.3}
  #allocation0 [shape = 'u32[]', space=smem, size = 0x4, offset = 0x4, fixed_abs, tag = 'smem constant byte address 0x4 - core index']
  #allocation1 [shape = 'u32[144,128]{1,0:T(1,128)}', space=vmem, size = 0x12000, scoped, tag = 'internal scratch']
  #allocation2 [shape = 'f32[1,1]{1,0:T(1,128)S(1)}', space=vmem, size = 0x200, scoped, tag = 'scoped memory for forward.3']
  %s0 = inlined_call_operand.vmem [shape: f32[24,16], index: 0, kind: input, shape index: {}]
  %s1 = inlined_call_operand.vmem [shape: f32[24,16], index: 1, kind: input, shape index: {}]
  %s2 = inlined_call_operand.vmem [shape: f32[24,1], index: 2, kind: input, shape index: {}]
  %s3 = inlined_call_operand.vmem [shape: f32[24,1], index: 3, kind: input, shape index: {}]
  %s4 = inlined_call_operand.vmem [shape: f32[24,32], index: 4, kind: input, shape index: {}]
  %s5 = inlined_call_operand.vmem [shape: f32[24,32], index: 5, kind: input, shape index: {}]
  %s6 = inlined_call_operand.vmem [shape: bf16[16,160], index: 6, kind: input, shape index: {}]
  %s7 = inlined_call_operand.vmem [shape: f32[1,160], index: 7, kind: input, shape index: {}]
  %s8 = inlined_call_operand.vmem [shape: bf16[32,64], index: 8, kind: input, shape index: {}]
  %s9 = inlined_call_operand.vmem [shape: f32[1,64], index: 9, kind: input, shape index: {}]
  %s10 = inlined_call_operand.vmem [shape: bf16[64,64], index: 10, kind: input, shape index: {}]
  %s11 = inlined_call_operand.vmem [shape: f32[1,64], index: 11, kind: input, shape index: {}]
  %s12 = inlined_call_operand.vmem [shape: bf16[32,8], index: 12, kind: input, shape index: {}]
  %s13 = inlined_call_operand.vmem [shape: f32[1,8], index: 13, kind: input, shape index: {}]
  %s14 = inlined_call_operand.vmem [shape: bf16[8,16], index: 14, kind: input, shape index: {}]
  %s15 = inlined_call_operand.vmem [shape: f32[1,16], index: 15, kind: input, shape index: {}]
  %s16 = inlined_call_operand.vmem [shape: bf16[3,2,160,160], index: 16, kind: input, shape index: {}]
  %s17 = inlined_call_operand.vmem [shape: bf16[3,2,64,160], index: 17, kind: input, shape index: {}]
  %s18 = inlined_call_operand.vmem [shape: bf16[3,2,16,160], index: 18, kind: input, shape index: {}]
  %s19 = inlined_call_operand.vmem [shape: f32[3,2,1,160], index: 19, kind: input, shape index: {}]
  %s20 = inlined_call_operand.vmem [shape: bf16[3,2,160,160], index: 20, kind: input, shape index: {}]
  %s21 = inlined_call_operand.vmem [shape: f32[3,2,1,160], index: 21, kind: input, shape index: {}]
  %s22 = inlined_call_operand.vmem [shape: bf16[160,144], index: 22, kind: input, shape index: {}]
  %s23 = inlined_call_operand.vmem [shape: f32[1,144], index: 23, kind: input, shape index: {}]
  %s24 = inlined_call_operand.vmem [shape: bf16[144,16], index: 24, kind: input, shape index: {}]
  %s25 = inlined_call_operand.<no memory space> [shape: f32[1,1], index: 25, kind: input, shape index: {}]
  %s26 = inlined_call_operand.hbm [shape: f32[1,1], index: 26, kind: output, shape index: {}]
  %s27 = sld [smem:[#allocation0]]
  $region114: #{forward.3} parent=0
    _
  %s29 = ssub.s32 1, %s27
  %s30 = scalar_select 0, %s29, %s27
  %v31 = vstv %s25
  %32 = vst [vmem:[#allocation2] sm:$0x1] %v31
  $region1: #{forward.3} parent=0
    #allocation3 [shape = 'u8[512]{0}', space=vmem, size = 0x400, scoped, tag = 'output window, operand 0, single buffered']
    #allocation4 [shape = 's32[1]{0}', space=sflag, size = 0x4, scoped, tag = 'scoped memory for forward.3']
    %33 = vsyncpa [#allocation4], 0
    // Predicated region
    $region2: #{forward.3} parent=1 // pred_check
      _
    $region3: #{forward.3} parent=1 // pred_check_branch
      %35 = sbr.rel (0) target = $region5
    $region4: #{forward.3} parent=1 // pred_region
      _
    $region5: #{forward.3} parent=1 // pred_fallthru
      _
    // Predicated region
    $region6: #{forward.3} parent=1 // pred_check
      _
    $region7: #{forward.3} parent=1 // pred_check_branch
      %37 = sbr.rel (0) target = $region9
    $region8: #{forward.3} parent=1 // pred_region
      _
    $region9: #{forward.3} parent=1 // pred_fallthru
      _
    // Predicated region
    $region10: #{forward.3} parent=1 // pred_check
      _
    $region11: #{forward.3} parent=1 // pred_check_branch
      %39 = sbr.rel (0) target = $region13
    $region12: #{forward.3} parent=1 // pred_region
      _
    $region13: #{forward.3} parent=1 // pred_fallthru
      _
    // Predicated region
    $region14: #{forward.3} parent=1 // pred_check
      _
    $region15: #{forward.3} parent=1 // pred_check_branch
      %41 = sbr.rel (0) target = $region17
    $region16: #{forward.3} parent=1 // pred_region
      _
    $region17: #{forward.3} parent=1 // pred_fallthru
      _
    // Predicated region
    $region18: #{forward.3} parent=1 // pred_check
      _
    $region19: #{forward.3} parent=1 // pred_check_branch
      %43 = sbr.rel (0) target = $region21
    $region20: #{forward.3} parent=1 // pred_region
      _
    $region21: #{forward.3} parent=1 // pred_fallthru
      _
    // Predicated region
    $region22: #{forward.3} parent=1 // pred_check
      _
    $region23: #{forward.3} parent=1 // pred_check_branch
      %45 = sbr.rel (0) target = $region25
    $region24: #{forward.3} parent=1 // pred_region
      _
    $region25: #{forward.3} parent=1 // pred_fallthru
      _
    // Predicated region
    $region26: #{forward.3} parent=1 // pred_check
      _
    $region27: #{forward.3} parent=1 // pred_check_branch
      %47 = sbr.rel (0) target = $region29
    $region28: #{forward.3} parent=1 // pred_region
      _
    $region29: #{forward.3} parent=1 // pred_fallthru
      _
    // Predicated region
    $region30: #{forward.3} parent=1 // pred_check
      _
    $region31: #{forward.3} parent=1 // pred_check_branch
      %49 = sbr.rel (0) target = $region33
    $region32: #{forward.3} parent=1 // pred_region
      _
    $region33: #{forward.3} parent=1 // pred_fallthru
      _
    // Predicated region
    $region34: #{forward.3} parent=1 // pred_check
      _
    $region35: #{forward.3} parent=1 // pred_check_branch
      %51 = sbr.rel (0) target = $region37
    $region36: #{forward.3} parent=1 // pred_region
      _
    $region37: #{forward.3} parent=1 // pred_fallthru
      _
    // Predicated region
    $region38: #{forward.3} parent=1 // pred_check
      _
    $region39: #{forward.3} parent=1 // pred_check_branch
      %53 = sbr.rel (0) target = $region41
    $region40: #{forward.3} parent=1 // pred_region
      _
    $region41: #{forward.3} parent=1 // pred_fallthru
      _
    // Predicated region
    $region42: #{forward.3} parent=1 // pred_check
      _
    $region43: #{forward.3} parent=1 // pred_check_branch
      %55 = sbr.rel (0) target = $region45
    $region44: #{forward.3} parent=1 // pred_region
      _
    $region45: #{forward.3} parent=1 // pred_fallthru
      _
    // Predicated region
    $region46: #{forward.3} parent=1 // pred_check
      _
    $region47: #{forward.3} parent=1 // pred_check_branch
      %57 = sbr.rel (0) target = $region49
    $region48: #{forward.3} parent=1 // pred_region
      _
    $region49: #{forward.3} parent=1 // pred_fallthru
      _
    // Predicated region
    $region50: #{forward.3} parent=1 // pred_check
      _
    $region51: #{forward.3} parent=1 // pred_check_branch
      %59 = sbr.rel (0) target = $region53
    $region52: #{forward.3} parent=1 // pred_region
      _
    $region53: #{forward.3} parent=1 // pred_fallthru
      _
    // Predicated region
    $region54: #{forward.3} parent=1 // pred_check
      _
    $region55: #{forward.3} parent=1 // pred_check_branch
      %61 = sbr.rel (0) target = $region57
    $region56: #{forward.3} parent=1 // pred_region
      _
    $region57: #{forward.3} parent=1 // pred_fallthru
      _
    // Predicated region
    $region58: #{forward.3} parent=1 // pred_check
      _
    $region59: #{forward.3} parent=1 // pred_check_branch
      %63 = sbr.rel (0) target = $region61
    $region60: #{forward.3} parent=1 // pred_region
      _
    $region61: #{forward.3} parent=1 // pred_fallthru
      _
    // Predicated region
    $region62: #{forward.3} parent=1 // pred_check
      _
    $region63: #{forward.3} parent=1 // pred_check_branch
      %65 = sbr.rel (0) target = $region65
    $region64: #{forward.3} parent=1 // pred_region
      _
    $region65: #{forward.3} parent=1 // pred_fallthru
      _
    // Predicated region
    $region66: #{forward.3} parent=1 // pred_check
      _
    $region67: #{forward.3} parent=1 // pred_check_branch
      %67 = sbr.rel (0) target = $region69
    $region68: #{forward.3} parent=1 // pred_region
      _
    $region69: #{forward.3} parent=1 // pred_fallthru
      _
    // Predicated region
    $region70: #{forward.3} parent=1 // pred_check
      _
    $region71: #{forward.3} parent=1 // pred_check_branch
      %69 = sbr.rel (0) target = $region73
    $region72: #{forward.3} parent=1 // pred_region
      _
    $region73: #{forward.3} parent=1 // pred_fallthru
      _
    // Predicated region
    $region74: #{forward.3} parent=1 // pred_check
      _
    $region75: #{forward.3} parent=1 // pred_check_branch
      %71 = sbr.rel (0) target = $region77
    $region76: #{forward.3} parent=1 // pred_region
      _
    $region77: #{forward.3} parent=1 // pred_fallthru
      _
    // Predicated region
    $region78: #{forward.3} parent=1 // pred_check
      _
    $region79: #{forward.3} parent=1 // pred_check_branch
      %73 = sbr.rel (0) target = $region81
    $region80: #{forward.3} parent=1 // pred_region
      _
    $region81: #{forward.3} parent=1 // pred_fallthru
      _
    // Predicated region
    $region82: #{forward.3} parent=1 // pred_check
      _
    $region83: #{forward.3} parent=1 // pred_check_branch
      %75 = sbr.rel (0) target = $region85
    $region84: #{forward.3} parent=1 // pred_region
      _
    $region85: #{forward.3} parent=1 // pred_fallthru
      _
    // Predicated region
    $region86: #{forward.3} parent=1 // pred_check
      _
    $region87: #{forward.3} parent=1 // pred_check_branch
      %77 = sbr.rel (0) target = $region89
    $region88: #{forward.3} parent=1 // pred_region
      _
    $region89: #{forward.3} parent=1 // pred_fallthru
      _
    // Predicated region
    $region90: #{forward.3} parent=1 // pred_check
      _
    $region91: #{forward.3} parent=1 // pred_check_branch
      %79 = sbr.rel (0) target = $region93
    $region92: #{forward.3} parent=1 // pred_region
      _
    $region93: #{forward.3} parent=1 // pred_fallthru
      _
    // Predicated region
    $region94: #{forward.3} parent=1 // pred_check
      _
    $region95: #{forward.3} parent=1 // pred_check_branch
      %81 = sbr.rel (0) target = $region97
    $region96: #{forward.3} parent=1 // pred_region
      _
    $region97: #{forward.3} parent=1 // pred_fallthru
      _
    // Predicated region
    $region98: #{forward.3} parent=1 // pred_check
      _
    $region99: #{forward.3} parent=1 // pred_check_branch
      %83 = sbr.rel (0) target = $region101
    $region100: #{forward.3} parent=1 // pred_region
      _
    $region101: #{forward.3} parent=1 // pred_fallthru
      _
    // Predicated region
    $region102: #{forward.3} parent=1 // pred_check
      _
    $region103: #{forward.3} parent=1 // pred_check_branch
      %85 = sbr.rel (0) target = $region105
    $region104: #{forward.3} parent=1 // pred_region
      _
    $region105: #{forward.3} parent=1 // pred_fallthru
      _
    %v87 = vld [vmem:[%s1] sm:$0xff]
    %v88 = vld [vmem:[%s1 + $0x8] sm:$0xff]
    %v89 = vld [vmem:[%s1 + $0x10] sm:$0xff]
    %v90 = vld [vmem:[%s2] sm:$0xff]
    %v91 = vld [vmem:[%s2 + $0x8] sm:$0xff]
    %v92 = vld [vmem:[%s2 + $0x10] sm:$0xff]
    %v93 = vld [vmem:[%s0] sm:$0xff]
    %v94 = vld [vmem:[%s0 + $0x8] sm:$0xff]
    %v95 = vld [vmem:[%s0 + $0x10] sm:$0xff]
    %97 = vset.pattern.permute.xlu0 0
    %98 = vperm.xlu0 %97, %v90
    %v99 = vpop.permute.xlu0 %98
    %102 = vset.pattern.permute.xlu0 0
    %103 = vperm.xlu0 %102, %v91
    %v104 = vpop.permute.xlu0 %103
    %107 = vset.pattern.permute.xlu0 0
    %108 = vperm.xlu0 %107, %v92
    %v109 = vpop.permute.xlu0 %108
    %v111 = vmul.f32 %v99, %v93
    %v112 = vmul.f32 %v104, %v94
    %v113 = vmul.f32 %v109, %v95
    %v114 = vld [vmem:[%s3] sm:$0xff]
    %v115 = vld [vmem:[%s3 + $0x8] sm:$0xff]
    %v116 = vld [vmem:[%s3 + $0x10] sm:$0xff]
    %118 = vset.pattern.permute.xlu0 0
    %119 = vperm.xlu0 %118, %v114
    %v120 = vpop.permute.xlu0 %119
    %123 = vset.pattern.permute.xlu0 0
    %124 = vperm.xlu0 %123, %v115
    %v125 = vpop.permute.xlu0 %124
    %128 = vset.pattern.permute.xlu0 0
    %129 = vperm.xlu0 %128, %v116
    %v130 = vpop.permute.xlu0 %129
    %v132 = vmul.f32 %v120, %v87
    %v133 = vmul.f32 %v125, %v88
    %v134 = vmul.f32 %v130, %v89
    %v135 = vadd.f32 %v111, %v132
    %v136 = vadd.f32 %v112, %v133
    %v137 = vadd.f32 %v113, %v134
    %v138 = vld [vmem:[%s4] sm:$0xff]
    %v139 = vld [vmem:[%s4 + $0x8] sm:$0xff]
    %v140 = vld [vmem:[%s4 + $0x10] sm:$0xff]
    %v141 = vld [vmem:[%s8] sm:$0xf]
    %v142 = vld [vmem:[%s8 + $0x4] sm:$0xf]
    %v143 = vld [vmem:[%s8 + $0x8] sm:$0xf]
    %v144 = vld [vmem:[%s8 + $0xc] sm:$0xf]
    %v145 = vpack.c.bf16 %v139, %v138
    %v146 = vpack.c.bf16 %v140, %v140
    %v147 = vld [vmem:[%s9] sm:$0x1]
    %v149 = vlaneseq
    %v150 = vshrl.u32 %v149, 7
    %v151 = vsub.s32 0, %v150
    %v152 = vrot.slane %v147, %v151
    %v158 = vunpack.c.l.b16 %v141
    %v159 = vunpack.c.l.b16 %v142
    %v160 = vunpack.c.l.b16 %v143
    %v161 = vunpack.c.l.b16 %v144
    %v162 = vpack.c.b16 %v159, %v158
    %v163 = vpack.c.b16 %v161, %v160
    %vm166 = vcmask 261120
    %v168 = vsel %vm166, %v145, 0
    %v171 = vsel %vm166, %v146, 0
    %173 = vmatprep.subr.bf16.mxu0 0
    %174 = vmatpush1.bf16.msra.mxu0 %v162
    %175 = vmatprep.subr.bf16.mxu0 0
    %176 = vmatpush1.bf16.msra.mxu0 %v163
    %177 = vmatprep.subr.bf16.mxu0 0
    %178 = vmatpush1.bf16.msra.mxu0 0
    %179 = vmatprep.subr.bf16.mxu0 0
    %180 = vmatpush1.bf16.msra.mxu0 0
    %181 = vmatprep.subr.bf16.mxu0 0
    %182 = vmatpush1.bf16.msra.mxu0 0
    %183 = vmatprep.subr.bf16.mxu0 0
    %184 = vmatpush1.bf16.msra.mxu0 0
    %185 = vmatprep.subr.bf16.mxu0 0
    %186 = vmatpush1.bf16.msra.mxu0 0
    %187 = vmatprep.subr.bf16.mxu0 0
    %188 = vmatpush1.bf16.msra.mxu0 0
    %189 = vmatprep.subr.bf16.mxu0 0
    %190 = vmatpush1.bf16.msra.mxu0 0
    %191 = vmatprep.subr.bf16.mxu0 0
    %192 = vmatpush1.bf16.msra.mxu0 0
    %193 = vmatprep.subr.bf16.mxu0 0
    %194 = vmatpush1.bf16.msra.mxu0 0
    %195 = vmatprep.subr.bf16.mxu0 0
    %196 = vmatpush1.bf16.msra.mxu0 0
    %197 = vmatprep.subr.bf16.mxu0 0
    %198 = vmatpush1.bf16.msra.mxu0 0
    %199 = vmatprep.subr.bf16.mxu0 0
    %200 = vmatpush1.bf16.msra.mxu0 0
    %201 = vmatprep.subr.bf16.mxu0 0
    %202 = vmatpush1.bf16.msra.mxu0 0
    %203 = vmatprep.subr.bf16.mxu0 0
    %204 = vmatpush1.bf16.msra.mxu0 0
    %205 = vmatprep.mubr.bf16.mxu0 0
    %206 = vmatmul.mubr.bf16.gmra.mrb[0].mxu0 %v168
    %v207 = vpop.f32.mrb[0].mxu0
    %v208 = vadd.f32 %v152, %v207
    %v209 = vpop.f32.mrb[0].mxu0
    %v210 = vpop.f32.mrb[0].mxu0
    %v211 = vadd.f32 %v152, %v210
    %v212 = vpop.f32.mrb[0].mxu0
    %213 = vmatprep.mubr.bf16.mxu0 0
    %214 = vmatmul.mubr.bf16.gmra.mrb[0].mxu0 %v171
    %v215 = vpop.f32.mrb[0].mxu0
    %v216 = vadd.f32 %v152, %v215
    %v217 = vpop.f32.mrb[0].mxu0
    %v218 = vpop.f32.mrb[0].mxu0
    %v219 = vpop.f32.mrb[0].mxu0
    %220 = vdwg.mxu0
    %v221 = vxor.u32 %v208, 2147483648
    %v222 = vxor.u32 %v211, 2147483648
    %v223 = vxor.u32 %v216, 2147483648
    %v224 = vmul.f32 %v221, 1.442695
    %v225 = vpow.pop %v224
    %v226 = vmul.f32 %v222, 1.442695
    %v227 = vpow.pop %v226
    %v228 = vmul.f32 %v223, 1.442695
    %v229 = vpow.pop %v228
    %v230 = vadd.f32 %v225, 1.0
    %v231 = vadd.f32 %v227, 1.0
    %v232 = vadd.f32 %v229, 1.0
    %v233 = vrcp.pop %v230
    %v234 = vmul.f32 1.0, %v233
    %v235 = vrcp.pop %v231
    %v236 = vmul.f32 1.0, %v235
    %v237 = vrcp.pop %v232
    %v238 = vmul.f32 1.0, %v237
    %v239 = vmul.f32 %v208, %v234
    %v240 = vmul.f32 %v211, %v236
    %v241 = vmul.f32 %v216, %v238
    %v242 = vld [vmem:[%s10] sm:$0xf]
    %v243 = vld [vmem:[%s10 + $0x4] sm:$0xf]
    %v244 = vld [vmem:[%s10 + $0x8] sm:$0xf]
    %v245 = vld [vmem:[%s10 + $0xc] sm:$0xf]
    %v246 = vld [vmem:[%s10 + $0x10] sm:$0xf]
    %v247 = vld [vmem:[%s10 + $0x14] sm:$0xf]
    %v248 = vld [vmem:[%s10 + $0x18] sm:$0xf]
    %v249 = vld [vmem:[%s10 + $0x1c] sm:$0xf]
    %v250 = vpack.c.bf16 %v240, %v239
    %v251 = vpack.c.bf16 %v241, %v241
    %v252 = vld [vmem:[%s11] sm:$0x1]
    %v254 = vlaneseq
    %v255 = vshrl.u32 %v254, 7
    %v256 = vsub.s32 0, %v255
    %v257 = vrot.slane %v252, %v256
    %v267 = vunpack.c.l.b16 %v242
    %v268 = vunpack.c.l.b16 %v243
    %v269 = vunpack.c.l.b16 %v244
    %v270 = vunpack.c.l.b16 %v245
    %v271 = vunpack.c.l.b16 %v246
    %v272 = vunpack.c.l.b16 %v247
    %v273 = vunpack.c.l.b16 %v248
    %v274 = vunpack.c.l.b16 %v249
    %v275 = vpack.c.b16 %v268, %v267
    %v276 = vpack.c.b16 %v270, %v269
    %v277 = vpack.c.b16 %v272, %v271
    %v278 = vpack.c.b16 %v274, %v273
    %vm283 = vcmask 523264
    %v285 = vsel %vm283, %v250, 0
    %v288 = vsel %vm283, %v251, 0
    %290 = vmatprep.subr.bf16.mxu0 0
    %291 = vmatpush1.bf16.msra.mxu0 %v275
    %292 = vmatprep.subr.bf16.mxu0 0
    %293 = vmatpush1.bf16.msra.mxu0 %v276
    %294 = vmatprep.subr.bf16.mxu0 0
    %295 = vmatpush1.bf16.msra.mxu0 %v277
    %296 = vmatprep.subr.bf16.mxu0 0
    %297 = vmatpush1.bf16.msra.mxu0 %v278
    %298 = vmatprep.subr.bf16.mxu0 0
    %299 = vmatpush1.bf16.msra.mxu0 0
    %300 = vmatprep.subr.bf16.mxu0 0
    %301 = vmatpush1.bf16.msra.mxu0 0
    %302 = vmatprep.subr.bf16.mxu0 0
    %303 = vmatpush1.bf16.msra.mxu0 0
    %304 = vmatprep.subr.bf16.mxu0 0
    %305 = vmatpush1.bf16.msra.mxu0 0
    %306 = vmatprep.subr.bf16.mxu0 0
    %307 = vmatpush1.bf16.msra.mxu0 0
    %308 = vmatprep.subr.bf16.mxu0 0
    %309 = vmatpush1.bf16.msra.mxu0 0
    %310 = vmatprep.subr.bf16.mxu0 0
    %311 = vmatpush1.bf16.msra.mxu0 0
    %312 = vmatprep.subr.bf16.mxu0 0
    %313 = vmatpush1.bf16.msra.mxu0 0
    %314 = vmatprep.subr.bf16.mxu0 0
    %315 = vmatpush1.bf16.msra.mxu0 0
    %316 = vmatprep.subr.bf16.mxu0 0
    %317 = vmatpush1.bf16.msra.mxu0 0
    %318 = vmatprep.subr.bf16.mxu0 0
    %319 = vmatpush1.bf16.msra.mxu0 0
    %320 = vmatprep.subr.bf16.mxu0 0
    %321 = vmatpush1.bf16.msra.mxu0 0
    %322 = vmatprep.mubr.bf16.mxu0 0
    %323 = vmatmul.mubr.bf16.gmra.mrb[0].mxu0 %v285
    %v324 = vpop.f32.mrb[0].mxu0
    %v325 = vadd.f32 %v257, %v324
    %v326 = vpop.f32.mrb[0].mxu0
    %v327 = vpop.f32.mrb[0].mxu0
    %v328 = vadd.f32 %v257, %v327
    %v329 = vpop.f32.mrb[0].mxu0
    %330 = vmatprep.mubr.bf16.mxu0 0
    %331 = vmatmul.mubr.bf16.gmra.mrb[0].mxu0 %v288
    %v332 = vpop.f32.mrb[0].mxu0
    %v333 = vadd.f32 %v257, %v332
    %v334 = vpop.f32.mrb[0].mxu0
    %v335 = vpop.f32.mrb[0].mxu0
    %v336 = vpop.f32.mrb[0].mxu0
    %337 = vdwg.mxu0
    %v338 = vxor.u32 %v325, 2147483648
    %v339 = vxor.u32 %v328, 2147483648
    %v340 = vxor.u32 %v333, 2147483648
    %v341 = vmul.f32 %v338, 1.442695
    %v342 = vpow.pop %v341
    %v343 = vmul.f32 %v339, 1.442695
    %v344 = vpow.pop %v343
    %v345 = vmul.f32 %v340, 1.442695
    %v346 = vpow.pop %v345
    %v347 = vadd.f32 %v342, 1.0
    %v348 = vadd.f32 %v344, 1.0
    %v349 = vadd.f32 %v346, 1.0
    %v350 = vrcp.pop %v347
    %v351 = vmul.f32 1.0, %v350
    %v352 = vrcp.pop %v348
    %v353 = vmul.f32 1.0, %v352
    %v354 = vrcp.pop %v349
    %v355 = vmul.f32 1.0, %v354
    %v356 = vmul.f32 %v325, %v351
    %v357 = vmul.f32 %v328, %v353
    %v358 = vmul.f32 %v333, %v355
    %v359 = vld [vmem:[%s5] sm:$0xff]
    %v360 = vld [vmem:[%s5 + $0x8] sm:$0xff]
    %v361 = vld [vmem:[%s5 + $0x10] sm:$0xff]
    %v362 = vld [vmem:[%s12] sm:$0xf]
    %v363 = vld [vmem:[%s12 + $0x4] sm:$0xf]
    %v364 = vld [vmem:[%s12 + $0x8] sm:$0xf]
    %v365 = vld [vmem:[%s12 + $0xc] sm:$0xf]
    %v366 = vpack.c.bf16 %v360, %v359
    %v367 = vpack.c.bf16 %v361, %v361
    %v368 = vld [vmem:[%s13] sm:$0x1]
    %v370 = vlaneseq
    %v371 = vshrl.u32 %v370, 7
    %v372 = vsub.s32 0, %v371
    %v373 = vrot.slane %v368, %v372
    %v379 = vunpack.c.l.b16 %v362
    %v380 = vunpack.c.l.b16 %v363
    %v381 = vunpack.c.l.b16 %v364
    %v382 = vunpack.c.l.b16 %v365
    %v383 = vpack.c.b16 %v380, %v379
    %v384 = vpack.c.b16 %v382, %v381
    %v388 = vsel %vm166, %v366, 0
    %v391 = vsel %vm166, %v367, 0
    %393 = vmatprep.subr.bf16.mxu0 0
    %394 = vmatpush1.bf16.msra.mxu0 %v383
    %395 = vmatprep.subr.bf16.mxu0 0
    %396 = vmatpush1.bf16.msra.mxu0 %v384
    %397 = vmatprep.subr.bf16.mxu0 0
    %398 = vmatpush1.bf16.msra.mxu0 0
    %399 = vmatprep.subr.bf16.mxu0 0
    %400 = vmatpush1.bf16.msra.mxu0 0
    %401 = vmatprep.subr.bf16.mxu0 0
    %402 = vmatpush1.bf16.msra.mxu0 0
    %403 = vmatprep.subr.bf16.mxu0 0
    %404 = vmatpush1.bf16.msra.mxu0 0
    %405 = vmatprep.subr.bf16.mxu0 0
    %406 = vmatpush1.bf16.msra.mxu0 0
    %407 = vmatprep.subr.bf16.mxu0 0
    %408 = vmatpush1.bf16.msra.mxu0 0
    %409 = vmatprep.subr.bf16.mxu0 0
    %410 = vmatpush1.bf16.msra.mxu0 0
    %411 = vmatprep.subr.bf16.mxu0 0
    %412 = vmatpush1.bf16.msra.mxu0 0
    %413 = vmatprep.subr.bf16.mxu0 0
    %414 = vmatpush1.bf16.msra.mxu0 0
    %415 = vmatprep.subr.bf16.mxu0 0
    %416 = vmatpush1.bf16.msra.mxu0 0
    %417 = vmatprep.subr.bf16.mxu0 0
    %418 = vmatpush1.bf16.msra.mxu0 0
    %419 = vmatprep.subr.bf16.mxu0 0
    %420 = vmatpush1.bf16.msra.mxu0 0
    %421 = vmatprep.subr.bf16.mxu0 0
    %422 = vmatpush1.bf16.msra.mxu0 0
    %423 = vmatprep.subr.bf16.mxu0 0
    %424 = vmatpush1.bf16.msra.mxu0 0
    %425 = vmatprep.mubr.bf16.mxu0 0
    %426 = vmatmul.mubr.bf16.gmra.mrb[0].mxu0 %v388
    %v427 = vpop.f32.mrb[0].mxu0
    %v428 = vadd.f32 %v373, %v427
    %v429 = vpop.f32.mrb[0].mxu0
    %v430 = vpop.f32.mrb[0].mxu0
    %v431 = vadd.f32 %v373, %v430
    %v432 = vpop.f32.mrb[0].mxu0
    %433 = vmatprep.mubr.bf16.mxu0 0
    %434 = vmatmul.mubr.bf16.gmra.mrb[0].mxu0 %v391
    %v435 = vpop.f32.mrb[0].mxu0
    %v436 = vadd.f32 %v373, %v435
    %v437 = vpop.f32.mrb[0].mxu0
    %v438 = vpop.f32.mrb[0].mxu0
    %v439 = vpop.f32.mrb[0].mxu0
    %440 = vdwg.mxu0
    %vm441 = vcmp.ge.f32.partialorder %v428, 0.0
    %vm442 = vcmp.ge.f32.partialorder %v431, 0.0
    %vm443 = vcmp.ge.f32.partialorder %v436, 0.0
    %v444 = vmul.f32 %v428, 0.4
    %v445 = vmul.f32 %v431, 0.4
    %v446 = vmul.f32 %v436, 0.4
    %v447 = vsel %vm441, %v428, %v444
    %v448 = vsel %vm442, %v431, %v445
    %v449 = vsel %vm443, %v436, %v446
    %v450 = vld [vmem:[%s14] sm:$0xf]
    %v451 = vpack.c.bf16 %v448, %v447
    %v452 = vpack.c.bf16 %v449, %v449
    %v453 = vld [vmem:[%s15] sm:$0x1]
    %v455 = vlaneseq
    %v456 = vshrl.u32 %v455, 7
    %v457 = vsub.s32 0, %v456
    %v458 = vrot.slane %v453, %v457
    %vm460 = vcmask 64512
    %v462 = vsel %vm460, %v451, 0
    %v465 = vsel %vm460, %v452, 0
    %vm467 = vcmask 1043456
    %v469 = vsel %vm467, %v450, 0
    %471 = vmatprep.subr.bf16.mxu0 0
    %472 = vmatpush1.bf16.msra.mxu0 %v469
    %473 = vmatprep.subr.bf16.mxu0 0
    %474 = vmatpush1.bf16.msra.mxu0 0
    %475 = vmatprep.subr.bf16.mxu0 0
    %476 = vmatpush1.bf16.msra.mxu0 0
    %477 = vmatprep.subr.bf16.mxu0 0
    %478 = vmatpush1.bf16.msra.mxu0 0
    %479 = vmatprep.subr.bf16.mxu0 0
    %480 = vmatpush1.bf16.msra.mxu0 0
    %481 = vmatprep.subr.bf16.mxu0 0
    %482 = vmatpush1.bf16.msra.mxu0 0
    %483 = vmatprep.subr.bf16.mxu0 0
    %484 = vmatpush1.bf16.msra.mxu0 0
    %485 = vmatprep.subr.bf16.mxu0 0
    %486 = vmatpush1.bf16.msra.mxu0 0
    %487 = vmatprep.subr.bf16.mxu0 0
    %488 = vmatpush1.bf16.msra.mxu0 0
    %489 = vmatprep.subr.bf16.mxu0 0
    %490 = vmatpush1.bf16.msra.mxu0 0
    %491 = vmatprep.subr.bf16.mxu0 0
    %492 = vmatpush1.bf16.msra.mxu0 0
    %493 = vmatprep.subr.bf16.mxu0 0
    %494 = vmatpush1.bf16.msra.mxu0 0
    %495 = vmatprep.subr.bf16.mxu0 0
    %496 = vmatpush1.bf16.msra.mxu0 0
    %497 = vmatprep.subr.bf16.mxu0 0
    %498 = vmatpush1.bf16.msra.mxu0 0
    %499 = vmatprep.subr.bf16.mxu0 0
    %500 = vmatpush1.bf16.msra.mxu0 0
    %501 = vmatprep.subr.bf16.mxu0 0
    %502 = vmatpush1.bf16.msra.mxu0 0
    %503 = vmatprep.mubr.bf16.mxu0 0
    %504 = vmatmul.mubr.bf16.gmra.mrb[0].mxu0 %v462
    %v505 = vpop.f32.mrb[0].mxu0
    %v506 = vadd.f32 %v458, %v505
    %v507 = vpop.f32.mrb[0].mxu0
    %v508 = vpop.f32.mrb[0].mxu0
    %v509 = vadd.f32 %v458, %v508
    %v510 = vpop.f32.mrb[0].mxu0
    %511 = vmatprep.mubr.bf16.mxu0 0
    %512 = vmatmul.mubr.bf16.gmra.mrb[0].mxu0 %v465
    %v513 = vpop.f32.mrb[0].mxu0
    %v514 = vadd.f32 %v458, %v513
    %v515 = vpop.f32.mrb[0].mxu0
    %v516 = vpop.f32.mrb[0].mxu0
    %v517 = vpop.f32.mrb[0].mxu0
    %518 = vdwg.mxu0
    %vm519 = vcmp.ge.f32.partialorder %v506, 0.0
    %vm520 = vcmp.ge.f32.partialorder %v509, 0.0
    %vm521 = vcmp.ge.f32.partialorder %v514, 0.0
    %v522 = vmul.f32 %v506, 0.4
    %v523 = vmul.f32 %v509, 0.4
    %v524 = vmul.f32 %v514, 0.4
    %v525 = vsel %vm519, %v506, %v522
    %v526 = vsel %vm520, %v509, %v523
    %v527 = vsel %vm521, %v514, %v524
    %v528 = vld [vmem:[%s6] sm:$0xff]
    %v529 = vld [vmem:[%s6 + $0x8] sm:$0xff]
    %v530 = vpack.c.bf16 %v136, %v135
    %v531 = vpack.c.bf16 %v137, %v137
    %v532 = vld [vmem:[%s7] sm:$0x3]
    %v534 = vlaneseq
    %v535 = vshrl.u32 %v534, 7
    %v536 = vsub.s32 0, %v535
    %v537 = vrot.slane %v532, %v536
    %v538 = vlaneseq
    %v539 = vshrl.u32 %v538, 7
    %v540 = vsub.s32 1, %v539
    %v541 = vrot.slane %v532, %v540
    %v546 = vunpack.c.l.b16 %v528
    %v547 = vunpack.c.h.b16 %v528
    %v548 = vunpack.c.l.b16 %v529
    %v549 = vunpack.c.h.b16 %v529
    %v550 = vpack.c.b16 %v548, %v546
    %v551 = vpack.c.b16 %v549, %v547
    %vm554 = vcmask 130048
    %v556 = vsel %vm554, %v530, 0
    %v559 = vsel %vm554, %v531, 0
    %561 = vmatprep.subr.bf16.mxu0 %v551
    %562 = vmatpush1.bf16.msra.mxu0 %v550
    %563 = vmatprep.subr.bf16.mxu0 0
    %564 = vmatpush1.bf16.msra.mxu0 0
    %565 = vmatprep.subr.bf16.mxu0 0
    %566 = vmatpush1.bf16.msra.mxu0 0
    %567 = vmatprep.subr.bf16.mxu0 0
    %568 = vmatpush1.bf16.msra.mxu0 0
    %569 = vmatprep.subr.bf16.mxu0 0
    %570 = vmatpush1.bf16.msra.mxu0 0
    %571 = vmatprep.subr.bf16.mxu0 0
    %572 = vmatpush1.bf16.msra.mxu0 0
    %573 = vmatprep.subr.bf16.mxu0 0
    %574 = vmatpush1.bf16.msra.mxu0 0
    %575 = vmatprep.subr.bf16.mxu0 0
    %576 = vmatpush1.bf16.msra.mxu0 0
    %577 = vmatprep.subr.bf16.mxu0 0
    %578 = vmatpush1.bf16.msra.mxu0 0
    %579 = vmatprep.subr.bf16.mxu0 0
    %580 = vmatpush1.bf16.msra.mxu0 0
    %581 = vmatprep.subr.bf16.mxu0 0
    %582 = vmatpush1.bf16.msra.mxu0 0
    %583 = vmatprep.subr.bf16.mxu0 0
    %584 = vmatpush1.bf16.msra.mxu0 0
    %585 = vmatprep.subr.bf16.mxu0 0
    %586 = vmatpush1.bf16.msra.mxu0 0
    %587 = vmatprep.subr.bf16.mxu0 0
    %588 = vmatpush1.bf16.msra.mxu0 0
    %589 = vmatprep.subr.bf16.mxu0 0
    %590 = vmatpush1.bf16.msra.mxu0 0
    %591 = vmatprep.subr.bf16.mxu0 0
    %592 = vmatpush1.bf16.msra.mxu0 0
    %593 = vmatprep.mubr.bf16.mxu0 0
    %594 = vmatmul.mubr.bf16.gmra.mrb[0].mxu0 %v556
    %v595 = vpop.f32.mrb[0].mxu0
    %v596 = vadd.f32 %v537, %v595
    %v597 = vpop.f32.mrb[0].mxu0
    %v598 = vadd.f32 %v541, %v597
    %v599 = vpop.f32.mrb[0].mxu0
    %v600 = vadd.f32 %v537, %v599
    %v601 = vpop.f32.mrb[0].mxu0
    %v602 = vadd.f32 %v541, %v601
    %603 = vmatprep.mubr.bf16.mxu0 0
    %604 = vmatmul.mubr.bf16.gmra.mrb[0].mxu0 %v559
    %v605 = vpop.f32.mrb[0].mxu0
    %v606 = vadd.f32 %v537, %v605
    %v607 = vpop.f32.mrb[0].mxu0
    %v608 = vadd.f32 %v541, %v607
    %v609 = vpop.f32.mrb[0].mxu0
    %v610 = vpop.f32.mrb[0].mxu0
    %611 = vdwg.mxu0
    %vm612 = vcmp.ge.f32.partialorder %v596, 0.0
    %vm613 = vcmp.ge.f32.partialorder %v598, 0.0
    %vm614 = vcmp.ge.f32.partialorder %v600, 0.0
    %vm615 = vcmp.ge.f32.partialorder %v602, 0.0
    %vm616 = vcmp.ge.f32.partialorder %v606, 0.0
    %vm617 = vcmp.ge.f32.partialorder %v608, 0.0
    %v618 = vmul.f32 %v596, 0.4
    %v619 = vmul.f32 %v598, 0.4
    %v620 = vmul.f32 %v600, 0.4
    %v621 = vmul.f32 %v602, 0.4
    %v622 = vmul.f32 %v606, 0.4
    %v623 = vmul.f32 %v608, 0.4
    %v624 = vsel %vm612, %v596, %v618
    %v625 = vsel %vm613, %v598, %v619
    %v626 = vsel %vm614, %v600, %v620
    %v627 = vsel %vm615, %v602, %v621
    %v628 = vsel %vm616, %v606, %v622
    %v629 = vsel %vm617, %v608, %v623
    %v630 = vpack.c.bf16 %v357, %v356
    %v631 = vpack.c.bf16 %v358, %v358
    %v632 = vpack.c.bf16 %v526, %v525
    %v633 = vpack.c.bf16 %v527, %v527
    %v634 = vpack.c.bf16 %v626, %v624
    %v635 = vpack.c.bf16 %v627, %v625
    %v636 = vpack.c.bf16 %v628, %v628
    %v637 = vpack.c.bf16 %v629, %v629
    %v638 = vld [vmem:[%s16] sm:$0xff]
    %v639 = vld [vmem:[%s16 + $0x8] sm:$0xff]
    %v640 = vld [vmem:[%s16 + $0x10] sm:$0xff]
    %v641 = vld [vmem:[%s16 + $0x18] sm:$0xff]
    %v642 = vld [vmem:[%s16 + $0x20] sm:$0xff]
    %v643 = vld [vmem:[%s16 + $0x28] sm:$0xff]
    %v644 = vld [vmem:[%s16 + $0x30] sm:$0xff]
    %v645 = vld [vmem:[%s16 + $0x38] sm:$0xff]
    %v646 = vld [vmem:[%s16 + $0x40] sm:$0xff]
    %v647 = vld [vmem:[%s16 + $0x48] sm:$0xff]
    %v648 = vld [vmem:[%s16 + $0x50] sm:$0xff]
    %v649 = vld [vmem:[%s16 + $0x58] sm:$0xff]
    %v650 = vld [vmem:[%s16 + $0x60] sm:$0xff]
    %v651 = vld [vmem:[%s16 + $0x68] sm:$0xff]
    %v652 = vld [vmem:[%s16 + $0x70] sm:$0xff]
    %v653 = vld [vmem:[%s16 + $0x78] sm:$0xff]
    %v654 = vld [vmem:[%s16 + $0x80] sm:$0xff]
    %v655 = vld [vmem:[%s16 + $0x88] sm:$0xff]
    %v656 = vld [vmem:[%s16 + $0x90] sm:$0xff]
    %v657 = vld [vmem:[%s16 + $0x98] sm:$0xff]
    %v658 = vld [vmem:[%s17] sm:$0xff]
    %v659 = vld [vmem:[%s17 + $0x8] sm:$0xff]
    %v660 = vld [vmem:[%s17 + $0x10] sm:$0xff]
    %v661 = vld [vmem:[%s17 + $0x18] sm:$0xff]
    %v662 = vld [vmem:[%s17 + $0x20] sm:$0xff]
    %v663 = vld [vmem:[%s17 + $0x28] sm:$0xff]
    %v664 = vld [vmem:[%s17 + $0x30] sm:$0xff]
    %v665 = vld [vmem:[%s17 + $0x38] sm:$0xff]
    %v674 = vunpack.c.l.b16 %v658
    %v675 = vunpack.c.h.b16 %v658
    %v676 = vunpack.c.l.b16 %v659
    %v677 = vunpack.c.h.b16 %v659
    %v678 = vunpack.c.l.b16 %v660
    %v679 = vunpack.c.h.b16 %v660
    %v680 = vunpack.c.l.b16 %v661
    %v681 = vunpack.c.h.b16 %v661
    %v682 = vunpack.c.l.b16 %v662
    %v683 = vunpack.c.h.b16 %v662
    %v684 = vunpack.c.l.b16 %v663
    %v685 = vunpack.c.h.b16 %v663
    %v686 = vunpack.c.l.b16 %v664
    %v687 = vunpack.c.h.b16 %v664
    %v688 = vunpack.c.l.b16 %v665
    %v689 = vunpack.c.h.b16 %v665
    %v690 = vpack.c.b16 %v676, %v674
    %v691 = vpack.c.b16 %v677, %v675
    %v692 = vpack.c.b16 %v680, %v678
    %v693 = vpack.c.b16 %v681, %v679
    %v694 = vpack.c.b16 %v684, %v682
    %v695 = vpack.c.b16 %v685, %v683
    %v696 = vpack.c.b16 %v688, %v686
    %v697 = vpack.c.b16 %v689, %v687
    %v707 = vsel %vm283, %v630, 0
    %v710 = vsel %vm283, %v631, 0
    %712 = vmatprep.subr.bf16.mxu0 %v691
    %713 = vmatpush1.bf16.msra.mxu0 %v690
    %714 = vmatprep.subr.bf16.mxu0 %v693
    %715 = vmatpush1.bf16.msra.mxu0 %v692
    %716 = vmatprep.subr.bf16.mxu0 %v695
    %717 = vmatpush1.bf16.msra.mxu0 %v694
    %718 = vmatprep.subr.bf16.mxu0 %v697
    %719 = vmatpush1.bf16.msra.mxu0 %v696
    %720 = vmatprep.subr.bf16.mxu0 0
    %721 = vmatpush1.bf16.msra.mxu0 0
    %722 = vmatprep.subr.bf16.mxu0 0
    %723 = vmatpush1.bf16.msra.mxu0 0
    %724 = vmatprep.subr.bf16.mxu0 0
    %725 = vmatpush1.bf16.msra.mxu0 0
    %726 = vmatprep.subr.bf16.mxu0 0
    %727 = vmatpush1.bf16.msra.mxu0 0
    %728 = vmatprep.subr.bf16.mxu0 0
    %729 = vmatpush1.bf16.msra.mxu0 0
    %730 = vmatprep.subr.bf16.mxu0 0
    %731 = vmatpush1.bf16.msra.mxu0 0
    %732 = vmatprep.subr.bf16.mxu0 0
    %733 = vmatpush1.bf16.msra.mxu0 0
    %734 = vmatprep.subr.bf16.mxu0 0
    %735 = vmatpush1.bf16.msra.mxu0 0
    %736 = vmatprep.subr.bf16.mxu0 0
    %737 = vmatpush1.bf16.msra.mxu0 0
    %738 = vmatprep.subr.bf16.mxu0 0
    %739 = vmatpush1.bf16.msra.mxu0 0
    %740 = vmatprep.subr.bf16.mxu0 0
    %741 = vmatpush1.bf16.msra.mxu0 0
    %742 = vmatprep.subr.bf16.mxu0 0
    %743 = vmatpush1.bf16.msra.mxu0 0
    %744 = vmatprep.mubr.bf16.mxu0 0
    %745 = vmatmul.mubr.bf16.gmra.mrb[0].mxu0 %v707
    %v746 = vpop.f32.mrb[0].mxu0
    %v747 = vadd.f32 0.0, %v746
    %v748 = vpop.f32.mrb[0].mxu0
    %v749 = vadd.f32 0.0, %v748
    %v750 = vpop.f32.mrb[0].mxu0
    %v751 = vadd.f32 0.0, %v750
    %v752 = vpop.f32.mrb[0].mxu0
    %v753 = vadd.f32 0.0, %v752
    %754 = vmatprep.mubr.bf16.mxu0 0
    %755 = vmatmul.mubr.bf16.gmra.mrb[0].mxu0 %v710
    %v756 = vpop.f32.mrb[0].mxu0
    %v757 = vadd.f32 0.0, %v756
    %v758 = vpop.f32.mrb[0].mxu0
    %v759 = vadd.f32 0.0, %v758
    %v760 = vpop.f32.mrb[0].mxu0
    %v761 = vpop.f32.mrb[0].mxu0
    %762 = vdwg.mxu0
    %v783 = vunpack.c.l.b16 %v638
    %v784 = vunpack.c.h.b16 %v638
    %v785 = vunpack.c.l.b16 %v639
    %v786 = vunpack.c.h.b16 %v639
    %v787 = vunpack.c.l.b16 %v640
    %v788 = vunpack.c.h.b16 %v640
    %v789 = vunpack.c.l.b16 %v641
    %v790 = vunpack.c.h.b16 %v641
    %v791 = vunpack.c.l.b16 %v642
    %v792 = vunpack.c.h.b16 %v642
    %v793 = vunpack.c.l.b16 %v643
    %v794 = vunpack.c.h.b16 %v643
    %v795 = vunpack.c.l.b16 %v644
    %v796 = vunpack.c.h.b16 %v644
    %v797 = vunpack.c.l.b16 %v645
    %v798 = vunpack.c.h.b16 %v645
    %v799 = vunpack.c.l.b16 %v646
    %v800 = vunpack.c.h.b16 %v646
    %v801 = vunpack.c.l.b16 %v647
    %v802 = vunpack.c.h.b16 %v647
    %v803 = vunpack.c.l.b16 %v648
    %v804 = vunpack.c.h.b16 %v648
    %v805 = vunpack.c.l.b16 %v649
    %v806 = vunpack.c.h.b16 %v649
    %v807 = vunpack.c.l.b16 %v650
    %v808 = vunpack.c.h.b16 %v650
    %v809 = vunpack.c.l.b16 %v651
    %v810 = vunpack.c.h.b16 %v651
    %v811 = vunpack.c.l.b16 %v652
    %v812 = vunpack.c.h.b16 %v652
    %v813 = vunpack.c.l.b16 %v653
    %v814 = vunpack.c.h.b16 %v653
    %v815 = vunpack.c.l.b16 %v654
    %v816 = vunpack.c.h.b16 %v654
    %v817 = vunpack.c.l.b16 %v655
    %v818 = vunpack.c.h.b16 %v655
    %v819 = vunpack.c.l.b16 %v656
    %v820 = vunpack.c.h.b16 %v656
    %v821 = vunpack.c.l.b16 %v657
    %v822 = vunpack.c.h.b16 %v657
    %v823 = vpack.c.b16 %v785, %v783
    %v824 = vpack.c.b16 %v786, %v784
    %v825 = vpack.c.b16 %v789, %v787
    %v826 = vpack.c.b16 %v790, %v788
    %v827 = vpack.c.b16 %v793, %v791
    %v828 = vpack.c.b16 %v794, %v792
    %v829 = vpack.c.b16 %v797, %v795
    %v830 = vpack.c.b16 %v798, %v796
    %v831 = vpack.c.b16 %v801, %v799
    %v832 = vpack.c.b16 %v802, %v800
    %v833 = vpack.c.b16 %v805, %v803
    %v834 = vpack.c.b16 %v806, %v804
    %v835 = vpack.c.b16 %v809, %v807
    %v836 = vpack.c.b16 %v810, %v808
    %v837 = vpack.c.b16 %v813, %v811
    %v838 = vpack.c.b16 %v814, %v812
    %v839 = vpack.c.b16 %v817, %v815
    %v840 = vpack.c.b16 %v818, %v816
    %v841 = vpack.c.b16 %v821, %v819
    %v842 = vpack.c.b16 %v822, %v820
    %v864 = vsel %vm166, %v635, 0
    %v867 = vsel %vm166, %v637, 0
    %869 = vmatprep.subr.bf16.mxu0 %v824
    %870 = vmatpush1.bf16.msra.mxu0 %v823
    %871 = vmatprep.subr.bf16.mxu0 %v826
    %872 = vmatpush1.bf16.msra.mxu0 %v825
    %873 = vmatprep.subr.bf16.mxu0 %v828
    %874 = vmatpush1.bf16.msra.mxu0 %v827
    %875 = vmatprep.subr.bf16.mxu0 %v830
    %876 = vmatpush1.bf16.msra.mxu0 %v829
    %877 = vmatprep.subr.bf16.mxu0 %v832
    %878 = vmatpush1.bf16.msra.mxu0 %v831
    %879 = vmatprep.subr.bf16.mxu0 %v834
    %880 = vmatpush1.bf16.msra.mxu0 %v833
    %881 = vmatprep.subr.bf16.mxu0 %v836
    %882 = vmatpush1.bf16.msra.mxu0 %v835
    %883 = vmatprep.subr.bf16.mxu0 %v838
    %884 = vmatpush1.bf16.msra.mxu0 %v837
    %885 = vmatprep.subr.bf16.mxu0 %v840
    %886 = vmatpush1.bf16.msra.mxu0 %v839
    %887 = vmatprep.subr.bf16.mxu0 %v842
    %888 = vmatpush1.bf16.msra.mxu0 %v841
    %889 = vmatprep.subr.bf16.mxu0 0
    %890 = vmatpush1.bf16.msra.mxu0 0
    %891 = vmatprep.subr.bf16.mxu0 0
    %892 = vmatpush1.bf16.msra.mxu0 0
    %893 = vmatprep.subr.bf16.mxu0 0
    %894 = vmatpush1.bf16.msra.mxu0 0
    %895 = vmatprep.subr.bf16.mxu0 0
    %896 = vmatpush1.bf16.msra.mxu0 0
    %897 = vmatprep.subr.bf16.mxu0 0
    %898 = vmatpush1.bf16.msra.mxu0 0
    %899 = vmatprep.subr.bf16.mxu0 0
    %900 = vmatpush1.bf16.msra.mxu0 0
    %901 = vmatprep.mubr.bf16.mxu0 %v864
    %902 = vmatmul.mubr.bf16.gmra.mrb[0].mxu0 %v634
    %v903 = vpop.f32.mrb[0].mxu0
    %v904 = vadd.f32 %v747, %v903
    %v905 = vpop.f32.mrb[0].mxu0
    %v906 = vadd.f32 %v749, %v905
    %v907 = vpop.f32.mrb[0].mxu0
    %v908 = vadd.f32 %v751, %v907
    %v909 = vpop.f32.mrb[0].mxu0
    %v910 = vadd.f32 %v753, %v909
    %911 = vmatprep.mubr.bf16.mxu0 %v867
    %912 = vmatmul.mubr.bf16.gmra.mrb[0].mxu0 %v636
    %v913 = vpop.f32.mrb[0].mxu0
    %v914 = vadd.f32 %v757, %v913
    %v915 = vpop.f32.mrb[0].mxu0
    %v916 = vadd.f32 %v759, %v915
    %v917 = vpop.f32.mrb[0].mxu0
    %v918 = vpop.f32.mrb[0].mxu0
    %919 = vdwg.mxu0
    %v920 = vld [vmem:[%s18] sm:$0xff]
    %v921 = vld [vmem:[%s18 + $0x8] sm:$0xff]
    %v924 = vunpack.c.l.b16 %v920
    %v925 = vunpack.c.h.b16 %v920
    %v926 = vunpack.c.l.b16 %v921
    %v927 = vunpack.c.h.b16 %v921
    %v928 = vpack.c.b16 %v926, %v924
    %v929 = vpack.c.b16 %v927, %v925
    %v933 = vsel %vm554, %v632, 0
    %v936 = vsel %vm554, %v633, 0
    %938 = vmatprep.subr.bf16.mxu0 %v929
    %939 = vmatpush1.bf16.msra.mxu0 %v928
    %940 = vmatprep.subr.bf16.mxu0 0
    %941 = vmatpush1.bf16.msra.mxu0 0
    %942 = vmatprep.subr.bf16.mxu0 0
    %943 = vmatpush1.bf16.msra.mxu0 0
    %944 = vmatprep.subr.bf16.mxu0 0
    %945 = vmatpush1.bf16.msra.mxu0 0
    %946 = vmatprep.subr.bf16.mxu0 0
    %947 = vmatpush1.bf16.msra.mxu0 0
    %948 = vmatprep.subr.bf16.mxu0 0
    %949 = vmatpush1.bf16.msra.mxu0 0
    %950 = vmatprep.subr.bf16.mxu0 0
    %951 = vmatpush1.bf16.msra.mxu0 0
    %952 = vmatprep.subr.bf16.mxu0 0
    %953 = vmatpush1.bf16.msra.mxu0 0
    %954 = vmatprep.subr.bf16.mxu0 0
    %955 = vmatpush1.bf16.msra.mxu0 0
    %956 = vmatprep.subr.bf16.mxu0 0
    %957 = vmatpush1.bf16.msra.mxu0 0
    %958 = vmatprep.subr.bf16.mxu0 0
    %959 = vmatpush1.bf16.msra.mxu0 0
    %960 = vmatprep.subr.bf16.mxu0 0
    %961 = vmatpush1.bf16.msra.mxu0 0
    %962 = vmatprep.subr.bf16.mxu0 0
    %963 = vmatpush1.bf16.msra.mxu0 0
    %964 = vmatprep.subr.bf16.mxu0 0
    %965 = vmatpush1.bf16.msra.mxu0 0
    %966 = vmatprep.subr.bf16.mxu0 0
    %967 = vmatpush1.bf16.msra.mxu0 0
    %968 = vmatprep.subr.bf16.mxu0 0
    %969 = vmatpush1.bf16.msra.mxu0 0
    %970 = vmatprep.mubr.bf16.mxu0 0
    %971 = vmatmul.mubr.bf16.gmra.mrb[0].mxu0 %v933
    %v972 = vpop.f32.mrb[0].mxu0
    %v973 = vadd.f32 0.0, %v972
    %v974 = vpop.f32.mrb[0].mxu0
    %v975 = vadd.f32 0.0, %v974
    %v976 = vpop.f32.mrb[0].mxu0
    %v977 = vadd.f32 0.0, %v976
    %v978 = vpop.f32.mrb[0].mxu0
    %v979 = vadd.f32 0.0, %v978
    %980 = vmatprep.mubr.bf16.mxu0 0
    %981 = vmatmul.mubr.bf16.gmra.mrb[0].mxu0 %v936
    %v982 = vpop.f32.mrb[0].mxu0
    %v983 = vadd.f32 0.0, %v982
    %v984 = vpop.f32.mrb[0].mxu0
    %v985 = vadd.f32 0.0, %v984
    %v986 = vpop.f32.mrb[0].mxu0
    %v987 = vpop.f32.mrb[0].mxu0
    %988 = vdwg.mxu0
    %v989 = vadd.f32 %v904, %v973
    %v990 = vadd.f32 %v906, %v975
    %v991 = vadd.f32 %v908, %v977
    %v992 = vadd.f32 %v910, %v979
    %v993 = vadd.f32 %v914, %v983
    %v994 = vadd.f32 %v916, %v985
    %v995 = vld [vmem:[%s19] sm:$0x3]
    %v997 = vlaneseq
    %v998 = vshrl.u32 %v997, 7
    %v999 = vsub.s32 0, %v998
    %v1000 = vrot.slane %v995, %v999
    %v1001 = vlaneseq
    %v1002 = vshrl.u32 %v1001, 7
    %v1003 = vsub.s32 1, %v1002
    %v1004 = vrot.slane %v995, %v1003
    %v1007 = vadd.f32 %v989, %v1000
    %v1008 = vadd.f32 %v990, %v1004
    %v1009 = vadd.f32 %v991, %v1000
    %v1010 = vadd.f32 %v992, %v1004
    %v1011 = vadd.f32 %v993, %v1000
    %v1012 = vadd.f32 %v994, %v1004
    %s1013 = scalar_lea.vmem %s16, 160
    %v1014 = vld [vmem:[%s1013] sm:$0xff]
    %v1015 = vld [vmem:[%s1013 + $0x8] sm:$0xff]
    %v1016 = vld [vmem:[%s1013 + $0x10] sm:$0xff]
    %v1017 = vld [vmem:[%s1013 + $0x18] sm:$0xff]
    %v1018 = vld [vmem:[%s1013 + $0x20] sm:$0xff]
    %v1019 = vld [vmem:[%s1013 + $0x28] sm:$0xff]
    %v1020 = vld [vmem:[%s1013 + $0x30] sm:$0xff]
    %v1021 = vld [vmem:[%s1013 + $0x38] sm:$0xff]
    %v1022 = vld [vmem:[%s1013 + $0x40] sm:$0xff]
    %v1023 = vld [vmem:[%s1013 + $0x48] sm:$0xff]
    %v1024 = vld [vmem:[%s1013 + $0x50] sm:$0xff]
    %v1025 = vld [vmem:[%s1013 + $0x58] sm:$0xff]
    %v1026 = vld [vmem:[%s1013 + $0x60] sm:$0xff]
    %v1027 = vld [vmem:[%s1013 + $0x68] sm:$0xff]
    %v1028 = vld [vmem:[%s1013 + $0x70] sm:$0xff]
    %v1029 = vld [vmem:[%s1013 + $0x78] sm:$0xff]
    %v1030 = vld [vmem:[%s1013 + $0x80] sm:$0xff]
    %v1031 = vld [vmem:[%s1013 + $0x88] sm:$0xff]
    %v1032 = vld [vmem:[%s1013 + $0x90] sm:$0xff]
    %v1033 = vld [vmem:[%s1013 + $0x98] sm:$0xff]
    %s1034 = scalar_lea.vmem %s17, 64
    %v1035 = vld [vmem:[%s1034] sm:$0xff]
    %v1036 = vld [vmem:[%s1034 + $0x8] sm:$0xff]
    %v1037 = vld [vmem:[%s1034 + $0x10] sm:$0xff]
    %v1038 = vld [vmem:[%s1034 + $0x18] sm:$0xff]
    %v1039 = vld [vmem:[%s1034 + $0x20] sm:$0xff]
    %v1040 = vld [vmem:[%s1034 + $0x28] sm:$0xff]
    %v1041 = vld [vmem:[%s1034 + $0x30] sm:$0xff]
    %v1042 = vld [vmem:[%s1034 + $0x38] sm:$0xff]
    %v1051 = vunpack.c.l.b16 %v1035
    %v1052 = vunpack.c.h.b16 %v1035
    %v1053 = vunpack.c.l.b16 %v1036
    %v1054 = vunpack.c.h.b16 %v1036
    %v1055 = vunpack.c.l.b16 %v1037
    %v1056 = vunpack.c.h.b16 %v1037
    %v1057 = vunpack.c.l.b16 %v1038
    %v1058 = vunpack.c.h.b16 %v1038
    %v1059 = vunpack.c.l.b16 %v1039
    %v1060 = vunpack.c.h.b16 %v1039
    %v1061 = vunpack.c.l.b16 %v1040
    %v1062 = vunpack.c.h.b16 %v1040
    %v1063 = vunpack.c.l.b16 %v1041
    %v1064 = vunpack.c.h.b16 %v1041
    %v1065 = vunpack.c.l.b16 %v1042
    %v1066 = vunpack.c.h.b16 %v1042
    %v1067 = vpack.c.b16 %v1053, %v1051
    %v1068 = vpack.c.b16 %v1054, %v1052
    %v1069 = vpack.c.b16 %v1057, %v1055
    %v1070 = vpack.c.b16 %v1058, %v1056
    %v1071 = vpack.c.b16 %v1061, %v1059
    %v1072 = vpack.c.b16 %v1062, %v1060
    %v1073 = vpack.c.b16 %v1065, %v1063
    %v1074 = vpack.c.b16 %v1066, %v1064
    %1083 = vmatprep.subr.bf16.mxu0 %v1068
    %1084 = vmatpush1.bf16.msra.mxu0 %v1067
    %1085 = vmatprep.subr.bf16.mxu0 %v1070
    %1086 = vmatpush1.bf16.msra.mxu0 %v1069
    %1087 = vmatprep.subr.bf16.mxu0 %v1072
    %1088 = vmatpush1.bf16.msra.mxu0 %v1071
    %1089 = vmatprep.subr.bf16.mxu0 %v1074
    %1090 = vmatpush1.bf16.msra.mxu0 %v1073
    %1091 = vmatprep.subr.bf16.mxu0 0
    %1092 = vmatpush1.bf16.msra.mxu0 0
    %1093 = vmatprep.subr.bf16.mxu0 0
    %1094 = vmatpush1.bf16.msra.mxu0 0
    %1095 = vmatprep.subr.bf16.mxu0 0
    %1096 = vmatpush1.bf16.msra.mxu0 0
    %1097 = vmatprep.subr.bf16.mxu0 0
    %1098 = vmatpush1.bf16.msra.mxu0 0
    %1099 = vmatprep.subr.bf16.mxu0 0
    %1100 = vmatpush1.bf16.msra.mxu0 0
    %1101 = vmatprep.subr.bf16.mxu0 0
    %1102 = vmatpush1.bf16.msra.mxu0 0
    %1103 = vmatprep.subr.bf16.mxu0 0
    %1104 = vmatpush1.bf16.msra.mxu0 0
    %1105 = vmatprep.subr.bf16.mxu0 0
    %1106 = vmatpush1.bf16.msra.mxu0 0
    %1107 = vmatprep.subr.bf16.mxu0 0
    %1108 = vmatpush1.bf16.msra.mxu0 0
    %1109 = vmatprep.subr.bf16.mxu0 0
    %1110 = vmatpush1.bf16.msra.mxu0 0
    %1111 = vmatprep.subr.bf16.mxu0 0
    %1112 = vmatpush1.bf16.msra.mxu0 0
    %1113 = vmatprep.subr.bf16.mxu0 0
    %1114 = vmatpush1.bf16.msra.mxu0 0
    %1115 = vmatprep.mubr.bf16.mxu0 0
    %1116 = vmatmul.mubr.bf16.gmra.mrb[0].mxu0 %v707
    %v1117 = vpop.f32.mrb[0].mxu0
    %v1118 = vadd.f32 0.0, %v1117
    %v1119 = vpop.f32.mrb[0].mxu0
    %v1120 = vadd.f32 0.0, %v1119
    %v1121 = vpop.f32.mrb[0].mxu0
    %v1122 = vadd.f32 0.0, %v1121
    %v1123 = vpop.f32.mrb[0].mxu0
    %v1124 = vadd.f32 0.0, %v1123
    %1125 = vmatprep.mubr.bf16.mxu0 0
    %1126 = vmatmul.mubr.bf16.gmra.mrb[0].mxu0 %v710
    %v1127 = vpop.f32.mrb[0].mxu0
    %v1128 = vadd.f32 0.0, %v1127
    %v1129 = vpop.f32.mrb[0].mxu0
    %v1130 = vadd.f32 0.0, %v1129
    %v1131 = vpop.f32.mrb[0].mxu0
    %v1132 = vpop.f32.mrb[0].mxu0
    %1133 = vdwg.mxu0
    %v1154 = vunpack.c.l.b16 %v1014
    %v1155 = vunpack.c.h.b16 %v1014
    %v1156 = vunpack.c.l.b16 %v1015
    %v1157 = vunpack.c.h.b16 %v1015
    %v1158 = vunpack.c.l.b16 %v1016
    %v1159 = vunpack.c.h.b16 %v1016
    %v1160 = vunpack.c.l.b16 %v1017
    %v1161 = vunpack.c.h.b16 %v1017
    %v1162 = vunpack.c.l.b16 %v1018
    %v1163 = vunpack.c.h.b16 %v1018
    %v1164 = vunpack.c.l.b16 %v1019
    %v1165 = vunpack.c.h.b16 %v1019
    %v1166 = vunpack.c.l.b16 %v1020
    %v1167 = vunpack.c.h.b16 %v1020
    %v1168 = vunpack.c.l.b16 %v1021
    %v1169 = vunpack.c.h.b16 %v1021
    %v1170 = vunpack.c.l.b16 %v1022
    %v1171 = vunpack.c.h.b16 %v1022
    %v1172 = vunpack.c.l.b16 %v1023
    %v1173 = vunpack.c.h.b16 %v1023
    %v1174 = vunpack.c.l.b16 %v1024
    %v1175 = vunpack.c.h.b16 %v1024
    %v1176 = vunpack.c.l.b16 %v1025
    %v1177 = vunpack.c.h.b16 %v1025
    %v1178 = vunpack.c.l.b16 %v1026
    %v1179 = vunpack.c.h.b16 %v1026
    %v1180 = vunpack.c.l.b16 %v1027
    %v1181 = vunpack.c.h.b16 %v1027
    %v1182 = vunpack.c.l.b16 %v1028
    %v1183 = vunpack.c.h.b16 %v1028
    %v1184 = vunpack.c.l.b16 %v1029
    %v1185 = vunpack.c.h.b16 %v1029
    %v1186 = vunpack.c.l.b16 %v1030
    %v1187 = vunpack.c.h.b16 %v1030
    %v1188 = vunpack.c.l.b16 %v1031
    %v1189 = vunpack.c.h.b16 %v1031
    %v1190 = vunpack.c.l.b16 %v1032
    %v1191 = vunpack.c.h.b16 %v1032
    %v1192 = vunpack.c.l.b16 %v1033
    %v1193 = vunpack.c.h.b16 %v1033
    %v1194 = vpack.c.b16 %v1156, %v1154
    %v1195 = vpack.c.b16 %v1157, %v1155
    %v1196 = vpack.c.b16 %v1160, %v1158
    %v1197 = vpack.c.b16 %v1161, %v1159
    %v1198 = vpack.c.b16 %v1164, %v1162
    %v1199 = vpack.c.b16 %v1165, %v1163
    %v1200 = vpack.c.b16 %v1168, %v1166
    %v1201 = vpack.c.b16 %v1169, %v1167
    %v1202 = vpack.c.b16 %v1172, %v1170
    %v1203 = vpack.c.b16 %v1173, %v1171
    %v1204 = vpack.c.b16 %v1176, %v1174
    %v1205 = vpack.c.b16 %v1177, %v1175
    %v1206 = vpack.c.b16 %v1180, %v1178
    %v1207 = vpack.c.b16 %v1181, %v1179
    %v1208 = vpack.c.b16 %v1184, %v1182
    %v1209 = vpack.c.b16 %v1185, %v1183
    %v1210 = vpack.c.b16 %v1188, %v1186
    %v1211 = vpack.c.b16 %v1189, %v1187
    %v1212 = vpack.c.b16 %v1192, %v1190
    %v1213 = vpack.c.b16 %v1193, %v1191
    %1234 = vmatprep.subr.bf16.mxu0 %v1195
    %1235 = vmatpush1.bf16.msra.mxu0 %v1194
    %1236 = vmatprep.subr.bf16.mxu0 %v1197
    %1237 = vmatpush1.bf16.msra.mxu0 %v1196
    %1238 = vmatprep.subr.bf16.mxu0 %v1199
    %1239 = vmatpush1.bf16.msra.mxu0 %v1198
    %1240 = vmatprep.subr.bf16.mxu0 %v1201
    %1241 = vmatpush1.bf16.msra.mxu0 %v1200
    %1242 = vmatprep.subr.bf16.mxu0 %v1203
    %1243 = vmatpush1.bf16.msra.mxu0 %v1202
    %1244 = vmatprep.subr.bf16.mxu0 %v1205
    %1245 = vmatpush1.bf16.msra.mxu0 %v1204
    %1246 = vmatprep.subr.bf16.mxu0 %v1207
    %1247 = vmatpush1.bf16.msra.mxu0 %v1206
    %1248 = vmatprep.subr.bf16.mxu0 %v1209
    %1249 = vmatpush1.bf16.msra.mxu0 %v1208
    %1250 = vmatprep.subr.bf16.mxu0 %v1211
    %1251 = vmatpush1.bf16.msra.mxu0 %v1210
    %1252 = vmatprep.subr.bf16.mxu0 %v1213
    %1253 = vmatpush1.bf16.msra.mxu0 %v1212
    %1254 = vmatprep.subr.bf16.mxu0 0
    %1255 = vmatpush1.bf16.msra.mxu0 0
    %1256 = vmatprep.subr.bf16.mxu0 0
    %1257 = vmatpush1.bf16.msra.mxu0 0
    %1258 = vmatprep.subr.bf16.mxu0 0
    %1259 = vmatpush1.bf16.msra.mxu0 0
    %1260 = vmatprep.subr.bf16.mxu0 0
    %1261 = vmatpush1.bf16.msra.mxu0 0
    %1262 = vmatprep.subr.bf16.mxu0 0
    %1263 = vmatpush1.bf16.msra.mxu0 0
    %1264 = vmatprep.subr.bf16.mxu0 0
    %1265 = vmatpush1.bf16.msra.mxu0 0
    %1266 = vmatprep.mubr.bf16.mxu0 %v864
    %1267 = vmatmul.mubr.bf16.gmra.mrb[0].mxu0 %v634
    %v1268 = vpop.f32.mrb[0].mxu0
    %v1269 = vadd.f32 %v1118, %v1268
    %v1270 = vpop.f32.mrb[0].mxu0
    %v1271 = vadd.f32 %v1120, %v1270
    %v1272 = vpop.f32.mrb[0].mxu0
    %v1273 = vadd.f32 %v1122, %v1272
    %v1274 = vpop.f32.mrb[0].mxu0
    %v1275 = vadd.f32 %v1124, %v1274
    %1276 = vmatprep.mubr.bf16.mxu0 %v867
    %1277 = vmatmul.mubr.bf16.gmra.mrb[0].mxu0 %v636
    %v1278 = vpop.f32.mrb[0].mxu0
    %v1279 = vadd.f32 %v1128, %v1278
    %v1280 = vpop.f32.mrb[0].mxu0
    %v1281 = vadd.f32 %v1130, %v1280
    %v1282 = vpop.f32.mrb[0].mxu0
    %v1283 = vpop.f32.mrb[0].mxu0
    %1284 = vdwg.mxu0
    %s1285 = scalar_lea.vmem %s18, 16
    %v1286 = vld [vmem:[%s1285] sm:$0xff]
    %v1287 = vld [vmem:[%s1285 + $0x8] sm:$0xff]
    %v1290 = vunpack.c.l.b16 %v1286
    %v1291 = vunpack.c.h.b16 %v1286
    %v1292 = vunpack.c.l.b16 %v1287
    %v1293 = vunpack.c.h.b16 %v1287
    %v1294 = vpack.c.b16 %v1292, %v1290
    %v1295 = vpack.c.b16 %v1293, %v1291
    %1298 = vmatprep.subr.bf16.mxu0 %v1295
    %1299 = vmatpush1.bf16.msra.mxu0 %v1294
    %1300 = vmatprep.subr.bf16.mxu0 0
    %1301 = vmatpush1.bf16.msra.mxu0 0
    %1302 = vmatprep.subr.bf16.mxu0 0
    %1303 = vmatpush1.bf16.msra.mxu0 0
    %1304 = vmatprep.subr.bf16.mxu0 0
    %1305 = vmatpush1.bf16.msra.mxu0 0
    %1306 = vmatprep.subr.bf16.mxu0 0
    %1307 = vmatpush1.bf16.msra.mxu0 0
    %1308 = vmatprep.subr.bf16.mxu0 0
    %1309 = vmatpush1.bf16.msra.mxu0 0
    %1310 = vmatprep.subr.bf16.mxu0 0
    %1311 = vmatpush1.bf16.msra.mxu0 0
    %1312 = vmatprep.subr.bf16.mxu0 0
    %1313 = vmatpush1.bf16.msra.mxu0 0
    %1314 = vmatprep.subr.bf16.mxu0 0
    %1315 = vmatpush1.bf16.msra.mxu0 0
    %1316 = vmatprep.subr.bf16.mxu0 0
    %1317 = vmatpush1.bf16.msra.mxu0 0
    %1318 = vmatprep.subr.bf16.mxu0 0
    %1319 = vmatpush1.bf16.msra.mxu0 0
    %1320 = vmatprep.subr.bf16.mxu0 0
    %1321 = vmatpush1.bf16.msra.mxu0 0
    %1322 = vmatprep.subr.bf16.mxu0 0
    %1323 = vmatpush1.bf16.msra.mxu0 0
    %1324 = vmatprep.subr.bf16.mxu0 0
    %1325 = vmatpush1.bf16.msra.mxu0 0
    %1326 = vmatprep.subr.bf16.mxu0 0
    %1327 = vmatpush1.bf16.msra.mxu0 0
    %1328 = vmatprep.subr.bf16.mxu0 0
    %1329 = vmatpush1.bf16.msra.mxu0 0
    %1330 = vmatprep.mubr.bf16.mxu0 0
    %1331 = vmatmul.mubr.bf16.gmra.mrb[0].mxu0 %v933
    %v1332 = vpop.f32.mrb[0].mxu0
    %v1333 = vadd.f32 0.0, %v1332
    %v1334 = vpop.f32.mrb[0].mxu0
    %v1335 = vadd.f32 0.0, %v1334
    %v1336 = vpop.f32.mrb[0].mxu0
    %v1337 = vadd.f32 0.0, %v1336
    %v1338 = vpop.f32.mrb[0].mxu0
    %v1339 = vadd.f32 0.0, %v1338
    %1340 = vmatprep.mubr.bf16.mxu0 0
    %1341 = vmatmul.mubr.bf16.gmra.mrb[0].mxu0 %v936
    %v1342 = vpop.f32.mrb[0].mxu0
    %v1343 = vadd.f32 0.0, %v1342
    %v1344 = vpop.f32.mrb[0].mxu0
    %v1345 = vadd.f32 0.0, %v1344
    %v1346 = vpop.f32.mrb[0].mxu0
    %v1347 = vpop.f32.mrb[0].mxu0
    %1348 = vdwg.mxu0
    %v1349 = vadd.f32 %v1269, %v1333
    %v1350 = vadd.f32 %v1271, %v1335
    %v1351 = vadd.f32 %v1273, %v1337
    %v1352 = vadd.f32 %v1275, %v1339
    %v1353 = vadd.f32 %v1279, %v1343
    %v1354 = vadd.f32 %v1281, %v1345
    %s1355 = scalar_lea.vmem %s19, 2
    %v1356 = vld [vmem:[%s1355] sm:$0x3]
    %v1358 = vlaneseq
    %v1359 = vshrl.u32 %v1358, 7
    %v1360 = vsub.s32 0, %v1359
    %v1361 = vrot.slane %v1356, %v1360
    %v1362 = vlaneseq
    %v1363 = vshrl.u32 %v1362, 7
    %v1364 = vsub.s32 1, %v1363
    %v1365 = vrot.slane %v1356, %v1364
    %v1368 = vadd.f32 %v1349, %v1361
    %v1369 = vadd.f32 %v1350, %v1365
    %v1370 = vadd.f32 %v1351, %v1361
    %v1371 = vadd.f32 %v1352, %v1365
    %v1372 = vadd.f32 %v1353, %v1361
    %v1373 = vadd.f32 %v1354, %v1365
    %v1374 = vxor.u32 %v1007, 2147483648
    %v1375 = vxor.u32 %v1008, 2147483648
    %v1376 = vxor.u32 %v1009, 2147483648
    %v1377 = vxor.u32 %v1010, 2147483648
    %v1378 = vxor.u32 %v1011, 2147483648
    %v1379 = vxor.u32 %v1012, 2147483648
    %v1380 = vmul.f32 %v1374, 1.442695
    %v1381 = vpow.pop %v1380
    %v1382 = vmul.f32 %v1375, 1.442695
    %v1383 = vpow.pop %v1382
    %v1384 = vmul.f32 %v1376, 1.442695
    %v1385 = vpow.pop %v1384
    %v1386 = vmul.f32 %v1377, 1.442695
    %v1387 = vpow.pop %v1386
    %v1388 = vmul.f32 %v1378, 1.442695
    %v1389 = vpow.pop %v1388
    %v1390 = vmul.f32 %v1379, 1.442695
    %v1391 = vpow.pop %v1390
    %v1392 = vadd.f32 %v1381, 1.0
    %v1393 = vadd.f32 %v1383, 1.0
    %v1394 = vadd.f32 %v1385, 1.0
    %v1395 = vadd.f32 %v1387, 1.0
    %v1396 = vadd.f32 %v1389, 1.0
    %v1397 = vadd.f32 %v1391, 1.0
    %v1398 = vrcp.pop %v1392
    %v1399 = vmul.f32 1.0, %v1398
    %v1400 = vrcp.pop %v1393
    %v1401 = vmul.f32 1.0, %v1400
    %v1402 = vrcp.pop %v1394
    %v1403 = vmul.f32 1.0, %v1402
    %v1404 = vrcp.pop %v1395
    %v1405 = vmul.f32 1.0, %v1404
    %v1406 = vrcp.pop %v1396
    %v1407 = vmul.f32 1.0, %v1406
    %v1408 = vrcp.pop %v1397
    %v1409 = vmul.f32 1.0, %v1408
    %v1410 = vtanh.pop %v1368
    %v1411 = vtanh.pop %v1369
    %v1412 = vtanh.pop %v1370
    %v1413 = vtanh.pop %v1371
    %v1414 = vtanh.pop %v1372
    %v1415 = vtanh.pop %v1373
    %v1416 = vmul.f32 %v1399, %v1410
    %v1417 = vmul.f32 %v1401, %v1411
    %v1418 = vmul.f32 %v1403, %v1412
    %v1419 = vmul.f32 %v1405, %v1413
    %v1420 = vmul.f32 %v1407, %v1414
    %v1421 = vmul.f32 %v1409, %v1415
    %v1422 = vpack.c.bf16 %v1418, %v1416
    %v1423 = vpack.c.bf16 %v1419, %v1417
    %v1424 = vpack.c.bf16 %v1420, %v1420
    %v1425 = vpack.c.bf16 %v1421, %v1421
    %v1426 = vld [vmem:[%s20] sm:$0xff]
    %v1427 = vld [vmem:[%s20 + $0x8] sm:$0xff]
    %v1428 = vld [vmem:[%s20 + $0x10] sm:$0xff]
    %v1429 = vld [vmem:[%s20 + $0x18] sm:$0xff]
    %v1430 = vld [vmem:[%s20 + $0x20] sm:$0xff]
    %v1431 = vld [vmem:[%s20 + $0x28] sm:$0xff]
    %v1432 = vld [vmem:[%s20 + $0x30] sm:$0xff]
    %v1433 = vld [vmem:[%s20 + $0x38] sm:$0xff]
    %v1434 = vld [vmem:[%s20 + $0x40] sm:$0xff]
    %v1435 = vld [vmem:[%s20 + $0x48] sm:$0xff]
    %v1436 = vld [vmem:[%s20 + $0x50] sm:$0xff]
    %v1437 = vld [vmem:[%s20 + $0x58] sm:$0xff]
    %v1438 = vld [vmem:[%s20 + $0x60] sm:$0xff]
    %v1439 = vld [vmem:[%s20 + $0x68] sm:$0xff]
    %v1440 = vld [vmem:[%s20 + $0x70] sm:$0xff]
    %v1441 = vld [vmem:[%s20 + $0x78] sm:$0xff]
    %v1442 = vld [vmem:[%s20 + $0x80] sm:$0xff]
    %v1443 = vld [vmem:[%s20 + $0x88] sm:$0xff]
    %v1444 = vld [vmem:[%s20 + $0x90] sm:$0xff]
    %v1445 = vld [vmem:[%s20 + $0x98] sm:$0xff]
    %v1446 = vld [vmem:[%s21] sm:$0x3]
    %v1448 = vlaneseq
    %v1449 = vshrl.u32 %v1448, 7
    %v1450 = vsub.s32 0, %v1449
    %v1451 = vrot.slane %v1446, %v1450
    %v1452 = vlaneseq
    %v1453 = vshrl.u32 %v1452, 7
    %v1454 = vsub.s32 1, %v1453
    %v1455 = vrot.slane %v1446, %v1454
    %v1478 = vunpack.c.l.b16 %v1426
    %v1479 = vunpack.c.h.b16 %v1426
    %v1480 = vunpack.c.l.b16 %v1427
    %v1481 = vunpack.c.h.b16 %v1427
    %v1482 = vunpack.c.l.b16 %v1428
    %v1483 = vunpack.c.h.b16 %v1428
    %v1484 = vunpack.c.l.b16 %v1429
    %v1485 = vunpack.c.h.b16 %v1429
    %v1486 = vunpack.c.l.b16 %v1430
    %v1487 = vunpack.c.h.b16 %v1430
    %v1488 = vunpack.c.l.b16 %v1431
    %v1489 = vunpack.c.h.b16 %v1431
    %v1490 = vunpack.c.l.b16 %v1432
    %v1491 = vunpack.c.h.b16 %v1432
    %v1492 = vunpack.c.l.b16 %v1433
    %v1493 = vunpack.c.h.b16 %v1433
    %v1494 = vunpack.c.l.b16 %v1434
    %v1495 = vunpack.c.h.b16 %v1434
    %v1496 = vunpack.c.l.b16 %v1435
    %v1497 = vunpack.c.h.b16 %v1435
    %v1498 = vunpack.c.l.b16 %v1436
    %v1499 = vunpack.c.h.b16 %v1436
    %v1500 = vunpack.c.l.b16 %v1437
    %v1501 = vunpack.c.h.b16 %v1437
    %v1502 = vunpack.c.l.b16 %v1438
    %v1503 = vunpack.c.h.b16 %v1438
    %v1504 = vunpack.c.l.b16 %v1439
    %v1505 = vunpack.c.h.b16 %v1439
    %v1506 = vunpack.c.l.b16 %v1440
    %v1507 = vunpack.c.h.b16 %v1440
    %v1508 = vunpack.c.l.b16 %v1441
    %v1509 = vunpack.c.h.b16 %v1441
    %v1510 = vunpack.c.l.b16 %v1442
    %v1511 = vunpack.c.h.b16 %v1442
    %v1512 = vunpack.c.l.b16 %v1443
    %v1513 = vunpack.c.h.b16 %v1443
    %v1514 = vunpack.c.l.b16 %v1444
    %v1515 = vunpack.c.h.b16 %v1444
    %v1516 = vunpack.c.l.b16 %v1445
    %v1517 = vunpack.c.h.b16 %v1445
    %v1518 = vpack.c.b16 %v1480, %v1478
    %v1519 = vpack.c.b16 %v1481, %v1479
    %v1520 = vpack.c.b16 %v1484, %v1482
    %v1521 = vpack.c.b16 %v1485, %v1483
    %v1522 = vpack.c.b16 %v1488, %v1486
    %v1523 = vpack.c.b16 %v1489, %v1487
    %v1524 = vpack.c.b16 %v1492, %v1490
    %v1525 = vpack.c.b16 %v1493, %v1491
    %v1526 = vpack.c.b16 %v1496, %v1494
    %v1527 = vpack.c.b16 %v1497, %v1495
    %v1528 = vpack.c.b16 %v1500, %v1498
    %v1529 = vpack.c.b16 %v1501, %v1499
    %v1530 = vpack.c.b16 %v1504, %v1502
    %v1531 = vpack.c.b16 %v1505, %v1503
    %v1532 = vpack.c.b16 %v1508, %v1506
    %v1533 = vpack.c.b16 %v1509, %v1507
    %v1534 = vpack.c.b16 %v1512, %v1510
    %v1535 = vpack.c.b16 %v1513, %v1511
    %v1536 = vpack.c.b16 %v1516, %v1514
    %v1537 = vpack.c.b16 %v1517, %v1515
    %v1559 = vsel %vm166, %v1423, 0
    %v1562 = vsel %vm166, %v1425, 0
    %1564 = vmatprep.subr.bf16.mxu0 %v1519
    %1565 = vmatpush1.bf16.msra.mxu0 %v1518
    %1566 = vmatprep.subr.bf16.mxu0 %v1521
    %1567 = vmatpush1.bf16.msra.mxu0 %v1520
    %1568 = vmatprep.subr.bf16.mxu0 %v1523
    %1569 = vmatpush1.bf16.msra.mxu0 %v1522
    %1570 = vmatprep.subr.bf16.mxu0 %v1525
    %1571 = vmatpush1.bf16.msra.mxu0 %v1524
    %1572 = vmatprep.subr.bf16.mxu0 %v1527
    %1573 = vmatpush1.bf16.msra.mxu0 %v1526
    %1574 = vmatprep.subr.bf16.mxu0 %v1529
    %1575 = vmatpush1.bf16.msra.mxu0 %v1528
    %1576 = vmatprep.subr.bf16.mxu0 %v1531
    %1577 = vmatpush1.bf16.msra.mxu0 %v1530
    %1578 = vmatprep.subr.bf16.mxu0 %v1533
    %1579 = vmatpush1.bf16.msra.mxu0 %v1532
    %1580 = vmatprep.subr.bf16.mxu0 %v1535
    %1581 = vmatpush1.bf16.msra.mxu0 %v1534
    %1582 = vmatprep.subr.bf16.mxu0 %v1537
    %1583 = vmatpush1.bf16.msra.mxu0 %v1536
    %1584 = vmatprep.subr.bf16.mxu0 0
    %1585 = vmatpush1.bf16.msra.mxu0 0
    %1586 = vmatprep.subr.bf16.mxu0 0
    %1587 = vmatpush1.bf16.msra.mxu0 0
    %1588 = vmatprep.subr.bf16.mxu0 0
    %1589 = vmatpush1.bf16.msra.mxu0 0
    %1590 = vmatprep.subr.bf16.mxu0 0
    %1591 = vmatpush1.bf16.msra.mxu0 0
    %1592 = vmatprep.subr.bf16.mxu0 0
    %1593 = vmatpush1.bf16.msra.mxu0 0
    %1594 = vmatprep.subr.bf16.mxu0 0
    %1595 = vmatpush1.bf16.msra.mxu0 0
    %1596 = vmatprep.mubr.bf16.mxu0 %v1559
    %1597 = vmatmul.mubr.bf16.gmra.mrb[0].mxu0 %v1422
    %v1598 = vpop.f32.mrb[0].mxu0
    %v1599 = vadd.f32 %v1451, %v1598
    %v1600 = vpop.f32.mrb[0].mxu0
    %v1601 = vadd.f32 %v1455, %v1600
    %v1602 = vpop.f32.mrb[0].mxu0
    %v1603 = vadd.f32 %v1451, %v1602
    %v1604 = vpop.f32.mrb[0].mxu0
    %v1605 = vadd.f32 %v1455, %v1604
    %1606 = vmatprep.mubr.bf16.mxu0 %v1562
    %1607 = vmatmul.mubr.bf16.gmra.mrb[0].mxu0 %v1424
    %v1608 = vpop.f32.mrb[0].mxu0
    %v1609 = vadd.f32 %v1451, %v1608
    %v1610 = vpop.f32.mrb[0].mxu0
    %v1611 = vadd.f32 %v1455, %v1610
    %v1612 = vpop.f32.mrb[0].mxu0
    %v1613 = vpop.f32.mrb[0].mxu0
    %1614 = vdwg.mxu0
    %vm1615 = vcmp.ge.f32.partialorder %v1599, 0.0
    %vm1616 = vcmp.ge.f32.partialorder %v1601, 0.0
    %vm1617 = vcmp.ge.f32.partialorder %v1603, 0.0
    %vm1618 = vcmp.ge.f32.partialorder %v1605, 0.0
    %vm1619 = vcmp.ge.f32.partialorder %v1609, 0.0
    %vm1620 = vcmp.ge.f32.partialorder %v1611, 0.0
    %v1621 = vmul.f32 %v1599, 0.4
    %v1622 = vmul.f32 %v1601, 0.4
    %v1623 = vmul.f32 %v1603, 0.4
    %v1624 = vmul.f32 %v1605, 0.4
    %v1625 = vmul.f32 %v1609, 0.4
    %v1626 = vmul.f32 %v1611, 0.4
    %v1627 = vsel %vm1615, %v1599, %v1621
    %v1628 = vsel %vm1616, %v1601, %v1622
    %v1629 = vsel %vm1617, %v1603, %v1623
    %v1630 = vsel %vm1618, %v1605, %v1624
    %v1631 = vsel %vm1619, %v1609, %v1625
    %v1632 = vsel %vm1620, %v1611, %v1626
    %s1633 = scalar_lea.vmem %s20, 160
    %v1634 = vld [vmem:[%s1633] sm:$0xff]
    %v1635 = vld [vmem:[%s1633 + $0x8] sm:$0xff]
    %v1636 = vld [vmem:[%s1633 + $0x10] sm:$0xff]
    %v1637 = vld [vmem:[%s1633 + $0x18] sm:$0xff]
    %v1638 = vld [vmem:[%s1633 + $0x20] sm:$0xff]
    %v1639 = vld [vmem:[%s1633 + $0x28] sm:$0xff]
    %v1640 = vld [vmem:[%s1633 + $0x30] sm:$0xff]
    %v1641 = vld [vmem:[%s1633 + $0x38] sm:$0xff]
    %v1642 = vld [vmem:[%s1633 + $0x40] sm:$0xff]
    %v1643 = vld [vmem:[%s1633 + $0x48] sm:$0xff]
    %v1644 = vld [vmem:[%s1633 + $0x50] sm:$0xff]
    %v1645 = vld [vmem:[%s1633 + $0x58] sm:$0xff]
    %v1646 = vld [vmem:[%s1633 + $0x60] sm:$0xff]
    %v1647 = vld [vmem:[%s1633 + $0x68] sm:$0xff]
    %v1648 = vld [vmem:[%s1633 + $0x70] sm:$0xff]
    %v1649 = vld [vmem:[%s1633 + $0x78] sm:$0xff]
    %v1650 = vld [vmem:[%s1633 + $0x80] sm:$0xff]
    %v1651 = vld [vmem:[%s1633 + $0x88] sm:$0xff]
    %v1652 = vld [vmem:[%s1633 + $0x90] sm:$0xff]
    %v1653 = vld [vmem:[%s1633 + $0x98] sm:$0xff]
    %s1654 = scalar_lea.vmem %s21, 2
    %v1655 = vld [vmem:[%s1654] sm:$0x3]
    %v1657 = vlaneseq
    %v1658 = vshrl.u32 %v1657, 7
    %v1659 = vsub.s32 0, %v1658
    %v1660 = vrot.slane %v1655, %v1659
    %v1661 = vlaneseq
    %v1662 = vshrl.u32 %v1661, 7
    %v1663 = vsub.s32 1, %v1662
    %v1664 = vrot.slane %v1655, %v1663
    %v1687 = vunpack.c.l.b16 %v1634
    %v1688 = vunpack.c.h.b16 %v1634
    %v1689 = vunpack.c.l.b16 %v1635
    %v1690 = vunpack.c.h.b16 %v1635
    %v1691 = vunpack.c.l.b16 %v1636
    %v1692 = vunpack.c.h.b16 %v1636
    %v1693 = vunpack.c.l.b16 %v1637
    %v1694 = vunpack.c.h.b16 %v1637
    %v1695 = vunpack.c.l.b16 %v1638
    %v1696 = vunpack.c.h.b16 %v1638
    %v1697 = vunpack.c.l.b16 %v1639
    %v1698 = vunpack.c.h.b16 %v1639
    %v1699 = vunpack.c.l.b16 %v1640
    %v1700 = vunpack.c.h.b16 %v1640
    %v1701 = vunpack.c.l.b16 %v1641
    %v1702 = vunpack.c.h.b16 %v1641
    %v1703 = vunpack.c.l.b16 %v1642
    %v1704 = vunpack.c.h.b16 %v1642
    %v1705 = vunpack.c.l.b16 %v1643
    %v1706 = vunpack.c.h.b16 %v1643
    %v1707 = vunpack.c.l.b16 %v1644
    %v1708 = vunpack.c.h.b16 %v1644
    %v1709 = vunpack.c.l.b16 %v1645
    %v1710 = vunpack.c.h.b16 %v1645
    %v1711 = vunpack.c.l.b16 %v1646
    %v1712 = vunpack.c.h.b16 %v1646
    %v1713 = vunpack.c.l.b16 %v1647
    %v1714 = vunpack.c.h.b16 %v1647
    %v1715 = vunpack.c.l.b16 %v1648
    %v1716 = vunpack.c.h.b16 %v1648
    %v1717 = vunpack.c.l.b16 %v1649
    %v1718 = vunpack.c.h.b16 %v1649
    %v1719 = vunpack.c.l.b16 %v1650
    %v1720 = vunpack.c.h.b16 %v1650
    %v1721 = vunpack.c.l.b16 %v1651
    %v1722 = vunpack.c.h.b16 %v1651
    %v1723 = vunpack.c.l.b16 %v1652
    %v1724 = vunpack.c.h.b16 %v1652
    %v1725 = vunpack.c.l.b16 %v1653
    %v1726 = vunpack.c.h.b16 %v1653
    %v1727 = vpack.c.b16 %v1689, %v1687
    %v1728 = vpack.c.b16 %v1690, %v1688
    %v1729 = vpack.c.b16 %v1693, %v1691
    %v1730 = vpack.c.b16 %v1694, %v1692
    %v1731 = vpack.c.b16 %v1697, %v1695
    %v1732 = vpack.c.b16 %v1698, %v1696
    %v1733 = vpack.c.b16 %v1701, %v1699
    %v1734 = vpack.c.b16 %v1702, %v1700
    %v1735 = vpack.c.b16 %v1705, %v1703
    %v1736 = vpack.c.b16 %v1706, %v1704
    %v1737 = vpack.c.b16 %v1709, %v1707
    %v1738 = vpack.c.b16 %v1710, %v1708
    %v1739 = vpack.c.b16 %v1713, %v1711
    %v1740 = vpack.c.b16 %v1714, %v1712
    %v1741 = vpack.c.b16 %v1717, %v1715
    %v1742 = vpack.c.b16 %v1718, %v1716
    %v1743 = vpack.c.b16 %v1721, %v1719
    %v1744 = vpack.c.b16 %v1722, %v1720
    %v1745 = vpack.c.b16 %v1725, %v1723
    %v1746 = vpack.c.b16 %v1726, %v1724
    %1767 = vmatprep.subr.bf16.mxu0 %v1728
    %1768 = vmatpush1.bf16.msra.mxu0 %v1727
    %1769 = vmatprep.subr.bf16.mxu0 %v1730
    %1770 = vmatpush1.bf16.msra.mxu0 %v1729
    %1771 = vmatprep.subr.bf16.mxu0 %v1732
    %1772 = vmatpush1.bf16.msra.mxu0 %v1731
    %1773 = vmatprep.subr.bf16.mxu0 %v1734
    %1774 = vmatpush1.bf16.msra.mxu0 %v1733
    %1775 = vmatprep.subr.bf16.mxu0 %v1736
    %1776 = vmatpush1.bf16.msra.mxu0 %v1735
    %1777 = vmatprep.subr.bf16.mxu0 %v1738
    %1778 = vmatpush1.bf16.msra.mxu0 %v1737
    %1779 = vmatprep.subr.bf16.mxu0 %v1740
    %1780 = vmatpush1.bf16.msra.mxu0 %v1739
    %1781 = vmatprep.subr.bf16.mxu0 %v1742
    %1782 = vmatpush1.bf16.msra.mxu0 %v1741
    %1783 = vmatprep.subr.bf16.mxu0 %v1744
    %1784 = vmatpush1.bf16.msra.mxu0 %v1743
    %1785 = vmatprep.subr.bf16.mxu0 %v1746
    %1786 = vmatpush1.bf16.msra.mxu0 %v1745
    %1787 = vmatprep.subr.bf16.mxu0 0
    %1788 = vmatpush1.bf16.msra.mxu0 0
    %1789 = vmatprep.subr.bf16.mxu0 0
    %1790 = vmatpush1.bf16.msra.mxu0 0
    %1791 = vmatprep.subr.bf16.mxu0 0
    %1792 = vmatpush1.bf16.msra.mxu0 0
    %1793 = vmatprep.subr.bf16.mxu0 0
    %1794 = vmatpush1.bf16.msra.mxu0 0
    %1795 = vmatprep.subr.bf16.mxu0 0
    %1796 = vmatpush1.bf16.msra.mxu0 0
    %1797 = vmatprep.subr.bf16.mxu0 0
    %1798 = vmatpush1.bf16.msra.mxu0 0
    %1799 = vmatprep.mubr.bf16.mxu0 %v1559
    %1800 = vmatmul.mubr.bf16.gmra.mrb[0].mxu0 %v1422
    %v1801 = vpop.f32.mrb[0].mxu0
    %v1802 = vadd.f32 %v1660, %v1801
    %v1803 = vpop.f32.mrb[0].mxu0
    %v1804 = vadd.f32 %v1664, %v1803
    %v1805 = vpop.f32.mrb[0].mxu0
    %v1806 = vadd.f32 %v1660, %v1805
    %v1807 = vpop.f32.mrb[0].mxu0
    %v1808 = vadd.f32 %v1664, %v1807
    %1809 = vmatprep.mubr.bf16.mxu0 %v1562
    %1810 = vmatmul.mubr.bf16.gmra.mrb[0].mxu0 %v1424
    %v1811 = vpop.f32.mrb[0].mxu0
    %v1812 = vadd.f32 %v1660, %v1811
    %v1813 = vpop.f32.mrb[0].mxu0
    %v1814 = vadd.f32 %v1664, %v1813
    %v1815 = vpop.f32.mrb[0].mxu0
    %v1816 = vpop.f32.mrb[0].mxu0
    %1817 = vdwg.mxu0
    %vm1818 = vcmp.ge.f32.partialorder %v1802, 0.0
    %vm1819 = vcmp.ge.f32.partialorder %v1804, 0.0
    %vm1820 = vcmp.ge.f32.partialorder %v1806, 0.0
    %vm1821 = vcmp.ge.f32.partialorder %v1808, 0.0
    %vm1822 = vcmp.ge.f32.partialorder %v1812, 0.0
    %vm1823 = vcmp.ge.f32.partialorder %v1814, 0.0
    %v1824 = vmul.f32 %v1802, 0.4
    %v1825 = vmul.f32 %v1804, 0.4
    %v1826 = vmul.f32 %v1806, 0.4
    %v1827 = vmul.f32 %v1808, 0.4
    %v1828 = vmul.f32 %v1812, 0.4
    %v1829 = vmul.f32 %v1814, 0.4
    %v1830 = vsel %vm1818, %v1802, %v1824
    %v1831 = vsel %vm1819, %v1804, %v1825
    %v1832 = vsel %vm1820, %v1806, %v1826
    %v1833 = vsel %vm1821, %v1808, %v1827
    %v1834 = vsel %vm1822, %v1812, %v1828
    %v1835 = vsel %vm1823, %v1814, %v1829
    %v1836 = vadd.f32 %v624, %v1627
    %v1837 = vadd.f32 %v625, %v1628
    %v1838 = vadd.f32 %v626, %v1629
    %v1839 = vadd.f32 %v627, %v1630
    %v1840 = vadd.f32 %v628, %v1631
    %v1841 = vadd.f32 %v629, %v1632
    %v1842 = vmul.f32 %v1836, 0.70710677
    %v1843 = vmul.f32 %v1837, 0.70710677
    %v1844 = vmul.f32 %v1838, 0.70710677
    %v1845 = vmul.f32 %v1839, 0.70710677
    %v1846 = vmul.f32 %v1840, 0.70710677
    %v1847 = vmul.f32 %v1841, 0.70710677
    %v1848 = vadd.f32 %v1830, 0.0
    %v1849 = vadd.f32 %v1831, 0.0
    %v1850 = vadd.f32 %v1832, 0.0
    %v1851 = vadd.f32 %v1833, 0.0
    %v1852 = vadd.f32 %v1834, 0.0
    %v1853 = vadd.f32 %v1835, 0.0
    %v1854 = vpack.c.bf16 %v1844, %v1842
    %v1855 = vpack.c.bf16 %v1845, %v1843
    %v1856 = vpack.c.bf16 %v1846, %v1846
    %v1857 = vpack.c.bf16 %v1847, %v1847
    %s1858 = scalar_lea.vmem %s16, 320
    %v1859 = vld [vmem:[%s1858] sm:$0xff]
    %v1860 = vld [vmem:[%s1858 + $0x8] sm:$0xff]
    %v1861 = vld [vmem:[%s1858 + $0x10] sm:$0xff]
    %v1862 = vld [vmem:[%s1858 + $0x18] sm:$0xff]
    %v1863 = vld [vmem:[%s1858 + $0x20] sm:$0xff]
    %v1864 = vld [vmem:[%s1858 + $0x28] sm:$0xff]
    %v1865 = vld [vmem:[%s1858 + $0x30] sm:$0xff]
    %v1866 = vld [vmem:[%s1858 + $0x38] sm:$0xff]
    %v1867 = vld [vmem:[%s1858 + $0x40] sm:$0xff]
    %v1868 = vld [vmem:[%s1858 + $0x48] sm:$0xff]
    %v1869 = vld [vmem:[%s1858 + $0x50] sm:$0xff]
    %v1870 = vld [vmem:[%s1858 + $0x58] sm:$0xff]
    %v1871 = vld [vmem:[%s1858 + $0x60] sm:$0xff]
    %v1872 = vld [vmem:[%s1858 + $0x68] sm:$0xff]
    %v1873 = vld [vmem:[%s1858 + $0x70] sm:$0xff]
    %v1874 = vld [vmem:[%s1858 + $0x78] sm:$0xff]
    %v1875 = vld [vmem:[%s1858 + $0x80] sm:$0xff]
    %v1876 = vld [vmem:[%s1858 + $0x88] sm:$0xff]
    %v1877 = vld [vmem:[%s1858 + $0x90] sm:$0xff]
    %v1878 = vld [vmem:[%s1858 + $0x98] sm:$0xff]
    %s1879 = scalar_lea.vmem %s17, 128
    %v1880 = vld [vmem:[%s1879] sm:$0xff]
    %v1881 = vld [vmem:[%s1879 + $0x8] sm:$0xff]
    %v1882 = vld [vmem:[%s1879 + $0x10] sm:$0xff]
    %v1883 = vld [vmem:[%s1879 + $0x18] sm:$0xff]
    %v1884 = vld [vmem:[%s1879 + $0x20] sm:$0xff]
    %v1885 = vld [vmem:[%s1879 + $0x28] sm:$0xff]
    %v1886 = vld [vmem:[%s1879 + $0x30] sm:$0xff]
    %v1887 = vld [vmem:[%s1879 + $0x38] sm:$0xff]
    %v1896 = vunpack.c.l.b16 %v1880
    %v1897 = vunpack.c.h.b16 %v1880
    %v1898 = vunpack.c.l.b16 %v1881
    %v1899 = vunpack.c.h.b16 %v1881
    %v1900 = vunpack.c.l.b16 %v1882
    %v1901 = vunpack.c.h.b16 %v1882
    %v1902 = vunpack.c.l.b16 %v1883
    %v1903 = vunpack.c.h.b16 %v1883
    %v1904 = vunpack.c.l.b16 %v1884
    %v1905 = vunpack.c.h.b16 %v1884
    %v1906 = vunpack.c.l.b16 %v1885
    %v1907 = vunpack.c.h.b16 %v1885
    %v1908 = vunpack.c.l.b16 %v1886
    %v1909 = vunpack.c.h.b16 %v1886
    %v1910 = vunpack.c.l.b16 %v1887
    %v1911 = vunpack.c.h.b16 %v1887
    %v1912 = vpack.c.b16 %v1898, %v1896
    %v1913 = vpack.c.b16 %v1899, %v1897
    %v1914 = vpack.c.b16 %v1902, %v1900
    %v1915 = vpack.c.b16 %v1903, %v1901
    %v1916 = vpack.c.b16 %v1906, %v1904
    %v1917 = vpack.c.b16 %v1907, %v1905
    %v1918 = vpack.c.b16 %v1910, %v1908
    %v1919 = vpack.c.b16 %v1911, %v1909
    %1928 = vmatprep.subr.bf16.mxu0 %v1913
    %1929 = vmatpush1.bf16.msra.mxu0 %v1912
    %1930 = vmatprep.subr.bf16.mxu0 %v1915
    %1931 = vmatpush1.bf16.msra.mxu0 %v1914
    %1932 = vmatprep.subr.bf16.mxu0 %v1917
    %1933 = vmatpush1.bf16.msra.mxu0 %v1916
    %1934 = vmatprep.subr.bf16.mxu0 %v1919
    %1935 = vmatpush1.bf16.msra.mxu0 %v1918
    %1936 = vmatprep.subr.bf16.mxu0 0
    %1937 = vmatpush1.bf16.msra.mxu0 0
    %1938 = vmatprep.subr.bf16.mxu0 0
    %1939 = vmatpush1.bf16.msra.mxu0 0
    %1940 = vmatprep.subr.bf16.mxu0 0
    %1941 = vmatpush1.bf16.msra.mxu0 0
    %1942 = vmatprep.subr.bf16.mxu0 0
    %1943 = vmatpush1.bf16.msra.mxu0 0
    %1944 = vmatprep.subr.bf16.mxu0 0
    %1945 = vmatpush1.bf16.msra.mxu0 0
    %1946 = vmatprep.subr.bf16.mxu0 0
    %1947 = vmatpush1.bf16.msra.mxu0 0
    %1948 = vmatprep.subr.bf16.mxu0 0
    %1949 = vmatpush1.bf16.msra.mxu0 0
    %1950 = vmatprep.subr.bf16.mxu0 0
    %1951 = vmatpush1.bf16.msra.mxu0 0
    %1952 = vmatprep.subr.bf16.mxu0 0
    %1953 = vmatpush1.bf16.msra.mxu0 0
    %1954 = vmatprep.subr.bf16.mxu0 0
    %1955 = vmatpush1.bf16.msra.mxu0 0
    %1956 = vmatprep.subr.bf16.mxu0 0
    %1957 = vmatpush1.bf16.msra.mxu0 0
    %1958 = vmatprep.subr.bf16.mxu0 0
    %1959 = vmatpush1.bf16.msra.mxu0 0
    %1960 = vmatprep.mubr.bf16.mxu0 0
    %1961 = vmatmul.mubr.bf16.gmra.mrb[0].mxu0 %v707
    %v1962 = vpop.f32.mrb[0].mxu0
    %v1963 = vadd.f32 0.0, %v1962
    %v1964 = vpop.f32.mrb[0].mxu0
    %v1965 = vadd.f32 0.0, %v1964
    %v1966 = vpop.f32.mrb[0].mxu0
    %v1967 = vadd.f32 0.0, %v1966
    %v1968 = vpop.f32.mrb[0].mxu0
    %v1969 = vadd.f32 0.0, %v1968
    %1970 = vmatprep.mubr.bf16.mxu0 0
    %1971 = vmatmul.mubr.bf16.gmra.mrb[0].mxu0 %v710
    %v1972 = vpop.f32.mrb[0].mxu0
    %v1973 = vadd.f32 0.0, %v1972
    %v1974 = vpop.f32.mrb[0].mxu0
    %v1975 = vadd.f32 0.0, %v1974
    %v1976 = vpop.f32.mrb[0].mxu0
    %v1977 = vpop.f32.mrb[0].mxu0
    %1978 = vdwg.mxu0
    %v1999 = vunpack.c.l.b16 %v1859
    %v2000 = vunpack.c.h.b16 %v1859
    %v2001 = vunpack.c.l.b16 %v1860
    %v2002 = vunpack.c.h.b16 %v1860
    %v2003 = vunpack.c.l.b16 %v1861
    %v2004 = vunpack.c.h.b16 %v1861
    %v2005 = vunpack.c.l.b16 %v1862
    %v2006 = vunpack.c.h.b16 %v1862
    %v2007 = vunpack.c.l.b16 %v1863
    %v2008 = vunpack.c.h.b16 %v1863
    %v2009 = vunpack.c.l.b16 %v1864
    %v2010 = vunpack.c.h.b16 %v1864
    %v2011 = vunpack.c.l.b16 %v1865
    %v2012 = vunpack.c.h.b16 %v1865
    %v2013 = vunpack.c.l.b16 %v1866
    %v2014 = vunpack.c.h.b16 %v1866
    %v2015 = vunpack.c.l.b16 %v1867
    %v2016 = vunpack.c.h.b16 %v1867
    %v2017 = vunpack.c.l.b16 %v1868
    %v2018 = vunpack.c.h.b16 %v1868
    %v2019 = vunpack.c.l.b16 %v1869
    %v2020 = vunpack.c.h.b16 %v1869
    %v2021 = vunpack.c.l.b16 %v1870
    %v2022 = vunpack.c.h.b16 %v1870
    %v2023 = vunpack.c.l.b16 %v1871
    %v2024 = vunpack.c.h.b16 %v1871
    %v2025 = vunpack.c.l.b16 %v1872
    %v2026 = vunpack.c.h.b16 %v1872
    %v2027 = vunpack.c.l.b16 %v1873
    %v2028 = vunpack.c.h.b16 %v1873
    %v2029 = vunpack.c.l.b16 %v1874
    %v2030 = vunpack.c.h.b16 %v1874
    %v2031 = vunpack.c.l.b16 %v1875
    %v2032 = vunpack.c.h.b16 %v1875
    %v2033 = vunpack.c.l.b16 %v1876
    %v2034 = vunpack.c.h.b16 %v1876
    %v2035 = vunpack.c.l.b16 %v1877
    %v2036 = vunpack.c.h.b16 %v1877
    %v2037 = vunpack.c.l.b16 %v1878
    %v2038 = vunpack.c.h.b16 %v1878
    %v2039 = vpack.c.b16 %v2001, %v1999
    %v2040 = vpack.c.b16 %v2002, %v2000
    %v2041 = vpack.c.b16 %v2005, %v2003
    %v2042 = vpack.c.b16 %v2006, %v2004
    %v2043 = vpack.c.b16 %v2009, %v2007
    %v2044 = vpack.c.b16 %v2010, %v2008
    %v2045 = vpack.c.b16 %v2013, %v2011
    %v2046 = vpack.c.b16 %v2014, %v2012
    %v2047 = vpack.c.b16 %v2017, %v2015
    %v2048 = vpack.c.b16 %v2018, %v2016
    %v2049 = vpack.c.b16 %v2021, %v2019
    %v2050 = vpack.c.b16 %v2022, %v2020
    %v2051 = vpack.c.b16 %v2025, %v2023
    %v2052 = vpack.c.b16 %v2026, %v2024
    %v2053 = vpack.c.b16 %v2029, %v2027
    %v2054 = vpack.c.b16 %v2030, %v2028
    %v2055 = vpack.c.b16 %v2033, %v2031
    %v2056 = vpack.c.b16 %v2034, %v2032
    %v2057 = vpack.c.b16 %v2037, %v2035
    %v2058 = vpack.c.b16 %v2038, %v2036
    %v2080 = vsel %vm166, %v1855, 0
    %v2083 = vsel %vm166, %v1857, 0
    %2085 = vmatprep.subr.bf16.mxu0 %v2040
    %2086 = vmatpush1.bf16.msra.mxu0 %v2039
    %2087 = vmatprep.subr.bf16.mxu0 %v2042
    %2088 = vmatpush1.bf16.msra.mxu0 %v2041
    %2089 = vmatprep.subr.bf16.mxu0 %v2044
    %2090 = vmatpush1.bf16.msra.mxu0 %v2043
    %2091 = vmatprep.subr.bf16.mxu0 %v2046
    %2092 = vmatpush1.bf16.msra.mxu0 %v2045
    %2093 = vmatprep.subr.bf16.mxu0 %v2048
    %2094 = vmatpush1.bf16.msra.mxu0 %v2047
    %2095 = vmatprep.subr.bf16.mxu0 %v2050
    %2096 = vmatpush1.bf16.msra.mxu0 %v2049
    %2097 = vmatprep.subr.bf16.mxu0 %v2052
    %2098 = vmatpush1.bf16.msra.mxu0 %v2051
    %2099 = vmatprep.subr.bf16.mxu0 %v2054
    %2100 = vmatpush1.bf16.msra.mxu0 %v2053
    %2101 = vmatprep.subr.bf16.mxu0 %v2056
    %2102 = vmatpush1.bf16.msra.mxu0 %v2055
    %2103 = vmatprep.subr.bf16.mxu0 %v2058
    %2104 = vmatpush1.bf16.msra.mxu0 %v2057
    %2105 = vmatprep.subr.bf16.mxu0 0
    %2106 = vmatpush1.bf16.msra.mxu0 0
    %2107 = vmatprep.subr.bf16.mxu0 0
    %2108 = vmatpush1.bf16.msra.mxu0 0
    %2109 = vmatprep.subr.bf16.mxu0 0
    %2110 = vmatpush1.bf16.msra.mxu0 0
    %2111 = vmatprep.subr.bf16.mxu0 0
    %2112 = vmatpush1.bf16.msra.mxu0 0
    %2113 = vmatprep.subr.bf16.mxu0 0
    %2114 = vmatpush1.bf16.msra.mxu0 0
    %2115 = vmatprep.subr.bf16.mxu0 0
    %2116 = vmatpush1.bf16.msra.mxu0 0
    %2117 = vmatprep.mubr.bf16.mxu0 %v2080
    %2118 = vmatmul.mubr.bf16.gmra.mrb[0].mxu0 %v1854
    %v2119 = vpop.f32.mrb[0].mxu0
    %v2120 = vadd.f32 %v1963, %v2119
    %v2121 = vpop.f32.mrb[0].mxu0
    %v2122 = vadd.f32 %v1965, %v2121
    %v2123 = vpop.f32.mrb[0].mxu0
    %v2124 = vadd.f32 %v1967, %v2123
    %v2125 = vpop.f32.mrb[0].mxu0
    %v2126 = vadd.f32 %v1969, %v2125
    %2127 = vmatprep.mubr.bf16.mxu0 %v2083
    %2128 = vmatmul.mubr.bf16.gmra.mrb[0].mxu0 %v1856
    %v2129 = vpop.f32.mrb[0].mxu0
    %v2130 = vadd.f32 %v1973, %v2129
    %v2131 = vpop.f32.mrb[0].mxu0
    %v2132 = vadd.f32 %v1975, %v2131
    %v2133 = vpop.f32.mrb[0].mxu0
    %v2134 = vpop.f32.mrb[0].mxu0
    %2135 = vdwg.mxu0
    %s2136 = scalar_lea.vmem %s18, 32
    %v2137 = vld [vmem:[%s2136] sm:$0xff]
    %v2138 = vld [vmem:[%s2136 + $0x8] sm:$0xff]
    %v2141 = vunpack.c.l.b16 %v2137
    %v2142 = vunpack.c.h.b16 %v2137
    %v2143 = vunpack.c.l.b16 %v2138
    %v2144 = vunpack.c.h.b16 %v2138
    %v2145 = vpack.c.b16 %v2143, %v2141
    %v2146 = vpack.c.b16 %v2144, %v2142
    %2149 = vmatprep.subr.bf16.mxu0 %v2146
    %2150 = vmatpush1.bf16.msra.mxu0 %v2145
    %2151 = vmatprep.subr.bf16.mxu0 0
    %2152 = vmatpush1.bf16.msra.mxu0 0
    %2153 = vmatprep.subr.bf16.mxu0 0
    %2154 = vmatpush1.bf16.msra.mxu0 0
    %2155 = vmatprep.subr.bf16.mxu0 0
    %2156 = vmatpush1.bf16.msra.mxu0 0
    %2157 = vmatprep.subr.bf16.mxu0 0
    %2158 = vmatpush1.bf16.msra.mxu0 0
    %2159 = vmatprep.subr.bf16.mxu0 0
    %2160 = vmatpush1.bf16.msra.mxu0 0
    %2161 = vmatprep.subr.bf16.mxu0 0
    %2162 = vmatpush1.bf16.msra.mxu0 0
    %2163 = vmatprep.subr.bf16.mxu0 0
    %2164 = vmatpush1.bf16.msra.mxu0 0
    %2165 = vmatprep.subr.bf16.mxu0 0
    %2166 = vmatpush1.bf16.msra.mxu0 0
    %2167 = vmatprep.subr.bf16.mxu0 0
    %2168 = vmatpush1.bf16.msra.mxu0 0
    %2169 = vmatprep.subr.bf16.mxu0 0
    %2170 = vmatpush1.bf16.msra.mxu0 0
    %2171 = vmatprep.subr.bf16.mxu0 0
    %2172 = vmatpush1.bf16.msra.mxu0 0
    %2173 = vmatprep.subr.bf16.mxu0 0
    %2174 = vmatpush1.bf16.msra.mxu0 0
    %2175 = vmatprep.subr.bf16.mxu0 0
    %2176 = vmatpush1.bf16.msra.mxu0 0
    %2177 = vmatprep.subr.bf16.mxu0 0
    %2178 = vmatpush1.bf16.msra.mxu0 0
    %2179 = vmatprep.subr.bf16.mxu0 0
    %2180 = vmatpush1.bf16.msra.mxu0 0
    %2181 = vmatprep.mubr.bf16.mxu0 0
    %2182 = vmatmul.mubr.bf16.gmra.mrb[0].mxu0 %v933
    %v2183 = vpop.f32.mrb[0].mxu0
    %v2184 = vadd.f32 0.0, %v2183
    %v2185 = vpop.f32.mrb[0].mxu0
    %v2186 = vadd.f32 0.0, %v2185
    %v2187 = vpop.f32.mrb[0].mxu0
    %v2188 = vadd.f32 0.0, %v2187
    %v2189 = vpop.f32.mrb[0].mxu0
    %v2190 = vadd.f32 0.0, %v2189
    %2191 = vmatprep.mubr.bf16.mxu0 0
    %2192 = vmatmul.mubr.bf16.gmra.mrb[0].mxu0 %v936
    %v2193 = vpop.f32.mrb[0].mxu0
    %v2194 = vadd.f32 0.0, %v2193
    %v2195 = vpop.f32.mrb[0].mxu0
    %v2196 = vadd.f32 0.0, %v2195
    %v2197 = vpop.f32.mrb[0].mxu0
    %v2198 = vpop.f32.mrb[0].mxu0
    %2199 = vdwg.mxu0
    %v2200 = vadd.f32 %v2120, %v2184
    %v2201 = vadd.f32 %v2122, %v2186
    %v2202 = vadd.f32 %v2124, %v2188
    %v2203 = vadd.f32 %v2126, %v2190
    %v2204 = vadd.f32 %v2130, %v2194
    %v2205 = vadd.f32 %v2132, %v2196
    %s2206 = scalar_lea.vmem %s19, 4
    %v2207 = vld [vmem:[%s2206] sm:$0x3]
    %v2209 = vlaneseq
    %v2210 = vshrl.u32 %v2209, 7
    %v2211 = vsub.s32 0, %v2210
    %v2212 = vrot.slane %v2207, %v2211
    %v2213 = vlaneseq
    %v2214 = vshrl.u32 %v2213, 7
    %v2215 = vsub.s32 1, %v2214
    %v2216 = vrot.slane %v2207, %v2215
    %v2219 = vadd.f32 %v2200, %v2212
    %v2220 = vadd.f32 %v2201, %v2216
    %v2221 = vadd.f32 %v2202, %v2212
    %v2222 = vadd.f32 %v2203, %v2216
    %v2223 = vadd.f32 %v2204, %v2212
    %v2224 = vadd.f32 %v2205, %v2216
    %s2225 = scalar_lea.vmem %s16, 480
    %v2226 = vld [vmem:[%s2225] sm:$0xff]
    %v2227 = vld [vmem:[%s2225 + $0x8] sm:$0xff]
    %v2228 = vld [vmem:[%s2225 + $0x10] sm:$0xff]
    %v2229 = vld [vmem:[%s2225 + $0x18] sm:$0xff]
    %v2230 = vld [vmem:[%s2225 + $0x20] sm:$0xff]
    %v2231 = vld [vmem:[%s2225 + $0x28] sm:$0xff]
    %v2232 = vld [vmem:[%s2225 + $0x30] sm:$0xff]
    %v2233 = vld [vmem:[%s2225 + $0x38] sm:$0xff]
    %v2234 = vld [vmem:[%s2225 + $0x40] sm:$0xff]
    %v2235 = vld [vmem:[%s2225 + $0x48] sm:$0xff]
    %v2236 = vld [vmem:[%s2225 + $0x50] sm:$0xff]
    %v2237 = vld [vmem:[%s2225 + $0x58] sm:$0xff]
    %v2238 = vld [vmem:[%s2225 + $0x60] sm:$0xff]
    %v2239 = vld [vmem:[%s2225 + $0x68] sm:$0xff]
    %v2240 = vld [vmem:[%s2225 + $0x70] sm:$0xff]
    %v2241 = vld [vmem:[%s2225 + $0x78] sm:$0xff]
    %v2242 = vld [vmem:[%s2225 + $0x80] sm:$0xff]
    %v2243 = vld [vmem:[%s2225 + $0x88] sm:$0xff]
    %v2244 = vld [vmem:[%s2225 + $0x90] sm:$0xff]
    %v2245 = vld [vmem:[%s2225 + $0x98] sm:$0xff]
    %s2246 = scalar_lea.vmem %s17, 192
    %v2247 = vld [vmem:[%s2246] sm:$0xff]
    %v2248 = vld [vmem:[%s2246 + $0x8] sm:$0xff]
    %v2249 = vld [vmem:[%s2246 + $0x10] sm:$0xff]
    %v2250 = vld [vmem:[%s2246 + $0x18] sm:$0xff]
    %v2251 = vld [vmem:[%s2246 + $0x20] sm:$0xff]
    %v2252 = vld [vmem:[%s2246 + $0x28] sm:$0xff]
    %v2253 = vld [vmem:[%s2246 + $0x30] sm:$0xff]
    %v2254 = vld [vmem:[%s2246 + $0x38] sm:$0xff]
    %v2263 = vunpack.c.l.b16 %v2247
    %v2264 = vunpack.c.h.b16 %v2247
    %v2265 = vunpack.c.l.b16 %v2248
    %v2266 = vunpack.c.h.b16 %v2248
    %v2267 = vunpack.c.l.b16 %v2249
    %v2268 = vunpack.c.h.b16 %v2249
    %v2269 = vunpack.c.l.b16 %v2250
    %v2270 = vunpack.c.h.b16 %v2250
    %v2271 = vunpack.c.l.b16 %v2251
    %v2272 = vunpack.c.h.b16 %v2251
    %v2273 = vunpack.c.l.b16 %v2252
    %v2274 = vunpack.c.h.b16 %v2252
    %v2275 = vunpack.c.l.b16 %v2253
    %v2276 = vunpack.c.h.b16 %v2253
    %v2277 = vunpack.c.l.b16 %v2254
    %v2278 = vunpack.c.h.b16 %v2254
    %v2279 = vpack.c.b16 %v2265, %v2263
    %v2280 = vpack.c.b16 %v2266, %v2264
    %v2281 = vpack.c.b16 %v2269, %v2267
    %v2282 = vpack.c.b16 %v2270, %v2268
    %v2283 = vpack.c.b16 %v2273, %v2271
    %v2284 = vpack.c.b16 %v2274, %v2272
    %v2285 = vpack.c.b16 %v2277, %v2275
    %v2286 = vpack.c.b16 %v2278, %v2276
    %2295 = vmatprep.subr.bf16.mxu0 %v2280
    %2296 = vmatpush1.bf16.msra.mxu0 %v2279
    %2297 = vmatprep.subr.bf16.mxu0 %v2282
    %2298 = vmatpush1.bf16.msra.mxu0 %v2281
    %2299 = vmatprep.subr.bf16.mxu0 %v2284
    %2300 = vmatpush1.bf16.msra.mxu0 %v2283
    %2301 = vmatprep.subr.bf16.mxu0 %v2286
    %2302 = vmatpush1.bf16.msra.mxu0 %v2285
    %2303 = vmatprep.subr.bf16.mxu0 0
    %2304 = vmatpush1.bf16.msra.mxu0 0
    %2305 = vmatprep.subr.bf16.mxu0 0
    %2306 = vmatpush1.bf16.msra.mxu0 0
    %2307 = vmatprep.subr.bf16.mxu0 0
    %2308 = vmatpush1.bf16.msra.mxu0 0
    %2309 = vmatprep.subr.bf16.mxu0 0
    %2310 = vmatpush1.bf16.msra.mxu0 0
    %2311 = vmatprep.subr.bf16.mxu0 0
    %2312 = vmatpush1.bf16.msra.mxu0 0
    %2313 = vmatprep.subr.bf16.mxu0 0
    %2314 = vmatpush1.bf16.msra.mxu0 0
    %2315 = vmatprep.subr.bf16.mxu0 0
    %2316 = vmatpush1.bf16.msra.mxu0 0
    %2317 = vmatprep.subr.bf16.mxu0 0
    %2318 = vmatpush1.bf16.msra.mxu0 0
    %2319 = vmatprep.subr.bf16.mxu0 0
    %2320 = vmatpush1.bf16.msra.mxu0 0
    %2321 = vmatprep.subr.bf16.mxu0 0
    %2322 = vmatpush1.bf16.msra.mxu0 0
    %2323 = vmatprep.subr.bf16.mxu0 0
    %2324 = vmatpush1.bf16.msra.mxu0 0
    %2325 = vmatprep.subr.bf16.mxu0 0
    %2326 = vmatpush1.bf16.msra.mxu0 0
    %2327 = vmatprep.mubr.bf16.mxu0 0
    %2328 = vmatmul.mubr.bf16.gmra.mrb[0].mxu0 %v707
    %v2329 = vpop.f32.mrb[0].mxu0
    %v2330 = vadd.f32 0.0, %v2329
    %v2331 = vpop.f32.mrb[0].mxu0
    %v2332 = vadd.f32 0.0, %v2331
    %v2333 = vpop.f32.mrb[0].mxu0
    %v2334 = vadd.f32 0.0, %v2333
    %v2335 = vpop.f32.mrb[0].mxu0
    %v2336 = vadd.f32 0.0, %v2335
    %2337 = vmatprep.mubr.bf16.mxu0 0
    %2338 = vmatmul.mubr.bf16.gmra.mrb[0].mxu0 %v710
    %v2339 = vpop.f32.mrb[0].mxu0
    %v2340 = vadd.f32 0.0, %v2339
    %v2341 = vpop.f32.mrb[0].mxu0
    %v2342 = vadd.f32 0.0, %v2341
    %v2343 = vpop.f32.mrb[0].mxu0
    %v2344 = vpop.f32.mrb[0].mxu0
    %2345 = vdwg.mxu0
    %v2366 = vunpack.c.l.b16 %v2226
    %v2367 = vunpack.c.h.b16 %v2226
    %v2368 = vunpack.c.l.b16 %v2227
    %v2369 = vunpack.c.h.b16 %v2227
    %v2370 = vunpack.c.l.b16 %v2228
    %v2371 = vunpack.c.h.b16 %v2228
    %v2372 = vunpack.c.l.b16 %v2229
    %v2373 = vunpack.c.h.b16 %v2229
    %v2374 = vunpack.c.l.b16 %v2230
    %v2375 = vunpack.c.h.b16 %v2230
    %v2376 = vunpack.c.l.b16 %v2231
    %v2377 = vunpack.c.h.b16 %v2231
    %v2378 = vunpack.c.l.b16 %v2232
    %v2379 = vunpack.c.h.b16 %v2232
    %v2380 = vunpack.c.l.b16 %v2233
    %v2381 = vunpack.c.h.b16 %v2233
    %v2382 = vunpack.c.l.b16 %v2234
    %v2383 = vunpack.c.h.b16 %v2234
    %v2384 = vunpack.c.l.b16 %v2235
    %v2385 = vunpack.c.h.b16 %v2235
    %v2386 = vunpack.c.l.b16 %v2236
    %v2387 = vunpack.c.h.b16 %v2236
    %v2388 = vunpack.c.l.b16 %v2237
    %v2389 = vunpack.c.h.b16 %v2237
    %v2390 = vunpack.c.l.b16 %v2238
    %v2391 = vunpack.c.h.b16 %v2238
    %v2392 = vunpack.c.l.b16 %v2239
    %v2393 = vunpack.c.h.b16 %v2239
    %v2394 = vunpack.c.l.b16 %v2240
    %v2395 = vunpack.c.h.b16 %v2240
    %v2396 = vunpack.c.l.b16 %v2241
    %v2397 = vunpack.c.h.b16 %v2241
    %v2398 = vunpack.c.l.b16 %v2242
    %v2399 = vunpack.c.h.b16 %v2242
    %v2400 = vunpack.c.l.b16 %v2243
    %v2401 = vunpack.c.h.b16 %v2243
    %v2402 = vunpack.c.l.b16 %v2244
    %v2403 = vunpack.c.h.b16 %v2244
    %v2404 = vunpack.c.l.b16 %v2245
    %v2405 = vunpack.c.h.b16 %v2245
    %v2406 = vpack.c.b16 %v2368, %v2366
    %v2407 = vpack.c.b16 %v2369, %v2367
    %v2408 = vpack.c.b16 %v2372, %v2370
    %v2409 = vpack.c.b16 %v2373, %v2371
    %v2410 = vpack.c.b16 %v2376, %v2374
    %v2411 = vpack.c.b16 %v2377, %v2375
    %v2412 = vpack.c.b16 %v2380, %v2378
    %v2413 = vpack.c.b16 %v2381, %v2379
    %v2414 = vpack.c.b16 %v2384, %v2382
    %v2415 = vpack.c.b16 %v2385, %v2383
    %v2416 = vpack.c.b16 %v2388, %v2386
    %v2417 = vpack.c.b16 %v2389, %v2387
    %v2418 = vpack.c.b16 %v2392, %v2390
    %v2419 = vpack.c.b16 %v2393, %v2391
    %v2420 = vpack.c.b16 %v2396, %v2394
    %v2421 = vpack.c.b16 %v2397, %v2395
    %v2422 = vpack.c.b16 %v2400, %v2398
    %v2423 = vpack.c.b16 %v2401, %v2399
    %v2424 = vpack.c.b16 %v2404, %v2402
    %v2425 = vpack.c.b16 %v2405, %v2403
    %2446 = vmatprep.subr.bf16.mxu0 %v2407
    %2447 = vmatpush1.bf16.msra.mxu0 %v2406
    %2448 = vmatprep.subr.bf16.mxu0 %v2409
    %2449 = vmatpush1.bf16.msra.mxu0 %v2408
    %2450 = vmatprep.subr.bf16.mxu0 %v2411
    %2451 = vmatpush1.bf16.msra.mxu0 %v2410
    %2452 = vmatprep.subr.bf16.mxu0 %v2413
    %2453 = vmatpush1.bf16.msra.mxu0 %v2412
    %2454 = vmatprep.subr.bf16.mxu0 %v2415
    %2455 = vmatpush1.bf16.msra.mxu0 %v2414
    %2456 = vmatprep.subr.bf16.mxu0 %v2417
    %2457 = vmatpush1.bf16.msra.mxu0 %v2416
    %2458 = vmatprep.subr.bf16.mxu0 %v2419
    %2459 = vmatpush1.bf16.msra.mxu0 %v2418
    %2460 = vmatprep.subr.bf16.mxu0 %v2421
    %2461 = vmatpush1.bf16.msra.mxu0 %v2420
    %2462 = vmatprep.subr.bf16.mxu0 %v2423
    %2463 = vmatpush1.bf16.msra.mxu0 %v2422
    %2464 = vmatprep.subr.bf16.mxu0 %v2425
    %2465 = vmatpush1.bf16.msra.mxu0 %v2424
    %2466 = vmatprep.subr.bf16.mxu0 0
    %2467 = vmatpush1.bf16.msra.mxu0 0
    %2468 = vmatprep.subr.bf16.mxu0 0
    %2469 = vmatpush1.bf16.msra.mxu0 0
    %2470 = vmatprep.subr.bf16.mxu0 0
    %2471 = vmatpush1.bf16.msra.mxu0 0
    %2472 = vmatprep.subr.bf16.mxu0 0
    %2473 = vmatpush1.bf16.msra.mxu0 0
    %2474 = vmatprep.subr.bf16.mxu0 0
    %2475 = vmatpush1.bf16.msra.mxu0 0
    %2476 = vmatprep.subr.bf16.mxu0 0
    %2477 = vmatpush1.bf16.msra.mxu0 0
    %2478 = vmatprep.mubr.bf16.mxu0 %v2080
    %2479 = vmatmul.mubr.bf16.gmra.mrb[0].mxu0 %v1854
    %v2480 = vpop.f32.mrb[0].mxu0
    %v2481 = vadd.f32 %v2330, %v2480
    %v2482 = vpop.f32.mrb[0].mxu0
    %v2483 = vadd.f32 %v2332, %v2482
    %v2484 = vpop.f32.mrb[0].mxu0
    %v2485 = vadd.f32 %v2334, %v2484
    %v2486 = vpop.f32.mrb[0].mxu0
    %v2487 = vadd.f32 %v2336, %v2486
    %2488 = vmatprep.mubr.bf16.mxu0 %v2083
    %2489 = vmatmul.mubr.bf16.gmra.mrb[0].mxu0 %v1856
    %v2490 = vpop.f32.mrb[0].mxu0
    %v2491 = vadd.f32 %v2340, %v2490
    %v2492 = vpop.f32.mrb[0].mxu0
    %v2493 = vadd.f32 %v2342, %v2492
    %v2494 = vpop.f32.mrb[0].mxu0
    %v2495 = vpop.f32.mrb[0].mxu0
    %2496 = vdwg.mxu0
    %s2497 = scalar_lea.vmem %s18, 48
    %v2498 = vld [vmem:[%s2497] sm:$0xff]
    %v2499 = vld [vmem:[%s2497 + $0x8] sm:$0xff]
    %v2502 = vunpack.c.l.b16 %v2498
    %v2503 = vunpack.c.h.b16 %v2498
    %v2504 = vunpack.c.l.b16 %v2499
    %v2505 = vunpack.c.h.b16 %v2499
    %v2506 = vpack.c.b16 %v2504, %v2502
    %v2507 = vpack.c.b16 %v2505, %v2503
    %2510 = vmatprep.subr.bf16.mxu0 %v2507
    %2511 = vmatpush1.bf16.msra.mxu0 %v2506
    %2512 = vmatprep.subr.bf16.mxu0 0
    %2513 = vmatpush1.bf16.msra.mxu0 0
    %2514 = vmatprep.subr.bf16.mxu0 0
    %2515 = vmatpush1.bf16.msra.mxu0 0
    %2516 = vmatprep.subr.bf16.mxu0 0
    %2517 = vmatpush1.bf16.msra.mxu0 0
    %2518 = vmatprep.subr.bf16.mxu0 0
    %2519 = vmatpush1.bf16.msra.mxu0 0
    %2520 = vmatprep.subr.bf16.mxu0 0
    %2521 = vmatpush1.bf16.msra.mxu0 0
    %2522 = vmatprep.subr.bf16.mxu0 0
    %2523 = vmatpush1.bf16.msra.mxu0 0
    %2524 = vmatprep.subr.bf16.mxu0 0
    %2525 = vmatpush1.bf16.msra.mxu0 0
    %2526 = vmatprep.subr.bf16.mxu0 0
    %2527 = vmatpush1.bf16.msra.mxu0 0
    %2528 = vmatprep.subr.bf16.mxu0 0
    %2529 = vmatpush1.bf16.msra.mxu0 0
    %2530 = vmatprep.subr.bf16.mxu0 0
    %2531 = vmatpush1.bf16.msra.mxu0 0
    %2532 = vmatprep.subr.bf16.mxu0 0
    %2533 = vmatpush1.bf16.msra.mxu0 0
    %2534 = vmatprep.subr.bf16.mxu0 0
    %2535 = vmatpush1.bf16.msra.mxu0 0
    %2536 = vmatprep.subr.bf16.mxu0 0
    %2537 = vmatpush1.bf16.msra.mxu0 0
    %2538 = vmatprep.subr.bf16.mxu0 0
    %2539 = vmatpush1.bf16.msra.mxu0 0
    %2540 = vmatprep.subr.bf16.mxu0 0
    %2541 = vmatpush1.bf16.msra.mxu0 0
    %2542 = vmatprep.mubr.bf16.mxu0 0
    %2543 = vmatmul.mubr.bf16.gmra.mrb[0].mxu0 %v933
    %v2544 = vpop.f32.mrb[0].mxu0
    %v2545 = vadd.f32 0.0, %v2544
    %v2546 = vpop.f32.mrb[0].mxu0
    %v2547 = vadd.f32 0.0, %v2546
    %v2548 = vpop.f32.mrb[0].mxu0
    %v2549 = vadd.f32 0.0, %v2548
    %v2550 = vpop.f32.mrb[0].mxu0
    %v2551 = vadd.f32 0.0, %v2550
    %2552 = vmatprep.mubr.bf16.mxu0 0
    %2553 = vmatmul.mubr.bf16.gmra.mrb[0].mxu0 %v936
    %v2554 = vpop.f32.mrb[0].mxu0
    %v2555 = vadd.f32 0.0, %v2554
    %v2556 = vpop.f32.mrb[0].mxu0
    %v2557 = vadd.f32 0.0, %v2556
    %v2558 = vpop.f32.mrb[0].mxu0
    %v2559 = vpop.f32.mrb[0].mxu0
    %2560 = vdwg.mxu0
    %v2561 = vadd.f32 %v2481, %v2545
    %v2562 = vadd.f32 %v2483, %v2547
    %v2563 = vadd.f32 %v2485, %v2549
    %v2564 = vadd.f32 %v2487, %v2551
    %v2565 = vadd.f32 %v2491, %v2555
    %v2566 = vadd.f32 %v2493, %v2557
    %s2567 = scalar_lea.vmem %s19, 6
    %v2568 = vld [vmem:[%s2567] sm:$0x3]
    %v2570 = vlaneseq
    %v2571 = vshrl.u32 %v2570, 7
    %v2572 = vsub.s32 0, %v2571
    %v2573 = vrot.slane %v2568, %v2572
    %v2574 = vlaneseq
    %v2575 = vshrl.u32 %v2574, 7
    %v2576 = vsub.s32 1, %v2575
    %v2577 = vrot.slane %v2568, %v2576
    %v2580 = vadd.f32 %v2561, %v2573
    %v2581 = vadd.f32 %v2562, %v2577
    %v2582 = vadd.f32 %v2563, %v2573
    %v2583 = vadd.f32 %v2564, %v2577
    %v2584 = vadd.f32 %v2565, %v2573
    %v2585 = vadd.f32 %v2566, %v2577
    %v2586 = vxor.u32 %v2219, 2147483648
    %v2587 = vxor.u32 %v2220, 2147483648
    %v2588 = vxor.u32 %v2221, 2147483648
    %v2589 = vxor.u32 %v2222, 2147483648
    %v2590 = vxor.u32 %v2223, 2147483648
    %v2591 = vxor.u32 %v2224, 2147483648
    %v2592 = vmul.f32 %v2586, 1.442695
    %v2593 = vpow.pop %v2592
    %v2594 = vmul.f32 %v2587, 1.442695
    %v2595 = vpow.pop %v2594
    %v2596 = vmul.f32 %v2588, 1.442695
    %v2597 = vpow.pop %v2596
    %v2598 = vmul.f32 %v2589, 1.442695
    %v2599 = vpow.pop %v2598
    %v2600 = vmul.f32 %v2590, 1.442695
    %v2601 = vpow.pop %v2600
    %v2602 = vmul.f32 %v2591, 1.442695
    %v2603 = vpow.pop %v2602
    %v2604 = vadd.f32 %v2593, 1.0
    %v2605 = vadd.f32 %v2595, 1.0
    %v2606 = vadd.f32 %v2597, 1.0
    %v2607 = vadd.f32 %v2599, 1.0
    %v2608 = vadd.f32 %v2601, 1.0
    %v2609 = vadd.f32 %v2603, 1.0
    %v2610 = vrcp.pop %v2604
    %v2611 = vmul.f32 1.0, %v2610
    %v2612 = vrcp.pop %v2605
    %v2613 = vmul.f32 1.0, %v2612
    %v2614 = vrcp.pop %v2606
    %v2615 = vmul.f32 1.0, %v2614
    %v2616 = vrcp.pop %v2607
    %v2617 = vmul.f32 1.0, %v2616
    %v2618 = vrcp.pop %v2608
    %v2619 = vmul.f32 1.0, %v2618
    %v2620 = vrcp.pop %v2609
    %v2621 = vmul.f32 1.0, %v2620
    %v2622 = vtanh.pop %v2580
    %v2623 = vtanh.pop %v2581
    %v2624 = vtanh.pop %v2582
    %v2625 = vtanh.pop %v2583
    %v2626 = vtanh.pop %v2584
    %v2627 = vtanh.pop %v2585
    %v2628 = vmul.f32 %v2611, %v2622
    %v2629 = vmul.f32 %v2613, %v2623
    %v2630 = vmul.f32 %v2615, %v2624
    %v2631 = vmul.f32 %v2617, %v2625
    %v2632 = vmul.f32 %v2619, %v2626
    %v2633 = vmul.f32 %v2621, %v2627
    %v2634 = vpack.c.bf16 %v2630, %v2628
    %v2635 = vpack.c.bf16 %v2631, %v2629
    %v2636 = vpack.c.bf16 %v2632, %v2632
    %v2637 = vpack.c.bf16 %v2633, %v2633
    %s2638 = scalar_lea.vmem %s20, 320
    %v2639 = vld [vmem:[%s2638] sm:$0xff]
    %v2640 = vld [vmem:[%s2638 + $0x8] sm:$0xff]
    %v2641 = vld [vmem:[%s2638 + $0x10] sm:$0xff]
    %v2642 = vld [vmem:[%s2638 + $0x18] sm:$0xff]
    %v2643 = vld [vmem:[%s2638 + $0x20] sm:$0xff]
    %v2644 = vld [vmem:[%s2638 + $0x28] sm:$0xff]
    %v2645 = vld [vmem:[%s2638 + $0x30] sm:$0xff]
    %v2646 = vld [vmem:[%s2638 + $0x38] sm:$0xff]
    %v2647 = vld [vmem:[%s2638 + $0x40] sm:$0xff]
    %v2648 = vld [vmem:[%s2638 + $0x48] sm:$0xff]
    %v2649 = vld [vmem:[%s2638 + $0x50] sm:$0xff]
    %v2650 = vld [vmem:[%s2638 + $0x58] sm:$0xff]
    %v2651 = vld [vmem:[%s2638 + $0x60] sm:$0xff]
    %v2652 = vld [vmem:[%s2638 + $0x68] sm:$0xff]
    %v2653 = vld [vmem:[%s2638 + $0x70] sm:$0xff]
    %v2654 = vld [vmem:[%s2638 + $0x78] sm:$0xff]
    %v2655 = vld [vmem:[%s2638 + $0x80] sm:$0xff]
    %v2656 = vld [vmem:[%s2638 + $0x88] sm:$0xff]
    %v2657 = vld [vmem:[%s2638 + $0x90] sm:$0xff]
    %v2658 = vld [vmem:[%s2638 + $0x98] sm:$0xff]
    %s2659 = scalar_lea.vmem %s21, 4
    %v2660 = vld [vmem:[%s2659] sm:$0x3]
    %v2662 = vlaneseq
    %v2663 = vshrl.u32 %v2662, 7
    %v2664 = vsub.s32 0, %v2663
    %v2665 = vrot.slane %v2660, %v2664
    %v2666 = vlaneseq
    %v2667 = vshrl.u32 %v2666, 7
    %v2668 = vsub.s32 1, %v2667
    %v2669 = vrot.slane %v2660, %v2668
    %v2692 = vunpack.c.l.b16 %v2639
    %v2693 = vunpack.c.h.b16 %v2639
    %v2694 = vunpack.c.l.b16 %v2640
    %v2695 = vunpack.c.h.b16 %v2640
    %v2696 = vunpack.c.l.b16 %v2641
    %v2697 = vunpack.c.h.b16 %v2641
    %v2698 = vunpack.c.l.b16 %v2642
    %v2699 = vunpack.c.h.b16 %v2642
    %v2700 = vunpack.c.l.b16 %v2643
    %v2701 = vunpack.c.h.b16 %v2643
    %v2702 = vunpack.c.l.b16 %v2644
    %v2703 = vunpack.c.h.b16 %v2644
    %v2704 = vunpack.c.l.b16 %v2645
    %v2705 = vunpack.c.h.b16 %v2645
    %v2706 = vunpack.c.l.b16 %v2646
    %v2707 = vunpack.c.h.b16 %v2646
    %v2708 = vunpack.c.l.b16 %v2647
    %v2709 = vunpack.c.h.b16 %v2647
    %v2710 = vunpack.c.l.b16 %v2648
    %v2711 = vunpack.c.h.b16 %v2648
    %v2712 = vunpack.c.l.b16 %v2649
    %v2713 = vunpack.c.h.b16 %v2649
    %v2714 = vunpack.c.l.b16 %v2650
    %v2715 = vunpack.c.h.b16 %v2650
    %v2716 = vunpack.c.l.b16 %v2651
    %v2717 = vunpack.c.h.b16 %v2651
    %v2718 = vunpack.c.l.b16 %v2652
    %v2719 = vunpack.c.h.b16 %v2652
    %v2720 = vunpack.c.l.b16 %v2653
    %v2721 = vunpack.c.h.b16 %v2653
    %v2722 = vunpack.c.l.b16 %v2654
    %v2723 = vunpack.c.h.b16 %v2654
    %v2724 = vunpack.c.l.b16 %v2655
    %v2725 = vunpack.c.h.b16 %v2655
    %v2726 = vunpack.c.l.b16 %v2656
    %v2727 = vunpack.c.h.b16 %v2656
    %v2728 = vunpack.c.l.b16 %v2657
    %v2729 = vunpack.c.h.b16 %v2657
    %v2730 = vunpack.c.l.b16 %v2658
    %v2731 = vunpack.c.h.b16 %v2658
    %v2732 = vpack.c.b16 %v2694, %v2692
    %v2733 = vpack.c.b16 %v2695, %v2693
    %v2734 = vpack.c.b16 %v2698, %v2696
    %v2735 = vpack.c.b16 %v2699, %v2697
    %v2736 = vpack.c.b16 %v2702, %v2700
    %v2737 = vpack.c.b16 %v2703, %v2701
    %v2738 = vpack.c.b16 %v2706, %v2704
    %v2739 = vpack.c.b16 %v2707, %v2705
    %v2740 = vpack.c.b16 %v2710, %v2708
    %v2741 = vpack.c.b16 %v2711, %v2709
    %v2742 = vpack.c.b16 %v2714, %v2712
    %v2743 = vpack.c.b16 %v2715, %v2713
    %v2744 = vpack.c.b16 %v2718, %v2716
    %v2745 = vpack.c.b16 %v2719, %v2717
    %v2746 = vpack.c.b16 %v2722, %v2720
    %v2747 = vpack.c.b16 %v2723, %v2721
    %v2748 = vpack.c.b16 %v2726, %v2724
    %v2749 = vpack.c.b16 %v2727, %v2725
    %v2750 = vpack.c.b16 %v2730, %v2728
    %v2751 = vpack.c.b16 %v2731, %v2729
    %v2773 = vsel %vm166, %v2635, 0
    %v2776 = vsel %vm166, %v2637, 0
    %2778 = vmatprep.subr.bf16.mxu0 %v2733
    %2779 = vmatpush1.bf16.msra.mxu0 %v2732
    %2780 = vmatprep.subr.bf16.mxu0 %v2735
    %2781 = vmatpush1.bf16.msra.mxu0 %v2734
    %2782 = vmatprep.subr.bf16.mxu0 %v2737
    %2783 = vmatpush1.bf16.msra.mxu0 %v2736
    %2784 = vmatprep.subr.bf16.mxu0 %v2739
    %2785 = vmatpush1.bf16.msra.mxu0 %v2738
    %2786 = vmatprep.subr.bf16.mxu0 %v2741
    %2787 = vmatpush1.bf16.msra.mxu0 %v2740
    %2788 = vmatprep.subr.bf16.mxu0 %v2743
    %2789 = vmatpush1.bf16.msra.mxu0 %v2742
    %2790 = vmatprep.subr.bf16.mxu0 %v2745
    %2791 = vmatpush1.bf16.msra.mxu0 %v2744
    %2792 = vmatprep.subr.bf16.mxu0 %v2747
    %2793 = vmatpush1.bf16.msra.mxu0 %v2746
    %2794 = vmatprep.subr.bf16.mxu0 %v2749
    %2795 = vmatpush1.bf16.msra.mxu0 %v2748
    %2796 = vmatprep.subr.bf16.mxu0 %v2751
    %2797 = vmatpush1.bf16.msra.mxu0 %v2750
    %2798 = vmatprep.subr.bf16.mxu0 0
    %2799 = vmatpush1.bf16.msra.mxu0 0
    %2800 = vmatprep.subr.bf16.mxu0 0
    %2801 = vmatpush1.bf16.msra.mxu0 0
    %2802 = vmatprep.subr.bf16.mxu0 0
    %2803 = vmatpush1.bf16.msra.mxu0 0
    %2804 = vmatprep.subr.bf16.mxu0 0
    %2805 = vmatpush1.bf16.msra.mxu0 0
    %2806 = vmatprep.subr.bf16.mxu0 0
    %2807 = vmatpush1.bf16.msra.mxu0 0
    %2808 = vmatprep.subr.bf16.mxu0 0
    %2809 = vmatpush1.bf16.msra.mxu0 0
    %2810 = vmatprep.mubr.bf16.mxu0 %v2773
    %2811 = vmatmul.mubr.bf16.gmra.mrb[0].mxu0 %v2634
    %v2812 = vpop.f32.mrb[0].mxu0
    %v2813 = vadd.f32 %v2665, %v2812
    %v2814 = vpop.f32.mrb[0].mxu0
    %v2815 = vadd.f32 %v2669, %v2814
    %v2816 = vpop.f32.mrb[0].mxu0
    %v2817 = vadd.f32 %v2665, %v2816
    %v2818 = vpop.f32.mrb[0].mxu0
    %v2819 = vadd.f32 %v2669, %v2818
    %2820 = vmatprep.mubr.bf16.mxu0 %v2776
    %2821 = vmatmul.mubr.bf16.gmra.mrb[0].mxu0 %v2636
    %v2822 = vpop.f32.mrb[0].mxu0
    %v2823 = vadd.f32 %v2665, %v2822
    %v2824 = vpop.f32.mrb[0].mxu0
    %v2825 = vadd.f32 %v2669, %v2824
    %v2826 = vpop.f32.mrb[0].mxu0
    %v2827 = vpop.f32.mrb[0].mxu0
    %2828 = vdwg.mxu0
    %vm2829 = vcmp.ge.f32.partialorder %v2813, 0.0
    %vm2830 = vcmp.ge.f32.partialorder %v2815, 0.0
    %vm2831 = vcmp.ge.f32.partialorder %v2817, 0.0
    %vm2832 = vcmp.ge.f32.partialorder %v2819, 0.0
    %vm2833 = vcmp.ge.f32.partialorder %v2823, 0.0
    %vm2834 = vcmp.ge.f32.partialorder %v2825, 0.0
    %v2835 = vmul.f32 %v2813, 0.4
    %v2836 = vmul.f32 %v2815, 0.4
    %v2837 = vmul.f32 %v2817, 0.4
    %v2838 = vmul.f32 %v2819, 0.4
    %v2839 = vmul.f32 %v2823, 0.4
    %v2840 = vmul.f32 %v2825, 0.4
    %v2841 = vsel %vm2829, %v2813, %v2835
    %v2842 = vsel %vm2830, %v2815, %v2836
    %v2843 = vsel %vm2831, %v2817, %v2837
    %v2844 = vsel %vm2832, %v2819, %v2838
    %v2845 = vsel %vm2833, %v2823, %v2839
    %v2846 = vsel %vm2834, %v2825, %v2840
    %s2847 = scalar_lea.vmem %s20, 480
    %v2848 = vld [vmem:[%s2847] sm:$0xff]
    %v2849 = vld [vmem:[%s2847 + $0x8] sm:$0xff]
    %v2850 = vld [vmem:[%s2847 + $0x10] sm:$0xff]
    %v2851 = vld [vmem:[%s2847 + $0x18] sm:$0xff]
    %v2852 = vld [vmem:[%s2847 + $0x20] sm:$0xff]
    %v2853 = vld [vmem:[%s2847 + $0x28] sm:$0xff]
    %v2854 = vld [vmem:[%s2847 + $0x30] sm:$0xff]
    %v2855 = vld [vmem:[%s2847 + $0x38] sm:$0xff]
    %v2856 = vld [vmem:[%s2847 + $0x40] sm:$0xff]
    %v2857 = vld [vmem:[%s2847 + $0x48] sm:$0xff]
    %v2858 = vld [vmem:[%s2847 + $0x50] sm:$0xff]
    %v2859 = vld [vmem:[%s2847 + $0x58] sm:$0xff]
    %v2860 = vld [vmem:[%s2847 + $0x60] sm:$0xff]
    %v2861 = vld [vmem:[%s2847 + $0x68] sm:$0xff]
    %v2862 = vld [vmem:[%s2847 + $0x70] sm:$0xff]
    %v2863 = vld [vmem:[%s2847 + $0x78] sm:$0xff]
    %v2864 = vld [vmem:[%s2847 + $0x80] sm:$0xff]
    %v2865 = vld [vmem:[%s2847 + $0x88] sm:$0xff]
    %v2866 = vld [vmem:[%s2847 + $0x90] sm:$0xff]
    %v2867 = vld [vmem:[%s2847 + $0x98] sm:$0xff]
    %s2868 = scalar_lea.vmem %s21, 6
    %v2869 = vld [vmem:[%s2868] sm:$0x3]
    %v2871 = vlaneseq
    %v2872 = vshrl.u32 %v2871, 7
    %v2873 = vsub.s32 0, %v2872
    %v2874 = vrot.slane %v2869, %v2873
    %v2875 = vlaneseq
    %v2876 = vshrl.u32 %v2875, 7
    %v2877 = vsub.s32 1, %v2876
    %v2878 = vrot.slane %v2869, %v2877
    %v2901 = vunpack.c.l.b16 %v2848
    %v2902 = vunpack.c.h.b16 %v2848
    %v2903 = vunpack.c.l.b16 %v2849
    %v2904 = vunpack.c.h.b16 %v2849
    %v2905 = vunpack.c.l.b16 %v2850
    %v2906 = vunpack.c.h.b16 %v2850
    %v2907 = vunpack.c.l.b16 %v2851
    %v2908 = vunpack.c.h.b16 %v2851
    %v2909 = vunpack.c.l.b16 %v2852
    %v2910 = vunpack.c.h.b16 %v2852
    %v2911 = vunpack.c.l.b16 %v2853
    %v2912 = vunpack.c.h.b16 %v2853
    %v2913 = vunpack.c.l.b16 %v2854
    %v2914 = vunpack.c.h.b16 %v2854
    %v2915 = vunpack.c.l.b16 %v2855
    %v2916 = vunpack.c.h.b16 %v2855
    %v2917 = vunpack.c.l.b16 %v2856
    %v2918 = vunpack.c.h.b16 %v2856
    %v2919 = vunpack.c.l.b16 %v2857
    %v2920 = vunpack.c.h.b16 %v2857
    %v2921 = vunpack.c.l.b16 %v2858
    %v2922 = vunpack.c.h.b16 %v2858
    %v2923 = vunpack.c.l.b16 %v2859
    %v2924 = vunpack.c.h.b16 %v2859
    %v2925 = vunpack.c.l.b16 %v2860
    %v2926 = vunpack.c.h.b16 %v2860
    %v2927 = vunpack.c.l.b16 %v2861
    %v2928 = vunpack.c.h.b16 %v2861
    %v2929 = vunpack.c.l.b16 %v2862
    %v2930 = vunpack.c.h.b16 %v2862
    %v2931 = vunpack.c.l.b16 %v2863
    %v2932 = vunpack.c.h.b16 %v2863
    %v2933 = vunpack.c.l.b16 %v2864
    %v2934 = vunpack.c.h.b16 %v2864
    %v2935 = vunpack.c.l.b16 %v2865
    %v2936 = vunpack.c.h.b16 %v2865
    %v2937 = vunpack.c.l.b16 %v2866
    %v2938 = vunpack.c.h.b16 %v2866
    %v2939 = vunpack.c.l.b16 %v2867
    %v2940 = vunpack.c.h.b16 %v2867
    %v2941 = vpack.c.b16 %v2903, %v2901
    %v2942 = vpack.c.b16 %v2904, %v2902
    %v2943 = vpack.c.b16 %v2907, %v2905
    %v2944 = vpack.c.b16 %v2908, %v2906
    %v2945 = vpack.c.b16 %v2911, %v2909
    %v2946 = vpack.c.b16 %v2912, %v2910
    %v2947 = vpack.c.b16 %v2915, %v2913
    %v2948 = vpack.c.b16 %v2916, %v2914
    %v2949 = vpack.c.b16 %v2919, %v2917
    %v2950 = vpack.c.b16 %v2920, %v2918
    %v2951 = vpack.c.b16 %v2923, %v2921
    %v2952 = vpack.c.b16 %v2924, %v2922
    %v2953 = vpack.c.b16 %v2927, %v2925
    %v2954 = vpack.c.b16 %v2928, %v2926
    %v2955 = vpack.c.b16 %v2931, %v2929
    %v2956 = vpack.c.b16 %v2932, %v2930
    %v2957 = vpack.c.b16 %v2935, %v2933
    %v2958 = vpack.c.b16 %v2936, %v2934
    %v2959 = vpack.c.b16 %v2939, %v2937
    %v2960 = vpack.c.b16 %v2940, %v2938
    %2981 = vmatprep.subr.bf16.mxu0 %v2942
    %2982 = vmatpush1.bf16.msra.mxu0 %v2941
    %2983 = vmatprep.subr.bf16.mxu0 %v2944
    %2984 = vmatpush1.bf16.msra.mxu0 %v2943
    %2985 = vmatprep.subr.bf16.mxu0 %v2946
    %2986 = vmatpush1.bf16.msra.mxu0 %v2945
    %2987 = vmatprep.subr.bf16.mxu0 %v2948
    %2988 = vmatpush1.bf16.msra.mxu0 %v2947
    %2989 = vmatprep.subr.bf16.mxu0 %v2950
    %2990 = vmatpush1.bf16.msra.mxu0 %v2949
    %2991 = vmatprep.subr.bf16.mxu0 %v2952
    %2992 = vmatpush1.bf16.msra.mxu0 %v2951
    %2993 = vmatprep.subr.bf16.mxu0 %v2954
    %2994 = vmatpush1.bf16.msra.mxu0 %v2953
    %2995 = vmatprep.subr.bf16.mxu0 %v2956
    %2996 = vmatpush1.bf16.msra.mxu0 %v2955
    %2997 = vmatprep.subr.bf16.mxu0 %v2958
    %2998 = vmatpush1.bf16.msra.mxu0 %v2957
    %2999 = vmatprep.subr.bf16.mxu0 %v2960
    %3000 = vmatpush1.bf16.msra.mxu0 %v2959
    %3001 = vmatprep.subr.bf16.mxu0 0
    %3002 = vmatpush1.bf16.msra.mxu0 0
    %3003 = vmatprep.subr.bf16.mxu0 0
    %3004 = vmatpush1.bf16.msra.mxu0 0
    %3005 = vmatprep.subr.bf16.mxu0 0
    %3006 = vmatpush1.bf16.msra.mxu0 0
    %3007 = vmatprep.subr.bf16.mxu0 0
    %3008 = vmatpush1.bf16.msra.mxu0 0
    %3009 = vmatprep.subr.bf16.mxu0 0
    %3010 = vmatpush1.bf16.msra.mxu0 0
    %3011 = vmatprep.subr.bf16.mxu0 0
    %3012 = vmatpush1.bf16.msra.mxu0 0
    %3013 = vmatprep.mubr.bf16.mxu0 %v2773
    %3014 = vmatmul.mubr.bf16.gmra.mrb[0].mxu0 %v2634
    %v3015 = vpop.f32.mrb[0].mxu0
    %v3016 = vadd.f32 %v2874, %v3015
    %v3017 = vpop.f32.mrb[0].mxu0
    %v3018 = vadd.f32 %v2878, %v3017
    %v3019 = vpop.f32.mrb[0].mxu0
    %v3020 = vadd.f32 %v2874, %v3019
    %v3021 = vpop.f32.mrb[0].mxu0
    %v3022 = vadd.f32 %v2878, %v3021
    %3023 = vmatprep.mubr.bf16.mxu0 %v2776
    %3024 = vmatmul.mubr.bf16.gmra.mrb[0].mxu0 %v2636
    %v3025 = vpop.f32.mrb[0].mxu0
    %v3026 = vadd.f32 %v2874, %v3025
    %v3027 = vpop.f32.mrb[0].mxu0
    %v3028 = vadd.f32 %v2878, %v3027
    %v3029 = vpop.f32.mrb[0].mxu0
    %v3030 = vpop.f32.mrb[0].mxu0
    %3031 = vdwg.mxu0
    %vm3032 = vcmp.ge.f32.partialorder %v3016, 0.0
    %vm3033 = vcmp.ge.f32.partialorder %v3018, 0.0
    %vm3034 = vcmp.ge.f32.partialorder %v3020, 0.0
    %vm3035 = vcmp.ge.f32.partialorder %v3022, 0.0
    %vm3036 = vcmp.ge.f32.partialorder %v3026, 0.0
    %vm3037 = vcmp.ge.f32.partialorder %v3028, 0.0
    %v3038 = vmul.f32 %v3016, 0.4
    %v3039 = vmul.f32 %v3018, 0.4
    %v3040 = vmul.f32 %v3020, 0.4
    %v3041 = vmul.f32 %v3022, 0.4
    %v3042 = vmul.f32 %v3026, 0.4
    %v3043 = vmul.f32 %v3028, 0.4
    %v3044 = vsel %vm3032, %v3016, %v3038
    %v3045 = vsel %vm3033, %v3018, %v3039
    %v3046 = vsel %vm3034, %v3020, %v3040
    %v3047 = vsel %vm3035, %v3022, %v3041
    %v3048 = vsel %vm3036, %v3026, %v3042
    %v3049 = vsel %vm3037, %v3028, %v3043
    %v3050 = vadd.f32 %v1842, %v2841
    %v3051 = vadd.f32 %v1843, %v2842
    %v3052 = vadd.f32 %v1844, %v2843
    %v3053 = vadd.f32 %v1845, %v2844
    %v3054 = vadd.f32 %v1846, %v2845
    %v3055 = vadd.f32 %v1847, %v2846
    %v3056 = vmul.f32 %v3050, 0.70710677
    %v3057 = vmul.f32 %v3051, 0.70710677
    %v3058 = vmul.f32 %v3052, 0.70710677
    %v3059 = vmul.f32 %v3053, 0.70710677
    %v3060 = vmul.f32 %v3054, 0.70710677
    %v3061 = vmul.f32 %v3055, 0.70710677
    %v3062 = vadd.f32 %v1848, %v3044
    %v3063 = vadd.f32 %v1849, %v3045
    %v3064 = vadd.f32 %v1850, %v3046
    %v3065 = vadd.f32 %v1851, %v3047
    %v3066 = vadd.f32 %v1852, %v3048
    %v3067 = vadd.f32 %v1853, %v3049
    %v3068 = vpack.c.bf16 %v3058, %v3056
    %v3069 = vpack.c.bf16 %v3059, %v3057
    %v3070 = vpack.c.bf16 %v3060, %v3060
    %v3071 = vpack.c.bf16 %v3061, %v3061
    %s3072 = scalar_lea.vmem %s16, 640
    %v3073 = vld [vmem:[%s3072] sm:$0xff]
    %v3074 = vld [vmem:[%s3072 + $0x8] sm:$0xff]
    %v3075 = vld [vmem:[%s3072 + $0x10] sm:$0xff]
    %v3076 = vld [vmem:[%s3072 + $0x18] sm:$0xff]
    %v3077 = vld [vmem:[%s3072 + $0x20] sm:$0xff]
    %v3078 = vld [vmem:[%s3072 + $0x28] sm:$0xff]
    %v3079 = vld [vmem:[%s3072 + $0x30] sm:$0xff]
    %v3080 = vld [vmem:[%s3072 + $0x38] sm:$0xff]
    %v3081 = vld [vmem:[%s3072 + $0x40] sm:$0xff]
    %v3082 = vld [vmem:[%s3072 + $0x48] sm:$0xff]
    %v3083 = vld [vmem:[%s3072 + $0x50] sm:$0xff]
    %v3084 = vld [vmem:[%s3072 + $0x58] sm:$0xff]
    %v3085 = vld [vmem:[%s3072 + $0x60] sm:$0xff]
    %v3086 = vld [vmem:[%s3072 + $0x68] sm:$0xff]
    %v3087 = vld [vmem:[%s3072 + $0x70] sm:$0xff]
    %v3088 = vld [vmem:[%s3072 + $0x78] sm:$0xff]
    %v3089 = vld [vmem:[%s3072 + $0x80] sm:$0xff]
    %v3090 = vld [vmem:[%s3072 + $0x88] sm:$0xff]
    %v3091 = vld [vmem:[%s3072 + $0x90] sm:$0xff]
    %v3092 = vld [vmem:[%s3072 + $0x98] sm:$0xff]
    %s3093 = scalar_lea.vmem %s17, 256
    %v3094 = vld [vmem:[%s3093] sm:$0xff]
    %v3095 = vld [vmem:[%s3093 + $0x8] sm:$0xff]
    %v3096 = vld [vmem:[%s3093 + $0x10] sm:$0xff]
    %v3097 = vld [vmem:[%s3093 + $0x18] sm:$0xff]
    %v3098 = vld [vmem:[%s3093 + $0x20] sm:$0xff]
    %v3099 = vld [vmem:[%s3093 + $0x28] sm:$0xff]
    %v3100 = vld [vmem:[%s3093 + $0x30] sm:$0xff]
    %v3101 = vld [vmem:[%s3093 + $0x38] sm:$0xff]
    %v3110 = vunpack.c.l.b16 %v3094
    %v3111 = vunpack.c.h.b16 %v3094
    %v3112 = vunpack.c.l.b16 %v3095
    %v3113 = vunpack.c.h.b16 %v3095
    %v3114 = vunpack.c.l.b16 %v3096
    %v3115 = vunpack.c.h.b16 %v3096
    %v3116 = vunpack.c.l.b16 %v3097
    %v3117 = vunpack.c.h.b16 %v3097
    %v3118 = vunpack.c.l.b16 %v3098
    %v3119 = vunpack.c.h.b16 %v3098
    %v3120 = vunpack.c.l.b16 %v3099
    %v3121 = vunpack.c.h.b16 %v3099
    %v3122 = vunpack.c.l.b16 %v3100
    %v3123 = vunpack.c.h.b16 %v3100
    %v3124 = vunpack.c.l.b16 %v3101
    %v3125 = vunpack.c.h.b16 %v3101
    %v3126 = vpack.c.b16 %v3112, %v3110
    %v3127 = vpack.c.b16 %v3113, %v3111
    %v3128 = vpack.c.b16 %v3116, %v3114
    %v3129 = vpack.c.b16 %v3117, %v3115
    %v3130 = vpack.c.b16 %v3120, %v3118
    %v3131 = vpack.c.b16 %v3121, %v3119
    %v3132 = vpack.c.b16 %v3124, %v3122
    %v3133 = vpack.c.b16 %v3125, %v3123
    %3142 = vmatprep.subr.bf16.mxu0 %v3127
    %3143 = vmatpush1.bf16.msra.mxu0 %v3126
    %3144 = vmatprep.subr.bf16.mxu0 %v3129
    %3145 = vmatpush1.bf16.msra.mxu0 %v3128
    %3146 = vmatprep.subr.bf16.mxu0 %v3131
    %3147 = vmatpush1.bf16.msra.mxu0 %v3130
    %3148 = vmatprep.subr.bf16.mxu0 %v3133
    %3149 = vmatpush1.bf16.msra.mxu0 %v3132
    %3150 = vmatprep.subr.bf16.mxu0 0
    %3151 = vmatpush1.bf16.msra.mxu0 0
    %3152 = vmatprep.subr.bf16.mxu0 0
    %3153 = vmatpush1.bf16.msra.mxu0 0
    %3154 = vmatprep.subr.bf16.mxu0 0
    %3155 = vmatpush1.bf16.msra.mxu0 0
    %3156 = vmatprep.subr.bf16.mxu0 0
    %3157 = vmatpush1.bf16.msra.mxu0 0
    %3158 = vmatprep.subr.bf16.mxu0 0
    %3159 = vmatpush1.bf16.msra.mxu0 0
    %3160 = vmatprep.subr.bf16.mxu0 0
    %3161 = vmatpush1.bf16.msra.mxu0 0
    %3162 = vmatprep.subr.bf16.mxu0 0
    %3163 = vmatpush1.bf16.msra.mxu0 0
    %3164 = vmatprep.subr.bf16.mxu0 0
    %3165 = vmatpush1.bf16.msra.mxu0 0
    %3166 = vmatprep.subr.bf16.mxu0 0
    %3167 = vmatpush1.bf16.msra.mxu0 0
    %3168 = vmatprep.subr.bf16.mxu0 0
    %3169 = vmatpush1.bf16.msra.mxu0 0
    %3170 = vmatprep.subr.bf16.mxu0 0
    %3171 = vmatpush1.bf16.msra.mxu0 0
    %3172 = vmatprep.subr.bf16.mxu0 0
    %3173 = vmatpush1.bf16.msra.mxu0 0
    %3174 = vmatprep.mubr.bf16.mxu0 0
    %3175 = vmatmul.mubr.bf16.gmra.mrb[0].mxu0 %v707
    %v3176 = vpop.f32.mrb[0].mxu0
    %v3177 = vadd.f32 0.0, %v3176
    %v3178 = vpop.f32.mrb[0].mxu0
    %v3179 = vadd.f32 0.0, %v3178
    %v3180 = vpop.f32.mrb[0].mxu0
    %v3181 = vadd.f32 0.0, %v3180
    %v3182 = vpop.f32.mrb[0].mxu0
    %v3183 = vadd.f32 0.0, %v3182
    %3184 = vmatprep.mubr.bf16.mxu0 0
    %3185 = vmatmul.mubr.bf16.gmra.mrb[0].mxu0 %v710
    %v3186 = vpop.f32.mrb[0].mxu0
    %v3187 = vadd.f32 0.0, %v3186
    %v3188 = vpop.f32.mrb[0].mxu0
    %v3189 = vadd.f32 0.0, %v3188
    %v3190 = vpop.f32.mrb[0].mxu0
    %v3191 = vpop.f32.mrb[0].mxu0
    %3192 = vdwg.mxu0
    %v3213 = vunpack.c.l.b16 %v3073
    %v3214 = vunpack.c.h.b16 %v3073
    %v3215 = vunpack.c.l.b16 %v3074
    %v3216 = vunpack.c.h.b16 %v3074
    %v3217 = vunpack.c.l.b16 %v3075
    %v3218 = vunpack.c.h.b16 %v3075
    %v3219 = vunpack.c.l.b16 %v3076
    %v3220 = vunpack.c.h.b16 %v3076
    %v3221 = vunpack.c.l.b16 %v3077
    %v3222 = vunpack.c.h.b16 %v3077
    %v3223 = vunpack.c.l.b16 %v3078
    %v3224 = vunpack.c.h.b16 %v3078
    %v3225 = vunpack.c.l.b16 %v3079
    %v3226 = vunpack.c.h.b16 %v3079
    %v3227 = vunpack.c.l.b16 %v3080
    %v3228 = vunpack.c.h.b16 %v3080
    %v3229 = vunpack.c.l.b16 %v3081
    %v3230 = vunpack.c.h.b16 %v3081
    %v3231 = vunpack.c.l.b16 %v3082
    %v3232 = vunpack.c.h.b16 %v3082
    %v3233 = vunpack.c.l.b16 %v3083
    %v3234 = vunpack.c.h.b16 %v3083
    %v3235 = vunpack.c.l.b16 %v3084
    %v3236 = vunpack.c.h.b16 %v3084
    %v3237 = vunpack.c.l.b16 %v3085
    %v3238 = vunpack.c.h.b16 %v3085
    %v3239 = vunpack.c.l.b16 %v3086
    %v3240 = vunpack.c.h.b16 %v3086
    %v3241 = vunpack.c.l.b16 %v3087
    %v3242 = vunpack.c.h.b16 %v3087
    %v3243 = vunpack.c.l.b16 %v3088
    %v3244 = vunpack.c.h.b16 %v3088
    %v3245 = vunpack.c.l.b16 %v3089
    %v3246 = vunpack.c.h.b16 %v3089
    %v3247 = vunpack.c.l.b16 %v3090
    %v3248 = vunpack.c.h.b16 %v3090
    %v3249 = vunpack.c.l.b16 %v3091
    %v3250 = vunpack.c.h.b16 %v3091
    %v3251 = vunpack.c.l.b16 %v3092
    %v3252 = vunpack.c.h.b16 %v3092
    %v3253 = vpack.c.b16 %v3215, %v3213
    %v3254 = vpack.c.b16 %v3216, %v3214
    %v3255 = vpack.c.b16 %v3219, %v3217
    %v3256 = vpack.c.b16 %v3220, %v3218
    %v3257 = vpack.c.b16 %v3223, %v3221
    %v3258 = vpack.c.b16 %v3224, %v3222
    %v3259 = vpack.c.b16 %v3227, %v3225
    %v3260 = vpack.c.b16 %v3228, %v3226
    %v3261 = vpack.c.b16 %v3231, %v3229
    %v3262 = vpack.c.b16 %v3232, %v3230
    %v3263 = vpack.c.b16 %v3235, %v3233
    %v3264 = vpack.c.b16 %v3236, %v3234
    %v3265 = vpack.c.b16 %v3239, %v3237
    %v3266 = vpack.c.b16 %v3240, %v3238
    %v3267 = vpack.c.b16 %v3243, %v3241
    %v3268 = vpack.c.b16 %v3244, %v3242
    %v3269 = vpack.c.b16 %v3247, %v3245
    %v3270 = vpack.c.b16 %v3248, %v3246
    %v3271 = vpack.c.b16 %v3251, %v3249
    %v3272 = vpack.c.b16 %v3252, %v3250
    %v3294 = vsel %vm166, %v3069, 0
    %v3297 = vsel %vm166, %v3071, 0
    %3299 = vmatprep.subr.bf16.mxu0 %v3254
    %3300 = vmatpush1.bf16.msra.mxu0 %v3253
    %3301 = vmatprep.subr.bf16.mxu0 %v3256
    %3302 = vmatpush1.bf16.msra.mxu0 %v3255
    %3303 = vmatprep.subr.bf16.mxu0 %v3258
    %3304 = vmatpush1.bf16.msra.mxu0 %v3257
    %3305 = vmatprep.subr.bf16.mxu0 %v3260
    %3306 = vmatpush1.bf16.msra.mxu0 %v3259
    %3307 = vmatprep.subr.bf16.mxu0 %v3262
    %3308 = vmatpush1.bf16.msra.mxu0 %v3261
    %3309 = vmatprep.subr.bf16.mxu0 %v3264
    %3310 = vmatpush1.bf16.msra.mxu0 %v3263
    %3311 = vmatprep.subr.bf16.mxu0 %v3266
    %3312 = vmatpush1.bf16.msra.mxu0 %v3265
    %3313 = vmatprep.subr.bf16.mxu0 %v3268
    %3314 = vmatpush1.bf16.msra.mxu0 %v3267
    %3315 = vmatprep.subr.bf16.mxu0 %v3270
    %3316 = vmatpush1.bf16.msra.mxu0 %v3269
    %3317 = vmatprep.subr.bf16.mxu0 %v3272
    %3318 = vmatpush1.bf16.msra.mxu0 %v3271
    %3319 = vmatprep.subr.bf16.mxu0 0
    %3320 = vmatpush1.bf16.msra.mxu0 0
    %3321 = vmatprep.subr.bf16.mxu0 0
    %3322 = vmatpush1.bf16.msra.mxu0 0
    %3323 = vmatprep.subr.bf16.mxu0 0
    %3324 = vmatpush1.bf16.msra.mxu0 0
    %3325 = vmatprep.subr.bf16.mxu0 0
    %3326 = vmatpush1.bf16.msra.mxu0 0
    %3327 = vmatprep.subr.bf16.mxu0 0
    %3328 = vmatpush1.bf16.msra.mxu0 0
    %3329 = vmatprep.subr.bf16.mxu0 0
    %3330 = vmatpush1.bf16.msra.mxu0 0
    %3331 = vmatprep.mubr.bf16.mxu0 %v3294
    %3332 = vmatmul.mubr.bf16.gmra.mrb[0].mxu0 %v3068
    %v3333 = vpop.f32.mrb[0].mxu0
    %v3334 = vadd.f32 %v3177, %v3333
    %v3335 = vpop.f32.mrb[0].mxu0
    %v3336 = vadd.f32 %v3179, %v3335
    %v3337 = vpop.f32.mrb[0].mxu0
    %v3338 = vadd.f32 %v3181, %v3337
    %v3339 = vpop.f32.mrb[0].mxu0
    %v3340 = vadd.f32 %v3183, %v3339
    %3341 = vmatprep.mubr.bf16.mxu0 %v3297
    %3342 = vmatmul.mubr.bf16.gmra.mrb[0].mxu0 %v3070
    %v3343 = vpop.f32.mrb[0].mxu0
    %v3344 = vadd.f32 %v3187, %v3343
    %v3345 = vpop.f32.mrb[0].mxu0
    %v3346 = vadd.f32 %v3189, %v3345
    %v3347 = vpop.f32.mrb[0].mxu0
    %v3348 = vpop.f32.mrb[0].mxu0
    %3349 = vdwg.mxu0
    %s3350 = scalar_lea.vmem %s18, 64
    %v3351 = vld [vmem:[%s3350] sm:$0xff]
    %v3352 = vld [vmem:[%s3350 + $0x8] sm:$0xff]
    %v3355 = vunpack.c.l.b16 %v3351
    %v3356 = vunpack.c.h.b16 %v3351
    %v3357 = vunpack.c.l.b16 %v3352
    %v3358 = vunpack.c.h.b16 %v3352
    %v3359 = vpack.c.b16 %v3357, %v3355
    %v3360 = vpack.c.b16 %v3358, %v3356
    %3363 = vmatprep.subr.bf16.mxu0 %v3360
    %3364 = vmatpush1.bf16.msra.mxu0 %v3359
    %3365 = vmatprep.subr.bf16.mxu0 0
    %3366 = vmatpush1.bf16.msra.mxu0 0
    %3367 = vmatprep.subr.bf16.mxu0 0
    %3368 = vmatpush1.bf16.msra.mxu0 0
    %3369 = vmatprep.subr.bf16.mxu0 0
    %3370 = vmatpush1.bf16.msra.mxu0 0
    %3371 = vmatprep.subr.bf16.mxu0 0
    %3372 = vmatpush1.bf16.msra.mxu0 0
    %3373 = vmatprep.subr.bf16.mxu0 0
    %3374 = vmatpush1.bf16.msra.mxu0 0
    %3375 = vmatprep.subr.bf16.mxu0 0
    %3376 = vmatpush1.bf16.msra.mxu0 0
    %3377 = vmatprep.subr.bf16.mxu0 0
    %3378 = vmatpush1.bf16.msra.mxu0 0
    %3379 = vmatprep.subr.bf16.mxu0 0
    %3380 = vmatpush1.bf16.msra.mxu0 0
    %3381 = vmatprep.subr.bf16.mxu0 0
    %3382 = vmatpush1.bf16.msra.mxu0 0
    %3383 = vmatprep.subr.bf16.mxu0 0
    %3384 = vmatpush1.bf16.msra.mxu0 0
    %3385 = vmatprep.subr.bf16.mxu0 0
    %3386 = vmatpush1.bf16.msra.mxu0 0
    %3387 = vmatprep.subr.bf16.mxu0 0
    %3388 = vmatpush1.bf16.msra.mxu0 0
    %3389 = vmatprep.subr.bf16.mxu0 0
    %3390 = vmatpush1.bf16.msra.mxu0 0
    %3391 = vmatprep.subr.bf16.mxu0 0
    %3392 = vmatpush1.bf16.msra.mxu0 0
    %3393 = vmatprep.subr.bf16.mxu0 0
    %3394 = vmatpush1.bf16.msra.mxu0 0
    %3395 = vmatprep.mubr.bf16.mxu0 0
    %3396 = vmatmul.mubr.bf16.gmra.mrb[0].mxu0 %v933
    %v3397 = vpop.f32.mrb[0].mxu0
    %v3398 = vadd.f32 0.0, %v3397
    %v3399 = vpop.f32.mrb[0].mxu0
    %v3400 = vadd.f32 0.0, %v3399
    %v3401 = vpop.f32.mrb[0].mxu0
    %v3402 = vadd.f32 0.0, %v3401
    %v3403 = vpop.f32.mrb[0].mxu0
    %v3404 = vadd.f32 0.0, %v3403
    %3405 = vmatprep.mubr.bf16.mxu0 0
    %3406 = vmatmul.mubr.bf16.gmra.mrb[0].mxu0 %v936
    %v3407 = vpop.f32.mrb[0].mxu0
    %v3408 = vadd.f32 0.0, %v3407
    %v3409 = vpop.f32.mrb[0].mxu0
    %v3410 = vadd.f32 0.0, %v3409
    %v3411 = vpop.f32.mrb[0].mxu0
    %v3412 = vpop.f32.mrb[0].mxu0
    %3413 = vdwg.mxu0
    %v3414 = vadd.f32 %v3334, %v3398
    %v3415 = vadd.f32 %v3336, %v3400
    %v3416 = vadd.f32 %v3338, %v3402
    %v3417 = vadd.f32 %v3340, %v3404
    %v3418 = vadd.f32 %v3344, %v3408
    %v3419 = vadd.f32 %v3346, %v3410
    %s3420 = scalar_lea.vmem %s19, 8
    %v3421 = vld [vmem:[%s3420] sm:$0x3]
    %v3423 = vlaneseq
    %v3424 = vshrl.u32 %v3423, 7
    %v3425 = vsub.s32 0, %v3424
    %v3426 = vrot.slane %v3421, %v3425
    %v3427 = vlaneseq
    %v3428 = vshrl.u32 %v3427, 7
    %v3429 = vsub.s32 1, %v3428
    %v3430 = vrot.slane %v3421, %v3429
    %v3433 = vadd.f32 %v3414, %v3426
    %v3434 = vadd.f32 %v3415, %v3430
    %v3435 = vadd.f32 %v3416, %v3426
    %v3436 = vadd.f32 %v3417, %v3430
    %v3437 = vadd.f32 %v3418, %v3426
    %v3438 = vadd.f32 %v3419, %v3430
    %s3439 = scalar_lea.vmem %s16, 800
    %v3440 = vld [vmem:[%s3439] sm:$0xff]
    %v3441 = vld [vmem:[%s3439 + $0x8] sm:$0xff]
    %v3442 = vld [vmem:[%s3439 + $0x10] sm:$0xff]
    %v3443 = vld [vmem:[%s3439 + $0x18] sm:$0xff]
    %v3444 = vld [vmem:[%s3439 + $0x20] sm:$0xff]
    %v3445 = vld [vmem:[%s3439 + $0x28] sm:$0xff]
    %v3446 = vld [vmem:[%s3439 + $0x30] sm:$0xff]
    %v3447 = vld [vmem:[%s3439 + $0x38] sm:$0xff]
    %v3448 = vld [vmem:[%s3439 + $0x40] sm:$0xff]
    %v3449 = vld [vmem:[%s3439 + $0x48] sm:$0xff]
    %v3450 = vld [vmem:[%s3439 + $0x50] sm:$0xff]
    %v3451 = vld [vmem:[%s3439 + $0x58] sm:$0xff]
    %v3452 = vld [vmem:[%s3439 + $0x60] sm:$0xff]
    %v3453 = vld [vmem:[%s3439 + $0x68] sm:$0xff]
    %v3454 = vld [vmem:[%s3439 + $0x70] sm:$0xff]
    %v3455 = vld [vmem:[%s3439 + $0x78] sm:$0xff]
    %v3456 = vld [vmem:[%s3439 + $0x80] sm:$0xff]
    %v3457 = vld [vmem:[%s3439 + $0x88] sm:$0xff]
    %v3458 = vld [vmem:[%s3439 + $0x90] sm:$0xff]
    %v3459 = vld [vmem:[%s3439 + $0x98] sm:$0xff]
    %s3460 = scalar_lea.vmem %s17, 320
    %v3461 = vld [vmem:[%s3460] sm:$0xff]
    %v3462 = vld [vmem:[%s3460 + $0x8] sm:$0xff]
    %v3463 = vld [vmem:[%s3460 + $0x10] sm:$0xff]
    %v3464 = vld [vmem:[%s3460 + $0x18] sm:$0xff]
    %v3465 = vld [vmem:[%s3460 + $0x20] sm:$0xff]
    %v3466 = vld [vmem:[%s3460 + $0x28] sm:$0xff]
    %v3467 = vld [vmem:[%s3460 + $0x30] sm:$0xff]
    %v3468 = vld [vmem:[%s3460 + $0x38] sm:$0xff]
    %v3477 = vunpack.c.l.b16 %v3461
    %v3478 = vunpack.c.h.b16 %v3461
    %v3479 = vunpack.c.l.b16 %v3462
    %v3480 = vunpack.c.h.b16 %v3462
    %v3481 = vunpack.c.l.b16 %v3463
    %v3482 = vunpack.c.h.b16 %v3463
    %v3483 = vunpack.c.l.b16 %v3464
    %v3484 = vunpack.c.h.b16 %v3464
    %v3485 = vunpack.c.l.b16 %v3465
    %v3486 = vunpack.c.h.b16 %v3465
    %v3487 = vunpack.c.l.b16 %v3466
    %v3488 = vunpack.c.h.b16 %v3466
    %v3489 = vunpack.c.l.b16 %v3467
    %v3490 = vunpack.c.h.b16 %v3467
    %v3491 = vunpack.c.l.b16 %v3468
    %v3492 = vunpack.c.h.b16 %v3468
    %v3493 = vpack.c.b16 %v3479, %v3477
    %v3494 = vpack.c.b16 %v3480, %v3478
    %v3495 = vpack.c.b16 %v3483, %v3481
    %v3496 = vpack.c.b16 %v3484, %v3482
    %v3497 = vpack.c.b16 %v3487, %v3485
    %v3498 = vpack.c.b16 %v3488, %v3486
    %v3499 = vpack.c.b16 %v3491, %v3489
    %v3500 = vpack.c.b16 %v3492, %v3490
    %3509 = vmatprep.subr.bf16.mxu0 %v3494
    %3510 = vmatpush1.bf16.msra.mxu0 %v3493
    %3511 = vmatprep.subr.bf16.mxu0 %v3496
    %3512 = vmatpush1.bf16.msra.mxu0 %v3495
    %3513 = vmatprep.subr.bf16.mxu0 %v3498
    %3514 = vmatpush1.bf16.msra.mxu0 %v3497
    %3515 = vmatprep.subr.bf16.mxu0 %v3500
    %3516 = vmatpush1.bf16.msra.mxu0 %v3499
    %3517 = vmatprep.subr.bf16.mxu0 0
    %3518 = vmatpush1.bf16.msra.mxu0 0
    %3519 = vmatprep.subr.bf16.mxu0 0
    %3520 = vmatpush1.bf16.msra.mxu0 0
    %3521 = vmatprep.subr.bf16.mxu0 0
    %3522 = vmatpush1.bf16.msra.mxu0 0
    %3523 = vmatprep.subr.bf16.mxu0 0
    %3524 = vmatpush1.bf16.msra.mxu0 0
    %3525 = vmatprep.subr.bf16.mxu0 0
    %3526 = vmatpush1.bf16.msra.mxu0 0
    %3527 = vmatprep.subr.bf16.mxu0 0
    %3528 = vmatpush1.bf16.msra.mxu0 0
    %3529 = vmatprep.subr.bf16.mxu0 0
    %3530 = vmatpush1.bf16.msra.mxu0 0
    %3531 = vmatprep.subr.bf16.mxu0 0
    %3532 = vmatpush1.bf16.msra.mxu0 0
    %3533 = vmatprep.subr.bf16.mxu0 0
    %3534 = vmatpush1.bf16.msra.mxu0 0
    %3535 = vmatprep.subr.bf16.mxu0 0
    %3536 = vmatpush1.bf16.msra.mxu0 0
    %3537 = vmatprep.subr.bf16.mxu0 0
    %3538 = vmatpush1.bf16.msra.mxu0 0
    %3539 = vmatprep.subr.bf16.mxu0 0
    %3540 = vmatpush1.bf16.msra.mxu0 0
    %3541 = vmatprep.mubr.bf16.mxu0 0
    %3542 = vmatmul.mubr.bf16.gmra.mrb[0].mxu0 %v707
    %v3543 = vpop.f32.mrb[0].mxu0
    %v3544 = vadd.f32 0.0, %v3543
    %v3545 = vpop.f32.mrb[0].mxu0
    %v3546 = vadd.f32 0.0, %v3545
    %v3547 = vpop.f32.mrb[0].mxu0
    %v3548 = vadd.f32 0.0, %v3547
    %v3549 = vpop.f32.mrb[0].mxu0
    %v3550 = vadd.f32 0.0, %v3549
    %3551 = vmatprep.mubr.bf16.mxu0 0
    %3552 = vmatmul.mubr.bf16.gmra.mrb[0].mxu0 %v710
    %v3553 = vpop.f32.mrb[0].mxu0
    %v3554 = vadd.f32 0.0, %v3553
    %v3555 = vpop.f32.mrb[0].mxu0
    %v3556 = vadd.f32 0.0, %v3555
    %v3557 = vpop.f32.mrb[0].mxu0
    %v3558 = vpop.f32.mrb[0].mxu0
    %3559 = vdwg.mxu0
    %v3580 = vunpack.c.l.b16 %v3440
    %v3581 = vunpack.c.h.b16 %v3440
    %v3582 = vunpack.c.l.b16 %v3441
    %v3583 = vunpack.c.h.b16 %v3441
    %v3584 = vunpack.c.l.b16 %v3442
    %v3585 = vunpack.c.h.b16 %v3442
    %v3586 = vunpack.c.l.b16 %v3443
    %v3587 = vunpack.c.h.b16 %v3443
    %v3588 = vunpack.c.l.b16 %v3444
    %v3589 = vunpack.c.h.b16 %v3444
    %v3590 = vunpack.c.l.b16 %v3445
    %v3591 = vunpack.c.h.b16 %v3445
    %v3592 = vunpack.c.l.b16 %v3446
    %v3593 = vunpack.c.h.b16 %v3446
    %v3594 = vunpack.c.l.b16 %v3447
    %v3595 = vunpack.c.h.b16 %v3447
    %v3596 = vunpack.c.l.b16 %v3448
    %v3597 = vunpack.c.h.b16 %v3448
    %v3598 = vunpack.c.l.b16 %v3449
    %v3599 = vunpack.c.h.b16 %v3449
    %v3600 = vunpack.c.l.b16 %v3450
    %v3601 = vunpack.c.h.b16 %v3450
    %v3602 = vunpack.c.l.b16 %v3451
    %v3603 = vunpack.c.h.b16 %v3451
    %v3604 = vunpack.c.l.b16 %v3452
    %v3605 = vunpack.c.h.b16 %v3452
    %v3606 = vunpack.c.l.b16 %v3453
    %v3607 = vunpack.c.h.b16 %v3453
    %v3608 = vunpack.c.l.b16 %v3454
    %v3609 = vunpack.c.h.b16 %v3454
    %v3610 = vunpack.c.l.b16 %v3455
    %v3611 = vunpack.c.h.b16 %v3455
    %v3612 = vunpack.c.l.b16 %v3456
    %v3613 = vunpack.c.h.b16 %v3456
    %v3614 = vunpack.c.l.b16 %v3457
    %v3615 = vunpack.c.h.b16 %v3457
    %v3616 = vunpack.c.l.b16 %v3458
    %v3617 = vunpack.c.h.b16 %v3458
    %v3618 = vunpack.c.l.b16 %v3459
    %v3619 = vunpack.c.h.b16 %v3459
    %v3620 = vpack.c.b16 %v3582, %v3580
    %v3621 = vpack.c.b16 %v3583, %v3581
    %v3622 = vpack.c.b16 %v3586, %v3584
    %v3623 = vpack.c.b16 %v3587, %v3585
    %v3624 = vpack.c.b16 %v3590, %v3588
    %v3625 = vpack.c.b16 %v3591, %v3589
    %v3626 = vpack.c.b16 %v3594, %v3592
    %v3627 = vpack.c.b16 %v3595, %v3593
    %v3628 = vpack.c.b16 %v3598, %v3596
    %v3629 = vpack.c.b16 %v3599, %v3597
    %v3630 = vpack.c.b16 %v3602, %v3600
    %v3631 = vpack.c.b16 %v3603, %v3601
    %v3632 = vpack.c.b16 %v3606, %v3604
    %v3633 = vpack.c.b16 %v3607, %v3605
    %v3634 = vpack.c.b16 %v3610, %v3608
    %v3635 = vpack.c.b16 %v3611, %v3609
    %v3636 = vpack.c.b16 %v3614, %v3612
    %v3637 = vpack.c.b16 %v3615, %v3613
    %v3638 = vpack.c.b16 %v3618, %v3616
    %v3639 = vpack.c.b16 %v3619, %v3617
    %3660 = vmatprep.subr.bf16.mxu0 %v3621
    %3661 = vmatpush1.bf16.msra.mxu0 %v3620
    %3662 = vmatprep.subr.bf16.mxu0 %v3623
    %3663 = vmatpush1.bf16.msra.mxu0 %v3622
    %3664 = vmatprep.subr.bf16.mxu0 %v3625
    %3665 = vmatpush1.bf16.msra.mxu0 %v3624
    %3666 = vmatprep.subr.bf16.mxu0 %v3627
    %3667 = vmatpush1.bf16.msra.mxu0 %v3626
    %3668 = vmatprep.subr.bf16.mxu0 %v3629
    %3669 = vmatpush1.bf16.msra.mxu0 %v3628
    %3670 = vmatprep.subr.bf16.mxu0 %v3631
    %3671 = vmatpush1.bf16.msra.mxu0 %v3630
    %3672 = vmatprep.subr.bf16.mxu0 %v3633
    %3673 = vmatpush1.bf16.msra.mxu0 %v3632
    %3674 = vmatprep.subr.bf16.mxu0 %v3635
    %3675 = vmatpush1.bf16.msra.mxu0 %v3634
    %3676 = vmatprep.subr.bf16.mxu0 %v3637
    %3677 = vmatpush1.bf16.msra.mxu0 %v3636
    %3678 = vmatprep.subr.bf16.mxu0 %v3639
    %3679 = vmatpush1.bf16.msra.mxu0 %v3638
    %3680 = vmatprep.subr.bf16.mxu0 0
    %3681 = vmatpush1.bf16.msra.mxu0 0
    %3682 = vmatprep.subr.bf16.mxu0 0
    %3683 = vmatpush1.bf16.msra.mxu0 0
    %3684 = vmatprep.subr.bf16.mxu0 0
    %3685 = vmatpush1.bf16.msra.mxu0 0
    %3686 = vmatprep.subr.bf16.mxu0 0
    %3687 = vmatpush1.bf16.msra.mxu0 0
    %3688 = vmatprep.subr.bf16.mxu0 0
    %3689 = vmatpush1.bf16.msra.mxu0 0
    %3690 = vmatprep.subr.bf16.mxu0 0
    %3691 = vmatpush1.bf16.msra.mxu0 0
    %3692 = vmatprep.mubr.bf16.mxu0 %v3294
    %3693 = vmatmul.mubr.bf16.gmra.mrb[0].mxu0 %v3068
    %v3694 = vpop.f32.mrb[0].mxu0
    %v3695 = vadd.f32 %v3544, %v3694
    %v3696 = vpop.f32.mrb[0].mxu0
    %v3697 = vadd.f32 %v3546, %v3696
    %v3698 = vpop.f32.mrb[0].mxu0
    %v3699 = vadd.f32 %v3548, %v3698
    %v3700 = vpop.f32.mrb[0].mxu0
    %v3701 = vadd.f32 %v3550, %v3700
    %3702 = vmatprep.mubr.bf16.mxu0 %v3297
    %3703 = vmatmul.mubr.bf16.gmra.mrb[0].mxu0 %v3070
    %v3704 = vpop.f32.mrb[0].mxu0
    %v3705 = vadd.f32 %v3554, %v3704
    %v3706 = vpop.f32.mrb[0].mxu0
    %v3707 = vadd.f32 %v3556, %v3706
    %v3708 = vpop.f32.mrb[0].mxu0
    %v3709 = vpop.f32.mrb[0].mxu0
    %3710 = vdwg.mxu0
    %s3711 = scalar_lea.vmem %s18, 80
    %v3712 = vld [vmem:[%s3711] sm:$0xff]
    %v3713 = vld [vmem:[%s3711 + $0x8] sm:$0xff]
    %v3716 = vunpack.c.l.b16 %v3712
    %v3717 = vunpack.c.h.b16 %v3712
    %v3718 = vunpack.c.l.b16 %v3713
    %v3719 = vunpack.c.h.b16 %v3713
    %v3720 = vpack.c.b16 %v3718, %v3716
    %v3721 = vpack.c.b16 %v3719, %v3717
    %3724 = vmatprep.subr.bf16.mxu0 %v3721
    %3725 = vmatpush1.bf16.msra.mxu0 %v3720
    %3726 = vmatprep.subr.bf16.mxu0 0
    %3727 = vmatpush1.bf16.msra.mxu0 0
    %3728 = vmatprep.subr.bf16.mxu0 0
    %3729 = vmatpush1.bf16.msra.mxu0 0
    %3730 = vmatprep.subr.bf16.mxu0 0
    %3731 = vmatpush1.bf16.msra.mxu0 0
    %3732 = vmatprep.subr.bf16.mxu0 0
    %3733 = vmatpush1.bf16.msra.mxu0 0
    %3734 = vmatprep.subr.bf16.mxu0 0
    %3735 = vmatpush1.bf16.msra.mxu0 0
    %3736 = vmatprep.subr.bf16.mxu0 0
    %3737 = vmatpush1.bf16.msra.mxu0 0
    %3738 = vmatprep.subr.bf16.mxu0 0
    %3739 = vmatpush1.bf16.msra.mxu0 0
    %3740 = vmatprep.subr.bf16.mxu0 0
    %3741 = vmatpush1.bf16.msra.mxu0 0
    %3742 = vmatprep.subr.bf16.mxu0 0
    %3743 = vmatpush1.bf16.msra.mxu0 0
    %3744 = vmatprep.subr.bf16.mxu0 0
    %3745 = vmatpush1.bf16.msra.mxu0 0
    %3746 = vmatprep.subr.bf16.mxu0 0
    %3747 = vmatpush1.bf16.msra.mxu0 0
    %3748 = vmatprep.subr.bf16.mxu0 0
    %3749 = vmatpush1.bf16.msra.mxu0 0
    %3750 = vmatprep.subr.bf16.mxu0 0
    %3751 = vmatpush1.bf16.msra.mxu0 0
    %3752 = vmatprep.subr.bf16.mxu0 0
    %3753 = vmatpush1.bf16.msra.mxu0 0
    %3754 = vmatprep.subr.bf16.mxu0 0
    %3755 = vmatpush1.bf16.msra.mxu0 0
    %3756 = vmatprep.mubr.bf16.mxu0 0
    %3757 = vmatmul.mubr.bf16.gmra.mrb[0].mxu0 %v933
    %v3758 = vpop.f32.mrb[0].mxu0
    %v3759 = vadd.f32 0.0, %v3758
    %v3760 = vpop.f32.mrb[0].mxu0
    %v3761 = vadd.f32 0.0, %v3760
    %v3762 = vpop.f32.mrb[0].mxu0
    %v3763 = vadd.f32 0.0, %v3762
    %v3764 = vpop.f32.mrb[0].mxu0
    %v3765 = vadd.f32 0.0, %v3764
    %3766 = vmatprep.mubr.bf16.mxu0 0
    %3767 = vmatmul.mubr.bf16.gmra.mrb[0].mxu0 %v936
    %v3768 = vpop.f32.mrb[0].mxu0
    %v3769 = vadd.f32 0.0, %v3768
    %v3770 = vpop.f32.mrb[0].mxu0
    %v3771 = vadd.f32 0.0, %v3770
    %v3772 = vpop.f32.mrb[0].mxu0
    %v3773 = vpop.f32.mrb[0].mxu0
    %3774 = vdwg.mxu0
    %v3775 = vadd.f32 %v3695, %v3759
    %v3776 = vadd.f32 %v3697, %v3761
    %v3777 = vadd.f32 %v3699, %v3763
    %v3778 = vadd.f32 %v3701, %v3765
    %v3779 = vadd.f32 %v3705, %v3769
    %v3780 = vadd.f32 %v3707, %v3771
    %s3781 = scalar_lea.vmem %s19, 10
    %v3782 = vld [vmem:[%s3781] sm:$0x3]
    %v3784 = vlaneseq
    %v3785 = vshrl.u32 %v3784, 7
    %v3786 = vsub.s32 0, %v3785
    %v3787 = vrot.slane %v3782, %v3786
    %v3788 = vlaneseq
    %v3789 = vshrl.u32 %v3788, 7
    %v3790 = vsub.s32 1, %v3789
    %v3791 = vrot.slane %v3782, %v3790
    %v3794 = vadd.f32 %v3775, %v3787
    %v3795 = vadd.f32 %v3776, %v3791
    %v3796 = vadd.f32 %v3777, %v3787
    %v3797 = vadd.f32 %v3778, %v3791
    %v3798 = vadd.f32 %v3779, %v3787
    %v3799 = vadd.f32 %v3780, %v3791
    %v3800 = vxor.u32 %v3433, 2147483648
    %v3801 = vxor.u32 %v3434, 2147483648
    %v3802 = vxor.u32 %v3435, 2147483648
    %v3803 = vxor.u32 %v3436, 2147483648
    %v3804 = vxor.u32 %v3437, 2147483648
    %v3805 = vxor.u32 %v3438, 2147483648
    %v3806 = vmul.f32 %v3800, 1.442695
    %v3807 = vpow.pop %v3806
    %v3808 = vmul.f32 %v3801, 1.442695
    %v3809 = vpow.pop %v3808
    %v3810 = vmul.f32 %v3802, 1.442695
    %v3811 = vpow.pop %v3810
    %v3812 = vmul.f32 %v3803, 1.442695
    %v3813 = vpow.pop %v3812
    %v3814 = vmul.f32 %v3804, 1.442695
    %v3815 = vpow.pop %v3814
    %v3816 = vmul.f32 %v3805, 1.442695
    %v3817 = vpow.pop %v3816
    %v3818 = vadd.f32 %v3807, 1.0
    %v3819 = vadd.f32 %v3809, 1.0
    %v3820 = vadd.f32 %v3811, 1.0
    %v3821 = vadd.f32 %v3813, 1.0
    %v3822 = vadd.f32 %v3815, 1.0
    %v3823 = vadd.f32 %v3817, 1.0
    %v3824 = vrcp.pop %v3818
    %v3825 = vmul.f32 1.0, %v3824
    %v3826 = vrcp.pop %v3819
    %v3827 = vmul.f32 1.0, %v3826
    %v3828 = vrcp.pop %v3820
    %v3829 = vmul.f32 1.0, %v3828
    %v3830 = vrcp.pop %v3821
    %v3831 = vmul.f32 1.0, %v3830
    %v3832 = vrcp.pop %v3822
    %v3833 = vmul.f32 1.0, %v3832
    %v3834 = vrcp.pop %v3823
    %v3835 = vmul.f32 1.0, %v3834
    %v3836 = vtanh.pop %v3794
    %v3837 = vtanh.pop %v3795
    %v3838 = vtanh.pop %v3796
    %v3839 = vtanh.pop %v3797
    %v3840 = vtanh.pop %v3798
    %v3841 = vtanh.pop %v3799
    %v3842 = vmul.f32 %v3825, %v3836
    %v3843 = vmul.f32 %v3827, %v3837
    %v3844 = vmul.f32 %v3829, %v3838
    %v3845 = vmul.f32 %v3831, %v3839
    %v3846 = vmul.f32 %v3833, %v3840
    %v3847 = vmul.f32 %v3835, %v3841
    %v3848 = vpack.c.bf16 %v3844, %v3842
    %v3849 = vpack.c.bf16 %v3845, %v3843
    %v3850 = vpack.c.bf16 %v3846, %v3846
    %v3851 = vpack.c.bf16 %v3847, %v3847
    %s3852 = scalar_lea.vmem %s20, 800
    %v3853 = vld [vmem:[%s3852] sm:$0xff]
    %v3854 = vld [vmem:[%s3852 + $0x8] sm:$0xff]
    %v3855 = vld [vmem:[%s3852 + $0x10] sm:$0xff]
    %v3856 = vld [vmem:[%s3852 + $0x18] sm:$0xff]
    %v3857 = vld [vmem:[%s3852 + $0x20] sm:$0xff]
    %v3858 = vld [vmem:[%s3852 + $0x28] sm:$0xff]
    %v3859 = vld [vmem:[%s3852 + $0x30] sm:$0xff]
    %v3860 = vld [vmem:[%s3852 + $0x38] sm:$0xff]
    %v3861 = vld [vmem:[%s3852 + $0x40] sm:$0xff]
    %v3862 = vld [vmem:[%s3852 + $0x48] sm:$0xff]
    %v3863 = vld [vmem:[%s3852 + $0x50] sm:$0xff]
    %v3864 = vld [vmem:[%s3852 + $0x58] sm:$0xff]
    %v3865 = vld [vmem:[%s3852 + $0x60] sm:$0xff]
    %v3866 = vld [vmem:[%s3852 + $0x68] sm:$0xff]
    %v3867 = vld [vmem:[%s3852 + $0x70] sm:$0xff]
    %v3868 = vld [vmem:[%s3852 + $0x78] sm:$0xff]
    %v3869 = vld [vmem:[%s3852 + $0x80] sm:$0xff]
    %v3870 = vld [vmem:[%s3852 + $0x88] sm:$0xff]
    %v3871 = vld [vmem:[%s3852 + $0x90] sm:$0xff]
    %v3872 = vld [vmem:[%s3852 + $0x98] sm:$0xff]
    %s3873 = scalar_lea.vmem %s21, 10
    %v3874 = vld [vmem:[%s3873] sm:$0x3]
    %v3876 = vlaneseq
    %v3877 = vshrl.u32 %v3876, 7
    %v3878 = vsub.s32 0, %v3877
    %v3879 = vrot.slane %v3874, %v3878
    %v3880 = vlaneseq
    %v3881 = vshrl.u32 %v3880, 7
    %v3882 = vsub.s32 1, %v3881
    %v3883 = vrot.slane %v3874, %v3882
    %v3906 = vunpack.c.l.b16 %v3853
    %v3907 = vunpack.c.h.b16 %v3853
    %v3908 = vunpack.c.l.b16 %v3854
    %v3909 = vunpack.c.h.b16 %v3854
    %v3910 = vunpack.c.l.b16 %v3855
    %v3911 = vunpack.c.h.b16 %v3855
    %v3912 = vunpack.c.l.b16 %v3856
    %v3913 = vunpack.c.h.b16 %v3856
    %v3914 = vunpack.c.l.b16 %v3857
    %v3915 = vunpack.c.h.b16 %v3857
    %v3916 = vunpack.c.l.b16 %v3858
    %v3917 = vunpack.c.h.b16 %v3858
    %v3918 = vunpack.c.l.b16 %v3859
    %v3919 = vunpack.c.h.b16 %v3859
    %v3920 = vunpack.c.l.b16 %v3860
    %v3921 = vunpack.c.h.b16 %v3860
    %v3922 = vunpack.c.l.b16 %v3861
    %v3923 = vunpack.c.h.b16 %v3861
    %v3924 = vunpack.c.l.b16 %v3862
    %v3925 = vunpack.c.h.b16 %v3862
    %v3926 = vunpack.c.l.b16 %v3863
    %v3927 = vunpack.c.h.b16 %v3863
    %v3928 = vunpack.c.l.b16 %v3864
    %v3929 = vunpack.c.h.b16 %v3864
    %v3930 = vunpack.c.l.b16 %v3865
    %v3931 = vunpack.c.h.b16 %v3865
    %v3932 = vunpack.c.l.b16 %v3866
    %v3933 = vunpack.c.h.b16 %v3866
    %v3934 = vunpack.c.l.b16 %v3867
    %v3935 = vunpack.c.h.b16 %v3867
    %v3936 = vunpack.c.l.b16 %v3868
    %v3937 = vunpack.c.h.b16 %v3868
    %v3938 = vunpack.c.l.b16 %v3869
    %v3939 = vunpack.c.h.b16 %v3869
    %v3940 = vunpack.c.l.b16 %v3870
    %v3941 = vunpack.c.h.b16 %v3870
    %v3942 = vunpack.c.l.b16 %v3871
    %v3943 = vunpack.c.h.b16 %v3871
    %v3944 = vunpack.c.l.b16 %v3872
    %v3945 = vunpack.c.h.b16 %v3872
    %v3946 = vpack.c.b16 %v3908, %v3906
    %v3947 = vpack.c.b16 %v3909, %v3907
    %v3948 = vpack.c.b16 %v3912, %v3910
    %v3949 = vpack.c.b16 %v3913, %v3911
    %v3950 = vpack.c.b16 %v3916, %v3914
    %v3951 = vpack.c.b16 %v3917, %v3915
    %v3952 = vpack.c.b16 %v3920, %v3918
    %v3953 = vpack.c.b16 %v3921, %v3919
    %v3954 = vpack.c.b16 %v3924, %v3922
    %v3955 = vpack.c.b16 %v3925, %v3923
    %v3956 = vpack.c.b16 %v3928, %v3926
    %v3957 = vpack.c.b16 %v3929, %v3927
    %v3958 = vpack.c.b16 %v3932, %v3930
    %v3959 = vpack.c.b16 %v3933, %v3931
    %v3960 = vpack.c.b16 %v3936, %v3934
    %v3961 = vpack.c.b16 %v3937, %v3935
    %v3962 = vpack.c.b16 %v3940, %v3938
    %v3963 = vpack.c.b16 %v3941, %v3939
    %v3964 = vpack.c.b16 %v3944, %v3942
    %v3965 = vpack.c.b16 %v3945, %v3943
    %v3987 = vsel %vm166, %v3849, 0
    %v3990 = vsel %vm166, %v3851, 0
    %3992 = vmatprep.subr.bf16.mxu0 %v3947
    %3993 = vmatpush1.bf16.msra.mxu0 %v3946
    %3994 = vmatprep.subr.bf16.mxu0 %v3949
    %3995 = vmatpush1.bf16.msra.mxu0 %v3948
    %3996 = vmatprep.subr.bf16.mxu0 %v3951
    %3997 = vmatpush1.bf16.msra.mxu0 %v3950
    %3998 = vmatprep.subr.bf16.mxu0 %v3953
    %3999 = vmatpush1.bf16.msra.mxu0 %v3952
    %4000 = vmatprep.subr.bf16.mxu0 %v3955
    %4001 = vmatpush1.bf16.msra.mxu0 %v3954
    %4002 = vmatprep.subr.bf16.mxu0 %v3957
    %4003 = vmatpush1.bf16.msra.mxu0 %v3956
    %4004 = vmatprep.subr.bf16.mxu0 %v3959
    %4005 = vmatpush1.bf16.msra.mxu0 %v3958
    %4006 = vmatprep.subr.bf16.mxu0 %v3961
    %4007 = vmatpush1.bf16.msra.mxu0 %v3960
    %4008 = vmatprep.subr.bf16.mxu0 %v3963
    %4009 = vmatpush1.bf16.msra.mxu0 %v3962
    %4010 = vmatprep.subr.bf16.mxu0 %v3965
    %4011 = vmatpush1.bf16.msra.mxu0 %v3964
    %4012 = vmatprep.subr.bf16.mxu0 0
    %4013 = vmatpush1.bf16.msra.mxu0 0
    %4014 = vmatprep.subr.bf16.mxu0 0
    %4015 = vmatpush1.bf16.msra.mxu0 0
    %4016 = vmatprep.subr.bf16.mxu0 0
    %4017 = vmatpush1.bf16.msra.mxu0 0
    %4018 = vmatprep.subr.bf16.mxu0 0
    %4019 = vmatpush1.bf16.msra.mxu0 0
    %4020 = vmatprep.subr.bf16.mxu0 0
    %4021 = vmatpush1.bf16.msra.mxu0 0
    %4022 = vmatprep.subr.bf16.mxu0 0
    %4023 = vmatpush1.bf16.msra.mxu0 0
    %4024 = vmatprep.mubr.bf16.mxu0 %v3987
    %4025 = vmatmul.mubr.bf16.gmra.mrb[0].mxu0 %v3848
    %v4026 = vpop.f32.mrb[0].mxu0
    %v4027 = vadd.f32 %v3879, %v4026
    %v4028 = vpop.f32.mrb[0].mxu0
    %v4029 = vadd.f32 %v3883, %v4028
    %v4030 = vpop.f32.mrb[0].mxu0
    %v4031 = vadd.f32 %v3879, %v4030
    %v4032 = vpop.f32.mrb[0].mxu0
    %v4033 = vadd.f32 %v3883, %v4032
    %4034 = vmatprep.mubr.bf16.mxu0 %v3990
    %4035 = vmatmul.mubr.bf16.gmra.mrb[0].mxu0 %v3850
    %v4036 = vpop.f32.mrb[0].mxu0
    %v4037 = vadd.f32 %v3879, %v4036
    %v4038 = vpop.f32.mrb[0].mxu0
    %v4039 = vadd.f32 %v3883, %v4038
    %v4040 = vpop.f32.mrb[0].mxu0
    %v4041 = vpop.f32.mrb[0].mxu0
    %4042 = vdwg.mxu0
    %vm4043 = vcmp.ge.f32.partialorder %v4027, 0.0
    %vm4044 = vcmp.ge.f32.partialorder %v4029, 0.0
    %vm4045 = vcmp.ge.f32.partialorder %v4031, 0.0
    %vm4046 = vcmp.ge.f32.partialorder %v4033, 0.0
    %vm4047 = vcmp.ge.f32.partialorder %v4037, 0.0
    %vm4048 = vcmp.ge.f32.partialorder %v4039, 0.0
    %v4049 = vmul.f32 %v4027, 0.4
    %v4050 = vmul.f32 %v4029, 0.4
    %v4051 = vmul.f32 %v4031, 0.4
    %v4052 = vmul.f32 %v4033, 0.4
    %v4053 = vmul.f32 %v4037, 0.4
    %v4054 = vmul.f32 %v4039, 0.4
    %v4055 = vsel %vm4043, %v4027, %v4049
    %v4056 = vsel %vm4044, %v4029, %v4050
    %v4057 = vsel %vm4045, %v4031, %v4051
    %v4058 = vsel %vm4046, %v4033, %v4052
    %v4059 = vsel %vm4047, %v4037, %v4053
    %v4060 = vsel %vm4048, %v4039, %v4054
    %v4061 = vadd.f32 %v3062, %v4055
    %v4062 = vadd.f32 %v3063, %v4056
    %v4063 = vadd.f32 %v3064, %v4057
    %v4064 = vadd.f32 %v3065, %v4058
    %v4065 = vadd.f32 %v3066, %v4059
    %v4066 = vadd.f32 %v3067, %v4060
    %v4067 = vmul.f32 %v4061, 0.57735026
    %v4068 = vmul.f32 %v4062, 0.57735026
    %v4069 = vmul.f32 %v4063, 0.57735026
    %v4070 = vmul.f32 %v4064, 0.57735026
    %v4071 = vmul.f32 %v4065, 0.57735026
    %v4072 = vmul.f32 %v4066, 0.57735026
    %v4073 = vld [vmem:[%s22] sm:$0xff]
    %v4074 = vld [vmem:[%s22 + $0x8] sm:$0xff]
    %v4075 = vld [vmem:[%s22 + $0x10] sm:$0xff]
    %v4076 = vld [vmem:[%s22 + $0x18] sm:$0xff]
    %v4077 = vld [vmem:[%s22 + $0x20] sm:$0xff]
    %v4078 = vld [vmem:[%s22 + $0x28] sm:$0xff]
    %v4079 = vld [vmem:[%s22 + $0x30] sm:$0xff]
    %v4080 = vld [vmem:[%s22 + $0x38] sm:$0xff]
    %v4081 = vld [vmem:[%s22 + $0x40] sm:$0xff]
    %v4082 = vld [vmem:[%s22 + $0x48] sm:$0xff]
    %v4083 = vld [vmem:[%s22 + $0x50] sm:$0xff]
    %v4084 = vld [vmem:[%s22 + $0x58] sm:$0xff]
    %v4085 = vld [vmem:[%s22 + $0x60] sm:$0xff]
    %v4086 = vld [vmem:[%s22 + $0x68] sm:$0xff]
    %v4087 = vld [vmem:[%s22 + $0x70] sm:$0xff]
    %v4088 = vld [vmem:[%s22 + $0x78] sm:$0xff]
    %v4089 = vld [vmem:[%s22 + $0x80] sm:$0xff]
    %v4090 = vld [vmem:[%s22 + $0x88] sm:$0xff]
    %v4091 = vld [vmem:[%s22 + $0x90] sm:$0xff]
    %v4092 = vld [vmem:[%s22 + $0x98] sm:$0xff]
    %v4093 = vpack.c.bf16 %v4069, %v4067
    %v4094 = vpack.c.bf16 %v4070, %v4068
    %v4095 = vpack.c.bf16 %v4071, %v4071
    %v4096 = vpack.c.bf16 %v4072, %v4072
    %v4097 = vld [vmem:[%s23] sm:$0x3]
    %v4099 = vlaneseq
    %v4100 = vshrl.u32 %v4099, 7
    %v4101 = vsub.s32 0, %v4100
    %v4102 = vrot.slane %v4097, %v4101
    %v4103 = vlaneseq
    %v4104 = vshrl.u32 %v4103, 7
    %v4105 = vsub.s32 1, %v4104
    %v4106 = vrot.slane %v4097, %v4105
    %v4129 = vunpack.c.l.b16 %v4073
    %v4130 = vunpack.c.h.b16 %v4073
    %v4131 = vunpack.c.l.b16 %v4074
    %v4132 = vunpack.c.h.b16 %v4074
    %v4133 = vunpack.c.l.b16 %v4075
    %v4134 = vunpack.c.h.b16 %v4075
    %v4135 = vunpack.c.l.b16 %v4076
    %v4136 = vunpack.c.h.b16 %v4076
    %v4137 = vunpack.c.l.b16 %v4077
    %v4138 = vunpack.c.h.b16 %v4077
    %v4139 = vunpack.c.l.b16 %v4078
    %v4140 = vunpack.c.h.b16 %v4078
    %v4141 = vunpack.c.l.b16 %v4079
    %v4142 = vunpack.c.h.b16 %v4079
    %v4143 = vunpack.c.l.b16 %v4080
    %v4144 = vunpack.c.h.b16 %v4080
    %v4145 = vunpack.c.l.b16 %v4081
    %v4146 = vunpack.c.h.b16 %v4081
    %v4147 = vunpack.c.l.b16 %v4082
    %v4148 = vunpack.c.h.b16 %v4082
    %v4149 = vunpack.c.l.b16 %v4083
    %v4150 = vunpack.c.h.b16 %v4083
    %v4151 = vunpack.c.l.b16 %v4084
    %v4152 = vunpack.c.h.b16 %v4084
    %v4153 = vunpack.c.l.b16 %v4085
    %v4154 = vunpack.c.h.b16 %v4085
    %v4155 = vunpack.c.l.b16 %v4086
    %v4156 = vunpack.c.h.b16 %v4086
    %v4157 = vunpack.c.l.b16 %v4087
    %v4158 = vunpack.c.h.b16 %v4087
    %v4159 = vunpack.c.l.b16 %v4088
    %v4160 = vunpack.c.h.b16 %v4088
    %v4161 = vunpack.c.l.b16 %v4089
    %v4162 = vunpack.c.h.b16 %v4089
    %v4163 = vunpack.c.l.b16 %v4090
    %v4164 = vunpack.c.h.b16 %v4090
    %v4165 = vunpack.c.l.b16 %v4091
    %v4166 = vunpack.c.h.b16 %v4091
    %v4167 = vunpack.c.l.b16 %v4092
    %v4168 = vunpack.c.h.b16 %v4092
    %v4169 = vpack.c.b16 %v4131, %v4129
    %v4170 = vpack.c.b16 %v4132, %v4130
    %v4171 = vpack.c.b16 %v4135, %v4133
    %v4172 = vpack.c.b16 %v4136, %v4134
    %v4173 = vpack.c.b16 %v4139, %v4137
    %v4174 = vpack.c.b16 %v4140, %v4138
    %v4175 = vpack.c.b16 %v4143, %v4141
    %v4176 = vpack.c.b16 %v4144, %v4142
    %v4177 = vpack.c.b16 %v4147, %v4145
    %v4178 = vpack.c.b16 %v4148, %v4146
    %v4179 = vpack.c.b16 %v4151, %v4149
    %v4180 = vpack.c.b16 %v4152, %v4150
    %v4181 = vpack.c.b16 %v4155, %v4153
    %v4182 = vpack.c.b16 %v4156, %v4154
    %v4183 = vpack.c.b16 %v4159, %v4157
    %v4184 = vpack.c.b16 %v4160, %v4158
    %v4185 = vpack.c.b16 %v4163, %v4161
    %v4186 = vpack.c.b16 %v4164, %v4162
    %v4187 = vpack.c.b16 %v4167, %v4165
    %v4188 = vpack.c.b16 %v4168, %v4166
    %v4210 = vsel %vm166, %v4094, 0
    %v4213 = vsel %vm166, %v4096, 0
    %4215 = vmatprep.subr.bf16.mxu0 %v4170
    %4216 = vmatpush1.bf16.msra.mxu0 %v4169
    %4217 = vmatprep.subr.bf16.mxu0 %v4172
    %4218 = vmatpush1.bf16.msra.mxu0 %v4171
    %4219 = vmatprep.subr.bf16.mxu0 %v4174
    %4220 = vmatpush1.bf16.msra.mxu0 %v4173
    %4221 = vmatprep.subr.bf16.mxu0 %v4176
    %4222 = vmatpush1.bf16.msra.mxu0 %v4175
    %4223 = vmatprep.subr.bf16.mxu0 %v4178
    %4224 = vmatpush1.bf16.msra.mxu0 %v4177
    %4225 = vmatprep.subr.bf16.mxu0 %v4180
    %4226 = vmatpush1.bf16.msra.mxu0 %v4179
    %4227 = vmatprep.subr.bf16.mxu0 %v4182
    %4228 = vmatpush1.bf16.msra.mxu0 %v4181
    %4229 = vmatprep.subr.bf16.mxu0 %v4184
    %4230 = vmatpush1.bf16.msra.mxu0 %v4183
    %4231 = vmatprep.subr.bf16.mxu0 %v4186
    %4232 = vmatpush1.bf16.msra.mxu0 %v4185
    %4233 = vmatprep.subr.bf16.mxu0 %v4188
    %4234 = vmatpush1.bf16.msra.mxu0 %v4187
    %4235 = vmatprep.subr.bf16.mxu0 0
    %4236 = vmatpush1.bf16.msra.mxu0 0
    %4237 = vmatprep.subr.bf16.mxu0 0
    %4238 = vmatpush1.bf16.msra.mxu0 0
    %4239 = vmatprep.subr.bf16.mxu0 0
    %4240 = vmatpush1.bf16.msra.mxu0 0
    %4241 = vmatprep.subr.bf16.mxu0 0
    %4242 = vmatpush1.bf16.msra.mxu0 0
    %4243 = vmatprep.subr.bf16.mxu0 0
    %4244 = vmatpush1.bf16.msra.mxu0 0
    %4245 = vmatprep.subr.bf16.mxu0 0
    %4246 = vmatpush1.bf16.msra.mxu0 0
    %4247 = vmatprep.mubr.bf16.mxu0 %v4210
    %4248 = vmatmul.mubr.bf16.gmra.mrb[0].mxu0 %v4093
    %v4249 = vpop.f32.mrb[0].mxu0
    %v4250 = vadd.f32 %v4102, %v4249
    %v4251 = vpop.f32.mrb[0].mxu0
    %v4252 = vadd.f32 %v4106, %v4251
    %v4253 = vpop.f32.mrb[0].mxu0
    %v4254 = vadd.f32 %v4102, %v4253
    %v4255 = vpop.f32.mrb[0].mxu0
    %v4256 = vadd.f32 %v4106, %v4255
    %4257 = vmatprep.mubr.bf16.mxu0 %v4213
    %4258 = vmatmul.mubr.bf16.gmra.mrb[0].mxu0 %v4095
    %v4259 = vpop.f32.mrb[0].mxu0
    %v4260 = vadd.f32 %v4102, %v4259
    %v4261 = vpop.f32.mrb[0].mxu0
    %v4262 = vadd.f32 %v4106, %v4261
    %v4263 = vpop.f32.mrb[0].mxu0
    %v4264 = vpop.f32.mrb[0].mxu0
    %4265 = vdwg.mxu0
    %vm4266 = vcmp.ge.f32.partialorder %v4250, 0.0
    %vm4267 = vcmp.ge.f32.partialorder %v4252, 0.0
    %vm4268 = vcmp.ge.f32.partialorder %v4254, 0.0
    %vm4269 = vcmp.ge.f32.partialorder %v4256, 0.0
    %vm4270 = vcmp.ge.f32.partialorder %v4260, 0.0
    %vm4271 = vcmp.ge.f32.partialorder %v4262, 0.0
    %v4272 = vmul.f32 %v4250, 0.4
    %v4273 = vmul.f32 %v4252, 0.4
    %v4274 = vmul.f32 %v4254, 0.4
    %v4275 = vmul.f32 %v4256, 0.4
    %v4276 = vmul.f32 %v4260, 0.4
    %v4277 = vmul.f32 %v4262, 0.4
    %v4278 = vsel %vm4266, %v4250, %v4272
    %v4279 = vsel %vm4267, %v4252, %v4273
    %v4280 = vsel %vm4268, %v4254, %v4274
    %v4281 = vsel %vm4269, %v4256, %v4275
    %v4282 = vsel %vm4270, %v4260, %v4276
    %v4283 = vsel %vm4271, %v4262, %v4277
    %v4284 = vld [vmem:[%s24] sm:$0xf]
    %v4285 = vld [vmem:[%s24 + $0x4] sm:$0xf]
    %v4286 = vld [vmem:[%s24 + $0x8] sm:$0xf]
    %v4287 = vld [vmem:[%s24 + $0xc] sm:$0xf]
    %v4288 = vld [vmem:[%s24 + $0x10] sm:$0xf]
    %v4289 = vld [vmem:[%s24 + $0x14] sm:$0xf]
    %v4290 = vld [vmem:[%s24 + $0x18] sm:$0xf]
    %v4291 = vld [vmem:[%s24 + $0x1c] sm:$0xf]
    %v4292 = vld [vmem:[%s24 + $0x20] sm:$0xf]
    %v4293 = vld [vmem:[%s24 + $0x24] sm:$0xf]
    %v4294 = vld [vmem:[%s24 + $0x28] sm:$0xf]
    %v4295 = vld [vmem:[%s24 + $0x2c] sm:$0xf]
    %v4296 = vld [vmem:[%s24 + $0x30] sm:$0xf]
    %v4297 = vld [vmem:[%s24 + $0x34] sm:$0xf]
    %v4298 = vld [vmem:[%s24 + $0x38] sm:$0xf]
    %v4299 = vld [vmem:[%s24 + $0x3c] sm:$0xf]
    %v4300 = vld [vmem:[%s24 + $0x40] sm:$0xf]
    %v4301 = vld [vmem:[%s24 + $0x44] sm:$0xf]
    %v4302 = vpack.c.bf16 %v4280, %v4278
    %v4303 = vpack.c.bf16 %v4281, %v4279
    %v4304 = vpack.c.bf16 %v4282, %v4282
    %v4305 = vpack.c.bf16 %v4283, %v4283
    %v4306 = vld [vmem:[#allocation2] sm:$0x1]
    %v4308 = vlaneseq
    %v4309 = vshrl.u32 %v4308, 7
    %v4310 = vsub.s32 0, %v4309
    %v4311 = vrot.slane %v4306, %v4310
    %4312 = vset.pattern.permute.xlu0 0
    %4313 = vperm.xlu0 %4312, %v4311
    %v4314 = vpop.permute.xlu0 %4313
    %v4334 = vunpack.c.l.b16 %v4284
    %v4335 = vunpack.c.l.b16 %v4285
    %v4336 = vunpack.c.l.b16 %v4286
    %v4337 = vunpack.c.l.b16 %v4287
    %v4338 = vunpack.c.l.b16 %v4288
    %v4339 = vunpack.c.l.b16 %v4289
    %v4340 = vunpack.c.l.b16 %v4290
    %v4341 = vunpack.c.l.b16 %v4291
    %v4342 = vunpack.c.l.b16 %v4292
    %v4343 = vunpack.c.l.b16 %v4293
    %v4344 = vunpack.c.l.b16 %v4294
    %v4345 = vunpack.c.l.b16 %v4295
    %v4346 = vunpack.c.l.b16 %v4296
    %v4347 = vunpack.c.l.b16 %v4297
    %v4348 = vunpack.c.l.b16 %v4298
    %v4349 = vunpack.c.l.b16 %v4299
    %v4350 = vunpack.c.l.b16 %v4300
    %v4351 = vunpack.c.l.b16 %v4301
    %v4352 = vpack.c.b16 %v4335, %v4334
    %v4353 = vpack.c.b16 %v4337, %v4336
    %v4354 = vpack.c.b16 %v4339, %v4338
    %v4355 = vpack.c.b16 %v4341, %v4340
    %v4356 = vpack.c.b16 %v4343, %v4342
    %v4357 = vpack.c.b16 %v4345, %v4344
    %v4358 = vpack.c.b16 %v4347, %v4346
    %v4359 = vpack.c.b16 %v4349, %v4348
    %v4360 = vpack.c.b16 %v4351, %v4350
    %v4371 = vsel %vm554, %v4303, 0
    %v4374 = vsel %vm554, %v4305, 0
    %4376 = vmatprep.subr.bf16.mxu0 0
    %4377 = vmatpush1.bf16.msra.mxu0 %v4352
    %4378 = vmatprep.subr.bf16.mxu0 0
    %4379 = vmatpush1.bf16.msra.mxu0 %v4353
    %4380 = vmatprep.subr.bf16.mxu0 0
    %4381 = vmatpush1.bf16.msra.mxu0 %v4354
    %4382 = vmatprep.subr.bf16.mxu0 0
    %4383 = vmatpush1.bf16.msra.mxu0 %v4355
    %4384 = vmatprep.subr.bf16.mxu0 0
    %4385 = vmatpush1.bf16.msra.mxu0 %v4356
    %4386 = vmatprep.subr.bf16.mxu0 0
    %4387 = vmatpush1.bf16.msra.mxu0 %v4357
    %4388 = vmatprep.subr.bf16.mxu0 0
    %4389 = vmatpush1.bf16.msra.mxu0 %v4358
    %4390 = vmatprep.subr.bf16.mxu0 0
    %4391 = vmatpush1.bf16.msra.mxu0 %v4359
    %4392 = vmatprep.subr.bf16.mxu0 0
    %4393 = vmatpush1.bf16.msra.mxu0 %v4360
    %4394 = vmatprep.subr.bf16.mxu0 0
    %4395 = vmatpush1.bf16.msra.mxu0 0
    %4396 = vmatprep.subr.bf16.mxu0 0
    %4397 = vmatpush1.bf16.msra.mxu0 0
    %4398 = vmatprep.subr.bf16.mxu0 0
    %4399 = vmatpush1.bf16.msra.mxu0 0
    %4400 = vmatprep.subr.bf16.mxu0 0
    %4401 = vmatpush1.bf16.msra.mxu0 0
    %4402 = vmatprep.subr.bf16.mxu0 0
    %4403 = vmatpush1.bf16.msra.mxu0 0
    %4404 = vmatprep.subr.bf16.mxu0 0
    %4405 = vmatpush1.bf16.msra.mxu0 0
    %4406 = vmatprep.subr.bf16.mxu0 0
    %4407 = vmatpush1.bf16.msra.mxu0 0
    %4408 = vmatprep.mubr.bf16.mxu0 %v4371
    %4409 = vmatmul.mubr.bf16.gmra.mrb[0].mxu0 %v4302
    %v4410 = vpop.f32.mrb[0].mxu0
    %v4411 = vadd.f32 %v4314, %v4410
    %v4412 = vpop.f32.mrb[0].mxu0
    %v4413 = vpop.f32.mrb[0].mxu0
    %v4414 = vadd.f32 %v4314, %v4413
    %v4415 = vpop.f32.mrb[0].mxu0
    %4416 = vmatprep.mubr.bf16.mxu0 %v4374
    %4417 = vmatmul.mubr.bf16.gmra.mrb[0].mxu0 %v4304
    %v4418 = vpop.f32.mrb[0].mxu0
    %v4419 = vadd.f32 %v4314, %v4418
    %v4420 = vpop.f32.mrb[0].mxu0
    %v4421 = vpop.f32.mrb[0].mxu0
    %v4422 = vpop.f32.mrb[0].mxu0
    %4423 = vdwg.mxu0
    %v4424 = vsub.f32 %v4411, %v87
    %v4425 = vsub.f32 %v4414, %v88
    %v4426 = vsub.f32 %v4419, %v89
    %v4427 = vmul.f32 %v4424, %v4424
    %v4428 = vmul.f32 %v4425, %v4425
    %v4429 = vmul.f32 %v4426, %v4426
    %v4430 = vsel %vm554, %v4427, 0.0
    %v4431 = vsel %vm554, %v4428, 0.0
    %v4432 = vadd.f32 %v4430, %v4431
    %v4433 = vsel %vm554, %v4429, 0.0
    %v4434 = vadd.f32 %v4432, %v4433
    %4435 = vadd.xlane.f32.xlu0 %v4434
    %v4436 = vpop.xlane.xlu0 %4435
    %v4437 = vrot.slane %v4436, 4
    %v4438 = vadd.f32 %v4436, %v4437
    %v4439 = vrot.slane %v4438, 2
    %v4440 = vadd.f32 %v4438, %v4439
    %v4441 = vrot.slane %v4440, 1
    %v4442 = vadd.f32 %v4440, %v4441
    %s4443 = vtos %v4442
    %v4444 = vstv %s4443
    %vm4445 = vcmask 0
    %4446 = vst.msk [vmem:[#allocation3] sm:$0x1] %vm4445, %v4444
    // Predicated region
    $region106: #{forward.3} parent=1 // pred_check
      _
    $region107: #{forward.3} parent=1 // pred_check_branch
      %4448 = sbr.rel (0) target = $region109
    $region108: #{forward.3} parent=1 // pred_region
      %s4450 = ssub.s32 16, 16
      %4451 = vsyncadd [#allocation4], %s4450
      %s4453 = sshll.u32 [#allocation3], 4
      %s4454 = int_to_ptr.vmem [resolvable:$true] %s4453
      %4456 = dma.vmem_to_hbm [thread:$0]  %s4454, 16, %s26, [#allocation4]
    $region109: #{forward.3} parent=1 // pred_fallthru
      _
    // Predicated region
    $region110: #{forward.3} parent=1 // pred_check
      _
    $region111: #{forward.3} parent=1 // pred_check_branch
      %4458 = sbr.rel (0) target = $region113
    $region112: #{forward.3} parent=1 // pred_region
      %4459 = dma.done [#allocation4], 16
    $region113: #{forward.3} parent=1 // pred_fallthru
      _
    %4460 = vsyncpa [#allocation4], 1

</llo_original>
